<compile_context>
chip_gen: v7x
topology: tpu7x:2x2x1
jax: 0.10.0
libtpu: 0.0.40
codegen_flags: <defaults>
</compile_context>

<pallas_src>
import jax
import jax.numpy as jnp
from jax import lax
from jax.experimental import pallas as pl
from jax.experimental.pallas import tpu as pltpu

RANDOM_LAYER = 5   # deterministic choice of the split point
TILE_M = 256       # matmul row tile (multiple of 16 for bf16 packed sublanes)
TILE_N = 128       # lane-dense output block width


def _round_up(x, m):
    return (x + m - 1) // m * m


# ----------------------------------------------------------------------------
# Pallas kernel: (tile_m, Kp) x (Kp, 128) matmul + bias + ReLU, bf16 out
# ----------------------------------------------------------------------------
def _conv_matmul_kernel(p_ref, w_ref, b_ref, o_ref):
    # p_ref: (tile_m, Kp) bf16 patches, w_ref: (Kp, 128) bf16 weight column
    # block, b_ref: (1, 128) f32 bias, o_ref: (tile_m, 128) bf16.
    acc = jnp.dot(p_ref[...], w_ref[...], preferred_element_type=jnp.float32)
    acc = jnp.maximum(acc + b_ref[...], 0.0)       # bias (broadcast) + ReLU
    o_ref[...] = acc.astype(o_ref.dtype)           # bf16 lane-dense store


# ----------------------------------------------------------------------------
# Wrappers (glue: padding, im2col, pooling) -- all fused under jit
# ----------------------------------------------------------------------------
def matmul_bias_relu(patches, w_padded, b_padded):
    """patches: (M, K) bf16; w_padded: (Kp, Np) bf16 pre-padded/transposed;
    b_padded: (1, Np) f32.  Returns (M, Np) bf16 (channels kept 128-padded)."""
    M, K = patches.shape
    Kp, Np = w_padded.shape
    assert K <= Kp and Np % TILE_N == 0

    tile_m = TILE_M if M >= TILE_M else _round_up(M, 16)
    Mp = _round_up(M, tile_m)

    # Single zero-pad of M and K (padded weight K-rows are zero, so exact).
    if (Mp, Kp) != (M, K):
        patches = jnp.pad(patches, ((0, Mp - M), (0, Kp - K)))

    out = pl.pallas_call(
        _conv_matmul_kernel,
        out_shape=jax.ShapeDtypeStruct((Mp, Np), jnp.bfloat16),
        grid=(Mp // tile_m, Np // TILE_N),
        in_specs=[
            pl.BlockSpec((tile_m, Kp), lambda i, j: (i, 0)),   # patch rows
            pl.BlockSpec((Kp, TILE_N), lambda i, j: (0, j)),   # weight cols
            pl.BlockSpec((1, TILE_N), lambda i, j: (0, j)),    # bias cols
        ],
        out_specs=pl.BlockSpec((tile_m, TILE_N), lambda i, j: (i, j)),
        compiler_params=pltpu.CompilerParams(
            dimension_semantics=("parallel", "parallel")),
    )(patches, w_padded, b_padded)
    return out[:M]                                  # keep all Np lanes


def conv2d_relu(x_nhwc, w_padded, b_padded, kh, kw, stride, pad):
    """Conv2d + ReLU via bf16 im2col + tiled Pallas matmul.
    x: (N,H,W,C) bf16 (C may already be the 128-padded channel count);
    w_padded: (Kp, Np) bf16 with (kh, kw, C) row order.
    Returns (N, OH, OW, Np) bf16 with channels kept 128-padded."""
    N, H, W, C = x_nhwc.shape
    xp = jnp.pad(x_nhwc, ((0, 0), (pad, pad), (pad, pad), (0, 0)))
    OH = (H + 2 * pad - kh) // stride + 1
    OW = (W + 2 * pad - kw) // stride + 1

    # im2col with (kh, kw, C) flattening order (matches weight prep below).
    cols = []
    for i in range(kh):
        for j in range(kw):
            cols.append(
                xp[:, i:i + stride * OH:stride, j:j + stride * OW:stride, :])
    patches = jnp.stack(cols, axis=3)                 # (N, OH, OW, kh*kw, C)
    patches = patches.reshape(N * OH * OW, kh * kw * C)

    out = matmul_bias_relu(patches, w_padded, b_padded)
    Np = w_padded.shape[1]
    return out.reshape(N, OH, OW, Np)


def maxpool2d(x_nhwc, k, stride):
    """MaxPool2d(k, stride, padding=0) -- plain XLA glue (fused under jit).
    bf16 max is exact; padded channel lanes stay zero and are sliced later."""
    return lax.reduce_window(
        x_nhwc, jnp.array(-jnp.inf, x_nhwc.dtype), lax.max,
        (1, k, k, 1), (1, stride, stride, 1), "VALID")


# ----------------------------------------------------------------------------
# HeadNet: AlexNet layers [0 : RANDOM_LAYER + 1]
# ----------------------------------------------------------------------------
def init_headnet_params(key):
    k0, k1, k2, k3 = jax.random.split(key, 4)
    return {
        # Conv2d(3, 64, kernel_size=11, stride=4, padding=2)
        "w0": jax.random.normal(k0, (64, 3, 11, 11), jnp.float32) * 0.05,
        "b0": jax.random.normal(k1, (64,), jnp.float32) * 0.05,
        # Conv2d(64, 192, kernel_size=5, stride=1, padding=2)
        "w1": jax.random.normal(k2, (192, 64, 5, 5), jnp.float32) * 0.02,
        "b1": jax.random.normal(k3, (192,), jnp.float32) * 0.02,
    }


def prepare_params(params):
    """One-time weight prep: transpose to (kh*kw*cin_padded, cout), pad to
    MXU-friendly (Kp, Np), cast to bf16; pad bias to (1, Np) f32.
    conv2's input-channel axis is padded to 128 (zero rows) so the 128-padded
    activation layout can flow straight into its im2col."""
    def prep_w(w_oihw, cin_pad=None):
        cout, cin, kh, kw = w_oihw.shape
        cin_p = cin if cin_pad is None else cin_pad
        K = kh * kw * cin_p
        Kp, Np = _round_up(K, 128), _round_up(cout, 128)
        w_t = jnp.transpose(w_oihw, (2, 3, 1, 0))             # (kh,kw,cin,cout)
        w_full = jnp.zeros((kh, kw, cin_p, cout), jnp.float32
                           ).at[:, :, :cin, :].set(w_t)
        w2d = w_full.reshape(K, cout)
        return jnp.zeros((Kp, Np), jnp.bfloat16).at[:K, :cout].set(
            w2d.astype(jnp.bfloat16))

    def prep_b(b):
        n = b.shape[0]
        return jnp.zeros((1, _round_up(n, 128)), jnp.float32).at[0, :n].set(b)

    return {
        "w0": prep_w(params["w0"]), "b0": prep_b(params["b0"]),
        "w1": prep_w(params["w1"], cin_pad=128), "b1": prep_b(params["b1"]),
    }


@jax.jit
def headnet_forward(prepped, x_nchw):
    """Forward of HeadNet(layers_of_network, random_layer=5). Input: NCHW f32."""
    x = jnp.transpose(x_nchw, (0, 2, 3, 1)).astype(jnp.bfloat16)  # NHWC bf16
    # layer 0+1: Conv2d(3,64,11,4,2) + ReLU (fused)    -> (N,15,15,128) bf16
    x = conv2d_relu(x, prepped["w0"], prepped["b0"], kh=11, kw=11, stride=4,
                    pad=2)
    # layer 2: MaxPool2d(3,2)                          -> (N, 7, 7,128) bf16
    x = maxpool2d(x, k=3, stride=2)
    # layer 3+4: Conv2d(64,192,5,1,2) + ReLU (fused)   -> (N, 7, 7,256) bf16
    x = conv2d_relu(x, prepped["w1"], prepped["b1"], kh=5, kw=5, stride=1,
                    pad=2)
    # layer 5: MaxPool2d(3,2)                          -> (N, 3, 3,256) bf16
    x = maxpool2d(x, k=3, stride=2)
    # Drop channel padding only at the very end; return f32 NCHW like PyTorch.
    x = x[..., :192].astype(jnp.float32)
    return jnp.transpose(x, (0, 3, 1, 2))


@jax.jit
def headnet_reference(params, x_nchw):
    """Pure-JAX reference (lax.conv / reduce_window) mirroring the bf16
    activation/operand precision of the Pallas path so tolerances stay tight."""
    x = jnp.transpose(x_nchw, (0, 2, 3, 1)).astype(jnp.float32)

    def conv_relu(x, w, b, stride, pad):
        xq = x.astype(jnp.bfloat16)
        wq = jnp.transpose(w, (2, 3, 1, 0)).astype(jnp.bfloat16)  # HWIO
        y = lax.conv_general_dilated(
            xq, wq, window_strides=(stride, stride),
            padding=[(pad, pad), (pad, pad)],
            dimension_numbers=("NHWC", "HWIO", "NHWC"),
            preferred_element_type=jnp.float32)
        y = jnp.maximum(y + b, 0.0)
        return y.astype(jnp.bfloat16).astype(jnp.float32)  # bf16 activations

    def pool(x):
        return lax.reduce_window(
            x, jnp.array(-jnp.inf, x.dtype), lax.max,
            (1, 3, 3, 1), (1, 2, 2, 1), "VALID")

    x = conv_relu(x, params["w0"], params["b0"], 4, 2)
    x = pool(x)
    x = conv_relu(x, params["w1"], params["b1"], 1, 2)
    x = pool(x)
    return jnp.transpose(x, (0, 3, 1, 2))


if __name__ == "__main__":
    key = jax.random.PRNGKey(0)
    pkey, xkey = jax.random.split(key)
    params = init_headnet_params(pkey)
    prepped = prepare_params(params)   # one-time weight transpose/pad/bf16 cast

    # Small input consistent with the AlexNet head: NCHW, batch=2, 3x63x63.
    x = jax.random.normal(xkey, (2, 3, 63, 63), jnp.float32)

    out = jax.block_until_ready(headnet_forward(prepped, x))
    ref = jax.block_until_ready(headnet_reference(params, x))

    assert out.shape == ref.shape, (out.shape, ref.shape)
    # bf16 MXU operands / bf16 activations (f32 accumulate) on both sides.
    assert jnp.allclose(out, ref, atol=2e-2, rtol=2e-2), "mismatch vs reference"

    print("KERNEL_OK")
</pallas_src>

<mosaic_0001>
module attributes {stable_mosaic.version = 11 : i64} {
  func.func @_conv_matmul_kernel(%arg0: i32, %arg1: i32, %arg2: memref<256x384xbf16, #tpu.memory_space<vmem>>, %arg3: memref<384x128xbf16, #tpu.memory_space<vmem>>, %arg4: memref<1x128xf32, #tpu.memory_space<vmem>>, %arg5: memref<256x128xbf16, #tpu.memory_space<vmem>>) attributes {dimension_semantics = [#tpu.dimension_semantics<parallel>, #tpu.dimension_semantics<parallel>], iteration_bounds = array<i64: 2, 1>, scalar_prefetch = 0 : i64, scratch_operands = 0 : i64, tpu.core_type = #tpu.core_type<tc>, window_params = [{transform_indices = @transform_0, window_bounds = array<i64: 256, 384>}, {transform_indices = @transform_1, window_bounds = array<i64: 384, 128>}, {transform_indices = @transform_2, window_bounds = array<i64: 1, 128>}, {transform_indices = @transform_3, window_bounds = array<i64: 256, 128>}]} {
    %c0 = arith.constant 0 : index
    %c0_0 = arith.constant 0 : index
    %0 = vector.load %arg2[%c0, %c0_0] : memref<256x384xbf16, #tpu.memory_space<vmem>>, vector<256x384xbf16>
    %c0_1 = arith.constant 0 : index
    %c0_2 = arith.constant 0 : index
    %1 = vector.load %arg3[%c0_1, %c0_2] : memref<384x128xbf16, #tpu.memory_space<vmem>>, vector<384x128xbf16>
    %cst = arith.constant dense<0.000000e+00> : vector<256x128xf32>
    %2 = tpu.matmul %0, %1, %cst {dimension_numbers = #tpu.dot_dimension_numbers<[1], [0], [0], [1], [0, 0, 1, 1], [], []>} : vector<256x384xbf16>, vector<384x128xbf16>, vector<256x128xf32> -> vector<256x128xf32>
    %c0_3 = arith.constant 0 : index
    %c0_4 = arith.constant 0 : index
    %3 = vector.load %arg4[%c0_3, %c0_4] : memref<1x128xf32, #tpu.memory_space<vmem>>, vector<1x128xf32>
    %4 = vector.broadcast %3 : vector<1x128xf32> to vector<256x128xf32>
    %5 = arith.addf %2, %4 : vector<256x128xf32>
    %cst_5 = arith.constant 0.000000e+00 : f32
    %6 = vector.broadcast %cst_5 : f32 to vector<256x128xf32>
    %7 = arith.maximumf %5, %6 : vector<256x128xf32>
    %8 = arith.truncf %7 : vector<256x128xf32> to vector<256x128xbf16>
    %c0_6 = arith.constant 0 : index
    %c0_7 = arith.constant 0 : index
    %9 = vector.load %arg5[%c0_6, %c0_7] : memref<256x128xbf16, #tpu.memory_space<vmem>>, vector<256x128xbf16>
    tpu.vector_store %arg5[%c0_6, %c0_7], %8 {strides = array<i32>} : memref<256x128xbf16, #tpu.memory_space<vmem>>, vector<256x128xbf16>,
    return
  }
  func.func @transform_0(%arg0: i32, %arg1: i32) -> (i32, i32) {
    %c0_i32 = arith.constant 0 : i32
    %c0_i32_0 = arith.constant 0 : i32
    return %arg0, %c0_i32 : i32, i32
  }
  func.func @transform_1(%arg0: i32, %arg1: i32) -> (i32, i32) {
    %c0_i32 = arith.constant 0 : i32
    %c0_i32_0 = arith.constant 0 : i32
    return %c0_i32, %arg1 : i32, i32
  }
  func.func @transform_2(%arg0: i32, %arg1: i32) -> (i32, i32) {
    %c0_i32 = arith.constant 0 : i32
    %c0_i32_0 = arith.constant 0 : i32
    return %c0_i32, %arg1 : i32, i32
  }
  func.func @transform_3(%arg0: i32, %arg1: i32) -> (i32, i32) {
    %c0_i32 = arith.constant 0 : i32
    return %arg0, %arg1 : i32, i32
  }
}

module attributes {stable_mosaic.version = 11 : i64} {
  func.func @_conv_matmul_kernel(%arg0: i32, %arg1: i32, %arg2: memref<112x3200xbf16, #tpu.memory_space<vmem>>, %arg3: memref<3200x128xbf16, #tpu.memory_space<vmem>>, %arg4: memref<1x128xf32, #tpu.memory_space<vmem>>, %arg5: memref<112x128xbf16, #tpu.memory_space<vmem>>) attributes {dimension_semantics = [#tpu.dimension_semantics<parallel>, #tpu.dimension_semantics<parallel>], iteration_bounds = array<i64: 1, 2>, scalar_prefetch = 0 : i64, scratch_operands = 0 : i64, tpu.core_type = #tpu.core_type<tc>, window_params = [{transform_indices = @transform_0, window_bounds = array<i64: 112, 3200>}, {transform_indices = @transform_1, window_bounds = array<i64: 3200, 128>}, {transform_indices = @transform_2, window_bounds = array<i64: 1, 128>}, {transform_indices = @transform_3, window_bounds = array<i64: 112, 128>}]} {
    %c0 = arith.constant 0 : index
    %c0_0 = arith.constant 0 : index
    %0 = vector.load %arg2[%c0, %c0_0] : memref<112x3200xbf16, #tpu.memory_space<vmem>>, vector<112x3200xbf16>
    %c0_1 = arith.constant 0 : index
    %c0_2 = arith.constant 0 : index
    %1 = vector.load %arg3[%c0_1, %c0_2] : memref<3200x128xbf16, #tpu.memory_space<vmem>>, vector<3200x128xbf16>
    %cst = arith.constant dense<0.000000e+00> : vector<112x128xf32>
    %2 = tpu.matmul %0, %1, %cst {dimension_numbers = #tpu.dot_dimension_numbers<[1], [0], [0], [1], [0, 0, 1, 1], [], []>} : vector<112x3200xbf16>, vector<3200x128xbf16>, vector<112x128xf32> -> vector<112x128xf32>
    %c0_3 = arith.constant 0 : index
    %c0_4 = arith.constant 0 : index
    %3 = vector.load %arg4[%c0_3, %c0_4] : memref<1x128xf32, #tpu.memory_space<vmem>>, vector<1x128xf32>
    %4 = vector.broadcast %3 : vector<1x128xf32> to vector<112x128xf32>
    %5 = arith.addf %2, %4 : vector<112x128xf32>
    %cst_5 = arith.constant 0.000000e+00 : f32
    %6 = vector.broadcast %cst_5 : f32 to vector<112x128xf32>
    %7 = arith.maximumf %5, %6 : vector<112x128xf32>
    %8 = arith.truncf %7 : vector<112x128xf32> to vector<112x128xbf16>
    %c0_6 = arith.constant 0 : index
    %c0_7 = arith.constant 0 : index
    %9 = vector.load %arg5[%c0_6, %c0_7] : memref<112x128xbf16, #tpu.memory_space<vmem>>, vector<112x128xbf16>
    tpu.vector_store %arg5[%c0_6, %c0_7], %8 {strides = array<i32>} : memref<112x128xbf16, #tpu.memory_space<vmem>>, vector<112x128xbf16>,
    return
  }
  func.func @transform_0(%arg0: i32, %arg1: i32) -> (i32, i32) {
    %c0_i32 = arith.constant 0 : i32
    %c0_i32_0 = arith.constant 0 : i32
    return %arg0, %c0_i32 : i32, i32
  }
  func.func @transform_1(%arg0: i32, %arg1: i32) -> (i32, i32) {
    %c0_i32 = arith.constant 0 : i32
    %c0_i32_0 = arith.constant 0 : i32
    return %c0_i32, %arg1 : i32, i32
  }
  func.func @transform_2(%arg0: i32, %arg1: i32) -> (i32, i32) {
    %c0_i32 = arith.constant 0 : i32
    %c0_i32_0 = arith.constant 0 : i32
    return %c0_i32, %arg1 : i32, i32
  }
  func.func @transform_3(%arg0: i32, %arg1: i32) -> (i32, i32) {
    %c0_i32 = arith.constant 0 : i32
    return %arg0, %arg1 : i32, i32
  }
}

</mosaic_0001>

<llo_original>
// kernel: headnet_forward.2
$region0: #{headnet_forward.2}
  #allocation0 [shape = 'u32[]', space=smem, size = 0x4, offset = 0x4, fixed_abs, tag = 'smem constant byte address 0x4 - core index']
  #allocation1 [shape = 'u32[144,128]{1,0:T(1,128)}', space=vmem, size = 0x12000, scoped, tag = 'internal scratch']
  %s0 = inlined_call_operand.vmem [shape: bf16[512,384], index: 0, kind: input, shape index: {}]
  %s1 = inlined_call_operand.vmem [shape: bf16[384,128], index: 1, kind: input, shape index: {}]
  %s2 = inlined_call_operand.vmem [shape: f32[1,128], index: 2, kind: input, shape index: {}]
  %s3 = inlined_call_operand.vmem [shape: bf16[512,128], index: 3, kind: output, shape index: {}]
  %s4 = sld [smem:[#allocation0]]
  $region45: #{headnet_forward.2} parent=0
    _
  %s6 = ssub.s32 1, %s4
  %s7 = scalar_select 0, %s6, %s4
  loop: start=0, step=1, limit=4
  $region2: #{headnet_forward.2} parent=0 // loop_pre_header
    _
  $region3: #{headnet_forward.2} parent=0 // loop_header
    %s9 = sphi 0, %s13
    %p10 = scmp.ge.s32.totalorder %s9, 4
    %s16 = sphi 0, %s28
    %s17 = sphi 0, %s24
    %s18 = sphi 0, %s16
    %s19 = sphi 0, %s17
    %s20 = sphi 0, %s18
    %s21 = sphi 0, %s19
    %s31 = sphi 0, %s33
    %s34 = sphi 0, %s31
    %s35 = sphi 0, %s34
    %s51 = sphi 0, %s35
    %s57 = sphi 0, %s59
    %s60 = sphi 0, %s57
    %s61 = sphi 0, %s60
    %s77 = sphi 0, %s61
    %s83 = sphi 0, %s85
    %s86 = sphi 0, %s83
    %s87 = sphi 0, %s86
    %s103 = sphi 0, %s87
    %s111 = sphi 0, %s113
    %s114 = sphi 0, %s111
    %s115 = sphi 0, %s114
    %s131 = sphi 0, %s115
  $region4: #{headnet_forward.2} parent=0 // loop_header_branch
    %12 = sbr.rel (%p10) target = $region8
  $region5: #{headnet_forward.2} parent=0 // loop_body
    %s14 = ssub.s32 %s9, 1
    %s15 = ssub.s32 %s9, 2
    %s22 = sadd.s32 1, %s17
    %p23 = scmp.ge.s32.totalorder %s22, 1
    %s24 = scalar_select %p23, 0, %s22
    %s25 = sadd.s32 1, %s16
    %s26 = scalar_select %p23, %s25, %s16
    %p27 = scmp.ge.s32.totalorder %s26, 2
    %s28 = scalar_select %p27, 0, %s26
    %s29 = ssub.s32 %s16, %s28
    %p30 = scmp.eq.s32.totalorder %s29, 0
    %s32 = sadd.s32 %s31, 1
    %s33 = scalar_select %p30, %s31, %s32
    %p36 = pneg %p30
    %p37 = scmp.eq.s32.totalorder %s9, 1
    %p38 = por %p36, %p37
    %p39 = scmp.ne.s32.totalorder %s31, %s34
    %p40 = scmp.eq.s32.totalorder %s9, 0
    %p41 = por %p39, %p40
    %p42 = scmp.ne.s32.totalorder %s31, %s34
    %p43 = scmp.eq.s32.totalorder %s14, 1
    %p44 = por %p42, %p43
    %p45 = scmp.ne.s32.totalorder %s34, %s35
    %p46 = scmp.eq.s32.totalorder %s14, 0
    %p47 = por %p45, %p46
    %p48 = scmp.ne.s32.totalorder %s34, %s35
    %p49 = scmp.eq.s32.totalorder %s15, 1
    %p50 = por %p48, %p49
    %p52 = scmp.ne.s32.totalorder %s35, %s51
    %p53 = scmp.eq.s32.totalorder %s15, 0
    %p54 = por %p52, %p53
    %s55 = ssub.s32 %s17, %s24
    %p56 = scmp.eq.s32.totalorder %s55, 0
    %s58 = sadd.s32 %s57, 1
    %s59 = scalar_select %p56, %s57, %s58
    %p62 = pneg %p56
    %p63 = scmp.eq.s32.totalorder %s9, 1
    %p64 = por %p62, %p63
    %p65 = scmp.ne.s32.totalorder %s57, %s60
    %p66 = scmp.eq.s32.totalorder %s9, 0
    %p67 = por %p65, %p66
    %p68 = scmp.ne.s32.totalorder %s57, %s60
    %p69 = scmp.eq.s32.totalorder %s14, 1
    %p70 = por %p68, %p69
    %p71 = scmp.ne.s32.totalorder %s60, %s61
    %p72 = scmp.eq.s32.totalorder %s14, 0
    %p73 = por %p71, %p72
    %p74 = scmp.ne.s32.totalorder %s60, %s61
    %p75 = scmp.eq.s32.totalorder %s15, 1
    %p76 = por %p74, %p75
    %p78 = scmp.ne.s32.totalorder %s61, %s77
    %p79 = scmp.eq.s32.totalorder %s15, 0
    %p80 = por %p78, %p79
    %s81 = ssub.s32 %s17, %s24
    %p82 = scmp.eq.s32.totalorder %s81, 0
    %s84 = sadd.s32 %s83, 1
    %s85 = scalar_select %p82, %s83, %s84
    %p88 = pneg %p82
    %p89 = scmp.eq.s32.totalorder %s9, 1
    %p90 = por %p88, %p89
    %p91 = scmp.ne.s32.totalorder %s83, %s86
    %p92 = scmp.eq.s32.totalorder %s9, 0
    %p93 = por %p91, %p92
    %p94 = scmp.ne.s32.totalorder %s83, %s86
    %p95 = scmp.eq.s32.totalorder %s14, 1
    %p96 = por %p94, %p95
    %p97 = scmp.ne.s32.totalorder %s86, %s87
    %p98 = scmp.eq.s32.totalorder %s14, 0
    %p99 = por %p97, %p98
    %p100 = scmp.ne.s32.totalorder %s86, %s87
    %p101 = scmp.eq.s32.totalorder %s15, 1
    %p102 = por %p100, %p101
    %p104 = scmp.ne.s32.totalorder %s87, %s103
    %p105 = scmp.eq.s32.totalorder %s15, 0
    %p106 = por %p104, %p105
    %s107 = ssub.s32 %s16, %s28
    %s108 = ssub.s32 %s17, %s24
    %s109 = sor.u32 %s107, %s108
    %p110 = scmp.eq.s32.totalorder %s109, 0
    %s112 = sadd.s32 %s111, 1
    %s113 = scalar_select %p110, %s111, %s112
    %p116 = pneg %p110
    %p117 = scmp.eq.s32.totalorder %s9, 1
    %p118 = por %p116, %p117
    %p119 = scmp.ne.s32.totalorder %s111, %s114
    %p120 = scmp.eq.s32.totalorder %s9, 0
    %p121 = por %p119, %p120
    %p122 = scmp.ne.s32.totalorder %s111, %s114
    %p123 = scmp.eq.s32.totalorder %s14, 1
    %p124 = por %p122, %p123
    %p125 = scmp.ne.s32.totalorder %s114, %s115
    %p126 = scmp.eq.s32.totalorder %s14, 0
    %p127 = por %p125, %p126
    %p128 = scmp.ne.s32.totalorder %s114, %s115
    %p129 = scmp.eq.s32.totalorder %s15, 1
    %p130 = por %p128, %p129
    %p132 = scmp.ne.s32.totalorder %s115, %s131
    %p133 = scmp.eq.s32.totalorder %s15, 0
    %p134 = por %p132, %p133
    %p135 = scmp.le.s32.totalorder 1, %s9
    %p136 = scmp.lt.s32.totalorder %s9, 3
    %p137 = pnand %p135, %p136
    %p138 = pneg %p137
    // Predicated region
    $region9: #{headnet_forward.2} parent=5 // pred_check
      _
    $region10: #{headnet_forward.2} parent=5 // pred_check_branch
      %140 = sbr.rel (%p137) target = $region12
    $region11: #{headnet_forward.2} parent=5 // pred_region
      %s141 = ssub.s32 %s9, 1
      // Predicated region
      $region13: #{headnet_forward.2} parent=11 // pred_check
        %p142 = pneg %p73
      $region14: #{headnet_forward.2} parent=11 // pred_check_branch
        %144 = sbr.rel (%p142) target = $region16
      $region15: #{headnet_forward.2} parent=11 // pred_region
        %p145 = scmp.lt.s32.totalorder %s19, 0
        %s146 = scalar_select %p145, %s19, 0
        %s147 = smul.addr %s146, 4
        %s148 = scalar_lea.vmem %s1, %s147
      $region16: #{headnet_forward.2} parent=11 // pred_fallthru
        _
      // Predicated region
      $region17: #{headnet_forward.2} parent=11 // pred_check
        %p149 = pneg %p99
      $region18: #{headnet_forward.2} parent=11 // pred_check_branch
        %151 = sbr.rel (%p149) target = $region20
      $region19: #{headnet_forward.2} parent=11 // pred_region
        %p152 = scmp.lt.s32.totalorder %s19, 0
        %s153 = scalar_select %p152, %s19, 0
        %s154 = scalar_lea.vmem %s2, %s153
      $region20: #{headnet_forward.2} parent=11 // pred_fallthru
        _
    $region12: #{headnet_forward.2} parent=5 // pred_fallthru
      _
    %p155 = scmp.lt.s32.totalorder %s9, 2
    // Predicated region
    $region21: #{headnet_forward.2} parent=5 // pred_check
      %p156 = pneg %p155
    $region22: #{headnet_forward.2} parent=5 // pred_check_branch
      %158 = sbr.rel (%p156) target = $region24
    $region23: #{headnet_forward.2} parent=5 // pred_region
      // Predicated region
      $region25: #{headnet_forward.2} parent=23 // pred_check
        %p159 = pneg %p41
      $region26: #{headnet_forward.2} parent=23 // pred_check_branch
        %161 = sbr.rel (%p159) target = $region28
      $region27: #{headnet_forward.2} parent=23 // pred_region
        %s162 = smul.u32 32, %s16
        %p163 = scmp.lt.s32.totalorder %s162, 63
        %s164 = scalar_select %p163, %s162, 63
        %s165 = smul.addr %s164, 3
        %s166 = smul.addr %s165, 4
        %s167 = scalar_lea.vmem %s0, %s166
        %s168 = smul.u32 32, %s16
      $region28: #{headnet_forward.2} parent=23 // pred_fallthru
        _
    $region24: #{headnet_forward.2} parent=5 // pred_fallthru
      _
    %p169 = scmp.le.s32.totalorder 1, %s9
    %p170 = scmp.lt.s32.totalorder %s9, 3
    %p171 = pnand %p169, %p170
    %p172 = pneg %p171
    // Predicated region
    $region29: #{headnet_forward.2} parent=5 // pred_check
      _
    $region30: #{headnet_forward.2} parent=5 // pred_check_branch
      %174 = sbr.rel (%p171) target = $region32
    $region31: #{headnet_forward.2} parent=5 // pred_region
      %s175 = ssub.s32 %s9, 1
      %s176 = smul.u32 32, %s18
      %p177 = scmp.lt.s32.totalorder %s176, 63
      %s178 = scalar_select %p177, %s176, 63
      %s179 = smul.addr %s178, 3
      %s180 = smul.addr %s179, 4
      %s181 = scalar_lea.vmem %s0, %s180
      %p182 = pneg %p47
      %p183 = pneg %p44
      %p184 = scmp.lt.s32.totalorder %s19, 0
      %s185 = scalar_select %p184, %s19, 0
      %s186 = smul.addr %s185, 4
      %s187 = scalar_lea.vmem %s1, %s186
      %p188 = pneg %p73
      %p189 = pneg %p70
      %p190 = scmp.lt.s32.totalorder %s19, 0
      %s191 = scalar_select %p190, %s19, 0
      %s192 = scalar_lea.vmem %s2, %s191
      %p193 = pneg %p99
      %p194 = pneg %p96
      %p195 = pneg %p127
      %p196 = pneg %p124
      %s197 = smul.u32 32, %s18
      %p198 = scmp.lt.s32.totalorder %s197, 63
      %s199 = scalar_select %p198, %s197, 63
      %p200 = scmp.lt.s32.totalorder %s19, 0
      %s201 = scalar_select %p200, %s19, 0
      %s202 = sadd.s32 %s201, %s199
      %s203 = smul.addr %s202, 4
      %s204 = scalar_lea.vmem %s3, %s203
      %s205 = smul.u32 32, %s18
      %p206 = scmp.lt.s32.totalorder %s205, 63
      %s207 = scalar_select %p206, %s205, 63
      %s208 = smul.addr %s207, 3
      %s209 = smul.addr %s208, 4
      %s210 = scalar_lea.vmem %s0, %s209
      %s211 = smul.u32 32, %s18
      %p212 = scmp.lt.s32.totalorder %s19, 0
      %s213 = scalar_select %p212, %s19, 0
      %s214 = smul.addr %s213, 4
      %s215 = scalar_lea.vmem %s1, %s214
      %p216 = scmp.lt.s32.totalorder %s19, 0
      %s217 = scalar_select %p216, %s19, 0
      %s218 = scalar_lea.vmem %s2, %s217
      %s219 = smul.u32 32, %s18
      %p220 = scmp.lt.s32.totalorder %s219, 63
      %s221 = scalar_select %p220, %s219, 63
      %p222 = scmp.lt.s32.totalorder %s19, 0
      %s223 = scalar_select %p222, %s19, 0
      %s224 = sadd.s32 %s223, %s221
      %s225 = smul.addr %s224, 4
      %s226 = scalar_lea.vmem %s3, %s225
      %s227 = smul.u32 32, %s18
      %v229 = vld [vmem:[%s210] sm:$0xff]
      %v230 = vld [vmem:[%s210 + $0x8] sm:$0xf]
      %v231 = vld [vmem:[%s210 + $0xc] sm:$0xff]
      %v232 = vld [vmem:[%s210 + $0x14] sm:$0xf]
      %v233 = vld [vmem:[%s210 + $0x18] sm:$0xff]
      %v234 = vld [vmem:[%s210 + $0x20] sm:$0xf]
      %v235 = vld [vmem:[%s210 + $0x24] sm:$0xff]
      %v236 = vld [vmem:[%s210 + $0x2c] sm:$0xf]
      %v237 = vld [vmem:[%s210 + $0x30] sm:$0xff]
      %v238 = vld [vmem:[%s210 + $0x38] sm:$0xf]
      %v239 = vld [vmem:[%s210 + $0x3c] sm:$0xff]
      %v240 = vld [vmem:[%s210 + $0x44] sm:$0xf]
      %v241 = vld [vmem:[%s210 + $0x48] sm:$0xff]
      %v242 = vld [vmem:[%s210 + $0x50] sm:$0xf]
      %v243 = vld [vmem:[%s210 + $0x54] sm:$0xff]
      %v244 = vld [vmem:[%s210 + $0x5c] sm:$0xf]
      %v245 = vld [vmem:[%s210 + $0x60] sm:$0xff]
      %v246 = vld [vmem:[%s210 + $0x68] sm:$0xf]
      %v247 = vld [vmem:[%s210 + $0x6c] sm:$0xff]
      %v248 = vld [vmem:[%s210 + $0x74] sm:$0xf]
      %v249 = vld [vmem:[%s210 + $0x78] sm:$0xff]
      %v250 = vld [vmem:[%s210 + $0x80] sm:$0xf]
      %v251 = vld [vmem:[%s210 + $0x84] sm:$0xff]
      %v252 = vld [vmem:[%s210 + $0x8c] sm:$0xf]
      %v253 = vld [vmem:[%s210 + $0x90] sm:$0xff]
      %v254 = vld [vmem:[%s210 + $0x98] sm:$0xf]
      %v255 = vld [vmem:[%s210 + $0x9c] sm:$0xff]
      %v256 = vld [vmem:[%s210 + $0xa4] sm:$0xf]
      %v257 = vld [vmem:[%s210 + $0xa8] sm:$0xff]
      %v258 = vld [vmem:[%s210 + $0xb0] sm:$0xf]
      %v259 = vld [vmem:[%s210 + $0xb4] sm:$0xff]
      %v260 = vld [vmem:[%s210 + $0xbc] sm:$0xf]
      %v261 = vld [vmem:[%s210 + $0xc0] sm:$0xff]
      %v262 = vld [vmem:[%s210 + $0xc8] sm:$0xf]
      %v263 = vld [vmem:[%s210 + $0xcc] sm:$0xff]
      %v264 = vld [vmem:[%s210 + $0xd4] sm:$0xf]
      %v265 = vld [vmem:[%s210 + $0xd8] sm:$0xff]
      %v266 = vld [vmem:[%s210 + $0xe0] sm:$0xf]
      %v267 = vld [vmem:[%s210 + $0xe4] sm:$0xff]
      %v268 = vld [vmem:[%s210 + $0xec] sm:$0xf]
      %v269 = vld [vmem:[%s210 + $0xf0] sm:$0xff]
      %v270 = vld [vmem:[%s210 + $0xf8] sm:$0xf]
      %v271 = vld [vmem:[%s210 + $0xfc] sm:$0xff]
      %v272 = vld [vmem:[%s210 + $0x104] sm:$0xf]
      %v273 = vld [vmem:[%s210 + $0x108] sm:$0xff]
      %v274 = vld [vmem:[%s210 + $0x110] sm:$0xf]
      %v275 = vld [vmem:[%s210 + $0x114] sm:$0xff]
      %v276 = vld [vmem:[%s210 + $0x11c] sm:$0xf]
      %v277 = vld [vmem:[%s210 + $0x120] sm:$0xff]
      %v278 = vld [vmem:[%s210 + $0x128] sm:$0xf]
      %v279 = vld [vmem:[%s210 + $0x12c] sm:$0xff]
      %v280 = vld [vmem:[%s210 + $0x134] sm:$0xf]
      %v281 = vld [vmem:[%s210 + $0x138] sm:$0xff]
      %v282 = vld [vmem:[%s210 + $0x140] sm:$0xf]
      %v283 = vld [vmem:[%s210 + $0x144] sm:$0xff]
      %v284 = vld [vmem:[%s210 + $0x14c] sm:$0xf]
      %v285 = vld [vmem:[%s210 + $0x150] sm:$0xff]
      %v286 = vld [vmem:[%s210 + $0x158] sm:$0xf]
      %v287 = vld [vmem:[%s210 + $0x15c] sm:$0xff]
      %v288 = vld [vmem:[%s210 + $0x164] sm:$0xf]
      %v289 = vld [vmem:[%s210 + $0x168] sm:$0xff]
      %v290 = vld [vmem:[%s210 + $0x170] sm:$0xf]
      %v291 = vld [vmem:[%s210 + $0x174] sm:$0xff]
      %v292 = vld [vmem:[%s210 + $0x17c] sm:$0xf]
      %v293 = vld [vmem:[%s215] sm:$0xf]
      %v294 = vld [vmem:[%s215 + $0x4] sm:$0xf]
      %v295 = vld [vmem:[%s215 + $0x8] sm:$0xf]
      %v296 = vld [vmem:[%s215 + $0xc] sm:$0xf]
      %v297 = vld [vmem:[%s215 + $0x10] sm:$0xf]
      %v298 = vld [vmem:[%s215 + $0x14] sm:$0xf]
      %v299 = vld [vmem:[%s215 + $0x18] sm:$0xf]
      %v300 = vld [vmem:[%s215 + $0x1c] sm:$0xf]
      %v301 = vld [vmem:[%s215 + $0x20] sm:$0xf]
      %v302 = vld [vmem:[%s215 + $0x24] sm:$0xf]
      %v303 = vld [vmem:[%s215 + $0x28] sm:$0xf]
      %v304 = vld [vmem:[%s215 + $0x2c] sm:$0xf]
      %v305 = vld [vmem:[%s215 + $0x30] sm:$0xf]
      %v306 = vld [vmem:[%s215 + $0x34] sm:$0xf]
      %v307 = vld [vmem:[%s215 + $0x38] sm:$0xf]
      %v308 = vld [vmem:[%s215 + $0x3c] sm:$0xf]
      %v309 = vld [vmem:[%s215 + $0x40] sm:$0xf]
      %v310 = vld [vmem:[%s215 + $0x44] sm:$0xf]
      %v311 = vld [vmem:[%s215 + $0x48] sm:$0xf]
      %v312 = vld [vmem:[%s215 + $0x4c] sm:$0xf]
      %v313 = vld [vmem:[%s215 + $0x50] sm:$0xf]
      %v314 = vld [vmem:[%s215 + $0x54] sm:$0xf]
      %v315 = vld [vmem:[%s215 + $0x58] sm:$0xf]
      %v316 = vld [vmem:[%s215 + $0x5c] sm:$0xf]
      %v317 = vld [vmem:[%s215 + $0x60] sm:$0xf]
      %v318 = vld [vmem:[%s215 + $0x64] sm:$0xf]
      %v319 = vld [vmem:[%s215 + $0x68] sm:$0xf]
      %v320 = vld [vmem:[%s215 + $0x6c] sm:$0xf]
      %v321 = vld [vmem:[%s215 + $0x70] sm:$0xf]
      %v322 = vld [vmem:[%s215 + $0x74] sm:$0xf]
      %v323 = vld [vmem:[%s215 + $0x78] sm:$0xf]
      %v324 = vld [vmem:[%s215 + $0x7c] sm:$0xf]
      %v325 = vld [vmem:[%s215 + $0x80] sm:$0xf]
      %v326 = vld [vmem:[%s215 + $0x84] sm:$0xf]
      %v327 = vld [vmem:[%s215 + $0x88] sm:$0xf]
      %v328 = vld [vmem:[%s215 + $0x8c] sm:$0xf]
      %v329 = vld [vmem:[%s215 + $0x90] sm:$0xf]
      %v330 = vld [vmem:[%s215 + $0x94] sm:$0xf]
      %v331 = vld [vmem:[%s215 + $0x98] sm:$0xf]
      %v332 = vld [vmem:[%s215 + $0x9c] sm:$0xf]
      %v333 = vld [vmem:[%s215 + $0xa0] sm:$0xf]
      %v334 = vld [vmem:[%s215 + $0xa4] sm:$0xf]
      %v335 = vld [vmem:[%s215 + $0xa8] sm:$0xf]
      %v336 = vld [vmem:[%s215 + $0xac] sm:$0xf]
      %v337 = vld [vmem:[%s215 + $0xb0] sm:$0xf]
      %v338 = vld [vmem:[%s215 + $0xb4] sm:$0xf]
      %v339 = vld [vmem:[%s215 + $0xb8] sm:$0xf]
      %v340 = vld [vmem:[%s215 + $0xbc] sm:$0xf]
      %v341 = vld [vmem:[%s218] sm:$0x1]
      %v343 = vlaneseq
      %v344 = vshrl.u32 %v343, 7
      %v345 = vsub.s32 0, %v344
      %v346 = vrot.slane %v341, %v345
      %v412 = vunpack.c.l.b16 %v229
      %v413 = vunpack.c.h.b16 %v229
      %v414 = vunpack.c.l.b16 %v230
      %v415 = vunpack.c.l.b16 %v231
      %v416 = vunpack.c.h.b16 %v231
      %v417 = vunpack.c.l.b16 %v232
      %v418 = vunpack.c.l.b16 %v233
      %v419 = vunpack.c.h.b16 %v233
      %v420 = vunpack.c.l.b16 %v234
      %v421 = vunpack.c.l.b16 %v235
      %v422 = vunpack.c.h.b16 %v235
      %v423 = vunpack.c.l.b16 %v236
      %v424 = vunpack.c.l.b16 %v237
      %v425 = vunpack.c.h.b16 %v237
      %v426 = vunpack.c.l.b16 %v238
      %v427 = vunpack.c.l.b16 %v239
      %v428 = vunpack.c.h.b16 %v239
      %v429 = vunpack.c.l.b16 %v240
      %v430 = vunpack.c.l.b16 %v241
      %v431 = vunpack.c.h.b16 %v241
      %v432 = vunpack.c.l.b16 %v242
      %v433 = vunpack.c.l.b16 %v243
      %v434 = vunpack.c.h.b16 %v243
      %v435 = vunpack.c.l.b16 %v244
      %v436 = vunpack.c.l.b16 %v245
      %v437 = vunpack.c.h.b16 %v245
      %v438 = vunpack.c.l.b16 %v246
      %v439 = vunpack.c.l.b16 %v247
      %v440 = vunpack.c.h.b16 %v247
      %v441 = vunpack.c.l.b16 %v248
      %v442 = vunpack.c.l.b16 %v249
      %v443 = vunpack.c.h.b16 %v249
      %v444 = vunpack.c.l.b16 %v250
      %v445 = vunpack.c.l.b16 %v251
      %v446 = vunpack.c.h.b16 %v251
      %v447 = vunpack.c.l.b16 %v252
      %v448 = vunpack.c.l.b16 %v253
      %v449 = vunpack.c.h.b16 %v253
      %v450 = vunpack.c.l.b16 %v254
      %v451 = vunpack.c.l.b16 %v255
      %v452 = vunpack.c.h.b16 %v255
      %v453 = vunpack.c.l.b16 %v256
      %v454 = vunpack.c.l.b16 %v257
      %v455 = vunpack.c.h.b16 %v257
      %v456 = vunpack.c.l.b16 %v258
      %v457 = vunpack.c.l.b16 %v259
      %v458 = vunpack.c.h.b16 %v259
      %v459 = vunpack.c.l.b16 %v260
      %v460 = vunpack.c.l.b16 %v261
      %v461 = vunpack.c.h.b16 %v261
      %v462 = vunpack.c.l.b16 %v262
      %v463 = vunpack.c.l.b16 %v263
      %v464 = vunpack.c.h.b16 %v263
      %v465 = vunpack.c.l.b16 %v264
      %v466 = vunpack.c.l.b16 %v265
      %v467 = vunpack.c.h.b16 %v265
      %v468 = vunpack.c.l.b16 %v266
      %v469 = vunpack.c.l.b16 %v267
      %v470 = vunpack.c.h.b16 %v267
      %v471 = vunpack.c.l.b16 %v268
      %v472 = vunpack.c.l.b16 %v269
      %v473 = vunpack.c.h.b16 %v269
      %v474 = vunpack.c.l.b16 %v270
      %v475 = vunpack.c.l.b16 %v271
      %v476 = vunpack.c.h.b16 %v271
      %v477 = vunpack.c.l.b16 %v272
      %v478 = vunpack.c.l.b16 %v273
      %v479 = vunpack.c.h.b16 %v273
      %v480 = vunpack.c.l.b16 %v274
      %v481 = vunpack.c.l.b16 %v275
      %v482 = vunpack.c.h.b16 %v275
      %v483 = vunpack.c.l.b16 %v276
      %v484 = vunpack.c.l.b16 %v277
      %v485 = vunpack.c.h.b16 %v277
      %v486 = vunpack.c.l.b16 %v278
      %v487 = vunpack.c.l.b16 %v279
      %v488 = vunpack.c.h.b16 %v279
      %v489 = vunpack.c.l.b16 %v280
      %v490 = vunpack.c.l.b16 %v281
      %v491 = vunpack.c.h.b16 %v281
      %v492 = vunpack.c.l.b16 %v282
      %v493 = vunpack.c.l.b16 %v283
      %v494 = vunpack.c.h.b16 %v283
      %v495 = vunpack.c.l.b16 %v284
      %v496 = vunpack.c.l.b16 %v285
      %v497 = vunpack.c.h.b16 %v285
      %v498 = vunpack.c.l.b16 %v286
      %v499 = vunpack.c.l.b16 %v287
      %v500 = vunpack.c.h.b16 %v287
      %v501 = vunpack.c.l.b16 %v288
      %v502 = vunpack.c.l.b16 %v289
      %v503 = vunpack.c.h.b16 %v289
      %v504 = vunpack.c.l.b16 %v290
      %v505 = vunpack.c.l.b16 %v291
      %v506 = vunpack.c.h.b16 %v291
      %v507 = vunpack.c.l.b16 %v292
      %v508 = vpack.c.b16 %v415, %v412
      %v509 = vpack.c.b16 %v416, %v413
      %v510 = vpack.c.b16 %v417, %v414
      %v511 = vpack.c.b16 %v421, %v418
      %v512 = vpack.c.b16 %v422, %v419
      %v513 = vpack.c.b16 %v423, %v420
      %v514 = vpack.c.b16 %v427, %v424
      %v515 = vpack.c.b16 %v428, %v425
      %v516 = vpack.c.b16 %v429, %v426
      %v517 = vpack.c.b16 %v433, %v430
      %v518 = vpack.c.b16 %v434, %v431
      %v519 = vpack.c.b16 %v435, %v432
      %v520 = vpack.c.b16 %v439, %v436
      %v521 = vpack.c.b16 %v440, %v437
      %v522 = vpack.c.b16 %v441, %v438
      %v523 = vpack.c.b16 %v445, %v442
      %v524 = vpack.c.b16 %v446, %v443
      %v525 = vpack.c.b16 %v447, %v444
      %v526 = vpack.c.b16 %v451, %v448
      %v527 = vpack.c.b16 %v452, %v449
      %v528 = vpack.c.b16 %v453, %v450
      %v529 = vpack.c.b16 %v457, %v454
      %v530 = vpack.c.b16 %v458, %v455
      %v531 = vpack.c.b16 %v459, %v456
      %v532 = vpack.c.b16 %v463, %v460
      %v533 = vpack.c.b16 %v464, %v461
      %v534 = vpack.c.b16 %v465, %v462
      %v535 = vpack.c.b16 %v469, %v466
      %v536 = vpack.c.b16 %v470, %v467
      %v537 = vpack.c.b16 %v471, %v468
      %v538 = vpack.c.b16 %v475, %v472
      %v539 = vpack.c.b16 %v476, %v473
      %v540 = vpack.c.b16 %v477, %v474
      %v541 = vpack.c.b16 %v481, %v478
      %v542 = vpack.c.b16 %v482, %v479
      %v543 = vpack.c.b16 %v483, %v480
      %v544 = vpack.c.b16 %v487, %v484
      %v545 = vpack.c.b16 %v488, %v485
      %v546 = vpack.c.b16 %v489, %v486
      %v547 = vpack.c.b16 %v493, %v490
      %v548 = vpack.c.b16 %v494, %v491
      %v549 = vpack.c.b16 %v495, %v492
      %v550 = vpack.c.b16 %v499, %v496
      %v551 = vpack.c.b16 %v500, %v497
      %v552 = vpack.c.b16 %v501, %v498
      %v553 = vpack.c.b16 %v505, %v502
      %v554 = vpack.c.b16 %v506, %v503
      %v555 = vpack.c.b16 %v507, %v504
      %v652 = vunpack.c.l.b16 %v293
      %v653 = vunpack.c.l.b16 %v294
      %v654 = vunpack.c.l.b16 %v295
      %v655 = vunpack.c.l.b16 %v296
      %v656 = vunpack.c.l.b16 %v297
      %v657 = vunpack.c.l.b16 %v298
      %v658 = vunpack.c.l.b16 %v299
      %v659 = vunpack.c.l.b16 %v300
      %v660 = vunpack.c.l.b16 %v301
      %v661 = vunpack.c.l.b16 %v302
      %v662 = vunpack.c.l.b16 %v303
      %v663 = vunpack.c.l.b16 %v304
      %v664 = vunpack.c.l.b16 %v305
      %v665 = vunpack.c.l.b16 %v306
      %v666 = vunpack.c.l.b16 %v307
      %v667 = vunpack.c.l.b16 %v308
      %v668 = vunpack.c.l.b16 %v309
      %v669 = vunpack.c.l.b16 %v310
      %v670 = vunpack.c.l.b16 %v311
      %v671 = vunpack.c.l.b16 %v312
      %v672 = vunpack.c.l.b16 %v313
      %v673 = vunpack.c.l.b16 %v314
      %v674 = vunpack.c.l.b16 %v315
      %v675 = vunpack.c.l.b16 %v316
      %v676 = vunpack.c.l.b16 %v317
      %v677 = vunpack.c.l.b16 %v318
      %v678 = vunpack.c.l.b16 %v319
      %v679 = vunpack.c.l.b16 %v320
      %v680 = vunpack.c.l.b16 %v321
      %v681 = vunpack.c.l.b16 %v322
      %v682 = vunpack.c.l.b16 %v323
      %v683 = vunpack.c.l.b16 %v324
      %v684 = vunpack.c.l.b16 %v325
      %v685 = vunpack.c.l.b16 %v326
      %v686 = vunpack.c.l.b16 %v327
      %v687 = vunpack.c.l.b16 %v328
      %v688 = vunpack.c.l.b16 %v329
      %v689 = vunpack.c.l.b16 %v330
      %v690 = vunpack.c.l.b16 %v331
      %v691 = vunpack.c.l.b16 %v332
      %v692 = vunpack.c.l.b16 %v333
      %v693 = vunpack.c.l.b16 %v334
      %v694 = vunpack.c.l.b16 %v335
      %v695 = vunpack.c.l.b16 %v336
      %v696 = vunpack.c.l.b16 %v337
      %v697 = vunpack.c.l.b16 %v338
      %v698 = vunpack.c.l.b16 %v339
      %v699 = vunpack.c.l.b16 %v340
      %v700 = vpack.c.b16 %v653, %v652
      %v701 = vpack.c.b16 %v655, %v654
      %v702 = vpack.c.b16 %v657, %v656
      %v703 = vpack.c.b16 %v659, %v658
      %v704 = vpack.c.b16 %v661, %v660
      %v705 = vpack.c.b16 %v663, %v662
      %v706 = vpack.c.b16 %v665, %v664
      %v707 = vpack.c.b16 %v667, %v666
      %v708 = vpack.c.b16 %v669, %v668
      %v709 = vpack.c.b16 %v671, %v670
      %v710 = vpack.c.b16 %v673, %v672
      %v711 = vpack.c.b16 %v675, %v674
      %v712 = vpack.c.b16 %v677, %v676
      %v713 = vpack.c.b16 %v679, %v678
      %v714 = vpack.c.b16 %v681, %v680
      %v715 = vpack.c.b16 %v683, %v682
      %v716 = vpack.c.b16 %v685, %v684
      %v717 = vpack.c.b16 %v687, %v686
      %v718 = vpack.c.b16 %v689, %v688
      %v719 = vpack.c.b16 %v691, %v690
      %v720 = vpack.c.b16 %v693, %v692
      %v721 = vpack.c.b16 %v695, %v694
      %v722 = vpack.c.b16 %v697, %v696
      %v723 = vpack.c.b16 %v699, %v698
      %748 = vmatprep.subr.bf16.mxu0 0
      %749 = vmatpush1.bf16.msra.mxu0 %v700
      %750 = vmatprep.subr.bf16.mxu0 0
      %751 = vmatpush1.bf16.msra.mxu0 %v701
      %752 = vmatprep.subr.bf16.mxu0 0
      %753 = vmatpush1.bf16.msra.mxu0 %v702
      %754 = vmatprep.subr.bf16.mxu0 0
      %755 = vmatpush1.bf16.msra.mxu0 %v703
      %756 = vmatprep.subr.bf16.mxu0 0
      %757 = vmatpush1.bf16.msra.mxu0 %v704
      %758 = vmatprep.subr.bf16.mxu0 0
      %759 = vmatpush1.bf16.msra.mxu0 %v705
      %760 = vmatprep.subr.bf16.mxu0 0
      %761 = vmatpush1.bf16.msra.mxu0 %v706
      %762 = vmatprep.subr.bf16.mxu0 0
      %763 = vmatpush1.bf16.msra.mxu0 %v707
      %764 = vmatprep.subr.bf16.mxu0 0
      %765 = vmatpush1.bf16.msra.mxu0 %v708
      %766 = vmatprep.subr.bf16.mxu0 0
      %767 = vmatpush1.bf16.msra.mxu0 %v709
      %768 = vmatprep.subr.bf16.mxu0 0
      %769 = vmatpush1.bf16.msra.mxu0 %v710
      %770 = vmatprep.subr.bf16.mxu0 0
      %771 = vmatpush1.bf16.msra.mxu0 %v711
      %772 = vmatprep.subr.bf16.mxu0 0
      %773 = vmatpush1.bf16.msra.mxu0 %v712
      %774 = vmatprep.subr.bf16.mxu0 0
      %775 = vmatpush1.bf16.msra.mxu0 %v713
      %776 = vmatprep.subr.bf16.mxu0 0
      %777 = vmatpush1.bf16.msra.mxu0 %v714
      %778 = vmatprep.subr.bf16.mxu0 0
      %779 = vmatpush1.bf16.msra.mxu0 %v715
      %780 = vmatprep.mubr.bf16.mxu0 %v509
      %781 = vmatmul.mubr.bf16.gmra.mrb[0].mxu0 %v508
      %v782 = vpop.f32.mrb[0].mxu0
      %v783 = vadd.f32 %v346, %v782
      %v784 = vpop.f32.mrb[0].mxu0
      %v785 = vpop.f32.mrb[0].mxu0
      %v786 = vadd.f32 %v346, %v785
      %v787 = vpop.f32.mrb[0].mxu0
      %788 = vmatprep.mubr.bf16.mxu0 %v512
      %789 = vmatmul.mubr.bf16.gmra.mrb[0].mxu0 %v511
      %v790 = vpop.f32.mrb[0].mxu0
      %v791 = vadd.f32 %v346, %v790
      %v792 = vpop.f32.mrb[0].mxu0
      %v793 = vpop.f32.mrb[0].mxu0
      %v794 = vadd.f32 %v346, %v793
      %v795 = vpop.f32.mrb[0].mxu0
      %796 = vmatprep.mubr.bf16.mxu0 %v515
      %797 = vmatmul.mubr.bf16.gmra.mrb[0].mxu0 %v514
      %v798 = vpop.f32.mrb[0].mxu0
      %v799 = vadd.f32 %v346, %v798
      %v800 = vpop.f32.mrb[0].mxu0
      %v801 = vpop.f32.mrb[0].mxu0
      %v802 = vadd.f32 %v346, %v801
      %v803 = vpop.f32.mrb[0].mxu0
      %804 = vmatprep.mubr.bf16.mxu0 %v518
      %805 = vmatmul.mubr.bf16.gmra.mrb[0].mxu0 %v517
      %v806 = vpop.f32.mrb[0].mxu0
      %v807 = vadd.f32 %v346, %v806
      %v808 = vpop.f32.mrb[0].mxu0
      %v809 = vpop.f32.mrb[0].mxu0
      %v810 = vadd.f32 %v346, %v809
      %v811 = vpop.f32.mrb[0].mxu0
      %812 = vmatprep.mubr.bf16.mxu0 %v521
      %813 = vmatmul.mubr.bf16.gmra.mrb[0].mxu0 %v520
      %v814 = vpop.f32.mrb[0].mxu0
      %v815 = vadd.f32 %v346, %v814
      %v816 = vpop.f32.mrb[0].mxu0
      %v817 = vpop.f32.mrb[0].mxu0
      %v818 = vadd.f32 %v346, %v817
      %v819 = vpop.f32.mrb[0].mxu0
      %820 = vmatprep.mubr.bf16.mxu0 %v524
      %821 = vmatmul.mubr.bf16.gmra.mrb[0].mxu0 %v523
      %v822 = vpop.f32.mrb[0].mxu0
      %v823 = vadd.f32 %v346, %v822
      %v824 = vpop.f32.mrb[0].mxu0
      %v825 = vpop.f32.mrb[0].mxu0
      %v826 = vadd.f32 %v346, %v825
      %v827 = vpop.f32.mrb[0].mxu0
      %828 = vmatprep.mubr.bf16.mxu0 %v527
      %829 = vmatmul.mubr.bf16.gmra.mrb[0].mxu0 %v526
      %v830 = vpop.f32.mrb[0].mxu0
      %v831 = vadd.f32 %v346, %v830
      %v832 = vpop.f32.mrb[0].mxu0
      %v833 = vpop.f32.mrb[0].mxu0
      %v834 = vadd.f32 %v346, %v833
      %v835 = vpop.f32.mrb[0].mxu0
      %836 = vmatprep.mubr.bf16.mxu0 %v530
      %837 = vmatmul.mubr.bf16.gmra.mrb[0].mxu0 %v529
      %v838 = vpop.f32.mrb[0].mxu0
      %v839 = vadd.f32 %v346, %v838
      %v840 = vpop.f32.mrb[0].mxu0
      %v841 = vpop.f32.mrb[0].mxu0
      %v842 = vadd.f32 %v346, %v841
      %v843 = vpop.f32.mrb[0].mxu0
      %844 = vmatprep.mubr.bf16.mxu0 %v533
      %845 = vmatmul.mubr.bf16.gmra.mrb[0].mxu0 %v532
      %v846 = vpop.f32.mrb[0].mxu0
      %v847 = vadd.f32 %v346, %v846
      %v848 = vpop.f32.mrb[0].mxu0
      %v849 = vpop.f32.mrb[0].mxu0
      %v850 = vadd.f32 %v346, %v849
      %v851 = vpop.f32.mrb[0].mxu0
      %852 = vmatprep.mubr.bf16.mxu0 %v536
      %853 = vmatmul.mubr.bf16.gmra.mrb[0].mxu0 %v535
      %v854 = vpop.f32.mrb[0].mxu0
      %v855 = vadd.f32 %v346, %v854
      %v856 = vpop.f32.mrb[0].mxu0
      %v857 = vpop.f32.mrb[0].mxu0
      %v858 = vadd.f32 %v346, %v857
      %v859 = vpop.f32.mrb[0].mxu0
      %860 = vmatprep.mubr.bf16.mxu0 %v539
      %861 = vmatmul.mubr.bf16.gmra.mrb[0].mxu0 %v538
      %v862 = vpop.f32.mrb[0].mxu0
      %v863 = vadd.f32 %v346, %v862
      %v864 = vpop.f32.mrb[0].mxu0
      %v865 = vpop.f32.mrb[0].mxu0
      %v866 = vadd.f32 %v346, %v865
      %v867 = vpop.f32.mrb[0].mxu0
      %868 = vmatprep.mubr.bf16.mxu0 %v542
      %869 = vmatmul.mubr.bf16.gmra.mrb[0].mxu0 %v541
      %v870 = vpop.f32.mrb[0].mxu0
      %v871 = vadd.f32 %v346, %v870
      %v872 = vpop.f32.mrb[0].mxu0
      %v873 = vpop.f32.mrb[0].mxu0
      %v874 = vadd.f32 %v346, %v873
      %v875 = vpop.f32.mrb[0].mxu0
      %876 = vmatprep.mubr.bf16.mxu0 %v545
      %877 = vmatmul.mubr.bf16.gmra.mrb[0].mxu0 %v544
      %v878 = vpop.f32.mrb[0].mxu0
      %v879 = vadd.f32 %v346, %v878
      %v880 = vpop.f32.mrb[0].mxu0
      %v881 = vpop.f32.mrb[0].mxu0
      %v882 = vadd.f32 %v346, %v881
      %v883 = vpop.f32.mrb[0].mxu0
      %884 = vmatprep.mubr.bf16.mxu0 %v548
      %885 = vmatmul.mubr.bf16.gmra.mrb[0].mxu0 %v547
      %v886 = vpop.f32.mrb[0].mxu0
      %v887 = vadd.f32 %v346, %v886
      %v888 = vpop.f32.mrb[0].mxu0
      %v889 = vpop.f32.mrb[0].mxu0
      %v890 = vadd.f32 %v346, %v889
      %v891 = vpop.f32.mrb[0].mxu0
      %892 = vmatprep.mubr.bf16.mxu0 %v551
      %893 = vmatmul.mubr.bf16.gmra.mrb[0].mxu0 %v550
      %v894 = vpop.f32.mrb[0].mxu0
      %v895 = vadd.f32 %v346, %v894
      %v896 = vpop.f32.mrb[0].mxu0
      %v897 = vpop.f32.mrb[0].mxu0
      %v898 = vadd.f32 %v346, %v897
      %v899 = vpop.f32.mrb[0].mxu0
      %900 = vmatprep.mubr.bf16.mxu0 %v554
      %901 = vmatmul.mubr.bf16.gmra.mrb[0].mxu0 %v553
      %v902 = vpop.f32.mrb[0].mxu0
      %v903 = vadd.f32 %v346, %v902
      %v904 = vpop.f32.mrb[0].mxu0
      %v905 = vpop.f32.mrb[0].mxu0
      %v906 = vadd.f32 %v346, %v905
      %v907 = vpop.f32.mrb[0].mxu0
      %908 = vdwg.mxu0
      %909 = vmatprep.subr.bf16.mxu0 0
      %910 = vmatpush1.bf16.msra.mxu0 %v716
      %911 = vmatprep.subr.bf16.mxu0 0
      %912 = vmatpush1.bf16.msra.mxu0 %v717
      %913 = vmatprep.subr.bf16.mxu0 0
      %914 = vmatpush1.bf16.msra.mxu0 %v718
      %915 = vmatprep.subr.bf16.mxu0 0
      %916 = vmatpush1.bf16.msra.mxu0 %v719
      %917 = vmatprep.subr.bf16.mxu0 0
      %918 = vmatpush1.bf16.msra.mxu0 %v720
      %919 = vmatprep.subr.bf16.mxu0 0
      %920 = vmatpush1.bf16.msra.mxu0 %v721
      %921 = vmatprep.subr.bf16.mxu0 0
      %922 = vmatpush1.bf16.msra.mxu0 %v722
      %923 = vmatprep.subr.bf16.mxu0 0
      %924 = vmatpush1.bf16.msra.mxu0 %v723
      %925 = vmatprep.subr.bf16.mxu0 0
      %926 = vmatpush1.bf16.msra.mxu0 0
      %927 = vmatprep.subr.bf16.mxu0 0
      %928 = vmatpush1.bf16.msra.mxu0 0
      %929 = vmatprep.subr.bf16.mxu0 0
      %930 = vmatpush1.bf16.msra.mxu0 0
      %931 = vmatprep.subr.bf16.mxu0 0
      %932 = vmatpush1.bf16.msra.mxu0 0
      %933 = vmatprep.subr.bf16.mxu0 0
      %934 = vmatpush1.bf16.msra.mxu0 0
      %935 = vmatprep.subr.bf16.mxu0 0
      %936 = vmatpush1.bf16.msra.mxu0 0
      %937 = vmatprep.subr.bf16.mxu0 0
      %938 = vmatpush1.bf16.msra.mxu0 0
      %939 = vmatprep.subr.bf16.mxu0 0
      %940 = vmatpush1.bf16.msra.mxu0 0
      %941 = vmatprep.mubr.bf16.mxu0 0
      %942 = vmatmul.mubr.bf16.gmra.mrb[0].mxu0 %v510
      %v943 = vpop.f32.mrb[0].mxu0
      %v944 = vadd.f32 %v783, %v943
      %v945 = vpop.f32.mrb[0].mxu0
      %v946 = vpop.f32.mrb[0].mxu0
      %v947 = vadd.f32 %v786, %v946
      %v948 = vpop.f32.mrb[0].mxu0
      %949 = vmatprep.mubr.bf16.mxu0 0
      %950 = vmatmul.mubr.bf16.gmra.mrb[0].mxu0 %v513
      %v951 = vpop.f32.mrb[0].mxu0
      %v952 = vadd.f32 %v791, %v951
      %v953 = vpop.f32.mrb[0].mxu0
      %v954 = vpop.f32.mrb[0].mxu0
      %v955 = vadd.f32 %v794, %v954
      %v956 = vpop.f32.mrb[0].mxu0
      %957 = vmatprep.mubr.bf16.mxu0 0
      %958 = vmatmul.mubr.bf16.gmra.mrb[0].mxu0 %v516
      %v959 = vpop.f32.mrb[0].mxu0
      %v960 = vadd.f32 %v799, %v959
      %v961 = vpop.f32.mrb[0].mxu0
      %v962 = vpop.f32.mrb[0].mxu0
      %v963 = vadd.f32 %v802, %v962
      %v964 = vpop.f32.mrb[0].mxu0
      %965 = vmatprep.mubr.bf16.mxu0 0
      %966 = vmatmul.mubr.bf16.gmra.mrb[0].mxu0 %v519
      %v967 = vpop.f32.mrb[0].mxu0
      %v968 = vadd.f32 %v807, %v967
      %v969 = vpop.f32.mrb[0].mxu0
      %v970 = vpop.f32.mrb[0].mxu0
      %v971 = vadd.f32 %v810, %v970
      %v972 = vpop.f32.mrb[0].mxu0
      %973 = vmatprep.mubr.bf16.mxu0 0
      %974 = vmatmul.mubr.bf16.gmra.mrb[0].mxu0 %v522
      %v975 = vpop.f32.mrb[0].mxu0
      %v976 = vadd.f32 %v815, %v975
      %v977 = vpop.f32.mrb[0].mxu0
      %v978 = vpop.f32.mrb[0].mxu0
      %v979 = vadd.f32 %v818, %v978
      %v980 = vpop.f32.mrb[0].mxu0
      %981 = vmatprep.mubr.bf16.mxu0 0
      %982 = vmatmul.mubr.bf16.gmra.mrb[0].mxu0 %v525
      %v983 = vpop.f32.mrb[0].mxu0
      %v984 = vadd.f32 %v823, %v983
      %v985 = vpop.f32.mrb[0].mxu0
      %v986 = vpop.f32.mrb[0].mxu0
      %v987 = vadd.f32 %v826, %v986
      %v988 = vpop.f32.mrb[0].mxu0
      %989 = vmatprep.mubr.bf16.mxu0 0
      %990 = vmatmul.mubr.bf16.gmra.mrb[0].mxu0 %v528
      %v991 = vpop.f32.mrb[0].mxu0
      %v992 = vadd.f32 %v831, %v991
      %v993 = vpop.f32.mrb[0].mxu0
      %v994 = vpop.f32.mrb[0].mxu0
      %v995 = vadd.f32 %v834, %v994
      %v996 = vpop.f32.mrb[0].mxu0
      %997 = vmatprep.mubr.bf16.mxu0 0
      %998 = vmatmul.mubr.bf16.gmra.mrb[0].mxu0 %v531
      %v999 = vpop.f32.mrb[0].mxu0
      %v1000 = vadd.f32 %v839, %v999
      %v1001 = vpop.f32.mrb[0].mxu0
      %v1002 = vpop.f32.mrb[0].mxu0
      %v1003 = vadd.f32 %v842, %v1002
      %v1004 = vpop.f32.mrb[0].mxu0
      %1005 = vmatprep.mubr.bf16.mxu0 0
      %1006 = vmatmul.mubr.bf16.gmra.mrb[0].mxu0 %v534
      %v1007 = vpop.f32.mrb[0].mxu0
      %v1008 = vadd.f32 %v847, %v1007
      %v1009 = vpop.f32.mrb[0].mxu0
      %v1010 = vpop.f32.mrb[0].mxu0
      %v1011 = vadd.f32 %v850, %v1010
      %v1012 = vpop.f32.mrb[0].mxu0
      %1013 = vmatprep.mubr.bf16.mxu0 0
      %1014 = vmatmul.mubr.bf16.gmra.mrb[0].mxu0 %v537
      %v1015 = vpop.f32.mrb[0].mxu0
      %v1016 = vadd.f32 %v855, %v1015
      %v1017 = vpop.f32.mrb[0].mxu0
      %v1018 = vpop.f32.mrb[0].mxu0
      %v1019 = vadd.f32 %v858, %v1018
      %v1020 = vpop.f32.mrb[0].mxu0
      %1021 = vmatprep.mubr.bf16.mxu0 0
      %1022 = vmatmul.mubr.bf16.gmra.mrb[0].mxu0 %v540
      %v1023 = vpop.f32.mrb[0].mxu0
      %v1024 = vadd.f32 %v863, %v1023
      %v1025 = vpop.f32.mrb[0].mxu0
      %v1026 = vpop.f32.mrb[0].mxu0
      %v1027 = vadd.f32 %v866, %v1026
      %v1028 = vpop.f32.mrb[0].mxu0
      %1029 = vmatprep.mubr.bf16.mxu0 0
      %1030 = vmatmul.mubr.bf16.gmra.mrb[0].mxu0 %v543
      %v1031 = vpop.f32.mrb[0].mxu0
      %v1032 = vadd.f32 %v871, %v1031
      %v1033 = vpop.f32.mrb[0].mxu0
      %v1034 = vpop.f32.mrb[0].mxu0
      %v1035 = vadd.f32 %v874, %v1034
      %v1036 = vpop.f32.mrb[0].mxu0
      %1037 = vmatprep.mubr.bf16.mxu0 0
      %1038 = vmatmul.mubr.bf16.gmra.mrb[0].mxu0 %v546
      %v1039 = vpop.f32.mrb[0].mxu0
      %v1040 = vadd.f32 %v879, %v1039
      %v1041 = vpop.f32.mrb[0].mxu0
      %v1042 = vpop.f32.mrb[0].mxu0
      %v1043 = vadd.f32 %v882, %v1042
      %v1044 = vpop.f32.mrb[0].mxu0
      %1045 = vmatprep.mubr.bf16.mxu0 0
      %1046 = vmatmul.mubr.bf16.gmra.mrb[0].mxu0 %v549
      %v1047 = vpop.f32.mrb[0].mxu0
      %v1048 = vadd.f32 %v887, %v1047
      %v1049 = vpop.f32.mrb[0].mxu0
      %v1050 = vpop.f32.mrb[0].mxu0
      %v1051 = vadd.f32 %v890, %v1050
      %v1052 = vpop.f32.mrb[0].mxu0
      %1053 = vmatprep.mubr.bf16.mxu0 0
      %1054 = vmatmul.mubr.bf16.gmra.mrb[0].mxu0 %v552
      %v1055 = vpop.f32.mrb[0].mxu0
      %v1056 = vadd.f32 %v895, %v1055
      %v1057 = vpop.f32.mrb[0].mxu0
      %v1058 = vpop.f32.mrb[0].mxu0
      %v1059 = vadd.f32 %v898, %v1058
      %v1060 = vpop.f32.mrb[0].mxu0
      %1061 = vmatprep.mubr.bf16.mxu0 0
      %1062 = vmatmul.mubr.bf16.gmra.mrb[0].mxu0 %v555
      %v1063 = vpop.f32.mrb[0].mxu0
      %v1064 = vadd.f32 %v903, %v1063
      %v1065 = vpop.f32.mrb[0].mxu0
      %v1066 = vpop.f32.mrb[0].mxu0
      %v1067 = vadd.f32 %v906, %v1066
      %v1068 = vpop.f32.mrb[0].mxu0
      %1069 = vdwg.mxu0
      %v1070 = vmax.f32 %v944, 0.0
      %v1071 = vmax.f32 %v947, 0.0
      %v1072 = vmax.f32 %v952, 0.0
      %v1073 = vmax.f32 %v955, 0.0
      %v1074 = vmax.f32 %v960, 0.0
      %v1075 = vmax.f32 %v963, 0.0
      %v1076 = vmax.f32 %v968, 0.0
      %v1077 = vmax.f32 %v971, 0.0
      %v1078 = vmax.f32 %v976, 0.0
      %v1079 = vmax.f32 %v979, 0.0
      %v1080 = vmax.f32 %v984, 0.0
      %v1081 = vmax.f32 %v987, 0.0
      %v1082 = vmax.f32 %v992, 0.0
      %v1083 = vmax.f32 %v995, 0.0
      %v1084 = vmax.f32 %v1000, 0.0
      %v1085 = vmax.f32 %v1003, 0.0
      %v1086 = vmax.f32 %v1008, 0.0
      %v1087 = vmax.f32 %v1011, 0.0
      %v1088 = vmax.f32 %v1016, 0.0
      %v1089 = vmax.f32 %v1019, 0.0
      %v1090 = vmax.f32 %v1024, 0.0
      %v1091 = vmax.f32 %v1027, 0.0
      %v1092 = vmax.f32 %v1032, 0.0
      %v1093 = vmax.f32 %v1035, 0.0
      %v1094 = vmax.f32 %v1040, 0.0
      %v1095 = vmax.f32 %v1043, 0.0
      %v1096 = vmax.f32 %v1048, 0.0
      %v1097 = vmax.f32 %v1051, 0.0
      %v1098 = vmax.f32 %v1056, 0.0
      %v1099 = vmax.f32 %v1059, 0.0
      %v1100 = vmax.f32 %v1064, 0.0
      %v1101 = vmax.f32 %v1067, 0.0
      %v1102 = vpack.c.bf16 %v1071, %v1070
      %v1103 = vpack.c.bf16 %v1073, %v1072
      %v1104 = vpack.c.bf16 %v1075, %v1074
      %v1105 = vpack.c.bf16 %v1077, %v1076
      %v1106 = vpack.c.bf16 %v1079, %v1078
      %v1107 = vpack.c.bf16 %v1081, %v1080
      %v1108 = vpack.c.bf16 %v1083, %v1082
      %v1109 = vpack.c.bf16 %v1085, %v1084
      %v1110 = vpack.c.bf16 %v1087, %v1086
      %v1111 = vpack.c.bf16 %v1089, %v1088
      %v1112 = vpack.c.bf16 %v1091, %v1090
      %v1113 = vpack.c.bf16 %v1093, %v1092
      %v1114 = vpack.c.bf16 %v1095, %v1094
      %v1115 = vpack.c.bf16 %v1097, %v1096
      %v1116 = vpack.c.bf16 %v1099, %v1098
      %v1117 = vpack.c.bf16 %v1101, %v1100
      %v1134 = vunpack.c.l.b16 %v1102
      %v1135 = vunpack.c.h.b16 %v1102
      %v1136 = vunpack.c.l.b16 %v1103
      %v1137 = vunpack.c.h.b16 %v1103
      %v1138 = vunpack.c.l.b16 %v1104
      %v1139 = vunpack.c.h.b16 %v1104
      %v1140 = vunpack.c.l.b16 %v1105
      %v1141 = vunpack.c.h.b16 %v1105
      %v1142 = vunpack.c.l.b16 %v1106
      %v1143 = vunpack.c.h.b16 %v1106
      %v1144 = vunpack.c.l.b16 %v1107
      %v1145 = vunpack.c.h.b16 %v1107
      %v1146 = vunpack.c.l.b16 %v1108
      %v1147 = vunpack.c.h.b16 %v1108
      %v1148 = vunpack.c.l.b16 %v1109
      %v1149 = vunpack.c.h.b16 %v1109
      %v1150 = vunpack.c.l.b16 %v1110
      %v1151 = vunpack.c.h.b16 %v1110
      %v1152 = vunpack.c.l.b16 %v1111
      %v1153 = vunpack.c.h.b16 %v1111
      %v1154 = vunpack.c.l.b16 %v1112
      %v1155 = vunpack.c.h.b16 %v1112
      %v1156 = vunpack.c.l.b16 %v1113
      %v1157 = vunpack.c.h.b16 %v1113
      %v1158 = vunpack.c.l.b16 %v1114
      %v1159 = vunpack.c.h.b16 %v1114
      %v1160 = vunpack.c.l.b16 %v1115
      %v1161 = vunpack.c.h.b16 %v1115
      %v1162 = vunpack.c.l.b16 %v1116
      %v1163 = vunpack.c.h.b16 %v1116
      %v1164 = vunpack.c.l.b16 %v1117
      %v1165 = vunpack.c.h.b16 %v1117
      %v1166 = vpack.c.b16 %v1134, %v1134
      %v1167 = vpack.c.b16 %v1135, %v1135
      %v1168 = vpack.c.b16 %v1136, %v1136
      %v1169 = vpack.c.b16 %v1137, %v1137
      %v1170 = vpack.c.b16 %v1138, %v1138
      %v1171 = vpack.c.b16 %v1139, %v1139
      %v1172 = vpack.c.b16 %v1140, %v1140
      %v1173 = vpack.c.b16 %v1141, %v1141
      %v1174 = vpack.c.b16 %v1142, %v1142
      %v1175 = vpack.c.b16 %v1143, %v1143
      %v1176 = vpack.c.b16 %v1144, %v1144
      %v1177 = vpack.c.b16 %v1145, %v1145
      %v1178 = vpack.c.b16 %v1146, %v1146
      %v1179 = vpack.c.b16 %v1147, %v1147
      %v1180 = vpack.c.b16 %v1148, %v1148
      %v1181 = vpack.c.b16 %v1149, %v1149
      %v1182 = vpack.c.b16 %v1150, %v1150
      %v1183 = vpack.c.b16 %v1151, %v1151
      %v1184 = vpack.c.b16 %v1152, %v1152
      %v1185 = vpack.c.b16 %v1153, %v1153
      %v1186 = vpack.c.b16 %v1154, %v1154
      %v1187 = vpack.c.b16 %v1155, %v1155
      %v1188 = vpack.c.b16 %v1156, %v1156
      %v1189 = vpack.c.b16 %v1157, %v1157
      %v1190 = vpack.c.b16 %v1158, %v1158
      %v1191 = vpack.c.b16 %v1159, %v1159
      %v1192 = vpack.c.b16 %v1160, %v1160
      %v1193 = vpack.c.b16 %v1161, %v1161
      %v1194 = vpack.c.b16 %v1162, %v1162
      %v1195 = vpack.c.b16 %v1163, %v1163
      %v1196 = vpack.c.b16 %v1164, %v1164
      %v1197 = vpack.c.b16 %v1165, %v1165
      %1230 = vst [vmem:[%s226] sm:$0xf] %v1166
      %1231 = vst [vmem:[%s226 + $0x4] sm:$0xf] %v1167
      %1232 = vst [vmem:[%s226 + $0x8] sm:$0xf] %v1168
      %1233 = vst [vmem:[%s226 + $0xc] sm:$0xf] %v1169
      %1234 = vst [vmem:[%s226 + $0x10] sm:$0xf] %v1170
      %1235 = vst [vmem:[%s226 + $0x14] sm:$0xf] %v1171
      %1236 = vst [vmem:[%s226 + $0x18] sm:$0xf] %v1172
      %1237 = vst [vmem:[%s226 + $0x1c] sm:$0xf] %v1173
      %1238 = vst [vmem:[%s226 + $0x20] sm:$0xf] %v1174
      %1239 = vst [vmem:[%s226 + $0x24] sm:$0xf] %v1175
      %1240 = vst [vmem:[%s226 + $0x28] sm:$0xf] %v1176
      %1241 = vst [vmem:[%s226 + $0x2c] sm:$0xf] %v1177
      %1242 = vst [vmem:[%s226 + $0x30] sm:$0xf] %v1178
      %1243 = vst [vmem:[%s226 + $0x34] sm:$0xf] %v1179
      %1244 = vst [vmem:[%s226 + $0x38] sm:$0xf] %v1180
      %1245 = vst [vmem:[%s226 + $0x3c] sm:$0xf] %v1181
      %1246 = vst [vmem:[%s226 + $0x40] sm:$0xf] %v1182
      %1247 = vst [vmem:[%s226 + $0x44] sm:$0xf] %v1183
      %1248 = vst [vmem:[%s226 + $0x48] sm:$0xf] %v1184
      %1249 = vst [vmem:[%s226 + $0x4c] sm:$0xf] %v1185
      %1250 = vst [vmem:[%s226 + $0x50] sm:$0xf] %v1186
      %1251 = vst [vmem:[%s226 + $0x54] sm:$0xf] %v1187
      %1252 = vst [vmem:[%s226 + $0x58] sm:$0xf] %v1188
      %1253 = vst [vmem:[%s226 + $0x5c] sm:$0xf] %v1189
      %1254 = vst [vmem:[%s226 + $0x60] sm:$0xf] %v1190
      %1255 = vst [vmem:[%s226 + $0x64] sm:$0xf] %v1191
      %1256 = vst [vmem:[%s226 + $0x68] sm:$0xf] %v1192
      %1257 = vst [vmem:[%s226 + $0x6c] sm:$0xf] %v1193
      %1258 = vst [vmem:[%s226 + $0x70] sm:$0xf] %v1194
      %1259 = vst [vmem:[%s226 + $0x74] sm:$0xf] %v1195
      %1260 = vst [vmem:[%s226 + $0x78] sm:$0xf] %v1196
      %1261 = vst [vmem:[%s226 + $0x7c] sm:$0xf] %v1197
      %s1262 = smul.u32 32, %s18
      %p1263 = scmp.lt.s32.totalorder %s1262, 63
      %s1264 = scalar_select %p1263, %s1262, 63
      %p1265 = scmp.lt.s32.totalorder %s19, 0
      %s1266 = scalar_select %p1265, %s19, 0
      %s1267 = sadd.s32 %s1266, %s1264
      %s1268 = smul.addr %s1267, 4
      %s1269 = scalar_lea.vmem %s3, %s1268
      // Predicated region
      $region33: #{headnet_forward.2} parent=31 // pred_check
        %p1270 = pneg %p124
      $region34: #{headnet_forward.2} parent=31 // pred_check_branch
        %1272 = sbr.rel (%p1270) target = $region36
      $region35: #{headnet_forward.2} parent=31 // pred_region
        %s1273 = smul.u32 32, %s18
      $region36: #{headnet_forward.2} parent=31 // pred_fallthru
        _
    $region32: #{headnet_forward.2} parent=5 // pred_fallthru
      _
    %p1274 = scmp.le.s32.totalorder 2, %s9
    // Predicated region
    $region37: #{headnet_forward.2} parent=5 // pred_check
      %p1275 = pneg %p1274
    $region38: #{headnet_forward.2} parent=5 // pred_check_branch
      %1277 = sbr.rel (%p1275) target = $region40
    $region39: #{headnet_forward.2} parent=5 // pred_region
      %s1278 = ssub.s32 %s9, 2
      // Predicated region
      $region41: #{headnet_forward.2} parent=39 // pred_check
        %p1279 = pneg %p130
      $region42: #{headnet_forward.2} parent=39 // pred_check_branch
        %1281 = sbr.rel (%p1279) target = $region44
      $region43: #{headnet_forward.2} parent=39 // pred_region
        %s1282 = smul.u32 32, %s20
        %p1283 = scmp.lt.s32.totalorder %s1282, 63
        %s1284 = scalar_select %p1283, %s1282, 63
        %p1285 = scmp.lt.s32.totalorder %s21, 0
        %s1286 = scalar_select %p1285, %s21, 0
        %s1287 = sadd.s32 %s1286, %s1284
        %s1288 = smul.addr %s1287, 4
        %s1289 = scalar_lea.vmem %s3, %s1288
      $region44: #{headnet_forward.2} parent=39 // pred_fallthru
        _
    $region40: #{headnet_forward.2} parent=5 // pred_fallthru
      _
  $region6: #{headnet_forward.2} parent=0 // loop_footer
    %s13 = sadd.s32 1, %s9
  $region7: #{headnet_forward.2} parent=0 // loop_footer_branch
    %8 = sbr.rel target = $region3
  $region8: #{headnet_forward.2} parent=0 // loop_exit
    _

// kernel: headnet_forward.3
$region0: #{headnet_forward.3}
  #allocation0 [shape = 'u32[]', space=smem, size = 0x4, offset = 0x4, fixed_abs, tag = 'smem constant byte address 0x4 - core index']
  #allocation1 [shape = 'u32[144,128]{1,0:T(1,128)}', space=vmem, size = 0x12000, scoped, tag = 'internal scratch']
  %s0 = inlined_call_operand.vmem [shape: bf16[112,3200], index: 0, kind: input, shape index: {}]
  %s1 = inlined_call_operand.vmem [shape: bf16[3200,256], index: 1, kind: input, shape index: {}]
  %s2 = inlined_call_operand.vmem [shape: f32[1,256], index: 2, kind: input, shape index: {}]
  %s3 = inlined_call_operand.vmem [shape: bf16[112,256], index: 3, kind: output, shape index: {}]
  %s4 = sld [smem:[#allocation0]]
  $region123: #{headnet_forward.3} parent=0
    _
  %s6 = ssub.s32 1, %s4
  %s7 = scalar_select 0, %s6, %s4
  $region1: #{headnet_forward.3} parent=0
    #allocation2 [shape = 'u8[1638400]{0}', space=vmem, size = 0x190000, scoped, tag = 'input window, operand 1']
    #allocation3 [shape = 'u8[57344]{0}', space=vmem, size = 0xe000, scoped, tag = 'output window, operand 0']
    loop: start=0, step=1, limit=4
    $region2: #{headnet_forward.3} parent=1 // loop_pre_header
      _
    $region3: #{headnet_forward.3} parent=1 // loop_header
      %s9 = sphi 0, %s13
      %p10 = scmp.ge.s32.totalorder %s9, 4
      %s16 = sphi 0, %s28
      %s17 = sphi 0, %s24
      %s18 = sphi 0, %s16
      %s19 = sphi 0, %s17
      %s20 = sphi 0, %s18
      %s21 = sphi 0, %s19
      %s31 = sphi 0, %s33
      %s34 = sphi 0, %s31
      %s35 = sphi 0, %s34
      %s51 = sphi 0, %s35
      %s57 = sphi 0, %s59
      %s60 = sphi 0, %s57
      %s61 = sphi 0, %s60
      %s77 = sphi 0, %s61
      %s83 = sphi 0, %s85
      %s86 = sphi 0, %s83
      %s87 = sphi 0, %s86
      %s103 = sphi 0, %s87
      %s111 = sphi 0, %s113
      %s114 = sphi 0, %s111
      %s115 = sphi 0, %s114
      %s131 = sphi 0, %s115
    $region4: #{headnet_forward.3} parent=1 // loop_header_branch
      %12 = sbr.rel (%p10) target = $region8
    $region5: #{headnet_forward.3} parent=1 // loop_body
      %s14 = ssub.s32 %s9, 1
      %s15 = ssub.s32 %s9, 2
      %s22 = sadd.s32 1, %s17
      %p23 = scmp.ge.s32.totalorder %s22, 2
      %s24 = scalar_select %p23, 0, %s22
      %s25 = sadd.s32 1, %s16
      %s26 = scalar_select %p23, %s25, %s16
      %p27 = scmp.ge.s32.totalorder %s26, 1
      %s28 = scalar_select %p27, 0, %s26
      %s29 = ssub.s32 %s16, %s28
      %p30 = scmp.eq.s32.totalorder %s29, 0
      %s32 = sadd.s32 %s31, 1
      %s33 = scalar_select %p30, %s31, %s32
      %p36 = pneg %p30
      %p37 = scmp.eq.s32.totalorder %s9, 1
      %p38 = por %p36, %p37
      %p39 = scmp.ne.s32.totalorder %s31, %s34
      %p40 = scmp.eq.s32.totalorder %s9, 0
      %p41 = por %p39, %p40
      %p42 = scmp.ne.s32.totalorder %s31, %s34
      %p43 = scmp.eq.s32.totalorder %s14, 1
      %p44 = por %p42, %p43
      %p45 = scmp.ne.s32.totalorder %s34, %s35
      %p46 = scmp.eq.s32.totalorder %s14, 0
      %p47 = por %p45, %p46
      %p48 = scmp.ne.s32.totalorder %s34, %s35
      %p49 = scmp.eq.s32.totalorder %s15, 1
      %p50 = por %p48, %p49
      %p52 = scmp.ne.s32.totalorder %s35, %s51
      %p53 = scmp.eq.s32.totalorder %s15, 0
      %p54 = por %p52, %p53
      %s55 = ssub.s32 %s17, %s24
      %p56 = scmp.eq.s32.totalorder %s55, 0
      %s58 = sadd.s32 %s57, 1
      %s59 = scalar_select %p56, %s57, %s58
      %p62 = pneg %p56
      %p63 = scmp.eq.s32.totalorder %s9, 1
      %p64 = por %p62, %p63
      %p65 = scmp.ne.s32.totalorder %s57, %s60
      %p66 = scmp.eq.s32.totalorder %s9, 0
      %p67 = por %p65, %p66
      %p68 = scmp.ne.s32.totalorder %s57, %s60
      %p69 = scmp.eq.s32.totalorder %s14, 1
      %p70 = por %p68, %p69
      %p71 = scmp.ne.s32.totalorder %s60, %s61
      %p72 = scmp.eq.s32.totalorder %s14, 0
      %p73 = por %p71, %p72
      %p74 = scmp.ne.s32.totalorder %s60, %s61
      %p75 = scmp.eq.s32.totalorder %s15, 1
      %p76 = por %p74, %p75
      %p78 = scmp.ne.s32.totalorder %s61, %s77
      %p79 = scmp.eq.s32.totalorder %s15, 0
      %p80 = por %p78, %p79
      %s81 = ssub.s32 %s17, %s24
      %p82 = scmp.eq.s32.totalorder %s81, 0
      %s84 = sadd.s32 %s83, 1
      %s85 = scalar_select %p82, %s83, %s84
      %p88 = pneg %p82
      %p89 = scmp.eq.s32.totalorder %s9, 1
      %p90 = por %p88, %p89
      %p91 = scmp.ne.s32.totalorder %s83, %s86
      %p92 = scmp.eq.s32.totalorder %s9, 0
      %p93 = por %p91, %p92
      %p94 = scmp.ne.s32.totalorder %s83, %s86
      %p95 = scmp.eq.s32.totalorder %s14, 1
      %p96 = por %p94, %p95
      %p97 = scmp.ne.s32.totalorder %s86, %s87
      %p98 = scmp.eq.s32.totalorder %s14, 0
      %p99 = por %p97, %p98
      %p100 = scmp.ne.s32.totalorder %s86, %s87
      %p101 = scmp.eq.s32.totalorder %s15, 1
      %p102 = por %p100, %p101
      %p104 = scmp.ne.s32.totalorder %s87, %s103
      %p105 = scmp.eq.s32.totalorder %s15, 0
      %p106 = por %p104, %p105
      %s107 = ssub.s32 %s16, %s28
      %s108 = ssub.s32 %s17, %s24
      %s109 = sor.u32 %s107, %s108
      %p110 = scmp.eq.s32.totalorder %s109, 0
      %s112 = sadd.s32 %s111, 1
      %s113 = scalar_select %p110, %s111, %s112
      %p116 = pneg %p110
      %p117 = scmp.eq.s32.totalorder %s9, 1
      %p118 = por %p116, %p117
      %p119 = scmp.ne.s32.totalorder %s111, %s114
      %p120 = scmp.eq.s32.totalorder %s9, 0
      %p121 = por %p119, %p120
      %p122 = scmp.ne.s32.totalorder %s111, %s114
      %p123 = scmp.eq.s32.totalorder %s14, 1
      %p124 = por %p122, %p123
      %p125 = scmp.ne.s32.totalorder %s114, %s115
      %p126 = scmp.eq.s32.totalorder %s14, 0
      %p127 = por %p125, %p126
      %p128 = scmp.ne.s32.totalorder %s114, %s115
      %p129 = scmp.eq.s32.totalorder %s15, 1
      %p130 = por %p128, %p129
      %p132 = scmp.ne.s32.totalorder %s115, %s131
      %p133 = scmp.eq.s32.totalorder %s15, 0
      %p134 = por %p132, %p133
      %p135 = scmp.le.s32.totalorder 1, %s9
      %p136 = scmp.lt.s32.totalorder %s9, 3
      %p137 = pnand %p135, %p136
      %p138 = pneg %p137
      // Predicated region
      $region9: #{headnet_forward.3} parent=5 // pred_check
        _
      $region10: #{headnet_forward.3} parent=5 // pred_check_branch
        %140 = sbr.rel (%p137) target = $region12
      $region11: #{headnet_forward.3} parent=5 // pred_region
        %s141 = ssub.s32 %s9, 1
        // Predicated region
        $region13: #{headnet_forward.3} parent=11 // pred_check
          %p142 = pneg %p47
        $region14: #{headnet_forward.3} parent=11 // pred_check_branch
          %144 = sbr.rel (%p142) target = $region16
        $region15: #{headnet_forward.3} parent=11 // pred_region
          %s145 = smul.u32 14, %s18
          %p146 = scmp.lt.s32.totalorder %s145, 13
          %s147 = scalar_select %p146, %s145, 13
          %s148 = smul.addr %s147, 25
          %s149 = smul.addr %s148, 4
          %s150 = scalar_lea.vmem %s0, %s149
          %s151 = smul.u32 14, %s18
        $region16: #{headnet_forward.3} parent=11 // pred_fallthru
          _
      $region12: #{headnet_forward.3} parent=5 // pred_fallthru
        _
      %p152 = scmp.lt.s32.totalorder %s9, 2
      // Predicated region
      $region17: #{headnet_forward.3} parent=5 // pred_check
        %p153 = pneg %p152
      $region18: #{headnet_forward.3} parent=5 // pred_check_branch
        %155 = sbr.rel (%p153) target = $region20
      $region19: #{headnet_forward.3} parent=5 // pred_region
        // Predicated region
        $region21: #{headnet_forward.3} parent=19 // pred_check
          %p156 = pneg %p67
        $region22: #{headnet_forward.3} parent=19 // pred_check_branch
          %158 = sbr.rel (%p156) target = $region24
        $region23: #{headnet_forward.3} parent=19 // pred_region
          %s159 = sand.u32 %s57, 1
          %s160 = sand.u32 %s57, 1
          %s161 = smul.addr %s160, 1600
          %s162 = scalar_lea.vmem [#allocation2], %s161
          %s163 = smul.addr %s17, 4
          %s164 = scalar_lea.vmem %s1, %s163
          // Predicated region
          $region25: #{headnet_forward.3} parent=23 // pred_check
            _
          $region26: #{headnet_forward.3} parent=23 // pred_check_branch
            %166 = sbr.rel (0) target = $region28
          $region27: #{headnet_forward.3} parent=23 // pred_region
            // Predicated region
            $region29: #{headnet_forward.3} parent=27 // pred_check
              _
            $region30: #{headnet_forward.3} parent=27 // pred_check_branch
              %168 = sbr.rel target = $region32
            $region31: #{headnet_forward.3} parent=27 // pred_region
              // Predicated region
              $region44: #{headnet_forward.3} parent=31 // pred_check
                _
              $region45: #{headnet_forward.3} parent=31 // pred_check_branch
                %981 = sbr.rel (0) target = $region47
              $region46: #{headnet_forward.3} parent=31 // pred_region
                loop: start=0, step=1, limit=1
                $region48: #{headnet_forward.3} parent=46 // loop_pre_header
                  _
                $region49: #{headnet_forward.3} parent=46 // loop_header
                  %s983 = sphi 0, %s987
                  %p984 = scmp.ge.s32.totalorder %s983, 1
                  %s988 = sphi %s164, %s164
                  %s989 = sphi %s162, %s162
                $region50: #{headnet_forward.3} parent=46 // loop_header_branch
                  %986 = sbr.rel (%p984) target = $region54
                $region51: #{headnet_forward.3} parent=46 // loop_body
                  _
                $region52: #{headnet_forward.3} parent=46 // loop_footer
                  %s987 = sadd.s32 1, %s983
                $region53: #{headnet_forward.3} parent=46 // loop_footer_branch
                  %982 = sbr.rel target = $region49
                $region54: #{headnet_forward.3} parent=46 // loop_exit
                  _
                loop: start=0, step=1, limit=1
                $region55: #{headnet_forward.3} parent=46 // loop_pre_header
                  _
                $region56: #{headnet_forward.3} parent=46 // loop_header
                  %s992 = sphi 0, %s996
                  %p993 = scmp.ge.s32.totalorder %s992, 1
                  %s997 = sphi %s164, %s164
                  %s998 = sphi %s162, %s162
                $region57: #{headnet_forward.3} parent=46 // loop_header_branch
                  %995 = sbr.rel (%p993) target = $region61
                $region58: #{headnet_forward.3} parent=46 // loop_body
                  %v999 = vld [vmem:[%s997] sm:$0xf]
                  %1000 = vst [vmem:[%s998] sm:$0xf] %v999
                  %v1001 = vld [vmem:[%s997 + $0x8] sm:$0xf]
                  %1002 = vst [vmem:[%s998 + $0x4] sm:$0xf] %v1001
                  %v1003 = vld [vmem:[%s997 + $0x10] sm:$0xf]
                  %1004 = vst [vmem:[%s998 + $0x8] sm:$0xf] %v1003
                  %v1005 = vld [vmem:[%s997 + $0x18] sm:$0xf]
                  %1006 = vst [vmem:[%s998 + $0xc] sm:$0xf] %v1005
                  %v1007 = vld [vmem:[%s997 + $0x20] sm:$0xf]
                  %1008 = vst [vmem:[%s998 + $0x10] sm:$0xf] %v1007
                  %v1009 = vld [vmem:[%s997 + $0x28] sm:$0xf]
                  %1010 = vst [vmem:[%s998 + $0x14] sm:$0xf] %v1009
                  %v1011 = vld [vmem:[%s997 + $0x30] sm:$0xf]
                  %1012 = vst [vmem:[%s998 + $0x18] sm:$0xf] %v1011
                  %v1013 = vld [vmem:[%s997 + $0x38] sm:$0xf]
                  %1014 = vst [vmem:[%s998 + $0x1c] sm:$0xf] %v1013
                  %v1015 = vld [vmem:[%s997 + $0x40] sm:$0xf]
                  %1016 = vst [vmem:[%s998 + $0x20] sm:$0xf] %v1015
                  %v1017 = vld [vmem:[%s997 + $0x48] sm:$0xf]
                  %1018 = vst [vmem:[%s998 + $0x24] sm:$0xf] %v1017
                  %v1019 = vld [vmem:[%s997 + $0x50] sm:$0xf]
                  %1020 = vst [vmem:[%s998 + $0x28] sm:$0xf] %v1019
                  %v1021 = vld [vmem:[%s997 + $0x58] sm:$0xf]
                  %1022 = vst [vmem:[%s998 + $0x2c] sm:$0xf] %v1021
                  %v1023 = vld [vmem:[%s997 + $0x60] sm:$0xf]
                  %1024 = vst [vmem:[%s998 + $0x30] sm:$0xf] %v1023
                  %v1025 = vld [vmem:[%s997 + $0x68] sm:$0xf]
                  %1026 = vst [vmem:[%s998 + $0x34] sm:$0xf] %v1025
                  %v1027 = vld [vmem:[%s997 + $0x70] sm:$0xf]
                  %1028 = vst [vmem:[%s998 + $0x38] sm:$0xf] %v1027
                  %v1029 = vld [vmem:[%s997 + $0x78] sm:$0xf]
                  %1030 = vst [vmem:[%s998 + $0x3c] sm:$0xf] %v1029
                  %v1031 = vld [vmem:[%s997 + $0x80] sm:$0xf]
                  %1032 = vst [vmem:[%s998 + $0x40] sm:$0xf] %v1031
                  %v1033 = vld [vmem:[%s997 + $0x88] sm:$0xf]
                  %1034 = vst [vmem:[%s998 + $0x44] sm:$0xf] %v1033
                  %v1035 = vld [vmem:[%s997 + $0x90] sm:$0xf]
                  %1036 = vst [vmem:[%s998 + $0x48] sm:$0xf] %v1035
                  %v1037 = vld [vmem:[%s997 + $0x98] sm:$0xf]
                  %1038 = vst [vmem:[%s998 + $0x4c] sm:$0xf] %v1037
                  %v1039 = vld [vmem:[%s997 + $0xa0] sm:$0xf]
                  %1040 = vst [vmem:[%s998 + $0x50] sm:$0xf] %v1039
                  %v1041 = vld [vmem:[%s997 + $0xa8] sm:$0xf]
                  %1042 = vst [vmem:[%s998 + $0x54] sm:$0xf] %v1041
                  %v1043 = vld [vmem:[%s997 + $0xb0] sm:$0xf]
                  %1044 = vst [vmem:[%s998 + $0x58] sm:$0xf] %v1043
                  %v1045 = vld [vmem:[%s997 + $0xb8] sm:$0xf]
                  %1046 = vst [vmem:[%s998 + $0x5c] sm:$0xf] %v1045
                  %v1047 = vld [vmem:[%s997 + $0xc0] sm:$0xf]
                  %1048 = vst [vmem:[%s998 + $0x60] sm:$0xf] %v1047
                  %v1049 = vld [vmem:[%s997 + $0xc8] sm:$0xf]
                  %1050 = vst [vmem:[%s998 + $0x64] sm:$0xf] %v1049
                  %v1051 = vld [vmem:[%s997 + $0xd0] sm:$0xf]
                  %1052 = vst [vmem:[%s998 + $0x68] sm:$0xf] %v1051
                  %v1053 = vld [vmem:[%s997 + $0xd8] sm:$0xf]
                  %1054 = vst [vmem:[%s998 + $0x6c] sm:$0xf] %v1053
                  %v1055 = vld [vmem:[%s997 + $0xe0] sm:$0xf]
                  %1056 = vst [vmem:[%s998 + $0x70] sm:$0xf] %v1055
                  %v1057 = vld [vmem:[%s997 + $0xe8] sm:$0xf]
                  %1058 = vst [vmem:[%s998 + $0x74] sm:$0xf] %v1057
                  %v1059 = vld [vmem:[%s997 + $0xf0] sm:$0xf]
                  %1060 = vst [vmem:[%s998 + $0x78] sm:$0xf] %v1059
                  %v1061 = vld [vmem:[%s997 + $0xf8] sm:$0xf]
                  %1062 = vst [vmem:[%s998 + $0x7c] sm:$0xf] %v1061
                  %v1063 = vld [vmem:[%s997 + $0x100] sm:$0xf]
                  %1064 = vst [vmem:[%s998 + $0x80] sm:$0xf] %v1063
                  %v1065 = vld [vmem:[%s997 + $0x108] sm:$0xf]
                  %1066 = vst [vmem:[%s998 + $0x84] sm:$0xf] %v1065
                  %v1067 = vld [vmem:[%s997 + $0x110] sm:$0xf]
                  %1068 = vst [vmem:[%s998 + $0x88] sm:$0xf] %v1067
                  %v1069 = vld [vmem:[%s997 + $0x118] sm:$0xf]
                  %1070 = vst [vmem:[%s998 + $0x8c] sm:$0xf] %v1069
                  %v1071 = vld [vmem:[%s997 + $0x120] sm:$0xf]
                  %1072 = vst [vmem:[%s998 + $0x90] sm:$0xf] %v1071
                  %v1073 = vld [vmem:[%s997 + $0x128] sm:$0xf]
                  %1074 = vst [vmem:[%s998 + $0x94] sm:$0xf] %v1073
                  %v1075 = vld [vmem:[%s997 + $0x130] sm:$0xf]
                  %1076 = vst [vmem:[%s998 + $0x98] sm:$0xf] %v1075
                  %v1077 = vld [vmem:[%s997 + $0x138] sm:$0xf]
                  %1078 = vst [vmem:[%s998 + $0x9c] sm:$0xf] %v1077
                  %v1079 = vld [vmem:[%s997 + $0x140] sm:$0xf]
                  %1080 = vst [vmem:[%s998 + $0xa0] sm:$0xf] %v1079
                  %v1081 = vld [vmem:[%s997 + $0x148] sm:$0xf]
                  %1082 = vst [vmem:[%s998 + $0xa4] sm:$0xf] %v1081
                  %v1083 = vld [vmem:[%s997 + $0x150] sm:$0xf]
                  %1084 = vst [vmem:[%s998 + $0xa8] sm:$0xf] %v1083
                  %v1085 = vld [vmem:[%s997 + $0x158] sm:$0xf]
                  %1086 = vst [vmem:[%s998 + $0xac] sm:$0xf] %v1085
                  %v1087 = vld [vmem:[%s997 + $0x160] sm:$0xf]
                  %1088 = vst [vmem:[%s998 + $0xb0] sm:$0xf] %v1087
                  %v1089 = vld [vmem:[%s997 + $0x168] sm:$0xf]
                  %1090 = vst [vmem:[%s998 + $0xb4] sm:$0xf] %v1089
                  %v1091 = vld [vmem:[%s997 + $0x170] sm:$0xf]
                  %1092 = vst [vmem:[%s998 + $0xb8] sm:$0xf] %v1091
                  %v1093 = vld [vmem:[%s997 + $0x178] sm:$0xf]
                  %1094 = vst [vmem:[%s998 + $0xbc] sm:$0xf] %v1093
                  %v1095 = vld [vmem:[%s997 + $0x180] sm:$0xf]
                  %1096 = vst [vmem:[%s998 + $0xc0] sm:$0xf] %v1095
                  %v1097 = vld [vmem:[%s997 + $0x188] sm:$0xf]
                  %1098 = vst [vmem:[%s998 + $0xc4] sm:$0xf] %v1097
                  %v1099 = vld [vmem:[%s997 + $0x190] sm:$0xf]
                  %1100 = vst [vmem:[%s998 + $0xc8] sm:$0xf] %v1099
                  %v1101 = vld [vmem:[%s997 + $0x198] sm:$0xf]
                  %1102 = vst [vmem:[%s998 + $0xcc] sm:$0xf] %v1101
                  %v1103 = vld [vmem:[%s997 + $0x1a0] sm:$0xf]
                  %1104 = vst [vmem:[%s998 + $0xd0] sm:$0xf] %v1103
                  %v1105 = vld [vmem:[%s997 + $0x1a8] sm:$0xf]
                  %1106 = vst [vmem:[%s998 + $0xd4] sm:$0xf] %v1105
                  %v1107 = vld [vmem:[%s997 + $0x1b0] sm:$0xf]
                  %1108 = vst [vmem:[%s998 + $0xd8] sm:$0xf] %v1107
                  %v1109 = vld [vmem:[%s997 + $0x1b8] sm:$0xf]
                  %1110 = vst [vmem:[%s998 + $0xdc] sm:$0xf] %v1109
                  %v1111 = vld [vmem:[%s997 + $0x1c0] sm:$0xf]
                  %1112 = vst [vmem:[%s998 + $0xe0] sm:$0xf] %v1111
                  %v1113 = vld [vmem:[%s997 + $0x1c8] sm:$0xf]
                  %1114 = vst [vmem:[%s998 + $0xe4] sm:$0xf] %v1113
                  %v1115 = vld [vmem:[%s997 + $0x1d0] sm:$0xf]
                  %1116 = vst [vmem:[%s998 + $0xe8] sm:$0xf] %v1115
                  %v1117 = vld [vmem:[%s997 + $0x1d8] sm:$0xf]
                  %1118 = vst [vmem:[%s998 + $0xec] sm:$0xf] %v1117
                  %v1119 = vld [vmem:[%s997 + $0x1e0] sm:$0xf]
                  %1120 = vst [vmem:[%s998 + $0xf0] sm:$0xf] %v1119
                  %v1121 = vld [vmem:[%s997 + $0x1e8] sm:$0xf]
                  %1122 = vst [vmem:[%s998 + $0xf4] sm:$0xf] %v1121
                  %v1123 = vld [vmem:[%s997 + $0x1f0] sm:$0xf]
                  %1124 = vst [vmem:[%s998 + $0xf8] sm:$0xf] %v1123
                  %v1125 = vld [vmem:[%s997 + $0x1f8] sm:$0xf]
                  %1126 = vst [vmem:[%s998 + $0xfc] sm:$0xf] %v1125
                  %v1127 = vld [vmem:[%s997 + $0x200] sm:$0xf]
                  %1128 = vst [vmem:[%s998 + $0x100] sm:$0xf] %v1127
                  %v1129 = vld [vmem:[%s997 + $0x208] sm:$0xf]
                  %1130 = vst [vmem:[%s998 + $0x104] sm:$0xf] %v1129
                  %v1131 = vld [vmem:[%s997 + $0x210] sm:$0xf]
                  %1132 = vst [vmem:[%s998 + $0x108] sm:$0xf] %v1131
                  %v1133 = vld [vmem:[%s997 + $0x218] sm:$0xf]
                  %1134 = vst [vmem:[%s998 + $0x10c] sm:$0xf] %v1133
                  %v1135 = vld [vmem:[%s997 + $0x220] sm:$0xf]
                  %1136 = vst [vmem:[%s998 + $0x110] sm:$0xf] %v1135
                  %v1137 = vld [vmem:[%s997 + $0x228] sm:$0xf]
                  %1138 = vst [vmem:[%s998 + $0x114] sm:$0xf] %v1137
                  %v1139 = vld [vmem:[%s997 + $0x230] sm:$0xf]
                  %1140 = vst [vmem:[%s998 + $0x118] sm:$0xf] %v1139
                  %v1141 = vld [vmem:[%s997 + $0x238] sm:$0xf]
                  %1142 = vst [vmem:[%s998 + $0x11c] sm:$0xf] %v1141
                  %v1143 = vld [vmem:[%s997 + $0x240] sm:$0xf]
                  %1144 = vst [vmem:[%s998 + $0x120] sm:$0xf] %v1143
                  %v1145 = vld [vmem:[%s997 + $0x248] sm:$0xf]
                  %1146 = vst [vmem:[%s998 + $0x124] sm:$0xf] %v1145
                  %v1147 = vld [vmem:[%s997 + $0x250] sm:$0xf]
                  %1148 = vst [vmem:[%s998 + $0x128] sm:$0xf] %v1147
                  %v1149 = vld [vmem:[%s997 + $0x258] sm:$0xf]
                  %1150 = vst [vmem:[%s998 + $0x12c] sm:$0xf] %v1149
                  %v1151 = vld [vmem:[%s997 + $0x260] sm:$0xf]
                  %1152 = vst [vmem:[%s998 + $0x130] sm:$0xf] %v1151
                  %v1153 = vld [vmem:[%s997 + $0x268] sm:$0xf]
                  %1154 = vst [vmem:[%s998 + $0x134] sm:$0xf] %v1153
                  %v1155 = vld [vmem:[%s997 + $0x270] sm:$0xf]
                  %1156 = vst [vmem:[%s998 + $0x138] sm:$0xf] %v1155
                  %v1157 = vld [vmem:[%s997 + $0x278] sm:$0xf]
                  %1158 = vst [vmem:[%s998 + $0x13c] sm:$0xf] %v1157
                  %v1159 = vld [vmem:[%s997 + $0x280] sm:$0xf]
                  %1160 = vst [vmem:[%s998 + $0x140] sm:$0xf] %v1159
                  %v1161 = vld [vmem:[%s997 + $0x288] sm:$0xf]
                  %1162 = vst [vmem:[%s998 + $0x144] sm:$0xf] %v1161
                  %v1163 = vld [vmem:[%s997 + $0x290] sm:$0xf]
                  %1164 = vst [vmem:[%s998 + $0x148] sm:$0xf] %v1163
                  %v1165 = vld [vmem:[%s997 + $0x298] sm:$0xf]
                  %1166 = vst [vmem:[%s998 + $0x14c] sm:$0xf] %v1165
                  %v1167 = vld [vmem:[%s997 + $0x2a0] sm:$0xf]
                  %1168 = vst [vmem:[%s998 + $0x150] sm:$0xf] %v1167
                  %v1169 = vld [vmem:[%s997 + $0x2a8] sm:$0xf]
                  %1170 = vst [vmem:[%s998 + $0x154] sm:$0xf] %v1169
                  %v1171 = vld [vmem:[%s997 + $0x2b0] sm:$0xf]
                  %1172 = vst [vmem:[%s998 + $0x158] sm:$0xf] %v1171
                  %v1173 = vld [vmem:[%s997 + $0x2b8] sm:$0xf]
                  %1174 = vst [vmem:[%s998 + $0x15c] sm:$0xf] %v1173
                  %v1175 = vld [vmem:[%s997 + $0x2c0] sm:$0xf]
                  %1176 = vst [vmem:[%s998 + $0x160] sm:$0xf] %v1175
                  %v1177 = vld [vmem:[%s997 + $0x2c8] sm:$0xf]
                  %1178 = vst [vmem:[%s998 + $0x164] sm:$0xf] %v1177
                  %v1179 = vld [vmem:[%s997 + $0x2d0] sm:$0xf]
                  %1180 = vst [vmem:[%s998 + $0x168] sm:$0xf] %v1179
                  %v1181 = vld [vmem:[%s997 + $0x2d8] sm:$0xf]
                  %1182 = vst [vmem:[%s998 + $0x16c] sm:$0xf] %v1181
                  %v1183 = vld [vmem:[%s997 + $0x2e0] sm:$0xf]
                  %1184 = vst [vmem:[%s998 + $0x170] sm:$0xf] %v1183
                  %v1185 = vld [vmem:[%s997 + $0x2e8] sm:$0xf]
                  %1186 = vst [vmem:[%s998 + $0x174] sm:$0xf] %v1185
                  %v1187 = vld [vmem:[%s997 + $0x2f0] sm:$0xf]
                  %1188 = vst [vmem:[%s998 + $0x178] sm:$0xf] %v1187
                  %v1189 = vld [vmem:[%s997 + $0x2f8] sm:$0xf]
                  %1190 = vst [vmem:[%s998 + $0x17c] sm:$0xf] %v1189
                  %v1191 = vld [vmem:[%s997 + $0x300] sm:$0xf]
                  %1192 = vst [vmem:[%s998 + $0x180] sm:$0xf] %v1191
                  %v1193 = vld [vmem:[%s997 + $0x308] sm:$0xf]
                  %1194 = vst [vmem:[%s998 + $0x184] sm:$0xf] %v1193
                  %v1195 = vld [vmem:[%s997 + $0x310] sm:$0xf]
                  %1196 = vst [vmem:[%s998 + $0x188] sm:$0xf] %v1195
                  %v1197 = vld [vmem:[%s997 + $0x318] sm:$0xf]
                  %1198 = vst [vmem:[%s998 + $0x18c] sm:$0xf] %v1197
                  %v1199 = vld [vmem:[%s997 + $0x320] sm:$0xf]
                  %1200 = vst [vmem:[%s998 + $0x190] sm:$0xf] %v1199
                  %v1201 = vld [vmem:[%s997 + $0x328] sm:$0xf]
                  %1202 = vst [vmem:[%s998 + $0x194] sm:$0xf] %v1201
                  %v1203 = vld [vmem:[%s997 + $0x330] sm:$0xf]
                  %1204 = vst [vmem:[%s998 + $0x198] sm:$0xf] %v1203
                  %v1205 = vld [vmem:[%s997 + $0x338] sm:$0xf]
                  %1206 = vst [vmem:[%s998 + $0x19c] sm:$0xf] %v1205
                  %v1207 = vld [vmem:[%s997 + $0x340] sm:$0xf]
                  %1208 = vst [vmem:[%s998 + $0x1a0] sm:$0xf] %v1207
                  %v1209 = vld [vmem:[%s997 + $0x348] sm:$0xf]
                  %1210 = vst [vmem:[%s998 + $0x1a4] sm:$0xf] %v1209
                  %v1211 = vld [vmem:[%s997 + $0x350] sm:$0xf]
                  %1212 = vst [vmem:[%s998 + $0x1a8] sm:$0xf] %v1211
                  %v1213 = vld [vmem:[%s997 + $0x358] sm:$0xf]
                  %1214 = vst [vmem:[%s998 + $0x1ac] sm:$0xf] %v1213
                  %v1215 = vld [vmem:[%s997 + $0x360] sm:$0xf]
                  %1216 = vst [vmem:[%s998 + $0x1b0] sm:$0xf] %v1215
                  %v1217 = vld [vmem:[%s997 + $0x368] sm:$0xf]
                  %1218 = vst [vmem:[%s998 + $0x1b4] sm:$0xf] %v1217
                  %v1219 = vld [vmem:[%s997 + $0x370] sm:$0xf]
                  %1220 = vst [vmem:[%s998 + $0x1b8] sm:$0xf] %v1219
                  %v1221 = vld [vmem:[%s997 + $0x378] sm:$0xf]
                  %1222 = vst [vmem:[%s998 + $0x1bc] sm:$0xf] %v1221
                  %v1223 = vld [vmem:[%s997 + $0x380] sm:$0xf]
                  %1224 = vst [vmem:[%s998 + $0x1c0] sm:$0xf] %v1223
                  %v1225 = vld [vmem:[%s997 + $0x388] sm:$0xf]
                  %1226 = vst [vmem:[%s998 + $0x1c4] sm:$0xf] %v1225
                  %v1227 = vld [vmem:[%s997 + $0x390] sm:$0xf]
                  %1228 = vst [vmem:[%s998 + $0x1c8] sm:$0xf] %v1227
                  %v1229 = vld [vmem:[%s997 + $0x398] sm:$0xf]
                  %1230 = vst [vmem:[%s998 + $0x1cc] sm:$0xf] %v1229
                  %v1231 = vld [vmem:[%s997 + $0x3a0] sm:$0xf]
                  %1232 = vst [vmem:[%s998 + $0x1d0] sm:$0xf] %v1231
                  %v1233 = vld [vmem:[%s997 + $0x3a8] sm:$0xf]
                  %1234 = vst [vmem:[%s998 + $0x1d4] sm:$0xf] %v1233
                  %v1235 = vld [vmem:[%s997 + $0x3b0] sm:$0xf]
                  %1236 = vst [vmem:[%s998 + $0x1d8] sm:$0xf] %v1235
                  %v1237 = vld [vmem:[%s997 + $0x3b8] sm:$0xf]
                  %1238 = vst [vmem:[%s998 + $0x1dc] sm:$0xf] %v1237
                  %v1239 = vld [vmem:[%s997 + $0x3c0] sm:$0xf]
                  %1240 = vst [vmem:[%s998 + $0x1e0] sm:$0xf] %v1239
                  %v1241 = vld [vmem:[%s997 + $0x3c8] sm:$0xf]
                  %1242 = vst [vmem:[%s998 + $0x1e4] sm:$0xf] %v1241
                  %v1243 = vld [vmem:[%s997 + $0x3d0] sm:$0xf]
                  %1244 = vst [vmem:[%s998 + $0x1e8] sm:$0xf] %v1243
                  %v1245 = vld [vmem:[%s997 + $0x3d8] sm:$0xf]
                  %1246 = vst [vmem:[%s998 + $0x1ec] sm:$0xf] %v1245
                  %v1247 = vld [vmem:[%s997 + $0x3e0] sm:$0xf]
                  %1248 = vst [vmem:[%s998 + $0x1f0] sm:$0xf] %v1247
                  %v1249 = vld [vmem:[%s997 + $0x3e8] sm:$0xf]
                  %1250 = vst [vmem:[%s998 + $0x1f4] sm:$0xf] %v1249
                  %v1251 = vld [vmem:[%s997 + $0x3f0] sm:$0xf]
                  %1252 = vst [vmem:[%s998 + $0x1f8] sm:$0xf] %v1251
                  %v1253 = vld [vmem:[%s997 + $0x3f8] sm:$0xf]
                  %1254 = vst [vmem:[%s998 + $0x1fc] sm:$0xf] %v1253
                  %v1255 = vld [vmem:[%s997 + $0x400] sm:$0xf]
                  %1256 = vst [vmem:[%s998 + $0x200] sm:$0xf] %v1255
                  %v1257 = vld [vmem:[%s997 + $0x408] sm:$0xf]
                  %1258 = vst [vmem:[%s998 + $0x204] sm:$0xf] %v1257
                  %v1259 = vld [vmem:[%s997 + $0x410] sm:$0xf]
                  %1260 = vst [vmem:[%s998 + $0x208] sm:$0xf] %v1259
                  %v1261 = vld [vmem:[%s997 + $0x418] sm:$0xf]
                  %1262 = vst [vmem:[%s998 + $0x20c] sm:$0xf] %v1261
                  %v1263 = vld [vmem:[%s997 + $0x420] sm:$0xf]
                  %1264 = vst [vmem:[%s998 + $0x210] sm:$0xf] %v1263
                  %v1265 = vld [vmem:[%s997 + $0x428] sm:$0xf]
                  %1266 = vst [vmem:[%s998 + $0x214] sm:$0xf] %v1265
                  %v1267 = vld [vmem:[%s997 + $0x430] sm:$0xf]
                  %1268 = vst [vmem:[%s998 + $0x218] sm:$0xf] %v1267
                  %v1269 = vld [vmem:[%s997 + $0x438] sm:$0xf]
                  %1270 = vst [vmem:[%s998 + $0x21c] sm:$0xf] %v1269
                  %v1271 = vld [vmem:[%s997 + $0x440] sm:$0xf]
                  %1272 = vst [vmem:[%s998 + $0x220] sm:$0xf] %v1271
                  %v1273 = vld [vmem:[%s997 + $0x448] sm:$0xf]
                  %1274 = vst [vmem:[%s998 + $0x224] sm:$0xf] %v1273
                  %v1275 = vld [vmem:[%s997 + $0x450] sm:$0xf]
                  %1276 = vst [vmem:[%s998 + $0x228] sm:$0xf] %v1275
                  %v1277 = vld [vmem:[%s997 + $0x458] sm:$0xf]
                  %1278 = vst [vmem:[%s998 + $0x22c] sm:$0xf] %v1277
                  %v1279 = vld [vmem:[%s997 + $0x460] sm:$0xf]
                  %1280 = vst [vmem:[%s998 + $0x230] sm:$0xf] %v1279
                  %v1281 = vld [vmem:[%s997 + $0x468] sm:$0xf]
                  %1282 = vst [vmem:[%s998 + $0x234] sm:$0xf] %v1281
                  %v1283 = vld [vmem:[%s997 + $0x470] sm:$0xf]
                  %1284 = vst [vmem:[%s998 + $0x238] sm:$0xf] %v1283
                  %v1285 = vld [vmem:[%s997 + $0x478] sm:$0xf]
                  %1286 = vst [vmem:[%s998 + $0x23c] sm:$0xf] %v1285
                  %v1287 = vld [vmem:[%s997 + $0x480] sm:$0xf]
                  %1288 = vst [vmem:[%s998 + $0x240] sm:$0xf] %v1287
                  %v1289 = vld [vmem:[%s997 + $0x488] sm:$0xf]
                  %1290 = vst [vmem:[%s998 + $0x244] sm:$0xf] %v1289
                  %v1291 = vld [vmem:[%s997 + $0x490] sm:$0xf]
                  %1292 = vst [vmem:[%s998 + $0x248] sm:$0xf] %v1291
                  %v1293 = vld [vmem:[%s997 + $0x498] sm:$0xf]
                  %1294 = vst [vmem:[%s998 + $0x24c] sm:$0xf] %v1293
                  %v1295 = vld [vmem:[%s997 + $0x4a0] sm:$0xf]
                  %1296 = vst [vmem:[%s998 + $0x250] sm:$0xf] %v1295
                  %v1297 = vld [vmem:[%s997 + $0x4a8] sm:$0xf]
                  %1298 = vst [vmem:[%s998 + $0x254] sm:$0xf] %v1297
                  %v1299 = vld [vmem:[%s997 + $0x4b0] sm:$0xf]
                  %1300 = vst [vmem:[%s998 + $0x258] sm:$0xf] %v1299
                  %v1301 = vld [vmem:[%s997 + $0x4b8] sm:$0xf]
                  %1302 = vst [vmem:[%s998 + $0x25c] sm:$0xf] %v1301
                  %v1303 = vld [vmem:[%s997 + $0x4c0] sm:$0xf]
                  %1304 = vst [vmem:[%s998 + $0x260] sm:$0xf] %v1303
                  %v1305 = vld [vmem:[%s997 + $0x4c8] sm:$0xf]
                  %1306 = vst [vmem:[%s998 + $0x264] sm:$0xf] %v1305
                  %v1307 = vld [vmem:[%s997 + $0x4d0] sm:$0xf]
                  %1308 = vst [vmem:[%s998 + $0x268] sm:$0xf] %v1307
                  %v1309 = vld [vmem:[%s997 + $0x4d8] sm:$0xf]
                  %1310 = vst [vmem:[%s998 + $0x26c] sm:$0xf] %v1309
                  %v1311 = vld [vmem:[%s997 + $0x4e0] sm:$0xf]
                  %1312 = vst [vmem:[%s998 + $0x270] sm:$0xf] %v1311
                  %v1313 = vld [vmem:[%s997 + $0x4e8] sm:$0xf]
                  %1314 = vst [vmem:[%s998 + $0x274] sm:$0xf] %v1313
                  %v1315 = vld [vmem:[%s997 + $0x4f0] sm:$0xf]
                  %1316 = vst [vmem:[%s998 + $0x278] sm:$0xf] %v1315
                  %v1317 = vld [vmem:[%s997 + $0x4f8] sm:$0xf]
                  %1318 = vst [vmem:[%s998 + $0x27c] sm:$0xf] %v1317
                  %v1319 = vld [vmem:[%s997 + $0x500] sm:$0xf]
                  %1320 = vst [vmem:[%s998 + $0x280] sm:$0xf] %v1319
                  %v1321 = vld [vmem:[%s997 + $0x508] sm:$0xf]
                  %1322 = vst [vmem:[%s998 + $0x284] sm:$0xf] %v1321
                  %v1323 = vld [vmem:[%s997 + $0x510] sm:$0xf]
                  %1324 = vst [vmem:[%s998 + $0x288] sm:$0xf] %v1323
                  %v1325 = vld [vmem:[%s997 + $0x518] sm:$0xf]
                  %1326 = vst [vmem:[%s998 + $0x28c] sm:$0xf] %v1325
                  %v1327 = vld [vmem:[%s997 + $0x520] sm:$0xf]
                  %1328 = vst [vmem:[%s998 + $0x290] sm:$0xf] %v1327
                  %v1329 = vld [vmem:[%s997 + $0x528] sm:$0xf]
                  %1330 = vst [vmem:[%s998 + $0x294] sm:$0xf] %v1329
                  %v1331 = vld [vmem:[%s997 + $0x530] sm:$0xf]
                  %1332 = vst [vmem:[%s998 + $0x298] sm:$0xf] %v1331
                  %v1333 = vld [vmem:[%s997 + $0x538] sm:$0xf]
                  %1334 = vst [vmem:[%s998 + $0x29c] sm:$0xf] %v1333
                  %v1335 = vld [vmem:[%s997 + $0x540] sm:$0xf]
                  %1336 = vst [vmem:[%s998 + $0x2a0] sm:$0xf] %v1335
                  %v1337 = vld [vmem:[%s997 + $0x548] sm:$0xf]
                  %1338 = vst [vmem:[%s998 + $0x2a4] sm:$0xf] %v1337
                  %v1339 = vld [vmem:[%s997 + $0x550] sm:$0xf]
                  %1340 = vst [vmem:[%s998 + $0x2a8] sm:$0xf] %v1339
                  %v1341 = vld [vmem:[%s997 + $0x558] sm:$0xf]
                  %1342 = vst [vmem:[%s998 + $0x2ac] sm:$0xf] %v1341
                  %v1343 = vld [vmem:[%s997 + $0x560] sm:$0xf]
                  %1344 = vst [vmem:[%s998 + $0x2b0] sm:$0xf] %v1343
                  %v1345 = vld [vmem:[%s997 + $0x568] sm:$0xf]
                  %1346 = vst [vmem:[%s998 + $0x2b4] sm:$0xf] %v1345
                  %v1347 = vld [vmem:[%s997 + $0x570] sm:$0xf]
                  %1348 = vst [vmem:[%s998 + $0x2b8] sm:$0xf] %v1347
                  %v1349 = vld [vmem:[%s997 + $0x578] sm:$0xf]
                  %1350 = vst [vmem:[%s998 + $0x2bc] sm:$0xf] %v1349
                  %v1351 = vld [vmem:[%s997 + $0x580] sm:$0xf]
                  %1352 = vst [vmem:[%s998 + $0x2c0] sm:$0xf] %v1351
                  %v1353 = vld [vmem:[%s997 + $0x588] sm:$0xf]
                  %1354 = vst [vmem:[%s998 + $0x2c4] sm:$0xf] %v1353
                  %v1355 = vld [vmem:[%s997 + $0x590] sm:$0xf]
                  %1356 = vst [vmem:[%s998 + $0x2c8] sm:$0xf] %v1355
                  %v1357 = vld [vmem:[%s997 + $0x598] sm:$0xf]
                  %1358 = vst [vmem:[%s998 + $0x2cc] sm:$0xf] %v1357
                  %v1359 = vld [vmem:[%s997 + $0x5a0] sm:$0xf]
                  %1360 = vst [vmem:[%s998 + $0x2d0] sm:$0xf] %v1359
                  %v1361 = vld [vmem:[%s997 + $0x5a8] sm:$0xf]
                  %1362 = vst [vmem:[%s998 + $0x2d4] sm:$0xf] %v1361
                  %v1363 = vld [vmem:[%s997 + $0x5b0] sm:$0xf]
                  %1364 = vst [vmem:[%s998 + $0x2d8] sm:$0xf] %v1363
                  %v1365 = vld [vmem:[%s997 + $0x5b8] sm:$0xf]
                  %1366 = vst [vmem:[%s998 + $0x2dc] sm:$0xf] %v1365
                  %v1367 = vld [vmem:[%s997 + $0x5c0] sm:$0xf]
                  %1368 = vst [vmem:[%s998 + $0x2e0] sm:$0xf] %v1367
                  %v1369 = vld [vmem:[%s997 + $0x5c8] sm:$0xf]
                  %1370 = vst [vmem:[%s998 + $0x2e4] sm:$0xf] %v1369
                  %v1371 = vld [vmem:[%s997 + $0x5d0] sm:$0xf]
                  %1372 = vst [vmem:[%s998 + $0x2e8] sm:$0xf] %v1371
                  %v1373 = vld [vmem:[%s997 + $0x5d8] sm:$0xf]
                  %1374 = vst [vmem:[%s998 + $0x2ec] sm:$0xf] %v1373
                  %v1375 = vld [vmem:[%s997 + $0x5e0] sm:$0xf]
                  %1376 = vst [vmem:[%s998 + $0x2f0] sm:$0xf] %v1375
                  %v1377 = vld [vmem:[%s997 + $0x5e8] sm:$0xf]
                  %1378 = vst [vmem:[%s998 + $0x2f4] sm:$0xf] %v1377
                  %v1379 = vld [vmem:[%s997 + $0x5f0] sm:$0xf]
                  %1380 = vst [vmem:[%s998 + $0x2f8] sm:$0xf] %v1379
                  %v1381 = vld [vmem:[%s997 + $0x5f8] sm:$0xf]
                  %1382 = vst [vmem:[%s998 + $0x2fc] sm:$0xf] %v1381
                  %v1383 = vld [vmem:[%s997 + $0x600] sm:$0xf]
                  %1384 = vst [vmem:[%s998 + $0x300] sm:$0xf] %v1383
                  %v1385 = vld [vmem:[%s997 + $0x608] sm:$0xf]
                  %1386 = vst [vmem:[%s998 + $0x304] sm:$0xf] %v1385
                  %v1387 = vld [vmem:[%s997 + $0x610] sm:$0xf]
                  %1388 = vst [vmem:[%s998 + $0x308] sm:$0xf] %v1387
                  %v1389 = vld [vmem:[%s997 + $0x618] sm:$0xf]
                  %1390 = vst [vmem:[%s998 + $0x30c] sm:$0xf] %v1389
                  %v1391 = vld [vmem:[%s997 + $0x620] sm:$0xf]
                  %1392 = vst [vmem:[%s998 + $0x310] sm:$0xf] %v1391
                  %v1393 = vld [vmem:[%s997 + $0x628] sm:$0xf]
                  %1394 = vst [vmem:[%s998 + $0x314] sm:$0xf] %v1393
                  %v1395 = vld [vmem:[%s997 + $0x630] sm:$0xf]
                  %1396 = vst [vmem:[%s998 + $0x318] sm:$0xf] %v1395
                  %v1397 = vld [vmem:[%s997 + $0x638] sm:$0xf]
                  %1398 = vst [vmem:[%s998 + $0x31c] sm:$0xf] %v1397
                  %v1399 = vld [vmem:[%s997 + $0x640] sm:$0xf]
                  %1400 = vst [vmem:[%s998 + $0x320] sm:$0xf] %v1399
                  %v1401 = vld [vmem:[%s997 + $0x648] sm:$0xf]
                  %1402 = vst [vmem:[%s998 + $0x324] sm:$0xf] %v1401
                  %v1403 = vld [vmem:[%s997 + $0x650] sm:$0xf]
                  %1404 = vst [vmem:[%s998 + $0x328] sm:$0xf] %v1403
                  %v1405 = vld [vmem:[%s997 + $0x658] sm:$0xf]
                  %1406 = vst [vmem:[%s998 + $0x32c] sm:$0xf] %v1405
                  %v1407 = vld [vmem:[%s997 + $0x660] sm:$0xf]
                  %1408 = vst [vmem:[%s998 + $0x330] sm:$0xf] %v1407
                  %v1409 = vld [vmem:[%s997 + $0x668] sm:$0xf]
                  %1410 = vst [vmem:[%s998 + $0x334] sm:$0xf] %v1409
                  %v1411 = vld [vmem:[%s997 + $0x670] sm:$0xf]
                  %1412 = vst [vmem:[%s998 + $0x338] sm:$0xf] %v1411
                  %v1413 = vld [vmem:[%s997 + $0x678] sm:$0xf]
                  %1414 = vst [vmem:[%s998 + $0x33c] sm:$0xf] %v1413
                  %v1415 = vld [vmem:[%s997 + $0x680] sm:$0xf]
                  %1416 = vst [vmem:[%s998 + $0x340] sm:$0xf] %v1415
                  %v1417 = vld [vmem:[%s997 + $0x688] sm:$0xf]
                  %1418 = vst [vmem:[%s998 + $0x344] sm:$0xf] %v1417
                  %v1419 = vld [vmem:[%s997 + $0x690] sm:$0xf]
                  %1420 = vst [vmem:[%s998 + $0x348] sm:$0xf] %v1419
                  %v1421 = vld [vmem:[%s997 + $0x698] sm:$0xf]
                  %1422 = vst [vmem:[%s998 + $0x34c] sm:$0xf] %v1421
                  %v1423 = vld [vmem:[%s997 + $0x6a0] sm:$0xf]
                  %1424 = vst [vmem:[%s998 + $0x350] sm:$0xf] %v1423
                  %v1425 = vld [vmem:[%s997 + $0x6a8] sm:$0xf]
                  %1426 = vst [vmem:[%s998 + $0x354] sm:$0xf] %v1425
                  %v1427 = vld [vmem:[%s997 + $0x6b0] sm:$0xf]
                  %1428 = vst [vmem:[%s998 + $0x358] sm:$0xf] %v1427
                  %v1429 = vld [vmem:[%s997 + $0x6b8] sm:$0xf]
                  %1430 = vst [vmem:[%s998 + $0x35c] sm:$0xf] %v1429
                  %v1431 = vld [vmem:[%s997 + $0x6c0] sm:$0xf]
                  %1432 = vst [vmem:[%s998 + $0x360] sm:$0xf] %v1431
                  %v1433 = vld [vmem:[%s997 + $0x6c8] sm:$0xf]
                  %1434 = vst [vmem:[%s998 + $0x364] sm:$0xf] %v1433
                  %v1435 = vld [vmem:[%s997 + $0x6d0] sm:$0xf]
                  %1436 = vst [vmem:[%s998 + $0x368] sm:$0xf] %v1435
                  %v1437 = vld [vmem:[%s997 + $0x6d8] sm:$0xf]
                  %1438 = vst [vmem:[%s998 + $0x36c] sm:$0xf] %v1437
                  %v1439 = vld [vmem:[%s997 + $0x6e0] sm:$0xf]
                  %1440 = vst [vmem:[%s998 + $0x370] sm:$0xf] %v1439
                  %v1441 = vld [vmem:[%s997 + $0x6e8] sm:$0xf]
                  %1442 = vst [vmem:[%s998 + $0x374] sm:$0xf] %v1441
                  %v1443 = vld [vmem:[%s997 + $0x6f0] sm:$0xf]
                  %1444 = vst [vmem:[%s998 + $0x378] sm:$0xf] %v1443
                  %v1445 = vld [vmem:[%s997 + $0x6f8] sm:$0xf]
                  %1446 = vst [vmem:[%s998 + $0x37c] sm:$0xf] %v1445
                  %v1447 = vld [vmem:[%s997 + $0x700] sm:$0xf]
                  %1448 = vst [vmem:[%s998 + $0x380] sm:$0xf] %v1447
                  %v1449 = vld [vmem:[%s997 + $0x708] sm:$0xf]
                  %1450 = vst [vmem:[%s998 + $0x384] sm:$0xf] %v1449
                  %v1451 = vld [vmem:[%s997 + $0x710] sm:$0xf]
                  %1452 = vst [vmem:[%s998 + $0x388] sm:$0xf] %v1451
                  %v1453 = vld [vmem:[%s997 + $0x718] sm:$0xf]
                  %1454 = vst [vmem:[%s998 + $0x38c] sm:$0xf] %v1453
                  %v1455 = vld [vmem:[%s997 + $0x720] sm:$0xf]
                  %1456 = vst [vmem:[%s998 + $0x390] sm:$0xf] %v1455
                  %v1457 = vld [vmem:[%s997 + $0x728] sm:$0xf]
                  %1458 = vst [vmem:[%s998 + $0x394] sm:$0xf] %v1457
                  %v1459 = vld [vmem:[%s997 + $0x730] sm:$0xf]
                  %1460 = vst [vmem:[%s998 + $0x398] sm:$0xf] %v1459
                  %v1461 = vld [vmem:[%s997 + $0x738] sm:$0xf]
                  %1462 = vst [vmem:[%s998 + $0x39c] sm:$0xf] %v1461
                  %v1463 = vld [vmem:[%s997 + $0x740] sm:$0xf]
                  %1464 = vst [vmem:[%s998 + $0x3a0] sm:$0xf] %v1463
                  %v1465 = vld [vmem:[%s997 + $0x748] sm:$0xf]
                  %1466 = vst [vmem:[%s998 + $0x3a4] sm:$0xf] %v1465
                  %v1467 = vld [vmem:[%s997 + $0x750] sm:$0xf]
                  %1468 = vst [vmem:[%s998 + $0x3a8] sm:$0xf] %v1467
                  %v1469 = vld [vmem:[%s997 + $0x758] sm:$0xf]
                  %1470 = vst [vmem:[%s998 + $0x3ac] sm:$0xf] %v1469
                  %v1471 = vld [vmem:[%s997 + $0x760] sm:$0xf]
                  %1472 = vst [vmem:[%s998 + $0x3b0] sm:$0xf] %v1471
                  %v1473 = vld [vmem:[%s997 + $0x768] sm:$0xf]
                  %1474 = vst [vmem:[%s998 + $0x3b4] sm:$0xf] %v1473
                  %v1475 = vld [vmem:[%s997 + $0x770] sm:$0xf]
                  %1476 = vst [vmem:[%s998 + $0x3b8] sm:$0xf] %v1475
                  %v1477 = vld [vmem:[%s997 + $0x778] sm:$0xf]
                  %1478 = vst [vmem:[%s998 + $0x3bc] sm:$0xf] %v1477
                  %v1479 = vld [vmem:[%s997 + $0x780] sm:$0xf]
                  %1480 = vst [vmem:[%s998 + $0x3c0] sm:$0xf] %v1479
                  %v1481 = vld [vmem:[%s997 + $0x788] sm:$0xf]
                  %1482 = vst [vmem:[%s998 + $0x3c4] sm:$0xf] %v1481
                  %v1483 = vld [vmem:[%s997 + $0x790] sm:$0xf]
                  %1484 = vst [vmem:[%s998 + $0x3c8] sm:$0xf] %v1483
                  %v1485 = vld [vmem:[%s997 + $0x798] sm:$0xf]
                  %1486 = vst [vmem:[%s998 + $0x3cc] sm:$0xf] %v1485
                  %v1487 = vld [vmem:[%s997 + $0x7a0] sm:$0xf]
                  %1488 = vst [vmem:[%s998 + $0x3d0] sm:$0xf] %v1487
                  %v1489 = vld [vmem:[%s997 + $0x7a8] sm:$0xf]
                  %1490 = vst [vmem:[%s998 + $0x3d4] sm:$0xf] %v1489
                  %v1491 = vld [vmem:[%s997 + $0x7b0] sm:$0xf]
                  %1492 = vst [vmem:[%s998 + $0x3d8] sm:$0xf] %v1491
                  %v1493 = vld [vmem:[%s997 + $0x7b8] sm:$0xf]
                  %1494 = vst [vmem:[%s998 + $0x3dc] sm:$0xf] %v1493
                  %v1495 = vld [vmem:[%s997 + $0x7c0] sm:$0xf]
                  %1496 = vst [vmem:[%s998 + $0x3e0] sm:$0xf] %v1495
                  %v1497 = vld [vmem:[%s997 + $0x7c8] sm:$0xf]
                  %1498 = vst [vmem:[%s998 + $0x3e4] sm:$0xf] %v1497
                  %v1499 = vld [vmem:[%s997 + $0x7d0] sm:$0xf]
                  %1500 = vst [vmem:[%s998 + $0x3e8] sm:$0xf] %v1499
                  %v1501 = vld [vmem:[%s997 + $0x7d8] sm:$0xf]
                  %1502 = vst [vmem:[%s998 + $0x3ec] sm:$0xf] %v1501
                  %v1503 = vld [vmem:[%s997 + $0x7e0] sm:$0xf]
                  %1504 = vst [vmem:[%s998 + $0x3f0] sm:$0xf] %v1503
                  %v1505 = vld [vmem:[%s997 + $0x7e8] sm:$0xf]
                  %1506 = vst [vmem:[%s998 + $0x3f4] sm:$0xf] %v1505
                  %v1507 = vld [vmem:[%s997 + $0x7f0] sm:$0xf]
                  %1508 = vst [vmem:[%s998 + $0x3f8] sm:$0xf] %v1507
                  %v1509 = vld [vmem:[%s997 + $0x7f8] sm:$0xf]
                  %1510 = vst [vmem:[%s998 + $0x3fc] sm:$0xf] %v1509
                  %v1511 = vld [vmem:[%s997 + $0x800] sm:$0xf]
                  %1512 = vst [vmem:[%s998 + $0x400] sm:$0xf] %v1511
                  %v1513 = vld [vmem:[%s997 + $0x808] sm:$0xf]
                  %1514 = vst [vmem:[%s998 + $0x404] sm:$0xf] %v1513
                  %v1515 = vld [vmem:[%s997 + $0x810] sm:$0xf]
                  %1516 = vst [vmem:[%s998 + $0x408] sm:$0xf] %v1515
                  %v1517 = vld [vmem:[%s997 + $0x818] sm:$0xf]
                  %1518 = vst [vmem:[%s998 + $0x40c] sm:$0xf] %v1517
                  %v1519 = vld [vmem:[%s997 + $0x820] sm:$0xf]
                  %1520 = vst [vmem:[%s998 + $0x410] sm:$0xf] %v1519
                  %v1521 = vld [vmem:[%s997 + $0x828] sm:$0xf]
                  %1522 = vst [vmem:[%s998 + $0x414] sm:$0xf] %v1521
                  %v1523 = vld [vmem:[%s997 + $0x830] sm:$0xf]
                  %1524 = vst [vmem:[%s998 + $0x418] sm:$0xf] %v1523
                  %v1525 = vld [vmem:[%s997 + $0x838] sm:$0xf]
                  %1526 = vst [vmem:[%s998 + $0x41c] sm:$0xf] %v1525
                  %v1527 = vld [vmem:[%s997 + $0x840] sm:$0xf]
                  %1528 = vst [vmem:[%s998 + $0x420] sm:$0xf] %v1527
                  %v1529 = vld [vmem:[%s997 + $0x848] sm:$0xf]
                  %1530 = vst [vmem:[%s998 + $0x424] sm:$0xf] %v1529
                  %v1531 = vld [vmem:[%s997 + $0x850] sm:$0xf]
                  %1532 = vst [vmem:[%s998 + $0x428] sm:$0xf] %v1531
                  %v1533 = vld [vmem:[%s997 + $0x858] sm:$0xf]
                  %1534 = vst [vmem:[%s998 + $0x42c] sm:$0xf] %v1533
                  %v1535 = vld [vmem:[%s997 + $0x860] sm:$0xf]
                  %1536 = vst [vmem:[%s998 + $0x430] sm:$0xf] %v1535
                  %v1537 = vld [vmem:[%s997 + $0x868] sm:$0xf]
                  %1538 = vst [vmem:[%s998 + $0x434] sm:$0xf] %v1537
                  %v1539 = vld [vmem:[%s997 + $0x870] sm:$0xf]
                  %1540 = vst [vmem:[%s998 + $0x438] sm:$0xf] %v1539
                  %v1541 = vld [vmem:[%s997 + $0x878] sm:$0xf]
                  %1542 = vst [vmem:[%s998 + $0x43c] sm:$0xf] %v1541
                  %v1543 = vld [vmem:[%s997 + $0x880] sm:$0xf]
                  %1544 = vst [vmem:[%s998 + $0x440] sm:$0xf] %v1543
                  %v1545 = vld [vmem:[%s997 + $0x888] sm:$0xf]
                  %1546 = vst [vmem:[%s998 + $0x444] sm:$0xf] %v1545
                  %v1547 = vld [vmem:[%s997 + $0x890] sm:$0xf]
                  %1548 = vst [vmem:[%s998 + $0x448] sm:$0xf] %v1547
                  %v1549 = vld [vmem:[%s997 + $0x898] sm:$0xf]
                  %1550 = vst [vmem:[%s998 + $0x44c] sm:$0xf] %v1549
                  %v1551 = vld [vmem:[%s997 + $0x8a0] sm:$0xf]
                  %1552 = vst [vmem:[%s998 + $0x450] sm:$0xf] %v1551
                  %v1553 = vld [vmem:[%s997 + $0x8a8] sm:$0xf]
                  %1554 = vst [vmem:[%s998 + $0x454] sm:$0xf] %v1553
                  %v1555 = vld [vmem:[%s997 + $0x8b0] sm:$0xf]
                  %1556 = vst [vmem:[%s998 + $0x458] sm:$0xf] %v1555
                  %v1557 = vld [vmem:[%s997 + $0x8b8] sm:$0xf]
                  %1558 = vst [vmem:[%s998 + $0x45c] sm:$0xf] %v1557
                  %v1559 = vld [vmem:[%s997 + $0x8c0] sm:$0xf]
                  %1560 = vst [vmem:[%s998 + $0x460] sm:$0xf] %v1559
                  %v1561 = vld [vmem:[%s997 + $0x8c8] sm:$0xf]
                  %1562 = vst [vmem:[%s998 + $0x464] sm:$0xf] %v1561
                  %v1563 = vld [vmem:[%s997 + $0x8d0] sm:$0xf]
                  %1564 = vst [vmem:[%s998 + $0x468] sm:$0xf] %v1563
                  %v1565 = vld [vmem:[%s997 + $0x8d8] sm:$0xf]
                  %1566 = vst [vmem:[%s998 + $0x46c] sm:$0xf] %v1565
                  %v1567 = vld [vmem:[%s997 + $0x8e0] sm:$0xf]
                  %1568 = vst [vmem:[%s998 + $0x470] sm:$0xf] %v1567
                  %v1569 = vld [vmem:[%s997 + $0x8e8] sm:$0xf]
                  %1570 = vst [vmem:[%s998 + $0x474] sm:$0xf] %v1569
                  %v1571 = vld [vmem:[%s997 + $0x8f0] sm:$0xf]
                  %1572 = vst [vmem:[%s998 + $0x478] sm:$0xf] %v1571
                  %v1573 = vld [vmem:[%s997 + $0x8f8] sm:$0xf]
                  %1574 = vst [vmem:[%s998 + $0x47c] sm:$0xf] %v1573
                  %v1575 = vld [vmem:[%s997 + $0x900] sm:$0xf]
                  %1576 = vst [vmem:[%s998 + $0x480] sm:$0xf] %v1575
                  %v1577 = vld [vmem:[%s997 + $0x908] sm:$0xf]
                  %1578 = vst [vmem:[%s998 + $0x484] sm:$0xf] %v1577
                  %v1579 = vld [vmem:[%s997 + $0x910] sm:$0xf]
                  %1580 = vst [vmem:[%s998 + $0x488] sm:$0xf] %v1579
                  %v1581 = vld [vmem:[%s997 + $0x918] sm:$0xf]
                  %1582 = vst [vmem:[%s998 + $0x48c] sm:$0xf] %v1581
                  %v1583 = vld [vmem:[%s997 + $0x920] sm:$0xf]
                  %1584 = vst [vmem:[%s998 + $0x490] sm:$0xf] %v1583
                  %v1585 = vld [vmem:[%s997 + $0x928] sm:$0xf]
                  %1586 = vst [vmem:[%s998 + $0x494] sm:$0xf] %v1585
                  %v1587 = vld [vmem:[%s997 + $0x930] sm:$0xf]
                  %1588 = vst [vmem:[%s998 + $0x498] sm:$0xf] %v1587
                  %v1589 = vld [vmem:[%s997 + $0x938] sm:$0xf]
                  %1590 = vst [vmem:[%s998 + $0x49c] sm:$0xf] %v1589
                  %v1591 = vld [vmem:[%s997 + $0x940] sm:$0xf]
                  %1592 = vst [vmem:[%s998 + $0x4a0] sm:$0xf] %v1591
                  %v1593 = vld [vmem:[%s997 + $0x948] sm:$0xf]
                  %1594 = vst [vmem:[%s998 + $0x4a4] sm:$0xf] %v1593
                  %v1595 = vld [vmem:[%s997 + $0x950] sm:$0xf]
                  %1596 = vst [vmem:[%s998 + $0x4a8] sm:$0xf] %v1595
                  %v1597 = vld [vmem:[%s997 + $0x958] sm:$0xf]
                  %1598 = vst [vmem:[%s998 + $0x4ac] sm:$0xf] %v1597
                  %v1599 = vld [vmem:[%s997 + $0x960] sm:$0xf]
                  %1600 = vst [vmem:[%s998 + $0x4b0] sm:$0xf] %v1599
                  %v1601 = vld [vmem:[%s997 + $0x968] sm:$0xf]
                  %1602 = vst [vmem:[%s998 + $0x4b4] sm:$0xf] %v1601
                  %v1603 = vld [vmem:[%s997 + $0x970] sm:$0xf]
                  %1604 = vst [vmem:[%s998 + $0x4b8] sm:$0xf] %v1603
                  %v1605 = vld [vmem:[%s997 + $0x978] sm:$0xf]
                  %1606 = vst [vmem:[%s998 + $0x4bc] sm:$0xf] %v1605
                  %v1607 = vld [vmem:[%s997 + $0x980] sm:$0xf]
                  %1608 = vst [vmem:[%s998 + $0x4c0] sm:$0xf] %v1607
                  %v1609 = vld [vmem:[%s997 + $0x988] sm:$0xf]
                  %1610 = vst [vmem:[%s998 + $0x4c4] sm:$0xf] %v1609
                  %v1611 = vld [vmem:[%s997 + $0x990] sm:$0xf]
                  %1612 = vst [vmem:[%s998 + $0x4c8] sm:$0xf] %v1611
                  %v1613 = vld [vmem:[%s997 + $0x998] sm:$0xf]
                  %1614 = vst [vmem:[%s998 + $0x4cc] sm:$0xf] %v1613
                  %v1615 = vld [vmem:[%s997 + $0x9a0] sm:$0xf]
                  %1616 = vst [vmem:[%s998 + $0x4d0] sm:$0xf] %v1615
                  %v1617 = vld [vmem:[%s997 + $0x9a8] sm:$0xf]
                  %1618 = vst [vmem:[%s998 + $0x4d4] sm:$0xf] %v1617
                  %v1619 = vld [vmem:[%s997 + $0x9b0] sm:$0xf]
                  %1620 = vst [vmem:[%s998 + $0x4d8] sm:$0xf] %v1619
                  %v1621 = vld [vmem:[%s997 + $0x9b8] sm:$0xf]
                  %1622 = vst [vmem:[%s998 + $0x4dc] sm:$0xf] %v1621
                  %v1623 = vld [vmem:[%s997 + $0x9c0] sm:$0xf]
                  %1624 = vst [vmem:[%s998 + $0x4e0] sm:$0xf] %v1623
                  %v1625 = vld [vmem:[%s997 + $0x9c8] sm:$0xf]
                  %1626 = vst [vmem:[%s998 + $0x4e4] sm:$0xf] %v1625
                  %v1627 = vld [vmem:[%s997 + $0x9d0] sm:$0xf]
                  %1628 = vst [vmem:[%s998 + $0x4e8] sm:$0xf] %v1627
                  %v1629 = vld [vmem:[%s997 + $0x9d8] sm:$0xf]
                  %1630 = vst [vmem:[%s998 + $0x4ec] sm:$0xf] %v1629
                  %v1631 = vld [vmem:[%s997 + $0x9e0] sm:$0xf]
                  %1632 = vst [vmem:[%s998 + $0x4f0] sm:$0xf] %v1631
                  %v1633 = vld [vmem:[%s997 + $0x9e8] sm:$0xf]
                  %1634 = vst [vmem:[%s998 + $0x4f4] sm:$0xf] %v1633
                  %v1635 = vld [vmem:[%s997 + $0x9f0] sm:$0xf]
                  %1636 = vst [vmem:[%s998 + $0x4f8] sm:$0xf] %v1635
                  %v1637 = vld [vmem:[%s997 + $0x9f8] sm:$0xf]
                  %1638 = vst [vmem:[%s998 + $0x4fc] sm:$0xf] %v1637
                  %v1639 = vld [vmem:[%s997 + $0xa00] sm:$0xf]
                  %1640 = vst [vmem:[%s998 + $0x500] sm:$0xf] %v1639
                  %v1641 = vld [vmem:[%s997 + $0xa08] sm:$0xf]
                  %1642 = vst [vmem:[%s998 + $0x504] sm:$0xf] %v1641
                  %v1643 = vld [vmem:[%s997 + $0xa10] sm:$0xf]
                  %1644 = vst [vmem:[%s998 + $0x508] sm:$0xf] %v1643
                  %v1645 = vld [vmem:[%s997 + $0xa18] sm:$0xf]
                  %1646 = vst [vmem:[%s998 + $0x50c] sm:$0xf] %v1645
                  %v1647 = vld [vmem:[%s997 + $0xa20] sm:$0xf]
                  %1648 = vst [vmem:[%s998 + $0x510] sm:$0xf] %v1647
                  %v1649 = vld [vmem:[%s997 + $0xa28] sm:$0xf]
                  %1650 = vst [vmem:[%s998 + $0x514] sm:$0xf] %v1649
                  %v1651 = vld [vmem:[%s997 + $0xa30] sm:$0xf]
                  %1652 = vst [vmem:[%s998 + $0x518] sm:$0xf] %v1651
                  %v1653 = vld [vmem:[%s997 + $0xa38] sm:$0xf]
                  %1654 = vst [vmem:[%s998 + $0x51c] sm:$0xf] %v1653
                  %v1655 = vld [vmem:[%s997 + $0xa40] sm:$0xf]
                  %1656 = vst [vmem:[%s998 + $0x520] sm:$0xf] %v1655
                  %v1657 = vld [vmem:[%s997 + $0xa48] sm:$0xf]
                  %1658 = vst [vmem:[%s998 + $0x524] sm:$0xf] %v1657
                  %v1659 = vld [vmem:[%s997 + $0xa50] sm:$0xf]
                  %1660 = vst [vmem:[%s998 + $0x528] sm:$0xf] %v1659
                  %v1661 = vld [vmem:[%s997 + $0xa58] sm:$0xf]
                  %1662 = vst [vmem:[%s998 + $0x52c] sm:$0xf] %v1661
                  %v1663 = vld [vmem:[%s997 + $0xa60] sm:$0xf]
                  %1664 = vst [vmem:[%s998 + $0x530] sm:$0xf] %v1663
                  %v1665 = vld [vmem:[%s997 + $0xa68] sm:$0xf]
                  %1666 = vst [vmem:[%s998 + $0x534] sm:$0xf] %v1665
                  %v1667 = vld [vmem:[%s997 + $0xa70] sm:$0xf]
                  %1668 = vst [vmem:[%s998 + $0x538] sm:$0xf] %v1667
                  %v1669 = vld [vmem:[%s997 + $0xa78] sm:$0xf]
                  %1670 = vst [vmem:[%s998 + $0x53c] sm:$0xf] %v1669
                  %v1671 = vld [vmem:[%s997 + $0xa80] sm:$0xf]
                  %1672 = vst [vmem:[%s998 + $0x540] sm:$0xf] %v1671
                  %v1673 = vld [vmem:[%s997 + $0xa88] sm:$0xf]
                  %1674 = vst [vmem:[%s998 + $0x544] sm:$0xf] %v1673
                  %v1675 = vld [vmem:[%s997 + $0xa90] sm:$0xf]
                  %1676 = vst [vmem:[%s998 + $0x548] sm:$0xf] %v1675
                  %v1677 = vld [vmem:[%s997 + $0xa98] sm:$0xf]
                  %1678 = vst [vmem:[%s998 + $0x54c] sm:$0xf] %v1677
                  %v1679 = vld [vmem:[%s997 + $0xaa0] sm:$0xf]
                  %1680 = vst [vmem:[%s998 + $0x550] sm:$0xf] %v1679
                  %v1681 = vld [vmem:[%s997 + $0xaa8] sm:$0xf]
                  %1682 = vst [vmem:[%s998 + $0x554] sm:$0xf] %v1681
                  %v1683 = vld [vmem:[%s997 + $0xab0] sm:$0xf]
                  %1684 = vst [vmem:[%s998 + $0x558] sm:$0xf] %v1683
                  %v1685 = vld [vmem:[%s997 + $0xab8] sm:$0xf]
                  %1686 = vst [vmem:[%s998 + $0x55c] sm:$0xf] %v1685
                  %v1687 = vld [vmem:[%s997 + $0xac0] sm:$0xf]
                  %1688 = vst [vmem:[%s998 + $0x560] sm:$0xf] %v1687
                  %v1689 = vld [vmem:[%s997 + $0xac8] sm:$0xf]
                  %1690 = vst [vmem:[%s998 + $0x564] sm:$0xf] %v1689
                  %v1691 = vld [vmem:[%s997 + $0xad0] sm:$0xf]
                  %1692 = vst [vmem:[%s998 + $0x568] sm:$0xf] %v1691
                  %v1693 = vld [vmem:[%s997 + $0xad8] sm:$0xf]
                  %1694 = vst [vmem:[%s998 + $0x56c] sm:$0xf] %v1693
                  %v1695 = vld [vmem:[%s997 + $0xae0] sm:$0xf]
                  %1696 = vst [vmem:[%s998 + $0x570] sm:$0xf] %v1695
                  %v1697 = vld [vmem:[%s997 + $0xae8] sm:$0xf]
                  %1698 = vst [vmem:[%s998 + $0x574] sm:$0xf] %v1697
                  %v1699 = vld [vmem:[%s997 + $0xaf0] sm:$0xf]
                  %1700 = vst [vmem:[%s998 + $0x578] sm:$0xf] %v1699
                  %v1701 = vld [vmem:[%s997 + $0xaf8] sm:$0xf]
                  %1702 = vst [vmem:[%s998 + $0x57c] sm:$0xf] %v1701
                  %v1703 = vld [vmem:[%s997 + $0xb00] sm:$0xf]
                  %1704 = vst [vmem:[%s998 + $0x580] sm:$0xf] %v1703
                  %v1705 = vld [vmem:[%s997 + $0xb08] sm:$0xf]
                  %1706 = vst [vmem:[%s998 + $0x584] sm:$0xf] %v1705
                  %v1707 = vld [vmem:[%s997 + $0xb10] sm:$0xf]
                  %1708 = vst [vmem:[%s998 + $0x588] sm:$0xf] %v1707
                  %v1709 = vld [vmem:[%s997 + $0xb18] sm:$0xf]
                  %1710 = vst [vmem:[%s998 + $0x58c] sm:$0xf] %v1709
                  %v1711 = vld [vmem:[%s997 + $0xb20] sm:$0xf]
                  %1712 = vst [vmem:[%s998 + $0x590] sm:$0xf] %v1711
                  %v1713 = vld [vmem:[%s997 + $0xb28] sm:$0xf]
                  %1714 = vst [vmem:[%s998 + $0x594] sm:$0xf] %v1713
                  %v1715 = vld [vmem:[%s997 + $0xb30] sm:$0xf]
                  %1716 = vst [vmem:[%s998 + $0x598] sm:$0xf] %v1715
                  %v1717 = vld [vmem:[%s997 + $0xb38] sm:$0xf]
                  %1718 = vst [vmem:[%s998 + $0x59c] sm:$0xf] %v1717
                  %v1719 = vld [vmem:[%s997 + $0xb40] sm:$0xf]
                  %1720 = vst [vmem:[%s998 + $0x5a0] sm:$0xf] %v1719
                  %v1721 = vld [vmem:[%s997 + $0xb48] sm:$0xf]
                  %1722 = vst [vmem:[%s998 + $0x5a4] sm:$0xf] %v1721
                  %v1723 = vld [vmem:[%s997 + $0xb50] sm:$0xf]
                  %1724 = vst [vmem:[%s998 + $0x5a8] sm:$0xf] %v1723
                  %v1725 = vld [vmem:[%s997 + $0xb58] sm:$0xf]
                  %1726 = vst [vmem:[%s998 + $0x5ac] sm:$0xf] %v1725
                  %v1727 = vld [vmem:[%s997 + $0xb60] sm:$0xf]
                  %1728 = vst [vmem:[%s998 + $0x5b0] sm:$0xf] %v1727
                  %v1729 = vld [vmem:[%s997 + $0xb68] sm:$0xf]
                  %1730 = vst [vmem:[%s998 + $0x5b4] sm:$0xf] %v1729
                  %v1731 = vld [vmem:[%s997 + $0xb70] sm:$0xf]
                  %1732 = vst [vmem:[%s998 + $0x5b8] sm:$0xf] %v1731
                  %v1733 = vld [vmem:[%s997 + $0xb78] sm:$0xf]
                  %1734 = vst [vmem:[%s998 + $0x5bc] sm:$0xf] %v1733
                  %v1735 = vld [vmem:[%s997 + $0xb80] sm:$0xf]
                  %1736 = vst [vmem:[%s998 + $0x5c0] sm:$0xf] %v1735
                  %v1737 = vld [vmem:[%s997 + $0xb88] sm:$0xf]
                  %1738 = vst [vmem:[%s998 + $0x5c4] sm:$0xf] %v1737
                  %v1739 = vld [vmem:[%s997 + $0xb90] sm:$0xf]
                  %1740 = vst [vmem:[%s998 + $0x5c8] sm:$0xf] %v1739
                  %v1741 = vld [vmem:[%s997 + $0xb98] sm:$0xf]
                  %1742 = vst [vmem:[%s998 + $0x5cc] sm:$0xf] %v1741
                  %v1743 = vld [vmem:[%s997 + $0xba0] sm:$0xf]
                  %1744 = vst [vmem:[%s998 + $0x5d0] sm:$0xf] %v1743
                  %v1745 = vld [vmem:[%s997 + $0xba8] sm:$0xf]
                  %1746 = vst [vmem:[%s998 + $0x5d4] sm:$0xf] %v1745
                  %v1747 = vld [vmem:[%s997 + $0xbb0] sm:$0xf]
                  %1748 = vst [vmem:[%s998 + $0x5d8] sm:$0xf] %v1747
                  %v1749 = vld [vmem:[%s997 + $0xbb8] sm:$0xf]
                  %1750 = vst [vmem:[%s998 + $0x5dc] sm:$0xf] %v1749
                  %v1751 = vld [vmem:[%s997 + $0xbc0] sm:$0xf]
                  %1752 = vst [vmem:[%s998 + $0x5e0] sm:$0xf] %v1751
                  %v1753 = vld [vmem:[%s997 + $0xbc8] sm:$0xf]
                  %1754 = vst [vmem:[%s998 + $0x5e4] sm:$0xf] %v1753
                  %v1755 = vld [vmem:[%s997 + $0xbd0] sm:$0xf]
                  %1756 = vst [vmem:[%s998 + $0x5e8] sm:$0xf] %v1755
                  %v1757 = vld [vmem:[%s997 + $0xbd8] sm:$0xf]
                  %1758 = vst [vmem:[%s998 + $0x5ec] sm:$0xf] %v1757
                  %v1759 = vld [vmem:[%s997 + $0xbe0] sm:$0xf]
                  %1760 = vst [vmem:[%s998 + $0x5f0] sm:$0xf] %v1759
                  %v1761 = vld [vmem:[%s997 + $0xbe8] sm:$0xf]
                  %1762 = vst [vmem:[%s998 + $0x5f4] sm:$0xf] %v1761
                  %v1763 = vld [vmem:[%s997 + $0xbf0] sm:$0xf]
                  %1764 = vst [vmem:[%s998 + $0x5f8] sm:$0xf] %v1763
                  %v1765 = vld [vmem:[%s997 + $0xbf8] sm:$0xf]
                  %1766 = vst [vmem:[%s998 + $0x5fc] sm:$0xf] %v1765
                  %v1767 = vld [vmem:[%s997 + $0xc00] sm:$0xf]
                  %1768 = vst [vmem:[%s998 + $0x600] sm:$0xf] %v1767
                  %v1769 = vld [vmem:[%s997 + $0xc08] sm:$0xf]
                  %1770 = vst [vmem:[%s998 + $0x604] sm:$0xf] %v1769
                  %v1771 = vld [vmem:[%s997 + $0xc10] sm:$0xf]
                  %1772 = vst [vmem:[%s998 + $0x608] sm:$0xf] %v1771
                  %v1773 = vld [vmem:[%s997 + $0xc18] sm:$0xf]
                  %1774 = vst [vmem:[%s998 + $0x60c] sm:$0xf] %v1773
                  %v1775 = vld [vmem:[%s997 + $0xc20] sm:$0xf]
                  %1776 = vst [vmem:[%s998 + $0x610] sm:$0xf] %v1775
                  %v1777 = vld [vmem:[%s997 + $0xc28] sm:$0xf]
                  %1778 = vst [vmem:[%s998 + $0x614] sm:$0xf] %v1777
                  %v1779 = vld [vmem:[%s997 + $0xc30] sm:$0xf]
                  %1780 = vst [vmem:[%s998 + $0x618] sm:$0xf] %v1779
                  %v1781 = vld [vmem:[%s997 + $0xc38] sm:$0xf]
                  %1782 = vst [vmem:[%s998 + $0x61c] sm:$0xf] %v1781
                  %v1783 = vld [vmem:[%s997 + $0xc40] sm:$0xf]
                  %1784 = vst [vmem:[%s998 + $0x620] sm:$0xf] %v1783
                  %v1785 = vld [vmem:[%s997 + $0xc48] sm:$0xf]
                  %1786 = vst [vmem:[%s998 + $0x624] sm:$0xf] %v1785
                  %v1787 = vld [vmem:[%s997 + $0xc50] sm:$0xf]
                  %1788 = vst [vmem:[%s998 + $0x628] sm:$0xf] %v1787
                  %v1789 = vld [vmem:[%s997 + $0xc58] sm:$0xf]
                  %1790 = vst [vmem:[%s998 + $0x62c] sm:$0xf] %v1789
                  %v1791 = vld [vmem:[%s997 + $0xc60] sm:$0xf]
                  %1792 = vst [vmem:[%s998 + $0x630] sm:$0xf] %v1791
                  %v1793 = vld [vmem:[%s997 + $0xc68] sm:$0xf]
                  %1794 = vst [vmem:[%s998 + $0x634] sm:$0xf] %v1793
                  %v1795 = vld [vmem:[%s997 + $0xc70] sm:$0xf]
                  %1796 = vst [vmem:[%s998 + $0x638] sm:$0xf] %v1795
                  %v1797 = vld [vmem:[%s997 + $0xc78] sm:$0xf]
                  %1798 = vst [vmem:[%s998 + $0x63c] sm:$0xf] %v1797
                $region59: #{headnet_forward.3} parent=46 // loop_footer
                  %s996 = sadd.s32 1, %s992
                $region60: #{headnet_forward.3} parent=46 // loop_footer_branch
                  %991 = sbr.rel target = $region56
                $region61: #{headnet_forward.3} parent=46 // loop_exit
                  _
              $region47: #{headnet_forward.3} parent=31 // pred_fallthru
                _
            $region32: #{headnet_forward.3} parent=27 // pred_fallthru
              _
            // Predicated region
            $region33: #{headnet_forward.3} parent=27 // pred_check
              _
            $region34: #{headnet_forward.3} parent=27 // pred_check_branch
              %170 = sbr.rel (0) target = $region36
            $region35: #{headnet_forward.3} parent=27 // pred_region
              loop: start=0, step=1, limit=1
              $region37: #{headnet_forward.3} parent=35 // loop_pre_header
                _
              $region38: #{headnet_forward.3} parent=35 // loop_header
                %s173 = sphi 0, %s177
                %p174 = scmp.ge.s32.totalorder %s173, 1
                %s178 = sphi %s164, %s164
                %s179 = sphi %s162, %s162
              $region39: #{headnet_forward.3} parent=35 // loop_header_branch
                %176 = sbr.rel (%p174) target = $region43
              $region40: #{headnet_forward.3} parent=35 // loop_body
                %v180 = vld [vmem:[%s178] sm:$0xf]
                %181 = vst [vmem:[%s179] sm:$0xf] %v180
                %v182 = vld [vmem:[%s178 + $0x8] sm:$0xf]
                %183 = vst [vmem:[%s179 + $0x4] sm:$0xf] %v182
                %v184 = vld [vmem:[%s178 + $0x10] sm:$0xf]
                %185 = vst [vmem:[%s179 + $0x8] sm:$0xf] %v184
                %v186 = vld [vmem:[%s178 + $0x18] sm:$0xf]
                %187 = vst [vmem:[%s179 + $0xc] sm:$0xf] %v186
                %v188 = vld [vmem:[%s178 + $0x20] sm:$0xf]
                %189 = vst [vmem:[%s179 + $0x10] sm:$0xf] %v188
                %v190 = vld [vmem:[%s178 + $0x28] sm:$0xf]
                %191 = vst [vmem:[%s179 + $0x14] sm:$0xf] %v190
                %v192 = vld [vmem:[%s178 + $0x30] sm:$0xf]
                %193 = vst [vmem:[%s179 + $0x18] sm:$0xf] %v192
                %v194 = vld [vmem:[%s178 + $0x38] sm:$0xf]
                %195 = vst [vmem:[%s179 + $0x1c] sm:$0xf] %v194
                %v196 = vld [vmem:[%s178 + $0x40] sm:$0xf]
                %197 = vst [vmem:[%s179 + $0x20] sm:$0xf] %v196
                %v198 = vld [vmem:[%s178 + $0x48] sm:$0xf]
                %199 = vst [vmem:[%s179 + $0x24] sm:$0xf] %v198
                %v200 = vld [vmem:[%s178 + $0x50] sm:$0xf]
                %201 = vst [vmem:[%s179 + $0x28] sm:$0xf] %v200
                %v202 = vld [vmem:[%s178 + $0x58] sm:$0xf]
                %203 = vst [vmem:[%s179 + $0x2c] sm:$0xf] %v202
                %v204 = vld [vmem:[%s178 + $0x60] sm:$0xf]
                %205 = vst [vmem:[%s179 + $0x30] sm:$0xf] %v204
                %v206 = vld [vmem:[%s178 + $0x68] sm:$0xf]
                %207 = vst [vmem:[%s179 + $0x34] sm:$0xf] %v206
                %v208 = vld [vmem:[%s178 + $0x70] sm:$0xf]
                %209 = vst [vmem:[%s179 + $0x38] sm:$0xf] %v208
                %v210 = vld [vmem:[%s178 + $0x78] sm:$0xf]
                %211 = vst [vmem:[%s179 + $0x3c] sm:$0xf] %v210
                %v212 = vld [vmem:[%s178 + $0x80] sm:$0xf]
                %213 = vst [vmem:[%s179 + $0x40] sm:$0xf] %v212
                %v214 = vld [vmem:[%s178 + $0x88] sm:$0xf]
                %215 = vst [vmem:[%s179 + $0x44] sm:$0xf] %v214
                %v216 = vld [vmem:[%s178 + $0x90] sm:$0xf]
                %217 = vst [vmem:[%s179 + $0x48] sm:$0xf] %v216
                %v218 = vld [vmem:[%s178 + $0x98] sm:$0xf]
                %219 = vst [vmem:[%s179 + $0x4c] sm:$0xf] %v218
                %v220 = vld [vmem:[%s178 + $0xa0] sm:$0xf]
                %221 = vst [vmem:[%s179 + $0x50] sm:$0xf] %v220
                %v222 = vld [vmem:[%s178 + $0xa8] sm:$0xf]
                %223 = vst [vmem:[%s179 + $0x54] sm:$0xf] %v222
                %v224 = vld [vmem:[%s178 + $0xb0] sm:$0xf]
                %225 = vst [vmem:[%s179 + $0x58] sm:$0xf] %v224
                %v226 = vld [vmem:[%s178 + $0xb8] sm:$0xf]
                %227 = vst [vmem:[%s179 + $0x5c] sm:$0xf] %v226
                %v228 = vld [vmem:[%s178 + $0xc0] sm:$0xf]
                %229 = vst [vmem:[%s179 + $0x60] sm:$0xf] %v228
                %v230 = vld [vmem:[%s178 + $0xc8] sm:$0xf]
                %231 = vst [vmem:[%s179 + $0x64] sm:$0xf] %v230
                %v232 = vld [vmem:[%s178 + $0xd0] sm:$0xf]
                %233 = vst [vmem:[%s179 + $0x68] sm:$0xf] %v232
                %v234 = vld [vmem:[%s178 + $0xd8] sm:$0xf]
                %235 = vst [vmem:[%s179 + $0x6c] sm:$0xf] %v234
                %v236 = vld [vmem:[%s178 + $0xe0] sm:$0xf]
                %237 = vst [vmem:[%s179 + $0x70] sm:$0xf] %v236
                %v238 = vld [vmem:[%s178 + $0xe8] sm:$0xf]
                %239 = vst [vmem:[%s179 + $0x74] sm:$0xf] %v238
                %v240 = vld [vmem:[%s178 + $0xf0] sm:$0xf]
                %241 = vst [vmem:[%s179 + $0x78] sm:$0xf] %v240
                %v242 = vld [vmem:[%s178 + $0xf8] sm:$0xf]
                %243 = vst [vmem:[%s179 + $0x7c] sm:$0xf] %v242
                %v244 = vld [vmem:[%s178 + $0x100] sm:$0xf]
                %245 = vst [vmem:[%s179 + $0x80] sm:$0xf] %v244
                %v246 = vld [vmem:[%s178 + $0x108] sm:$0xf]
                %247 = vst [vmem:[%s179 + $0x84] sm:$0xf] %v246
                %v248 = vld [vmem:[%s178 + $0x110] sm:$0xf]
                %249 = vst [vmem:[%s179 + $0x88] sm:$0xf] %v248
                %v250 = vld [vmem:[%s178 + $0x118] sm:$0xf]
                %251 = vst [vmem:[%s179 + $0x8c] sm:$0xf] %v250
                %v252 = vld [vmem:[%s178 + $0x120] sm:$0xf]
                %253 = vst [vmem:[%s179 + $0x90] sm:$0xf] %v252
                %v254 = vld [vmem:[%s178 + $0x128] sm:$0xf]
                %255 = vst [vmem:[%s179 + $0x94] sm:$0xf] %v254
                %v256 = vld [vmem:[%s178 + $0x130] sm:$0xf]
                %257 = vst [vmem:[%s179 + $0x98] sm:$0xf] %v256
                %v258 = vld [vmem:[%s178 + $0x138] sm:$0xf]
                %259 = vst [vmem:[%s179 + $0x9c] sm:$0xf] %v258
                %v260 = vld [vmem:[%s178 + $0x140] sm:$0xf]
                %261 = vst [vmem:[%s179 + $0xa0] sm:$0xf] %v260
                %v262 = vld [vmem:[%s178 + $0x148] sm:$0xf]
                %263 = vst [vmem:[%s179 + $0xa4] sm:$0xf] %v262
                %v264 = vld [vmem:[%s178 + $0x150] sm:$0xf]
                %265 = vst [vmem:[%s179 + $0xa8] sm:$0xf] %v264
                %v266 = vld [vmem:[%s178 + $0x158] sm:$0xf]
                %267 = vst [vmem:[%s179 + $0xac] sm:$0xf] %v266
                %v268 = vld [vmem:[%s178 + $0x160] sm:$0xf]
                %269 = vst [vmem:[%s179 + $0xb0] sm:$0xf] %v268
                %v270 = vld [vmem:[%s178 + $0x168] sm:$0xf]
                %271 = vst [vmem:[%s179 + $0xb4] sm:$0xf] %v270
                %v272 = vld [vmem:[%s178 + $0x170] sm:$0xf]
                %273 = vst [vmem:[%s179 + $0xb8] sm:$0xf] %v272
                %v274 = vld [vmem:[%s178 + $0x178] sm:$0xf]
                %275 = vst [vmem:[%s179 + $0xbc] sm:$0xf] %v274
                %v276 = vld [vmem:[%s178 + $0x180] sm:$0xf]
                %277 = vst [vmem:[%s179 + $0xc0] sm:$0xf] %v276
                %v278 = vld [vmem:[%s178 + $0x188] sm:$0xf]
                %279 = vst [vmem:[%s179 + $0xc4] sm:$0xf] %v278
                %v280 = vld [vmem:[%s178 + $0x190] sm:$0xf]
                %281 = vst [vmem:[%s179 + $0xc8] sm:$0xf] %v280
                %v282 = vld [vmem:[%s178 + $0x198] sm:$0xf]
                %283 = vst [vmem:[%s179 + $0xcc] sm:$0xf] %v282
                %v284 = vld [vmem:[%s178 + $0x1a0] sm:$0xf]
                %285 = vst [vmem:[%s179 + $0xd0] sm:$0xf] %v284
                %v286 = vld [vmem:[%s178 + $0x1a8] sm:$0xf]
                %287 = vst [vmem:[%s179 + $0xd4] sm:$0xf] %v286
                %v288 = vld [vmem:[%s178 + $0x1b0] sm:$0xf]
                %289 = vst [vmem:[%s179 + $0xd8] sm:$0xf] %v288
                %v290 = vld [vmem:[%s178 + $0x1b8] sm:$0xf]
                %291 = vst [vmem:[%s179 + $0xdc] sm:$0xf] %v290
                %v292 = vld [vmem:[%s178 + $0x1c0] sm:$0xf]
                %293 = vst [vmem:[%s179 + $0xe0] sm:$0xf] %v292
                %v294 = vld [vmem:[%s178 + $0x1c8] sm:$0xf]
                %295 = vst [vmem:[%s179 + $0xe4] sm:$0xf] %v294
                %v296 = vld [vmem:[%s178 + $0x1d0] sm:$0xf]
                %297 = vst [vmem:[%s179 + $0xe8] sm:$0xf] %v296
                %v298 = vld [vmem:[%s178 + $0x1d8] sm:$0xf]
                %299 = vst [vmem:[%s179 + $0xec] sm:$0xf] %v298
                %v300 = vld [vmem:[%s178 + $0x1e0] sm:$0xf]
                %301 = vst [vmem:[%s179 + $0xf0] sm:$0xf] %v300
                %v302 = vld [vmem:[%s178 + $0x1e8] sm:$0xf]
                %303 = vst [vmem:[%s179 + $0xf4] sm:$0xf] %v302
                %v304 = vld [vmem:[%s178 + $0x1f0] sm:$0xf]
                %305 = vst [vmem:[%s179 + $0xf8] sm:$0xf] %v304
                %v306 = vld [vmem:[%s178 + $0x1f8] sm:$0xf]
                %307 = vst [vmem:[%s179 + $0xfc] sm:$0xf] %v306
                %v308 = vld [vmem:[%s178 + $0x200] sm:$0xf]
                %309 = vst [vmem:[%s179 + $0x100] sm:$0xf] %v308
                %v310 = vld [vmem:[%s178 + $0x208] sm:$0xf]
                %311 = vst [vmem:[%s179 + $0x104] sm:$0xf] %v310
                %v312 = vld [vmem:[%s178 + $0x210] sm:$0xf]
                %313 = vst [vmem:[%s179 + $0x108] sm:$0xf] %v312
                %v314 = vld [vmem:[%s178 + $0x218] sm:$0xf]
                %315 = vst [vmem:[%s179 + $0x10c] sm:$0xf] %v314
                %v316 = vld [vmem:[%s178 + $0x220] sm:$0xf]
                %317 = vst [vmem:[%s179 + $0x110] sm:$0xf] %v316
                %v318 = vld [vmem:[%s178 + $0x228] sm:$0xf]
                %319 = vst [vmem:[%s179 + $0x114] sm:$0xf] %v318
                %v320 = vld [vmem:[%s178 + $0x230] sm:$0xf]
                %321 = vst [vmem:[%s179 + $0x118] sm:$0xf] %v320
                %v322 = vld [vmem:[%s178 + $0x238] sm:$0xf]
                %323 = vst [vmem:[%s179 + $0x11c] sm:$0xf] %v322
                %v324 = vld [vmem:[%s178 + $0x240] sm:$0xf]
                %325 = vst [vmem:[%s179 + $0x120] sm:$0xf] %v324
                %v326 = vld [vmem:[%s178 + $0x248] sm:$0xf]
                %327 = vst [vmem:[%s179 + $0x124] sm:$0xf] %v326
                %v328 = vld [vmem:[%s178 + $0x250] sm:$0xf]
                %329 = vst [vmem:[%s179 + $0x128] sm:$0xf] %v328
                %v330 = vld [vmem:[%s178 + $0x258] sm:$0xf]
                %331 = vst [vmem:[%s179 + $0x12c] sm:$0xf] %v330
                %v332 = vld [vmem:[%s178 + $0x260] sm:$0xf]
                %333 = vst [vmem:[%s179 + $0x130] sm:$0xf] %v332
                %v334 = vld [vmem:[%s178 + $0x268] sm:$0xf]
                %335 = vst [vmem:[%s179 + $0x134] sm:$0xf] %v334
                %v336 = vld [vmem:[%s178 + $0x270] sm:$0xf]
                %337 = vst [vmem:[%s179 + $0x138] sm:$0xf] %v336
                %v338 = vld [vmem:[%s178 + $0x278] sm:$0xf]
                %339 = vst [vmem:[%s179 + $0x13c] sm:$0xf] %v338
                %v340 = vld [vmem:[%s178 + $0x280] sm:$0xf]
                %341 = vst [vmem:[%s179 + $0x140] sm:$0xf] %v340
                %v342 = vld [vmem:[%s178 + $0x288] sm:$0xf]
                %343 = vst [vmem:[%s179 + $0x144] sm:$0xf] %v342
                %v344 = vld [vmem:[%s178 + $0x290] sm:$0xf]
                %345 = vst [vmem:[%s179 + $0x148] sm:$0xf] %v344
                %v346 = vld [vmem:[%s178 + $0x298] sm:$0xf]
                %347 = vst [vmem:[%s179 + $0x14c] sm:$0xf] %v346
                %v348 = vld [vmem:[%s178 + $0x2a0] sm:$0xf]
                %349 = vst [vmem:[%s179 + $0x150] sm:$0xf] %v348
                %v350 = vld [vmem:[%s178 + $0x2a8] sm:$0xf]
                %351 = vst [vmem:[%s179 + $0x154] sm:$0xf] %v350
                %v352 = vld [vmem:[%s178 + $0x2b0] sm:$0xf]
                %353 = vst [vmem:[%s179 + $0x158] sm:$0xf] %v352
                %v354 = vld [vmem:[%s178 + $0x2b8] sm:$0xf]
                %355 = vst [vmem:[%s179 + $0x15c] sm:$0xf] %v354
                %v356 = vld [vmem:[%s178 + $0x2c0] sm:$0xf]
                %357 = vst [vmem:[%s179 + $0x160] sm:$0xf] %v356
                %v358 = vld [vmem:[%s178 + $0x2c8] sm:$0xf]
                %359 = vst [vmem:[%s179 + $0x164] sm:$0xf] %v358
                %v360 = vld [vmem:[%s178 + $0x2d0] sm:$0xf]
                %361 = vst [vmem:[%s179 + $0x168] sm:$0xf] %v360
                %v362 = vld [vmem:[%s178 + $0x2d8] sm:$0xf]
                %363 = vst [vmem:[%s179 + $0x16c] sm:$0xf] %v362
                %v364 = vld [vmem:[%s178 + $0x2e0] sm:$0xf]
                %365 = vst [vmem:[%s179 + $0x170] sm:$0xf] %v364
                %v366 = vld [vmem:[%s178 + $0x2e8] sm:$0xf]
                %367 = vst [vmem:[%s179 + $0x174] sm:$0xf] %v366
                %v368 = vld [vmem:[%s178 + $0x2f0] sm:$0xf]
                %369 = vst [vmem:[%s179 + $0x178] sm:$0xf] %v368
                %v370 = vld [vmem:[%s178 + $0x2f8] sm:$0xf]
                %371 = vst [vmem:[%s179 + $0x17c] sm:$0xf] %v370
                %v372 = vld [vmem:[%s178 + $0x300] sm:$0xf]
                %373 = vst [vmem:[%s179 + $0x180] sm:$0xf] %v372
                %v374 = vld [vmem:[%s178 + $0x308] sm:$0xf]
                %375 = vst [vmem:[%s179 + $0x184] sm:$0xf] %v374
                %v376 = vld [vmem:[%s178 + $0x310] sm:$0xf]
                %377 = vst [vmem:[%s179 + $0x188] sm:$0xf] %v376
                %v378 = vld [vmem:[%s178 + $0x318] sm:$0xf]
                %379 = vst [vmem:[%s179 + $0x18c] sm:$0xf] %v378
                %v380 = vld [vmem:[%s178 + $0x320] sm:$0xf]
                %381 = vst [vmem:[%s179 + $0x190] sm:$0xf] %v380
                %v382 = vld [vmem:[%s178 + $0x328] sm:$0xf]
                %383 = vst [vmem:[%s179 + $0x194] sm:$0xf] %v382
                %v384 = vld [vmem:[%s178 + $0x330] sm:$0xf]
                %385 = vst [vmem:[%s179 + $0x198] sm:$0xf] %v384
                %v386 = vld [vmem:[%s178 + $0x338] sm:$0xf]
                %387 = vst [vmem:[%s179 + $0x19c] sm:$0xf] %v386
                %v388 = vld [vmem:[%s178 + $0x340] sm:$0xf]
                %389 = vst [vmem:[%s179 + $0x1a0] sm:$0xf] %v388
                %v390 = vld [vmem:[%s178 + $0x348] sm:$0xf]
                %391 = vst [vmem:[%s179 + $0x1a4] sm:$0xf] %v390
                %v392 = vld [vmem:[%s178 + $0x350] sm:$0xf]
                %393 = vst [vmem:[%s179 + $0x1a8] sm:$0xf] %v392
                %v394 = vld [vmem:[%s178 + $0x358] sm:$0xf]
                %395 = vst [vmem:[%s179 + $0x1ac] sm:$0xf] %v394
                %v396 = vld [vmem:[%s178 + $0x360] sm:$0xf]
                %397 = vst [vmem:[%s179 + $0x1b0] sm:$0xf] %v396
                %v398 = vld [vmem:[%s178 + $0x368] sm:$0xf]
                %399 = vst [vmem:[%s179 + $0x1b4] sm:$0xf] %v398
                %v400 = vld [vmem:[%s178 + $0x370] sm:$0xf]
                %401 = vst [vmem:[%s179 + $0x1b8] sm:$0xf] %v400
                %v402 = vld [vmem:[%s178 + $0x378] sm:$0xf]
                %403 = vst [vmem:[%s179 + $0x1bc] sm:$0xf] %v402
                %v404 = vld [vmem:[%s178 + $0x380] sm:$0xf]
                %405 = vst [vmem:[%s179 + $0x1c0] sm:$0xf] %v404
                %v406 = vld [vmem:[%s178 + $0x388] sm:$0xf]
                %407 = vst [vmem:[%s179 + $0x1c4] sm:$0xf] %v406
                %v408 = vld [vmem:[%s178 + $0x390] sm:$0xf]
                %409 = vst [vmem:[%s179 + $0x1c8] sm:$0xf] %v408
                %v410 = vld [vmem:[%s178 + $0x398] sm:$0xf]
                %411 = vst [vmem:[%s179 + $0x1cc] sm:$0xf] %v410
                %v412 = vld [vmem:[%s178 + $0x3a0] sm:$0xf]
                %413 = vst [vmem:[%s179 + $0x1d0] sm:$0xf] %v412
                %v414 = vld [vmem:[%s178 + $0x3a8] sm:$0xf]
                %415 = vst [vmem:[%s179 + $0x1d4] sm:$0xf] %v414
                %v416 = vld [vmem:[%s178 + $0x3b0] sm:$0xf]
                %417 = vst [vmem:[%s179 + $0x1d8] sm:$0xf] %v416
                %v418 = vld [vmem:[%s178 + $0x3b8] sm:$0xf]
                %419 = vst [vmem:[%s179 + $0x1dc] sm:$0xf] %v418
                %v420 = vld [vmem:[%s178 + $0x3c0] sm:$0xf]
                %421 = vst [vmem:[%s179 + $0x1e0] sm:$0xf] %v420
                %v422 = vld [vmem:[%s178 + $0x3c8] sm:$0xf]
                %423 = vst [vmem:[%s179 + $0x1e4] sm:$0xf] %v422
                %v424 = vld [vmem:[%s178 + $0x3d0] sm:$0xf]
                %425 = vst [vmem:[%s179 + $0x1e8] sm:$0xf] %v424
                %v426 = vld [vmem:[%s178 + $0x3d8] sm:$0xf]
                %427 = vst [vmem:[%s179 + $0x1ec] sm:$0xf] %v426
                %v428 = vld [vmem:[%s178 + $0x3e0] sm:$0xf]
                %429 = vst [vmem:[%s179 + $0x1f0] sm:$0xf] %v428
                %v430 = vld [vmem:[%s178 + $0x3e8] sm:$0xf]
                %431 = vst [vmem:[%s179 + $0x1f4] sm:$0xf] %v430
                %v432 = vld [vmem:[%s178 + $0x3f0] sm:$0xf]
                %433 = vst [vmem:[%s179 + $0x1f8] sm:$0xf] %v432
                %v434 = vld [vmem:[%s178 + $0x3f8] sm:$0xf]
                %435 = vst [vmem:[%s179 + $0x1fc] sm:$0xf] %v434
                %v436 = vld [vmem:[%s178 + $0x400] sm:$0xf]
                %437 = vst [vmem:[%s179 + $0x200] sm:$0xf] %v436
                %v438 = vld [vmem:[%s178 + $0x408] sm:$0xf]
                %439 = vst [vmem:[%s179 + $0x204] sm:$0xf] %v438
                %v440 = vld [vmem:[%s178 + $0x410] sm:$0xf]
                %441 = vst [vmem:[%s179 + $0x208] sm:$0xf] %v440
                %v442 = vld [vmem:[%s178 + $0x418] sm:$0xf]
                %443 = vst [vmem:[%s179 + $0x20c] sm:$0xf] %v442
                %v444 = vld [vmem:[%s178 + $0x420] sm:$0xf]
                %445 = vst [vmem:[%s179 + $0x210] sm:$0xf] %v444
                %v446 = vld [vmem:[%s178 + $0x428] sm:$0xf]
                %447 = vst [vmem:[%s179 + $0x214] sm:$0xf] %v446
                %v448 = vld [vmem:[%s178 + $0x430] sm:$0xf]
                %449 = vst [vmem:[%s179 + $0x218] sm:$0xf] %v448
                %v450 = vld [vmem:[%s178 + $0x438] sm:$0xf]
                %451 = vst [vmem:[%s179 + $0x21c] sm:$0xf] %v450
                %v452 = vld [vmem:[%s178 + $0x440] sm:$0xf]
                %453 = vst [vmem:[%s179 + $0x220] sm:$0xf] %v452
                %v454 = vld [vmem:[%s178 + $0x448] sm:$0xf]
                %455 = vst [vmem:[%s179 + $0x224] sm:$0xf] %v454
                %v456 = vld [vmem:[%s178 + $0x450] sm:$0xf]
                %457 = vst [vmem:[%s179 + $0x228] sm:$0xf] %v456
                %v458 = vld [vmem:[%s178 + $0x458] sm:$0xf]
                %459 = vst [vmem:[%s179 + $0x22c] sm:$0xf] %v458
                %v460 = vld [vmem:[%s178 + $0x460] sm:$0xf]
                %461 = vst [vmem:[%s179 + $0x230] sm:$0xf] %v460
                %v462 = vld [vmem:[%s178 + $0x468] sm:$0xf]
                %463 = vst [vmem:[%s179 + $0x234] sm:$0xf] %v462
                %v464 = vld [vmem:[%s178 + $0x470] sm:$0xf]
                %465 = vst [vmem:[%s179 + $0x238] sm:$0xf] %v464
                %v466 = vld [vmem:[%s178 + $0x478] sm:$0xf]
                %467 = vst [vmem:[%s179 + $0x23c] sm:$0xf] %v466
                %v468 = vld [vmem:[%s178 + $0x480] sm:$0xf]
                %469 = vst [vmem:[%s179 + $0x240] sm:$0xf] %v468
                %v470 = vld [vmem:[%s178 + $0x488] sm:$0xf]
                %471 = vst [vmem:[%s179 + $0x244] sm:$0xf] %v470
                %v472 = vld [vmem:[%s178 + $0x490] sm:$0xf]
                %473 = vst [vmem:[%s179 + $0x248] sm:$0xf] %v472
                %v474 = vld [vmem:[%s178 + $0x498] sm:$0xf]
                %475 = vst [vmem:[%s179 + $0x24c] sm:$0xf] %v474
                %v476 = vld [vmem:[%s178 + $0x4a0] sm:$0xf]
                %477 = vst [vmem:[%s179 + $0x250] sm:$0xf] %v476
                %v478 = vld [vmem:[%s178 + $0x4a8] sm:$0xf]
                %479 = vst [vmem:[%s179 + $0x254] sm:$0xf] %v478
                %v480 = vld [vmem:[%s178 + $0x4b0] sm:$0xf]
                %481 = vst [vmem:[%s179 + $0x258] sm:$0xf] %v480
                %v482 = vld [vmem:[%s178 + $0x4b8] sm:$0xf]
                %483 = vst [vmem:[%s179 + $0x25c] sm:$0xf] %v482
                %v484 = vld [vmem:[%s178 + $0x4c0] sm:$0xf]
                %485 = vst [vmem:[%s179 + $0x260] sm:$0xf] %v484
                %v486 = vld [vmem:[%s178 + $0x4c8] sm:$0xf]
                %487 = vst [vmem:[%s179 + $0x264] sm:$0xf] %v486
                %v488 = vld [vmem:[%s178 + $0x4d0] sm:$0xf]
                %489 = vst [vmem:[%s179 + $0x268] sm:$0xf] %v488
                %v490 = vld [vmem:[%s178 + $0x4d8] sm:$0xf]
                %491 = vst [vmem:[%s179 + $0x26c] sm:$0xf] %v490
                %v492 = vld [vmem:[%s178 + $0x4e0] sm:$0xf]
                %493 = vst [vmem:[%s179 + $0x270] sm:$0xf] %v492
                %v494 = vld [vmem:[%s178 + $0x4e8] sm:$0xf]
                %495 = vst [vmem:[%s179 + $0x274] sm:$0xf] %v494
                %v496 = vld [vmem:[%s178 + $0x4f0] sm:$0xf]
                %497 = vst [vmem:[%s179 + $0x278] sm:$0xf] %v496
                %v498 = vld [vmem:[%s178 + $0x4f8] sm:$0xf]
                %499 = vst [vmem:[%s179 + $0x27c] sm:$0xf] %v498
                %v500 = vld [vmem:[%s178 + $0x500] sm:$0xf]
                %501 = vst [vmem:[%s179 + $0x280] sm:$0xf] %v500
                %v502 = vld [vmem:[%s178 + $0x508] sm:$0xf]
                %503 = vst [vmem:[%s179 + $0x284] sm:$0xf] %v502
                %v504 = vld [vmem:[%s178 + $0x510] sm:$0xf]
                %505 = vst [vmem:[%s179 + $0x288] sm:$0xf] %v504
                %v506 = vld [vmem:[%s178 + $0x518] sm:$0xf]
                %507 = vst [vmem:[%s179 + $0x28c] sm:$0xf] %v506
                %v508 = vld [vmem:[%s178 + $0x520] sm:$0xf]
                %509 = vst [vmem:[%s179 + $0x290] sm:$0xf] %v508
                %v510 = vld [vmem:[%s178 + $0x528] sm:$0xf]
                %511 = vst [vmem:[%s179 + $0x294] sm:$0xf] %v510
                %v512 = vld [vmem:[%s178 + $0x530] sm:$0xf]
                %513 = vst [vmem:[%s179 + $0x298] sm:$0xf] %v512
                %v514 = vld [vmem:[%s178 + $0x538] sm:$0xf]
                %515 = vst [vmem:[%s179 + $0x29c] sm:$0xf] %v514
                %v516 = vld [vmem:[%s178 + $0x540] sm:$0xf]
                %517 = vst [vmem:[%s179 + $0x2a0] sm:$0xf] %v516
                %v518 = vld [vmem:[%s178 + $0x548] sm:$0xf]
                %519 = vst [vmem:[%s179 + $0x2a4] sm:$0xf] %v518
                %v520 = vld [vmem:[%s178 + $0x550] sm:$0xf]
                %521 = vst [vmem:[%s179 + $0x2a8] sm:$0xf] %v520
                %v522 = vld [vmem:[%s178 + $0x558] sm:$0xf]
                %523 = vst [vmem:[%s179 + $0x2ac] sm:$0xf] %v522
                %v524 = vld [vmem:[%s178 + $0x560] sm:$0xf]
                %525 = vst [vmem:[%s179 + $0x2b0] sm:$0xf] %v524
                %v526 = vld [vmem:[%s178 + $0x568] sm:$0xf]
                %527 = vst [vmem:[%s179 + $0x2b4] sm:$0xf] %v526
                %v528 = vld [vmem:[%s178 + $0x570] sm:$0xf]
                %529 = vst [vmem:[%s179 + $0x2b8] sm:$0xf] %v528
                %v530 = vld [vmem:[%s178 + $0x578] sm:$0xf]
                %531 = vst [vmem:[%s179 + $0x2bc] sm:$0xf] %v530
                %v532 = vld [vmem:[%s178 + $0x580] sm:$0xf]
                %533 = vst [vmem:[%s179 + $0x2c0] sm:$0xf] %v532
                %v534 = vld [vmem:[%s178 + $0x588] sm:$0xf]
                %535 = vst [vmem:[%s179 + $0x2c4] sm:$0xf] %v534
                %v536 = vld [vmem:[%s178 + $0x590] sm:$0xf]
                %537 = vst [vmem:[%s179 + $0x2c8] sm:$0xf] %v536
                %v538 = vld [vmem:[%s178 + $0x598] sm:$0xf]
                %539 = vst [vmem:[%s179 + $0x2cc] sm:$0xf] %v538
                %v540 = vld [vmem:[%s178 + $0x5a0] sm:$0xf]
                %541 = vst [vmem:[%s179 + $0x2d0] sm:$0xf] %v540
                %v542 = vld [vmem:[%s178 + $0x5a8] sm:$0xf]
                %543 = vst [vmem:[%s179 + $0x2d4] sm:$0xf] %v542
                %v544 = vld [vmem:[%s178 + $0x5b0] sm:$0xf]
                %545 = vst [vmem:[%s179 + $0x2d8] sm:$0xf] %v544
                %v546 = vld [vmem:[%s178 + $0x5b8] sm:$0xf]
                %547 = vst [vmem:[%s179 + $0x2dc] sm:$0xf] %v546
                %v548 = vld [vmem:[%s178 + $0x5c0] sm:$0xf]
                %549 = vst [vmem:[%s179 + $0x2e0] sm:$0xf] %v548
                %v550 = vld [vmem:[%s178 + $0x5c8] sm:$0xf]
                %551 = vst [vmem:[%s179 + $0x2e4] sm:$0xf] %v550
                %v552 = vld [vmem:[%s178 + $0x5d0] sm:$0xf]
                %553 = vst [vmem:[%s179 + $0x2e8] sm:$0xf] %v552
                %v554 = vld [vmem:[%s178 + $0x5d8] sm:$0xf]
                %555 = vst [vmem:[%s179 + $0x2ec] sm:$0xf] %v554
                %v556 = vld [vmem:[%s178 + $0x5e0] sm:$0xf]
                %557 = vst [vmem:[%s179 + $0x2f0] sm:$0xf] %v556
                %v558 = vld [vmem:[%s178 + $0x5e8] sm:$0xf]
                %559 = vst [vmem:[%s179 + $0x2f4] sm:$0xf] %v558
                %v560 = vld [vmem:[%s178 + $0x5f0] sm:$0xf]
                %561 = vst [vmem:[%s179 + $0x2f8] sm:$0xf] %v560
                %v562 = vld [vmem:[%s178 + $0x5f8] sm:$0xf]
                %563 = vst [vmem:[%s179 + $0x2fc] sm:$0xf] %v562
                %v564 = vld [vmem:[%s178 + $0x600] sm:$0xf]
                %565 = vst [vmem:[%s179 + $0x300] sm:$0xf] %v564
                %v566 = vld [vmem:[%s178 + $0x608] sm:$0xf]
                %567 = vst [vmem:[%s179 + $0x304] sm:$0xf] %v566
                %v568 = vld [vmem:[%s178 + $0x610] sm:$0xf]
                %569 = vst [vmem:[%s179 + $0x308] sm:$0xf] %v568
                %v570 = vld [vmem:[%s178 + $0x618] sm:$0xf]
                %571 = vst [vmem:[%s179 + $0x30c] sm:$0xf] %v570
                %v572 = vld [vmem:[%s178 + $0x620] sm:$0xf]
                %573 = vst [vmem:[%s179 + $0x310] sm:$0xf] %v572
                %v574 = vld [vmem:[%s178 + $0x628] sm:$0xf]
                %575 = vst [vmem:[%s179 + $0x314] sm:$0xf] %v574
                %v576 = vld [vmem:[%s178 + $0x630] sm:$0xf]
                %577 = vst [vmem:[%s179 + $0x318] sm:$0xf] %v576
                %v578 = vld [vmem:[%s178 + $0x638] sm:$0xf]
                %579 = vst [vmem:[%s179 + $0x31c] sm:$0xf] %v578
                %v580 = vld [vmem:[%s178 + $0x640] sm:$0xf]
                %581 = vst [vmem:[%s179 + $0x320] sm:$0xf] %v580
                %v582 = vld [vmem:[%s178 + $0x648] sm:$0xf]
                %583 = vst [vmem:[%s179 + $0x324] sm:$0xf] %v582
                %v584 = vld [vmem:[%s178 + $0x650] sm:$0xf]
                %585 = vst [vmem:[%s179 + $0x328] sm:$0xf] %v584
                %v586 = vld [vmem:[%s178 + $0x658] sm:$0xf]
                %587 = vst [vmem:[%s179 + $0x32c] sm:$0xf] %v586
                %v588 = vld [vmem:[%s178 + $0x660] sm:$0xf]
                %589 = vst [vmem:[%s179 + $0x330] sm:$0xf] %v588
                %v590 = vld [vmem:[%s178 + $0x668] sm:$0xf]
                %591 = vst [vmem:[%s179 + $0x334] sm:$0xf] %v590
                %v592 = vld [vmem:[%s178 + $0x670] sm:$0xf]
                %593 = vst [vmem:[%s179 + $0x338] sm:$0xf] %v592
                %v594 = vld [vmem:[%s178 + $0x678] sm:$0xf]
                %595 = vst [vmem:[%s179 + $0x33c] sm:$0xf] %v594
                %v596 = vld [vmem:[%s178 + $0x680] sm:$0xf]
                %597 = vst [vmem:[%s179 + $0x340] sm:$0xf] %v596
                %v598 = vld [vmem:[%s178 + $0x688] sm:$0xf]
                %599 = vst [vmem:[%s179 + $0x344] sm:$0xf] %v598
                %v600 = vld [vmem:[%s178 + $0x690] sm:$0xf]
                %601 = vst [vmem:[%s179 + $0x348] sm:$0xf] %v600
                %v602 = vld [vmem:[%s178 + $0x698] sm:$0xf]
                %603 = vst [vmem:[%s179 + $0x34c] sm:$0xf] %v602
                %v604 = vld [vmem:[%s178 + $0x6a0] sm:$0xf]
                %605 = vst [vmem:[%s179 + $0x350] sm:$0xf] %v604
                %v606 = vld [vmem:[%s178 + $0x6a8] sm:$0xf]
                %607 = vst [vmem:[%s179 + $0x354] sm:$0xf] %v606
                %v608 = vld [vmem:[%s178 + $0x6b0] sm:$0xf]
                %609 = vst [vmem:[%s179 + $0x358] sm:$0xf] %v608
                %v610 = vld [vmem:[%s178 + $0x6b8] sm:$0xf]
                %611 = vst [vmem:[%s179 + $0x35c] sm:$0xf] %v610
                %v612 = vld [vmem:[%s178 + $0x6c0] sm:$0xf]
                %613 = vst [vmem:[%s179 + $0x360] sm:$0xf] %v612
                %v614 = vld [vmem:[%s178 + $0x6c8] sm:$0xf]
                %615 = vst [vmem:[%s179 + $0x364] sm:$0xf] %v614
                %v616 = vld [vmem:[%s178 + $0x6d0] sm:$0xf]
                %617 = vst [vmem:[%s179 + $0x368] sm:$0xf] %v616
                %v618 = vld [vmem:[%s178 + $0x6d8] sm:$0xf]
                %619 = vst [vmem:[%s179 + $0x36c] sm:$0xf] %v618
                %v620 = vld [vmem:[%s178 + $0x6e0] sm:$0xf]
                %621 = vst [vmem:[%s179 + $0x370] sm:$0xf] %v620
                %v622 = vld [vmem:[%s178 + $0x6e8] sm:$0xf]
                %623 = vst [vmem:[%s179 + $0x374] sm:$0xf] %v622
                %v624 = vld [vmem:[%s178 + $0x6f0] sm:$0xf]
                %625 = vst [vmem:[%s179 + $0x378] sm:$0xf] %v624
                %v626 = vld [vmem:[%s178 + $0x6f8] sm:$0xf]
                %627 = vst [vmem:[%s179 + $0x37c] sm:$0xf] %v626
                %v628 = vld [vmem:[%s178 + $0x700] sm:$0xf]
                %629 = vst [vmem:[%s179 + $0x380] sm:$0xf] %v628
                %v630 = vld [vmem:[%s178 + $0x708] sm:$0xf]
                %631 = vst [vmem:[%s179 + $0x384] sm:$0xf] %v630
                %v632 = vld [vmem:[%s178 + $0x710] sm:$0xf]
                %633 = vst [vmem:[%s179 + $0x388] sm:$0xf] %v632
                %v634 = vld [vmem:[%s178 + $0x718] sm:$0xf]
                %635 = vst [vmem:[%s179 + $0x38c] sm:$0xf] %v634
                %v636 = vld [vmem:[%s178 + $0x720] sm:$0xf]
                %637 = vst [vmem:[%s179 + $0x390] sm:$0xf] %v636
                %v638 = vld [vmem:[%s178 + $0x728] sm:$0xf]
                %639 = vst [vmem:[%s179 + $0x394] sm:$0xf] %v638
                %v640 = vld [vmem:[%s178 + $0x730] sm:$0xf]
                %641 = vst [vmem:[%s179 + $0x398] sm:$0xf] %v640
                %v642 = vld [vmem:[%s178 + $0x738] sm:$0xf]
                %643 = vst [vmem:[%s179 + $0x39c] sm:$0xf] %v642
                %v644 = vld [vmem:[%s178 + $0x740] sm:$0xf]
                %645 = vst [vmem:[%s179 + $0x3a0] sm:$0xf] %v644
                %v646 = vld [vmem:[%s178 + $0x748] sm:$0xf]
                %647 = vst [vmem:[%s179 + $0x3a4] sm:$0xf] %v646
                %v648 = vld [vmem:[%s178 + $0x750] sm:$0xf]
                %649 = vst [vmem:[%s179 + $0x3a8] sm:$0xf] %v648
                %v650 = vld [vmem:[%s178 + $0x758] sm:$0xf]
                %651 = vst [vmem:[%s179 + $0x3ac] sm:$0xf] %v650
                %v652 = vld [vmem:[%s178 + $0x760] sm:$0xf]
                %653 = vst [vmem:[%s179 + $0x3b0] sm:$0xf] %v652
                %v654 = vld [vmem:[%s178 + $0x768] sm:$0xf]
                %655 = vst [vmem:[%s179 + $0x3b4] sm:$0xf] %v654
                %v656 = vld [vmem:[%s178 + $0x770] sm:$0xf]
                %657 = vst [vmem:[%s179 + $0x3b8] sm:$0xf] %v656
                %v658 = vld [vmem:[%s178 + $0x778] sm:$0xf]
                %659 = vst [vmem:[%s179 + $0x3bc] sm:$0xf] %v658
                %v660 = vld [vmem:[%s178 + $0x780] sm:$0xf]
                %661 = vst [vmem:[%s179 + $0x3c0] sm:$0xf] %v660
                %v662 = vld [vmem:[%s178 + $0x788] sm:$0xf]
                %663 = vst [vmem:[%s179 + $0x3c4] sm:$0xf] %v662
                %v664 = vld [vmem:[%s178 + $0x790] sm:$0xf]
                %665 = vst [vmem:[%s179 + $0x3c8] sm:$0xf] %v664
                %v666 = vld [vmem:[%s178 + $0x798] sm:$0xf]
                %667 = vst [vmem:[%s179 + $0x3cc] sm:$0xf] %v666
                %v668 = vld [vmem:[%s178 + $0x7a0] sm:$0xf]
                %669 = vst [vmem:[%s179 + $0x3d0] sm:$0xf] %v668
                %v670 = vld [vmem:[%s178 + $0x7a8] sm:$0xf]
                %671 = vst [vmem:[%s179 + $0x3d4] sm:$0xf] %v670
                %v672 = vld [vmem:[%s178 + $0x7b0] sm:$0xf]
                %673 = vst [vmem:[%s179 + $0x3d8] sm:$0xf] %v672
                %v674 = vld [vmem:[%s178 + $0x7b8] sm:$0xf]
                %675 = vst [vmem:[%s179 + $0x3dc] sm:$0xf] %v674
                %v676 = vld [vmem:[%s178 + $0x7c0] sm:$0xf]
                %677 = vst [vmem:[%s179 + $0x3e0] sm:$0xf] %v676
                %v678 = vld [vmem:[%s178 + $0x7c8] sm:$0xf]
                %679 = vst [vmem:[%s179 + $0x3e4] sm:$0xf] %v678
                %v680 = vld [vmem:[%s178 + $0x7d0] sm:$0xf]
                %681 = vst [vmem:[%s179 + $0x3e8] sm:$0xf] %v680
                %v682 = vld [vmem:[%s178 + $0x7d8] sm:$0xf]
                %683 = vst [vmem:[%s179 + $0x3ec] sm:$0xf] %v682
                %v684 = vld [vmem:[%s178 + $0x7e0] sm:$0xf]
                %685 = vst [vmem:[%s179 + $0x3f0] sm:$0xf] %v684
                %v686 = vld [vmem:[%s178 + $0x7e8] sm:$0xf]
                %687 = vst [vmem:[%s179 + $0x3f4] sm:$0xf] %v686
                %v688 = vld [vmem:[%s178 + $0x7f0] sm:$0xf]
                %689 = vst [vmem:[%s179 + $0x3f8] sm:$0xf] %v688
                %v690 = vld [vmem:[%s178 + $0x7f8] sm:$0xf]
                %691 = vst [vmem:[%s179 + $0x3fc] sm:$0xf] %v690
                %v692 = vld [vmem:[%s178 + $0x800] sm:$0xf]
                %693 = vst [vmem:[%s179 + $0x400] sm:$0xf] %v692
                %v694 = vld [vmem:[%s178 + $0x808] sm:$0xf]
                %695 = vst [vmem:[%s179 + $0x404] sm:$0xf] %v694
                %v696 = vld [vmem:[%s178 + $0x810] sm:$0xf]
                %697 = vst [vmem:[%s179 + $0x408] sm:$0xf] %v696
                %v698 = vld [vmem:[%s178 + $0x818] sm:$0xf]
                %699 = vst [vmem:[%s179 + $0x40c] sm:$0xf] %v698
                %v700 = vld [vmem:[%s178 + $0x820] sm:$0xf]
                %701 = vst [vmem:[%s179 + $0x410] sm:$0xf] %v700
                %v702 = vld [vmem:[%s178 + $0x828] sm:$0xf]
                %703 = vst [vmem:[%s179 + $0x414] sm:$0xf] %v702
                %v704 = vld [vmem:[%s178 + $0x830] sm:$0xf]
                %705 = vst [vmem:[%s179 + $0x418] sm:$0xf] %v704
                %v706 = vld [vmem:[%s178 + $0x838] sm:$0xf]
                %707 = vst [vmem:[%s179 + $0x41c] sm:$0xf] %v706
                %v708 = vld [vmem:[%s178 + $0x840] sm:$0xf]
                %709 = vst [vmem:[%s179 + $0x420] sm:$0xf] %v708
                %v710 = vld [vmem:[%s178 + $0x848] sm:$0xf]
                %711 = vst [vmem:[%s179 + $0x424] sm:$0xf] %v710
                %v712 = vld [vmem:[%s178 + $0x850] sm:$0xf]
                %713 = vst [vmem:[%s179 + $0x428] sm:$0xf] %v712
                %v714 = vld [vmem:[%s178 + $0x858] sm:$0xf]
                %715 = vst [vmem:[%s179 + $0x42c] sm:$0xf] %v714
                %v716 = vld [vmem:[%s178 + $0x860] sm:$0xf]
                %717 = vst [vmem:[%s179 + $0x430] sm:$0xf] %v716
                %v718 = vld [vmem:[%s178 + $0x868] sm:$0xf]
                %719 = vst [vmem:[%s179 + $0x434] sm:$0xf] %v718
                %v720 = vld [vmem:[%s178 + $0x870] sm:$0xf]
                %721 = vst [vmem:[%s179 + $0x438] sm:$0xf] %v720
                %v722 = vld [vmem:[%s178 + $0x878] sm:$0xf]
                %723 = vst [vmem:[%s179 + $0x43c] sm:$0xf] %v722
                %v724 = vld [vmem:[%s178 + $0x880] sm:$0xf]
                %725 = vst [vmem:[%s179 + $0x440] sm:$0xf] %v724
                %v726 = vld [vmem:[%s178 + $0x888] sm:$0xf]
                %727 = vst [vmem:[%s179 + $0x444] sm:$0xf] %v726
                %v728 = vld [vmem:[%s178 + $0x890] sm:$0xf]
                %729 = vst [vmem:[%s179 + $0x448] sm:$0xf] %v728
                %v730 = vld [vmem:[%s178 + $0x898] sm:$0xf]
                %731 = vst [vmem:[%s179 + $0x44c] sm:$0xf] %v730
                %v732 = vld [vmem:[%s178 + $0x8a0] sm:$0xf]
                %733 = vst [vmem:[%s179 + $0x450] sm:$0xf] %v732
                %v734 = vld [vmem:[%s178 + $0x8a8] sm:$0xf]
                %735 = vst [vmem:[%s179 + $0x454] sm:$0xf] %v734
                %v736 = vld [vmem:[%s178 + $0x8b0] sm:$0xf]
                %737 = vst [vmem:[%s179 + $0x458] sm:$0xf] %v736
                %v738 = vld [vmem:[%s178 + $0x8b8] sm:$0xf]
                %739 = vst [vmem:[%s179 + $0x45c] sm:$0xf] %v738
                %v740 = vld [vmem:[%s178 + $0x8c0] sm:$0xf]
                %741 = vst [vmem:[%s179 + $0x460] sm:$0xf] %v740
                %v742 = vld [vmem:[%s178 + $0x8c8] sm:$0xf]
                %743 = vst [vmem:[%s179 + $0x464] sm:$0xf] %v742
                %v744 = vld [vmem:[%s178 + $0x8d0] sm:$0xf]
                %745 = vst [vmem:[%s179 + $0x468] sm:$0xf] %v744
                %v746 = vld [vmem:[%s178 + $0x8d8] sm:$0xf]
                %747 = vst [vmem:[%s179 + $0x46c] sm:$0xf] %v746
                %v748 = vld [vmem:[%s178 + $0x8e0] sm:$0xf]
                %749 = vst [vmem:[%s179 + $0x470] sm:$0xf] %v748
                %v750 = vld [vmem:[%s178 + $0x8e8] sm:$0xf]
                %751 = vst [vmem:[%s179 + $0x474] sm:$0xf] %v750
                %v752 = vld [vmem:[%s178 + $0x8f0] sm:$0xf]
                %753 = vst [vmem:[%s179 + $0x478] sm:$0xf] %v752
                %v754 = vld [vmem:[%s178 + $0x8f8] sm:$0xf]
                %755 = vst [vmem:[%s179 + $0x47c] sm:$0xf] %v754
                %v756 = vld [vmem:[%s178 + $0x900] sm:$0xf]
                %757 = vst [vmem:[%s179 + $0x480] sm:$0xf] %v756
                %v758 = vld [vmem:[%s178 + $0x908] sm:$0xf]
                %759 = vst [vmem:[%s179 + $0x484] sm:$0xf] %v758
                %v760 = vld [vmem:[%s178 + $0x910] sm:$0xf]
                %761 = vst [vmem:[%s179 + $0x488] sm:$0xf] %v760
                %v762 = vld [vmem:[%s178 + $0x918] sm:$0xf]
                %763 = vst [vmem:[%s179 + $0x48c] sm:$0xf] %v762
                %v764 = vld [vmem:[%s178 + $0x920] sm:$0xf]
                %765 = vst [vmem:[%s179 + $0x490] sm:$0xf] %v764
                %v766 = vld [vmem:[%s178 + $0x928] sm:$0xf]
                %767 = vst [vmem:[%s179 + $0x494] sm:$0xf] %v766
                %v768 = vld [vmem:[%s178 + $0x930] sm:$0xf]
                %769 = vst [vmem:[%s179 + $0x498] sm:$0xf] %v768
                %v770 = vld [vmem:[%s178 + $0x938] sm:$0xf]
                %771 = vst [vmem:[%s179 + $0x49c] sm:$0xf] %v770
                %v772 = vld [vmem:[%s178 + $0x940] sm:$0xf]
                %773 = vst [vmem:[%s179 + $0x4a0] sm:$0xf] %v772
                %v774 = vld [vmem:[%s178 + $0x948] sm:$0xf]
                %775 = vst [vmem:[%s179 + $0x4a4] sm:$0xf] %v774
                %v776 = vld [vmem:[%s178 + $0x950] sm:$0xf]
                %777 = vst [vmem:[%s179 + $0x4a8] sm:$0xf] %v776
                %v778 = vld [vmem:[%s178 + $0x958] sm:$0xf]
                %779 = vst [vmem:[%s179 + $0x4ac] sm:$0xf] %v778
                %v780 = vld [vmem:[%s178 + $0x960] sm:$0xf]
                %781 = vst [vmem:[%s179 + $0x4b0] sm:$0xf] %v780
                %v782 = vld [vmem:[%s178 + $0x968] sm:$0xf]
                %783 = vst [vmem:[%s179 + $0x4b4] sm:$0xf] %v782
                %v784 = vld [vmem:[%s178 + $0x970] sm:$0xf]
                %785 = vst [vmem:[%s179 + $0x4b8] sm:$0xf] %v784
                %v786 = vld [vmem:[%s178 + $0x978] sm:$0xf]
                %787 = vst [vmem:[%s179 + $0x4bc] sm:$0xf] %v786
                %v788 = vld [vmem:[%s178 + $0x980] sm:$0xf]
                %789 = vst [vmem:[%s179 + $0x4c0] sm:$0xf] %v788
                %v790 = vld [vmem:[%s178 + $0x988] sm:$0xf]
                %791 = vst [vmem:[%s179 + $0x4c4] sm:$0xf] %v790
                %v792 = vld [vmem:[%s178 + $0x990] sm:$0xf]
                %793 = vst [vmem:[%s179 + $0x4c8] sm:$0xf] %v792
                %v794 = vld [vmem:[%s178 + $0x998] sm:$0xf]
                %795 = vst [vmem:[%s179 + $0x4cc] sm:$0xf] %v794
                %v796 = vld [vmem:[%s178 + $0x9a0] sm:$0xf]
                %797 = vst [vmem:[%s179 + $0x4d0] sm:$0xf] %v796
                %v798 = vld [vmem:[%s178 + $0x9a8] sm:$0xf]
                %799 = vst [vmem:[%s179 + $0x4d4] sm:$0xf] %v798
                %v800 = vld [vmem:[%s178 + $0x9b0] sm:$0xf]
                %801 = vst [vmem:[%s179 + $0x4d8] sm:$0xf] %v800
                %v802 = vld [vmem:[%s178 + $0x9b8] sm:$0xf]
                %803 = vst [vmem:[%s179 + $0x4dc] sm:$0xf] %v802
                %v804 = vld [vmem:[%s178 + $0x9c0] sm:$0xf]
                %805 = vst [vmem:[%s179 + $0x4e0] sm:$0xf] %v804
                %v806 = vld [vmem:[%s178 + $0x9c8] sm:$0xf]
                %807 = vst [vmem:[%s179 + $0x4e4] sm:$0xf] %v806
                %v808 = vld [vmem:[%s178 + $0x9d0] sm:$0xf]
                %809 = vst [vmem:[%s179 + $0x4e8] sm:$0xf] %v808
                %v810 = vld [vmem:[%s178 + $0x9d8] sm:$0xf]
                %811 = vst [vmem:[%s179 + $0x4ec] sm:$0xf] %v810
                %v812 = vld [vmem:[%s178 + $0x9e0] sm:$0xf]
                %813 = vst [vmem:[%s179 + $0x4f0] sm:$0xf] %v812
                %v814 = vld [vmem:[%s178 + $0x9e8] sm:$0xf]
                %815 = vst [vmem:[%s179 + $0x4f4] sm:$0xf] %v814
                %v816 = vld [vmem:[%s178 + $0x9f0] sm:$0xf]
                %817 = vst [vmem:[%s179 + $0x4f8] sm:$0xf] %v816
                %v818 = vld [vmem:[%s178 + $0x9f8] sm:$0xf]
                %819 = vst [vmem:[%s179 + $0x4fc] sm:$0xf] %v818
                %v820 = vld [vmem:[%s178 + $0xa00] sm:$0xf]
                %821 = vst [vmem:[%s179 + $0x500] sm:$0xf] %v820
                %v822 = vld [vmem:[%s178 + $0xa08] sm:$0xf]
                %823 = vst [vmem:[%s179 + $0x504] sm:$0xf] %v822
                %v824 = vld [vmem:[%s178 + $0xa10] sm:$0xf]
                %825 = vst [vmem:[%s179 + $0x508] sm:$0xf] %v824
                %v826 = vld [vmem:[%s178 + $0xa18] sm:$0xf]
                %827 = vst [vmem:[%s179 + $0x50c] sm:$0xf] %v826
                %v828 = vld [vmem:[%s178 + $0xa20] sm:$0xf]
                %829 = vst [vmem:[%s179 + $0x510] sm:$0xf] %v828
                %v830 = vld [vmem:[%s178 + $0xa28] sm:$0xf]
                %831 = vst [vmem:[%s179 + $0x514] sm:$0xf] %v830
                %v832 = vld [vmem:[%s178 + $0xa30] sm:$0xf]
                %833 = vst [vmem:[%s179 + $0x518] sm:$0xf] %v832
                %v834 = vld [vmem:[%s178 + $0xa38] sm:$0xf]
                %835 = vst [vmem:[%s179 + $0x51c] sm:$0xf] %v834
                %v836 = vld [vmem:[%s178 + $0xa40] sm:$0xf]
                %837 = vst [vmem:[%s179 + $0x520] sm:$0xf] %v836
                %v838 = vld [vmem:[%s178 + $0xa48] sm:$0xf]
                %839 = vst [vmem:[%s179 + $0x524] sm:$0xf] %v838
                %v840 = vld [vmem:[%s178 + $0xa50] sm:$0xf]
                %841 = vst [vmem:[%s179 + $0x528] sm:$0xf] %v840
                %v842 = vld [vmem:[%s178 + $0xa58] sm:$0xf]
                %843 = vst [vmem:[%s179 + $0x52c] sm:$0xf] %v842
                %v844 = vld [vmem:[%s178 + $0xa60] sm:$0xf]
                %845 = vst [vmem:[%s179 + $0x530] sm:$0xf] %v844
                %v846 = vld [vmem:[%s178 + $0xa68] sm:$0xf]
                %847 = vst [vmem:[%s179 + $0x534] sm:$0xf] %v846
                %v848 = vld [vmem:[%s178 + $0xa70] sm:$0xf]
                %849 = vst [vmem:[%s179 + $0x538] sm:$0xf] %v848
                %v850 = vld [vmem:[%s178 + $0xa78] sm:$0xf]
                %851 = vst [vmem:[%s179 + $0x53c] sm:$0xf] %v850
                %v852 = vld [vmem:[%s178 + $0xa80] sm:$0xf]
                %853 = vst [vmem:[%s179 + $0x540] sm:$0xf] %v852
                %v854 = vld [vmem:[%s178 + $0xa88] sm:$0xf]
                %855 = vst [vmem:[%s179 + $0x544] sm:$0xf] %v854
                %v856 = vld [vmem:[%s178 + $0xa90] sm:$0xf]
                %857 = vst [vmem:[%s179 + $0x548] sm:$0xf] %v856
                %v858 = vld [vmem:[%s178 + $0xa98] sm:$0xf]
                %859 = vst [vmem:[%s179 + $0x54c] sm:$0xf] %v858
                %v860 = vld [vmem:[%s178 + $0xaa0] sm:$0xf]
                %861 = vst [vmem:[%s179 + $0x550] sm:$0xf] %v860
                %v862 = vld [vmem:[%s178 + $0xaa8] sm:$0xf]
                %863 = vst [vmem:[%s179 + $0x554] sm:$0xf] %v862
                %v864 = vld [vmem:[%s178 + $0xab0] sm:$0xf]
                %865 = vst [vmem:[%s179 + $0x558] sm:$0xf] %v864
                %v866 = vld [vmem:[%s178 + $0xab8] sm:$0xf]
                %867 = vst [vmem:[%s179 + $0x55c] sm:$0xf] %v866
                %v868 = vld [vmem:[%s178 + $0xac0] sm:$0xf]
                %869 = vst [vmem:[%s179 + $0x560] sm:$0xf] %v868
                %v870 = vld [vmem:[%s178 + $0xac8] sm:$0xf]
                %871 = vst [vmem:[%s179 + $0x564] sm:$0xf] %v870
                %v872 = vld [vmem:[%s178 + $0xad0] sm:$0xf]
                %873 = vst [vmem:[%s179 + $0x568] sm:$0xf] %v872
                %v874 = vld [vmem:[%s178 + $0xad8] sm:$0xf]
                %875 = vst [vmem:[%s179 + $0x56c] sm:$0xf] %v874
                %v876 = vld [vmem:[%s178 + $0xae0] sm:$0xf]
                %877 = vst [vmem:[%s179 + $0x570] sm:$0xf] %v876
                %v878 = vld [vmem:[%s178 + $0xae8] sm:$0xf]
                %879 = vst [vmem:[%s179 + $0x574] sm:$0xf] %v878
                %v880 = vld [vmem:[%s178 + $0xaf0] sm:$0xf]
                %881 = vst [vmem:[%s179 + $0x578] sm:$0xf] %v880
                %v882 = vld [vmem:[%s178 + $0xaf8] sm:$0xf]
                %883 = vst [vmem:[%s179 + $0x57c] sm:$0xf] %v882
                %v884 = vld [vmem:[%s178 + $0xb00] sm:$0xf]
                %885 = vst [vmem:[%s179 + $0x580] sm:$0xf] %v884
                %v886 = vld [vmem:[%s178 + $0xb08] sm:$0xf]
                %887 = vst [vmem:[%s179 + $0x584] sm:$0xf] %v886
                %v888 = vld [vmem:[%s178 + $0xb10] sm:$0xf]
                %889 = vst [vmem:[%s179 + $0x588] sm:$0xf] %v888
                %v890 = vld [vmem:[%s178 + $0xb18] sm:$0xf]
                %891 = vst [vmem:[%s179 + $0x58c] sm:$0xf] %v890
                %v892 = vld [vmem:[%s178 + $0xb20] sm:$0xf]
                %893 = vst [vmem:[%s179 + $0x590] sm:$0xf] %v892
                %v894 = vld [vmem:[%s178 + $0xb28] sm:$0xf]
                %895 = vst [vmem:[%s179 + $0x594] sm:$0xf] %v894
                %v896 = vld [vmem:[%s178 + $0xb30] sm:$0xf]
                %897 = vst [vmem:[%s179 + $0x598] sm:$0xf] %v896
                %v898 = vld [vmem:[%s178 + $0xb38] sm:$0xf]
                %899 = vst [vmem:[%s179 + $0x59c] sm:$0xf] %v898
                %v900 = vld [vmem:[%s178 + $0xb40] sm:$0xf]
                %901 = vst [vmem:[%s179 + $0x5a0] sm:$0xf] %v900
                %v902 = vld [vmem:[%s178 + $0xb48] sm:$0xf]
                %903 = vst [vmem:[%s179 + $0x5a4] sm:$0xf] %v902
                %v904 = vld [vmem:[%s178 + $0xb50] sm:$0xf]
                %905 = vst [vmem:[%s179 + $0x5a8] sm:$0xf] %v904
                %v906 = vld [vmem:[%s178 + $0xb58] sm:$0xf]
                %907 = vst [vmem:[%s179 + $0x5ac] sm:$0xf] %v906
                %v908 = vld [vmem:[%s178 + $0xb60] sm:$0xf]
                %909 = vst [vmem:[%s179 + $0x5b0] sm:$0xf] %v908
                %v910 = vld [vmem:[%s178 + $0xb68] sm:$0xf]
                %911 = vst [vmem:[%s179 + $0x5b4] sm:$0xf] %v910
                %v912 = vld [vmem:[%s178 + $0xb70] sm:$0xf]
                %913 = vst [vmem:[%s179 + $0x5b8] sm:$0xf] %v912
                %v914 = vld [vmem:[%s178 + $0xb78] sm:$0xf]
                %915 = vst [vmem:[%s179 + $0x5bc] sm:$0xf] %v914
                %v916 = vld [vmem:[%s178 + $0xb80] sm:$0xf]
                %917 = vst [vmem:[%s179 + $0x5c0] sm:$0xf] %v916
                %v918 = vld [vmem:[%s178 + $0xb88] sm:$0xf]
                %919 = vst [vmem:[%s179 + $0x5c4] sm:$0xf] %v918
                %v920 = vld [vmem:[%s178 + $0xb90] sm:$0xf]
                %921 = vst [vmem:[%s179 + $0x5c8] sm:$0xf] %v920
                %v922 = vld [vmem:[%s178 + $0xb98] sm:$0xf]
                %923 = vst [vmem:[%s179 + $0x5cc] sm:$0xf] %v922
                %v924 = vld [vmem:[%s178 + $0xba0] sm:$0xf]
                %925 = vst [vmem:[%s179 + $0x5d0] sm:$0xf] %v924
                %v926 = vld [vmem:[%s178 + $0xba8] sm:$0xf]
                %927 = vst [vmem:[%s179 + $0x5d4] sm:$0xf] %v926
                %v928 = vld [vmem:[%s178 + $0xbb0] sm:$0xf]
                %929 = vst [vmem:[%s179 + $0x5d8] sm:$0xf] %v928
                %v930 = vld [vmem:[%s178 + $0xbb8] sm:$0xf]
                %931 = vst [vmem:[%s179 + $0x5dc] sm:$0xf] %v930
                %v932 = vld [vmem:[%s178 + $0xbc0] sm:$0xf]
                %933 = vst [vmem:[%s179 + $0x5e0] sm:$0xf] %v932
                %v934 = vld [vmem:[%s178 + $0xbc8] sm:$0xf]
                %935 = vst [vmem:[%s179 + $0x5e4] sm:$0xf] %v934
                %v936 = vld [vmem:[%s178 + $0xbd0] sm:$0xf]
                %937 = vst [vmem:[%s179 + $0x5e8] sm:$0xf] %v936
                %v938 = vld [vmem:[%s178 + $0xbd8] sm:$0xf]
                %939 = vst [vmem:[%s179 + $0x5ec] sm:$0xf] %v938
                %v940 = vld [vmem:[%s178 + $0xbe0] sm:$0xf]
                %941 = vst [vmem:[%s179 + $0x5f0] sm:$0xf] %v940
                %v942 = vld [vmem:[%s178 + $0xbe8] sm:$0xf]
                %943 = vst [vmem:[%s179 + $0x5f4] sm:$0xf] %v942
                %v944 = vld [vmem:[%s178 + $0xbf0] sm:$0xf]
                %945 = vst [vmem:[%s179 + $0x5f8] sm:$0xf] %v944
                %v946 = vld [vmem:[%s178 + $0xbf8] sm:$0xf]
                %947 = vst [vmem:[%s179 + $0x5fc] sm:$0xf] %v946
                %v948 = vld [vmem:[%s178 + $0xc00] sm:$0xf]
                %949 = vst [vmem:[%s179 + $0x600] sm:$0xf] %v948
                %v950 = vld [vmem:[%s178 + $0xc08] sm:$0xf]
                %951 = vst [vmem:[%s179 + $0x604] sm:$0xf] %v950
                %v952 = vld [vmem:[%s178 + $0xc10] sm:$0xf]
                %953 = vst [vmem:[%s179 + $0x608] sm:$0xf] %v952
                %v954 = vld [vmem:[%s178 + $0xc18] sm:$0xf]
                %955 = vst [vmem:[%s179 + $0x60c] sm:$0xf] %v954
                %v956 = vld [vmem:[%s178 + $0xc20] sm:$0xf]
                %957 = vst [vmem:[%s179 + $0x610] sm:$0xf] %v956
                %v958 = vld [vmem:[%s178 + $0xc28] sm:$0xf]
                %959 = vst [vmem:[%s179 + $0x614] sm:$0xf] %v958
                %v960 = vld [vmem:[%s178 + $0xc30] sm:$0xf]
                %961 = vst [vmem:[%s179 + $0x618] sm:$0xf] %v960
                %v962 = vld [vmem:[%s178 + $0xc38] sm:$0xf]
                %963 = vst [vmem:[%s179 + $0x61c] sm:$0xf] %v962
                %v964 = vld [vmem:[%s178 + $0xc40] sm:$0xf]
                %965 = vst [vmem:[%s179 + $0x620] sm:$0xf] %v964
                %v966 = vld [vmem:[%s178 + $0xc48] sm:$0xf]
                %967 = vst [vmem:[%s179 + $0x624] sm:$0xf] %v966
                %v968 = vld [vmem:[%s178 + $0xc50] sm:$0xf]
                %969 = vst [vmem:[%s179 + $0x628] sm:$0xf] %v968
                %v970 = vld [vmem:[%s178 + $0xc58] sm:$0xf]
                %971 = vst [vmem:[%s179 + $0x62c] sm:$0xf] %v970
                %v972 = vld [vmem:[%s178 + $0xc60] sm:$0xf]
                %973 = vst [vmem:[%s179 + $0x630] sm:$0xf] %v972
                %v974 = vld [vmem:[%s178 + $0xc68] sm:$0xf]
                %975 = vst [vmem:[%s179 + $0x634] sm:$0xf] %v974
                %v976 = vld [vmem:[%s178 + $0xc70] sm:$0xf]
                %977 = vst [vmem:[%s179 + $0x638] sm:$0xf] %v976
                %v978 = vld [vmem:[%s178 + $0xc78] sm:$0xf]
                %979 = vst [vmem:[%s179 + $0x63c] sm:$0xf] %v978
              $region41: #{headnet_forward.3} parent=35 // loop_footer
                %s177 = sadd.s32 1, %s173
              $region42: #{headnet_forward.3} parent=35 // loop_footer_branch
                %172 = sbr.rel target = $region38
              $region43: #{headnet_forward.3} parent=35 // loop_exit
                _
            $region36: #{headnet_forward.3} parent=27 // pred_fallthru
              _
          $region28: #{headnet_forward.3} parent=23 // pred_fallthru
            _
          %1799 = vnop
        $region24: #{headnet_forward.3} parent=19 // pred_fallthru
          _
        // Predicated region
        $region62: #{headnet_forward.3} parent=19 // pred_check
          %p1800 = pneg %p93
        $region63: #{headnet_forward.3} parent=19 // pred_check_branch
          %1802 = sbr.rel (%p1800) target = $region65
        $region64: #{headnet_forward.3} parent=19 // pred_region
          %p1803 = scmp.lt.s32.totalorder %s17, 1
          %s1804 = scalar_select %p1803, %s17, 1
          %s1805 = scalar_lea.vmem %s2, %s1804
        $region65: #{headnet_forward.3} parent=19 // pred_fallthru
          _
      $region20: #{headnet_forward.3} parent=5 // pred_fallthru
        _
      %p1806 = scmp.le.s32.totalorder 1, %s9
      %p1807 = scmp.lt.s32.totalorder %s9, 3
      %p1808 = pnand %p1806, %p1807
      %p1809 = pneg %p1808
      // Predicated region
      $region66: #{headnet_forward.3} parent=5 // pred_check
        _
      $region67: #{headnet_forward.3} parent=5 // pred_check_branch
        %1811 = sbr.rel (%p1808) target = $region69
      $region68: #{headnet_forward.3} parent=5 // pred_region
        %s1812 = ssub.s32 %s9, 1
        %s1813 = sand.u32 %s60, 1
        %s1814 = sand.u32 %s60, 1
        %s1815 = smul.addr %s1814, 1600
        %s1816 = scalar_lea.vmem [#allocation2], %s1815
        // Predicated region
        $region70: #{headnet_forward.3} parent=68 // pred_check
          %p1817 = pneg %p73
        $region71: #{headnet_forward.3} parent=68 // pred_check_branch
          %1819 = sbr.rel (%p1817) target = $region73
        $region72: #{headnet_forward.3} parent=68 // pred_region
          _
        $region73: #{headnet_forward.3} parent=68 // pred_fallthru
          _
        %s1820 = smul.u32 14, %s18
        %p1821 = scmp.lt.s32.totalorder %s1820, 13
        %s1822 = scalar_select %p1821, %s1820, 13
        %s1823 = smul.addr %s1822, 25
        %s1824 = smul.addr %s1823, 4
        %s1825 = scalar_lea.vmem %s0, %s1824
        %p1826 = pneg %p47
        %p1827 = pneg %p44
        %s1828 = sand.u32 %s60, 1
        %s1829 = sand.u32 %s60, 1
        %s1830 = smul.addr %s1829, 1600
        %s1831 = scalar_lea.vmem [#allocation2], %s1830
        %p1832 = pneg %p73
        %p1833 = pneg %p70
        %p1834 = scmp.lt.s32.totalorder %s19, 1
        %s1835 = scalar_select %p1834, %s19, 1
        %s1836 = scalar_lea.vmem %s2, %s1835
        %p1837 = pneg %p99
        %p1838 = pneg %p96
        %p1839 = pneg %p127
        %p1840 = pneg %p124
        %s1841 = sand.u32 %s114, 1
        %s1842 = sand.u32 %s114, 1
        %s1843 = smul.addr %s1842, 56
        %s1844 = scalar_lea.vmem [#allocation3], %s1843
        %s1845 = smul.u32 14, %s18
        %p1846 = scmp.lt.s32.totalorder %s1845, 13
        %s1847 = scalar_select %p1846, %s1845, 13
        %s1848 = smul.addr %s1847, 25
        %s1849 = smul.addr %s1848, 4
        %s1850 = scalar_lea.vmem %s0, %s1849
        %s1851 = smul.u32 14, %s18
        %p1852 = scmp.lt.s32.totalorder %s19, 1
        %s1853 = scalar_select %p1852, %s19, 1
        %s1854 = scalar_lea.vmem %s2, %s1853
        %s1855 = smul.u32 14, %s18
        %v1857 = vld [vmem:[%s1850] sm:$0xff]
        %v1858 = vld [vmem:[%s1850 + $0x8] sm:$0xff]
        %v1859 = vld [vmem:[%s1850 + $0x10] sm:$0xff]
        %v1860 = vld [vmem:[%s1850 + $0x18] sm:$0xff]
        %v1861 = vld [vmem:[%s1850 + $0x20] sm:$0xff]
        %v1862 = vld [vmem:[%s1850 + $0x28] sm:$0xff]
        %v1863 = vld [vmem:[%s1850 + $0x30] sm:$0xff]
        %v1864 = vld [vmem:[%s1850 + $0x38] sm:$0xff]
        %v1865 = vld [vmem:[%s1850 + $0x40] sm:$0xff]
        %v1866 = vld [vmem:[%s1850 + $0x48] sm:$0xff]
        %v1867 = vld [vmem:[%s1850 + $0x50] sm:$0xff]
        %v1868 = vld [vmem:[%s1850 + $0x58] sm:$0xff]
        %v1869 = vld [vmem:[%s1850 + $0x60] sm:$0xf]
        %v1870 = vld [vmem:[%s1850 + $0x64] sm:$0xff]
        %v1871 = vld [vmem:[%s1850 + $0x6c] sm:$0xff]
        %v1872 = vld [vmem:[%s1850 + $0x74] sm:$0xff]
        %v1873 = vld [vmem:[%s1850 + $0x7c] sm:$0xff]
        %v1874 = vld [vmem:[%s1850 + $0x84] sm:$0xff]
        %v1875 = vld [vmem:[%s1850 + $0x8c] sm:$0xff]
        %v1876 = vld [vmem:[%s1850 + $0x94] sm:$0xff]
        %v1877 = vld [vmem:[%s1850 + $0x9c] sm:$0xff]
        %v1878 = vld [vmem:[%s1850 + $0xa4] sm:$0xff]
        %v1879 = vld [vmem:[%s1850 + $0xac] sm:$0xff]
        %v1880 = vld [vmem:[%s1850 + $0xb4] sm:$0xff]
        %v1881 = vld [vmem:[%s1850 + $0xbc] sm:$0xff]
        %v1882 = vld [vmem:[%s1850 + $0xc4] sm:$0xf]
        %v1883 = vld [vmem:[%s1850 + $0xc8] sm:$0xff]
        %v1884 = vld [vmem:[%s1850 + $0xd0] sm:$0xff]
        %v1885 = vld [vmem:[%s1850 + $0xd8] sm:$0xff]
        %v1886 = vld [vmem:[%s1850 + $0xe0] sm:$0xff]
        %v1887 = vld [vmem:[%s1850 + $0xe8] sm:$0xff]
        %v1888 = vld [vmem:[%s1850 + $0xf0] sm:$0xff]
        %v1889 = vld [vmem:[%s1850 + $0xf8] sm:$0xff]
        %v1890 = vld [vmem:[%s1850 + $0x100] sm:$0xff]
        %v1891 = vld [vmem:[%s1850 + $0x108] sm:$0xff]
        %v1892 = vld [vmem:[%s1850 + $0x110] sm:$0xff]
        %v1893 = vld [vmem:[%s1850 + $0x118] sm:$0xff]
        %v1894 = vld [vmem:[%s1850 + $0x120] sm:$0xff]
        %v1895 = vld [vmem:[%s1850 + $0x128] sm:$0xf]
        %v1896 = vld [vmem:[%s1850 + $0x12c] sm:$0xff]
        %v1897 = vld [vmem:[%s1850 + $0x134] sm:$0xff]
        %v1898 = vld [vmem:[%s1850 + $0x13c] sm:$0xff]
        %v1899 = vld [vmem:[%s1850 + $0x144] sm:$0xff]
        %v1900 = vld [vmem:[%s1850 + $0x14c] sm:$0xff]
        %v1901 = vld [vmem:[%s1850 + $0x154] sm:$0xff]
        %v1902 = vld [vmem:[%s1850 + $0x15c] sm:$0xff]
        %v1903 = vld [vmem:[%s1850 + $0x164] sm:$0xff]
        %v1904 = vld [vmem:[%s1850 + $0x16c] sm:$0xff]
        %v1905 = vld [vmem:[%s1850 + $0x174] sm:$0xff]
        %v1906 = vld [vmem:[%s1850 + $0x17c] sm:$0xff]
        %v1907 = vld [vmem:[%s1850 + $0x184] sm:$0xff]
        %v1908 = vld [vmem:[%s1850 + $0x18c] sm:$0xf]
        %v1909 = vld [vmem:[%s1850 + $0x190] sm:$0xff]
        %v1910 = vld [vmem:[%s1850 + $0x198] sm:$0xff]
        %v1911 = vld [vmem:[%s1850 + $0x1a0] sm:$0xff]
        %v1912 = vld [vmem:[%s1850 + $0x1a8] sm:$0xff]
        %v1913 = vld [vmem:[%s1850 + $0x1b0] sm:$0xff]
        %v1914 = vld [vmem:[%s1850 + $0x1b8] sm:$0xff]
        %v1915 = vld [vmem:[%s1850 + $0x1c0] sm:$0xff]
        %v1916 = vld [vmem:[%s1850 + $0x1c8] sm:$0xff]
        %v1917 = vld [vmem:[%s1850 + $0x1d0] sm:$0xff]
        %v1918 = vld [vmem:[%s1850 + $0x1d8] sm:$0xff]
        %v1919 = vld [vmem:[%s1850 + $0x1e0] sm:$0xff]
        %v1920 = vld [vmem:[%s1850 + $0x1e8] sm:$0xff]
        %v1921 = vld [vmem:[%s1850 + $0x1f0] sm:$0xf]
        %v1922 = vld [vmem:[%s1850 + $0x1f4] sm:$0xff]
        %v1923 = vld [vmem:[%s1850 + $0x1fc] sm:$0xff]
        %v1924 = vld [vmem:[%s1850 + $0x204] sm:$0xff]
        %v1925 = vld [vmem:[%s1850 + $0x20c] sm:$0xff]
        %v1926 = vld [vmem:[%s1850 + $0x214] sm:$0xff]
        %v1927 = vld [vmem:[%s1850 + $0x21c] sm:$0xff]
        %v1928 = vld [vmem:[%s1850 + $0x224] sm:$0xff]
        %v1929 = vld [vmem:[%s1850 + $0x22c] sm:$0xff]
        %v1930 = vld [vmem:[%s1850 + $0x234] sm:$0xff]
        %v1931 = vld [vmem:[%s1850 + $0x23c] sm:$0xff]
        %v1932 = vld [vmem:[%s1850 + $0x244] sm:$0xff]
        %v1933 = vld [vmem:[%s1850 + $0x24c] sm:$0xff]
        %v1934 = vld [vmem:[%s1850 + $0x254] sm:$0xf]
        %v1935 = vld [vmem:[%s1850 + $0x258] sm:$0xff]
        %v1936 = vld [vmem:[%s1850 + $0x260] sm:$0xff]
        %v1937 = vld [vmem:[%s1850 + $0x268] sm:$0xff]
        %v1938 = vld [vmem:[%s1850 + $0x270] sm:$0xff]
        %v1939 = vld [vmem:[%s1850 + $0x278] sm:$0xff]
        %v1940 = vld [vmem:[%s1850 + $0x280] sm:$0xff]
        %v1941 = vld [vmem:[%s1850 + $0x288] sm:$0xff]
        %v1942 = vld [vmem:[%s1850 + $0x290] sm:$0xff]
        %v1943 = vld [vmem:[%s1850 + $0x298] sm:$0xff]
        %v1944 = vld [vmem:[%s1850 + $0x2a0] sm:$0xff]
        %v1945 = vld [vmem:[%s1850 + $0x2a8] sm:$0xff]
        %v1946 = vld [vmem:[%s1850 + $0x2b0] sm:$0xff]
        %v1947 = vld [vmem:[%s1850 + $0x2b8] sm:$0xf]
        %v1948 = vld [vmem:[%s1850 + $0x2bc] sm:$0xff]
        %v1949 = vld [vmem:[%s1850 + $0x2c4] sm:$0xff]
        %v1950 = vld [vmem:[%s1850 + $0x2cc] sm:$0xff]
        %v1951 = vld [vmem:[%s1850 + $0x2d4] sm:$0xff]
        %v1952 = vld [vmem:[%s1850 + $0x2dc] sm:$0xff]
        %v1953 = vld [vmem:[%s1850 + $0x2e4] sm:$0xff]
        %v1954 = vld [vmem:[%s1850 + $0x2ec] sm:$0xff]
        %v1955 = vld [vmem:[%s1850 + $0x2f4] sm:$0xff]
        %v1956 = vld [vmem:[%s1850 + $0x2fc] sm:$0xff]
        %v1957 = vld [vmem:[%s1850 + $0x304] sm:$0xff]
        %v1958 = vld [vmem:[%s1850 + $0x30c] sm:$0xff]
        %v1959 = vld [vmem:[%s1850 + $0x314] sm:$0xff]
        %v1960 = vld [vmem:[%s1850 + $0x31c] sm:$0xf]
        %v1961 = vld [vmem:[%s1850 + $0x320] sm:$0xff]
        %v1962 = vld [vmem:[%s1850 + $0x328] sm:$0xff]
        %v1963 = vld [vmem:[%s1850 + $0x330] sm:$0xff]
        %v1964 = vld [vmem:[%s1850 + $0x338] sm:$0xff]
        %v1965 = vld [vmem:[%s1850 + $0x340] sm:$0xff]
        %v1966 = vld [vmem:[%s1850 + $0x348] sm:$0xff]
        %v1967 = vld [vmem:[%s1850 + $0x350] sm:$0xff]
        %v1968 = vld [vmem:[%s1850 + $0x358] sm:$0xff]
        %v1969 = vld [vmem:[%s1850 + $0x360] sm:$0xff]
        %v1970 = vld [vmem:[%s1850 + $0x368] sm:$0xff]
        %v1971 = vld [vmem:[%s1850 + $0x370] sm:$0xff]
        %v1972 = vld [vmem:[%s1850 + $0x378] sm:$0xff]
        %v1973 = vld [vmem:[%s1850 + $0x380] sm:$0xf]
        %v1974 = vld [vmem:[%s1850 + $0x384] sm:$0xff]
        %v1975 = vld [vmem:[%s1850 + $0x38c] sm:$0xff]
        %v1976 = vld [vmem:[%s1850 + $0x394] sm:$0xff]
        %v1977 = vld [vmem:[%s1850 + $0x39c] sm:$0xff]
        %v1978 = vld [vmem:[%s1850 + $0x3a4] sm:$0xff]
        %v1979 = vld [vmem:[%s1850 + $0x3ac] sm:$0xff]
        %v1980 = vld [vmem:[%s1850 + $0x3b4] sm:$0xff]
        %v1981 = vld [vmem:[%s1850 + $0x3bc] sm:$0xff]
        %v1982 = vld [vmem:[%s1850 + $0x3c4] sm:$0xff]
        %v1983 = vld [vmem:[%s1850 + $0x3cc] sm:$0xff]
        %v1984 = vld [vmem:[%s1850 + $0x3d4] sm:$0xff]
        %v1985 = vld [vmem:[%s1850 + $0x3dc] sm:$0xff]
        %v1986 = vld [vmem:[%s1850 + $0x3e4] sm:$0xf]
        %v1987 = vld [vmem:[%s1850 + $0x3e8] sm:$0xff]
        %v1988 = vld [vmem:[%s1850 + $0x3f0] sm:$0xff]
        %v1989 = vld [vmem:[%s1850 + $0x3f8] sm:$0xff]
        %v1990 = vld [vmem:[%s1850 + $0x400] sm:$0xff]
        %v1991 = vld [vmem:[%s1850 + $0x408] sm:$0xff]
        %v1992 = vld [vmem:[%s1850 + $0x410] sm:$0xff]
        %v1993 = vld [vmem:[%s1850 + $0x418] sm:$0xff]
        %v1994 = vld [vmem:[%s1850 + $0x420] sm:$0xff]
        %v1995 = vld [vmem:[%s1850 + $0x428] sm:$0xff]
        %v1996 = vld [vmem:[%s1850 + $0x430] sm:$0xff]
        %v1997 = vld [vmem:[%s1850 + $0x438] sm:$0xff]
        %v1998 = vld [vmem:[%s1850 + $0x440] sm:$0xff]
        %v1999 = vld [vmem:[%s1850 + $0x448] sm:$0xf]
        %v2000 = vld [vmem:[%s1850 + $0x44c] sm:$0xff]
        %v2001 = vld [vmem:[%s1850 + $0x454] sm:$0xff]
        %v2002 = vld [vmem:[%s1850 + $0x45c] sm:$0xff]
        %v2003 = vld [vmem:[%s1850 + $0x464] sm:$0xff]
        %v2004 = vld [vmem:[%s1850 + $0x46c] sm:$0xff]
        %v2005 = vld [vmem:[%s1850 + $0x474] sm:$0xff]
        %v2006 = vld [vmem:[%s1850 + $0x47c] sm:$0xff]
        %v2007 = vld [vmem:[%s1850 + $0x484] sm:$0xff]
        %v2008 = vld [vmem:[%s1850 + $0x48c] sm:$0xff]
        %v2009 = vld [vmem:[%s1850 + $0x494] sm:$0xff]
        %v2010 = vld [vmem:[%s1850 + $0x49c] sm:$0xff]
        %v2011 = vld [vmem:[%s1850 + $0x4a4] sm:$0xff]
        %v2012 = vld [vmem:[%s1850 + $0x4ac] sm:$0xf]
        %v2013 = vld [vmem:[%s1850 + $0x4b0] sm:$0xff]
        %v2014 = vld [vmem:[%s1850 + $0x4b8] sm:$0xff]
        %v2015 = vld [vmem:[%s1850 + $0x4c0] sm:$0xff]
        %v2016 = vld [vmem:[%s1850 + $0x4c8] sm:$0xff]
        %v2017 = vld [vmem:[%s1850 + $0x4d0] sm:$0xff]
        %v2018 = vld [vmem:[%s1850 + $0x4d8] sm:$0xff]
        %v2019 = vld [vmem:[%s1850 + $0x4e0] sm:$0xff]
        %v2020 = vld [vmem:[%s1850 + $0x4e8] sm:$0xff]
        %v2021 = vld [vmem:[%s1850 + $0x4f0] sm:$0xff]
        %v2022 = vld [vmem:[%s1850 + $0x4f8] sm:$0xff]
        %v2023 = vld [vmem:[%s1850 + $0x500] sm:$0xff]
        %v2024 = vld [vmem:[%s1850 + $0x508] sm:$0xff]
        %v2025 = vld [vmem:[%s1850 + $0x510] sm:$0xf]
        %v2026 = vld [vmem:[%s1850 + $0x514] sm:$0xff]
        %v2027 = vld [vmem:[%s1850 + $0x51c] sm:$0xff]
        %v2028 = vld [vmem:[%s1850 + $0x524] sm:$0xff]
        %v2029 = vld [vmem:[%s1850 + $0x52c] sm:$0xff]
        %v2030 = vld [vmem:[%s1850 + $0x534] sm:$0xff]
        %v2031 = vld [vmem:[%s1850 + $0x53c] sm:$0xff]
        %v2032 = vld [vmem:[%s1850 + $0x544] sm:$0xff]
        %v2033 = vld [vmem:[%s1850 + $0x54c] sm:$0xff]
        %v2034 = vld [vmem:[%s1850 + $0x554] sm:$0xff]
        %v2035 = vld [vmem:[%s1850 + $0x55c] sm:$0xff]
        %v2036 = vld [vmem:[%s1850 + $0x564] sm:$0xff]
        %v2037 = vld [vmem:[%s1850 + $0x56c] sm:$0xff]
        %v2038 = vld [vmem:[%s1850 + $0x574] sm:$0xf]
        %v2039 = vld [vmem:[%s1816] sm:$0xf]
        %v2040 = vld [vmem:[%s1816 + $0x4] sm:$0xf]
        %v2041 = vld [vmem:[%s1816 + $0x8] sm:$0xf]
        %v2042 = vld [vmem:[%s1816 + $0xc] sm:$0xf]
        %v2043 = vld [vmem:[%s1816 + $0x10] sm:$0xf]
        %v2044 = vld [vmem:[%s1816 + $0x14] sm:$0xf]
        %v2045 = vld [vmem:[%s1816 + $0x18] sm:$0xf]
        %v2046 = vld [vmem:[%s1816 + $0x1c] sm:$0xf]
        %v2047 = vld [vmem:[%s1816 + $0x20] sm:$0xf]
        %v2048 = vld [vmem:[%s1816 + $0x24] sm:$0xf]
        %v2049 = vld [vmem:[%s1816 + $0x28] sm:$0xf]
        %v2050 = vld [vmem:[%s1816 + $0x2c] sm:$0xf]
        %v2051 = vld [vmem:[%s1816 + $0x30] sm:$0xf]
        %v2052 = vld [vmem:[%s1816 + $0x34] sm:$0xf]
        %v2053 = vld [vmem:[%s1816 + $0x38] sm:$0xf]
        %v2054 = vld [vmem:[%s1816 + $0x3c] sm:$0xf]
        %v2055 = vld [vmem:[%s1816 + $0x40] sm:$0xf]
        %v2056 = vld [vmem:[%s1816 + $0x44] sm:$0xf]
        %v2057 = vld [vmem:[%s1816 + $0x48] sm:$0xf]
        %v2058 = vld [vmem:[%s1816 + $0x4c] sm:$0xf]
        %v2059 = vld [vmem:[%s1816 + $0x50] sm:$0xf]
        %v2060 = vld [vmem:[%s1816 + $0x54] sm:$0xf]
        %v2061 = vld [vmem:[%s1816 + $0x58] sm:$0xf]
        %v2062 = vld [vmem:[%s1816 + $0x5c] sm:$0xf]
        %v2063 = vld [vmem:[%s1816 + $0x60] sm:$0xf]
        %v2064 = vld [vmem:[%s1816 + $0x64] sm:$0xf]
        %v2065 = vld [vmem:[%s1816 + $0x68] sm:$0xf]
        %v2066 = vld [vmem:[%s1816 + $0x6c] sm:$0xf]
        %v2067 = vld [vmem:[%s1816 + $0x70] sm:$0xf]
        %v2068 = vld [vmem:[%s1816 + $0x74] sm:$0xf]
        %v2069 = vld [vmem:[%s1816 + $0x78] sm:$0xf]
        %v2070 = vld [vmem:[%s1816 + $0x7c] sm:$0xf]
        %v2071 = vld [vmem:[%s1816 + $0x80] sm:$0xf]
        %v2072 = vld [vmem:[%s1816 + $0x84] sm:$0xf]
        %v2073 = vld [vmem:[%s1816 + $0x88] sm:$0xf]
        %v2074 = vld [vmem:[%s1816 + $0x8c] sm:$0xf]
        %v2075 = vld [vmem:[%s1816 + $0x90] sm:$0xf]
        %v2076 = vld [vmem:[%s1816 + $0x94] sm:$0xf]
        %v2077 = vld [vmem:[%s1816 + $0x98] sm:$0xf]
        %v2078 = vld [vmem:[%s1816 + $0x9c] sm:$0xf]
        %v2079 = vld [vmem:[%s1816 + $0xa0] sm:$0xf]
        %v2080 = vld [vmem:[%s1816 + $0xa4] sm:$0xf]
        %v2081 = vld [vmem:[%s1816 + $0xa8] sm:$0xf]
        %v2082 = vld [vmem:[%s1816 + $0xac] sm:$0xf]
        %v2083 = vld [vmem:[%s1816 + $0xb0] sm:$0xf]
        %v2084 = vld [vmem:[%s1816 + $0xb4] sm:$0xf]
        %v2085 = vld [vmem:[%s1816 + $0xb8] sm:$0xf]
        %v2086 = vld [vmem:[%s1816 + $0xbc] sm:$0xf]
        %v2087 = vld [vmem:[%s1816 + $0xc0] sm:$0xf]
        %v2088 = vld [vmem:[%s1816 + $0xc4] sm:$0xf]
        %v2089 = vld [vmem:[%s1816 + $0xc8] sm:$0xf]
        %v2090 = vld [vmem:[%s1816 + $0xcc] sm:$0xf]
        %v2091 = vld [vmem:[%s1816 + $0xd0] sm:$0xf]
        %v2092 = vld [vmem:[%s1816 + $0xd4] sm:$0xf]
        %v2093 = vld [vmem:[%s1816 + $0xd8] sm:$0xf]
        %v2094 = vld [vmem:[%s1816 + $0xdc] sm:$0xf]
        %v2095 = vld [vmem:[%s1816 + $0xe0] sm:$0xf]
        %v2096 = vld [vmem:[%s1816 + $0xe4] sm:$0xf]
        %v2097 = vld [vmem:[%s1816 + $0xe8] sm:$0xf]
        %v2098 = vld [vmem:[%s1816 + $0xec] sm:$0xf]
        %v2099 = vld [vmem:[%s1816 + $0xf0] sm:$0xf]
        %v2100 = vld [vmem:[%s1816 + $0xf4] sm:$0xf]
        %v2101 = vld [vmem:[%s1816 + $0xf8] sm:$0xf]
        %v2102 = vld [vmem:[%s1816 + $0xfc] sm:$0xf]
        %v2103 = vld [vmem:[%s1816 + $0x100] sm:$0xf]
        %v2104 = vld [vmem:[%s1816 + $0x104] sm:$0xf]
        %v2105 = vld [vmem:[%s1816 + $0x108] sm:$0xf]
        %v2106 = vld [vmem:[%s1816 + $0x10c] sm:$0xf]
        %v2107 = vld [vmem:[%s1816 + $0x110] sm:$0xf]
        %v2108 = vld [vmem:[%s1816 + $0x114] sm:$0xf]
        %v2109 = vld [vmem:[%s1816 + $0x118] sm:$0xf]
        %v2110 = vld [vmem:[%s1816 + $0x11c] sm:$0xf]
        %v2111 = vld [vmem:[%s1816 + $0x120] sm:$0xf]
        %v2112 = vld [vmem:[%s1816 + $0x124] sm:$0xf]
        %v2113 = vld [vmem:[%s1816 + $0x128] sm:$0xf]
        %v2114 = vld [vmem:[%s1816 + $0x12c] sm:$0xf]
        %v2115 = vld [vmem:[%s1816 + $0x130] sm:$0xf]
        %v2116 = vld [vmem:[%s1816 + $0x134] sm:$0xf]
        %v2117 = vld [vmem:[%s1816 + $0x138] sm:$0xf]
        %v2118 = vld [vmem:[%s1816 + $0x13c] sm:$0xf]
        %v2119 = vld [vmem:[%s1816 + $0x140] sm:$0xf]
        %v2120 = vld [vmem:[%s1816 + $0x144] sm:$0xf]
        %v2121 = vld [vmem:[%s1816 + $0x148] sm:$0xf]
        %v2122 = vld [vmem:[%s1816 + $0x14c] sm:$0xf]
        %v2123 = vld [vmem:[%s1816 + $0x150] sm:$0xf]
        %v2124 = vld [vmem:[%s1816 + $0x154] sm:$0xf]
        %v2125 = vld [vmem:[%s1816 + $0x158] sm:$0xf]
        %v2126 = vld [vmem:[%s1816 + $0x15c] sm:$0xf]
        %v2127 = vld [vmem:[%s1816 + $0x160] sm:$0xf]
        %v2128 = vld [vmem:[%s1816 + $0x164] sm:$0xf]
        %v2129 = vld [vmem:[%s1816 + $0x168] sm:$0xf]
        %v2130 = vld [vmem:[%s1816 + $0x16c] sm:$0xf]
        %v2131 = vld [vmem:[%s1816 + $0x170] sm:$0xf]
        %v2132 = vld [vmem:[%s1816 + $0x174] sm:$0xf]
        %v2133 = vld [vmem:[%s1816 + $0x178] sm:$0xf]
        %v2134 = vld [vmem:[%s1816 + $0x17c] sm:$0xf]
        %v2135 = vld [vmem:[%s1816 + $0x180] sm:$0xf]
        %v2136 = vld [vmem:[%s1816 + $0x184] sm:$0xf]
        %v2137 = vld [vmem:[%s1816 + $0x188] sm:$0xf]
        %v2138 = vld [vmem:[%s1816 + $0x18c] sm:$0xf]
        %v2139 = vld [vmem:[%s1816 + $0x190] sm:$0xf]
        %v2140 = vld [vmem:[%s1816 + $0x194] sm:$0xf]
        %v2141 = vld [vmem:[%s1816 + $0x198] sm:$0xf]
        %v2142 = vld [vmem:[%s1816 + $0x19c] sm:$0xf]
        %v2143 = vld [vmem:[%s1816 + $0x1a0] sm:$0xf]
        %v2144 = vld [vmem:[%s1816 + $0x1a4] sm:$0xf]
        %v2145 = vld [vmem:[%s1816 + $0x1a8] sm:$0xf]
        %v2146 = vld [vmem:[%s1816 + $0x1ac] sm:$0xf]
        %v2147 = vld [vmem:[%s1816 + $0x1b0] sm:$0xf]
        %v2148 = vld [vmem:[%s1816 + $0x1b4] sm:$0xf]
        %v2149 = vld [vmem:[%s1816 + $0x1b8] sm:$0xf]
        %v2150 = vld [vmem:[%s1816 + $0x1bc] sm:$0xf]
        %v2151 = vld [vmem:[%s1816 + $0x1c0] sm:$0xf]
        %v2152 = vld [vmem:[%s1816 + $0x1c4] sm:$0xf]
        %v2153 = vld [vmem:[%s1816 + $0x1c8] sm:$0xf]
        %v2154 = vld [vmem:[%s1816 + $0x1cc] sm:$0xf]
        %v2155 = vld [vmem:[%s1816 + $0x1d0] sm:$0xf]
        %v2156 = vld [vmem:[%s1816 + $0x1d4] sm:$0xf]
        %v2157 = vld [vmem:[%s1816 + $0x1d8] sm:$0xf]
        %v2158 = vld [vmem:[%s1816 + $0x1dc] sm:$0xf]
        %v2159 = vld [vmem:[%s1816 + $0x1e0] sm:$0xf]
        %v2160 = vld [vmem:[%s1816 + $0x1e4] sm:$0xf]
        %v2161 = vld [vmem:[%s1816 + $0x1e8] sm:$0xf]
        %v2162 = vld [vmem:[%s1816 + $0x1ec] sm:$0xf]
        %v2163 = vld [vmem:[%s1816 + $0x1f0] sm:$0xf]
        %v2164 = vld [vmem:[%s1816 + $0x1f4] sm:$0xf]
        %v2165 = vld [vmem:[%s1816 + $0x1f8] sm:$0xf]
        %v2166 = vld [vmem:[%s1816 + $0x1fc] sm:$0xf]
        %v2167 = vld [vmem:[%s1816 + $0x200] sm:$0xf]
        %v2168 = vld [vmem:[%s1816 + $0x204] sm:$0xf]
        %v2169 = vld [vmem:[%s1816 + $0x208] sm:$0xf]
        %v2170 = vld [vmem:[%s1816 + $0x20c] sm:$0xf]
        %v2171 = vld [vmem:[%s1816 + $0x210] sm:$0xf]
        %v2172 = vld [vmem:[%s1816 + $0x214] sm:$0xf]
        %v2173 = vld [vmem:[%s1816 + $0x218] sm:$0xf]
        %v2174 = vld [vmem:[%s1816 + $0x21c] sm:$0xf]
        %v2175 = vld [vmem:[%s1816 + $0x220] sm:$0xf]
        %v2176 = vld [vmem:[%s1816 + $0x224] sm:$0xf]
        %v2177 = vld [vmem:[%s1816 + $0x228] sm:$0xf]
        %v2178 = vld [vmem:[%s1816 + $0x22c] sm:$0xf]
        %v2179 = vld [vmem:[%s1816 + $0x230] sm:$0xf]
        %v2180 = vld [vmem:[%s1816 + $0x234] sm:$0xf]
        %v2181 = vld [vmem:[%s1816 + $0x238] sm:$0xf]
        %v2182 = vld [vmem:[%s1816 + $0x23c] sm:$0xf]
        %v2183 = vld [vmem:[%s1816 + $0x240] sm:$0xf]
        %v2184 = vld [vmem:[%s1816 + $0x244] sm:$0xf]
        %v2185 = vld [vmem:[%s1816 + $0x248] sm:$0xf]
        %v2186 = vld [vmem:[%s1816 + $0x24c] sm:$0xf]
        %v2187 = vld [vmem:[%s1816 + $0x250] sm:$0xf]
        %v2188 = vld [vmem:[%s1816 + $0x254] sm:$0xf]
        %v2189 = vld [vmem:[%s1816 + $0x258] sm:$0xf]
        %v2190 = vld [vmem:[%s1816 + $0x25c] sm:$0xf]
        %v2191 = vld [vmem:[%s1816 + $0x260] sm:$0xf]
        %v2192 = vld [vmem:[%s1816 + $0x264] sm:$0xf]
        %v2193 = vld [vmem:[%s1816 + $0x268] sm:$0xf]
        %v2194 = vld [vmem:[%s1816 + $0x26c] sm:$0xf]
        %v2195 = vld [vmem:[%s1816 + $0x270] sm:$0xf]
        %v2196 = vld [vmem:[%s1816 + $0x274] sm:$0xf]
        %v2197 = vld [vmem:[%s1816 + $0x278] sm:$0xf]
        %v2198 = vld [vmem:[%s1816 + $0x27c] sm:$0xf]
        %v2199 = vld [vmem:[%s1816 + $0x280] sm:$0xf]
        %v2200 = vld [vmem:[%s1816 + $0x284] sm:$0xf]
        %v2201 = vld [vmem:[%s1816 + $0x288] sm:$0xf]
        %v2202 = vld [vmem:[%s1816 + $0x28c] sm:$0xf]
        %v2203 = vld [vmem:[%s1816 + $0x290] sm:$0xf]
        %v2204 = vld [vmem:[%s1816 + $0x294] sm:$0xf]
        %v2205 = vld [vmem:[%s1816 + $0x298] sm:$0xf]
        %v2206 = vld [vmem:[%s1816 + $0x29c] sm:$0xf]
        %v2207 = vld [vmem:[%s1816 + $0x2a0] sm:$0xf]
        %v2208 = vld [vmem:[%s1816 + $0x2a4] sm:$0xf]
        %v2209 = vld [vmem:[%s1816 + $0x2a8] sm:$0xf]
        %v2210 = vld [vmem:[%s1816 + $0x2ac] sm:$0xf]
        %v2211 = vld [vmem:[%s1816 + $0x2b0] sm:$0xf]
        %v2212 = vld [vmem:[%s1816 + $0x2b4] sm:$0xf]
        %v2213 = vld [vmem:[%s1816 + $0x2b8] sm:$0xf]
        %v2214 = vld [vmem:[%s1816 + $0x2bc] sm:$0xf]
        %v2215 = vld [vmem:[%s1816 + $0x2c0] sm:$0xf]
        %v2216 = vld [vmem:[%s1816 + $0x2c4] sm:$0xf]
        %v2217 = vld [vmem:[%s1816 + $0x2c8] sm:$0xf]
        %v2218 = vld [vmem:[%s1816 + $0x2cc] sm:$0xf]
        %v2219 = vld [vmem:[%s1816 + $0x2d0] sm:$0xf]
        %v2220 = vld [vmem:[%s1816 + $0x2d4] sm:$0xf]
        %v2221 = vld [vmem:[%s1816 + $0x2d8] sm:$0xf]
        %v2222 = vld [vmem:[%s1816 + $0x2dc] sm:$0xf]
        %v2223 = vld [vmem:[%s1816 + $0x2e0] sm:$0xf]
        %v2224 = vld [vmem:[%s1816 + $0x2e4] sm:$0xf]
        %v2225 = vld [vmem:[%s1816 + $0x2e8] sm:$0xf]
        %v2226 = vld [vmem:[%s1816 + $0x2ec] sm:$0xf]
        %v2227 = vld [vmem:[%s1816 + $0x2f0] sm:$0xf]
        %v2228 = vld [vmem:[%s1816 + $0x2f4] sm:$0xf]
        %v2229 = vld [vmem:[%s1816 + $0x2f8] sm:$0xf]
        %v2230 = vld [vmem:[%s1816 + $0x2fc] sm:$0xf]
        %v2231 = vld [vmem:[%s1816 + $0x300] sm:$0xf]
        %v2232 = vld [vmem:[%s1816 + $0x304] sm:$0xf]
        %v2233 = vld [vmem:[%s1816 + $0x308] sm:$0xf]
        %v2234 = vld [vmem:[%s1816 + $0x30c] sm:$0xf]
        %v2235 = vld [vmem:[%s1816 + $0x310] sm:$0xf]
        %v2236 = vld [vmem:[%s1816 + $0x314] sm:$0xf]
        %v2237 = vld [vmem:[%s1816 + $0x318] sm:$0xf]
        %v2238 = vld [vmem:[%s1816 + $0x31c] sm:$0xf]
        %v2239 = vld [vmem:[%s1816 + $0x320] sm:$0xf]
        %v2240 = vld [vmem:[%s1816 + $0x324] sm:$0xf]
        %v2241 = vld [vmem:[%s1816 + $0x328] sm:$0xf]
        %v2242 = vld [vmem:[%s1816 + $0x32c] sm:$0xf]
        %v2243 = vld [vmem:[%s1816 + $0x330] sm:$0xf]
        %v2244 = vld [vmem:[%s1816 + $0x334] sm:$0xf]
        %v2245 = vld [vmem:[%s1816 + $0x338] sm:$0xf]
        %v2246 = vld [vmem:[%s1816 + $0x33c] sm:$0xf]
        %v2247 = vld [vmem:[%s1816 + $0x340] sm:$0xf]
        %v2248 = vld [vmem:[%s1816 + $0x344] sm:$0xf]
        %v2249 = vld [vmem:[%s1816 + $0x348] sm:$0xf]
        %v2250 = vld [vmem:[%s1816 + $0x34c] sm:$0xf]
        %v2251 = vld [vmem:[%s1816 + $0x350] sm:$0xf]
        %v2252 = vld [vmem:[%s1816 + $0x354] sm:$0xf]
        %v2253 = vld [vmem:[%s1816 + $0x358] sm:$0xf]
        %v2254 = vld [vmem:[%s1816 + $0x35c] sm:$0xf]
        %v2255 = vld [vmem:[%s1816 + $0x360] sm:$0xf]
        %v2256 = vld [vmem:[%s1816 + $0x364] sm:$0xf]
        %v2257 = vld [vmem:[%s1816 + $0x368] sm:$0xf]
        %v2258 = vld [vmem:[%s1816 + $0x36c] sm:$0xf]
        %v2259 = vld [vmem:[%s1816 + $0x370] sm:$0xf]
        %v2260 = vld [vmem:[%s1816 + $0x374] sm:$0xf]
        %v2261 = vld [vmem:[%s1816 + $0x378] sm:$0xf]
        %v2262 = vld [vmem:[%s1816 + $0x37c] sm:$0xf]
        %v2263 = vld [vmem:[%s1816 + $0x380] sm:$0xf]
        %v2264 = vld [vmem:[%s1816 + $0x384] sm:$0xf]
        %v2265 = vld [vmem:[%s1816 + $0x388] sm:$0xf]
        %v2266 = vld [vmem:[%s1816 + $0x38c] sm:$0xf]
        %v2267 = vld [vmem:[%s1816 + $0x390] sm:$0xf]
        %v2268 = vld [vmem:[%s1816 + $0x394] sm:$0xf]
        %v2269 = vld [vmem:[%s1816 + $0x398] sm:$0xf]
        %v2270 = vld [vmem:[%s1816 + $0x39c] sm:$0xf]
        %v2271 = vld [vmem:[%s1816 + $0x3a0] sm:$0xf]
        %v2272 = vld [vmem:[%s1816 + $0x3a4] sm:$0xf]
        %v2273 = vld [vmem:[%s1816 + $0x3a8] sm:$0xf]
        %v2274 = vld [vmem:[%s1816 + $0x3ac] sm:$0xf]
        %v2275 = vld [vmem:[%s1816 + $0x3b0] sm:$0xf]
        %v2276 = vld [vmem:[%s1816 + $0x3b4] sm:$0xf]
        %v2277 = vld [vmem:[%s1816 + $0x3b8] sm:$0xf]
        %v2278 = vld [vmem:[%s1816 + $0x3bc] sm:$0xf]
        %v2279 = vld [vmem:[%s1816 + $0x3c0] sm:$0xf]
        %v2280 = vld [vmem:[%s1816 + $0x3c4] sm:$0xf]
        %v2281 = vld [vmem:[%s1816 + $0x3c8] sm:$0xf]
        %v2282 = vld [vmem:[%s1816 + $0x3cc] sm:$0xf]
        %v2283 = vld [vmem:[%s1816 + $0x3d0] sm:$0xf]
        %v2284 = vld [vmem:[%s1816 + $0x3d4] sm:$0xf]
        %v2285 = vld [vmem:[%s1816 + $0x3d8] sm:$0xf]
        %v2286 = vld [vmem:[%s1816 + $0x3dc] sm:$0xf]
        %v2287 = vld [vmem:[%s1816 + $0x3e0] sm:$0xf]
        %v2288 = vld [vmem:[%s1816 + $0x3e4] sm:$0xf]
        %v2289 = vld [vmem:[%s1816 + $0x3e8] sm:$0xf]
        %v2290 = vld [vmem:[%s1816 + $0x3ec] sm:$0xf]
        %v2291 = vld [vmem:[%s1816 + $0x3f0] sm:$0xf]
        %v2292 = vld [vmem:[%s1816 + $0x3f4] sm:$0xf]
        %v2293 = vld [vmem:[%s1816 + $0x3f8] sm:$0xf]
        %v2294 = vld [vmem:[%s1816 + $0x3fc] sm:$0xf]
        %v2295 = vld [vmem:[%s1816 + $0x400] sm:$0xf]
        %v2296 = vld [vmem:[%s1816 + $0x404] sm:$0xf]
        %v2297 = vld [vmem:[%s1816 + $0x408] sm:$0xf]
        %v2298 = vld [vmem:[%s1816 + $0x40c] sm:$0xf]
        %v2299 = vld [vmem:[%s1816 + $0x410] sm:$0xf]
        %v2300 = vld [vmem:[%s1816 + $0x414] sm:$0xf]
        %v2301 = vld [vmem:[%s1816 + $0x418] sm:$0xf]
        %v2302 = vld [vmem:[%s1816 + $0x41c] sm:$0xf]
        %v2303 = vld [vmem:[%s1816 + $0x420] sm:$0xf]
        %v2304 = vld [vmem:[%s1816 + $0x424] sm:$0xf]
        %v2305 = vld [vmem:[%s1816 + $0x428] sm:$0xf]
        %v2306 = vld [vmem:[%s1816 + $0x42c] sm:$0xf]
        %v2307 = vld [vmem:[%s1816 + $0x430] sm:$0xf]
        %v2308 = vld [vmem:[%s1816 + $0x434] sm:$0xf]
        %v2309 = vld [vmem:[%s1816 + $0x438] sm:$0xf]
        %v2310 = vld [vmem:[%s1816 + $0x43c] sm:$0xf]
        %v2311 = vld [vmem:[%s1816 + $0x440] sm:$0xf]
        %v2312 = vld [vmem:[%s1816 + $0x444] sm:$0xf]
        %v2313 = vld [vmem:[%s1816 + $0x448] sm:$0xf]
        %v2314 = vld [vmem:[%s1816 + $0x44c] sm:$0xf]
        %v2315 = vld [vmem:[%s1816 + $0x450] sm:$0xf]
        %v2316 = vld [vmem:[%s1816 + $0x454] sm:$0xf]
        %v2317 = vld [vmem:[%s1816 + $0x458] sm:$0xf]
        %v2318 = vld [vmem:[%s1816 + $0x45c] sm:$0xf]
        %v2319 = vld [vmem:[%s1816 + $0x460] sm:$0xf]
        %v2320 = vld [vmem:[%s1816 + $0x464] sm:$0xf]
        %v2321 = vld [vmem:[%s1816 + $0x468] sm:$0xf]
        %v2322 = vld [vmem:[%s1816 + $0x46c] sm:$0xf]
        %v2323 = vld [vmem:[%s1816 + $0x470] sm:$0xf]
        %v2324 = vld [vmem:[%s1816 + $0x474] sm:$0xf]
        %v2325 = vld [vmem:[%s1816 + $0x478] sm:$0xf]
        %v2326 = vld [vmem:[%s1816 + $0x47c] sm:$0xf]
        %v2327 = vld [vmem:[%s1816 + $0x480] sm:$0xf]
        %v2328 = vld [vmem:[%s1816 + $0x484] sm:$0xf]
        %v2329 = vld [vmem:[%s1816 + $0x488] sm:$0xf]
        %v2330 = vld [vmem:[%s1816 + $0x48c] sm:$0xf]
        %v2331 = vld [vmem:[%s1816 + $0x490] sm:$0xf]
        %v2332 = vld [vmem:[%s1816 + $0x494] sm:$0xf]
        %v2333 = vld [vmem:[%s1816 + $0x498] sm:$0xf]
        %v2334 = vld [vmem:[%s1816 + $0x49c] sm:$0xf]
        %v2335 = vld [vmem:[%s1816 + $0x4a0] sm:$0xf]
        %v2336 = vld [vmem:[%s1816 + $0x4a4] sm:$0xf]
        %v2337 = vld [vmem:[%s1816 + $0x4a8] sm:$0xf]
        %v2338 = vld [vmem:[%s1816 + $0x4ac] sm:$0xf]
        %v2339 = vld [vmem:[%s1816 + $0x4b0] sm:$0xf]
        %v2340 = vld [vmem:[%s1816 + $0x4b4] sm:$0xf]
        %v2341 = vld [vmem:[%s1816 + $0x4b8] sm:$0xf]
        %v2342 = vld [vmem:[%s1816 + $0x4bc] sm:$0xf]
        %v2343 = vld [vmem:[%s1816 + $0x4c0] sm:$0xf]
        %v2344 = vld [vmem:[%s1816 + $0x4c4] sm:$0xf]
        %v2345 = vld [vmem:[%s1816 + $0x4c8] sm:$0xf]
        %v2346 = vld [vmem:[%s1816 + $0x4cc] sm:$0xf]
        %v2347 = vld [vmem:[%s1816 + $0x4d0] sm:$0xf]
        %v2348 = vld [vmem:[%s1816 + $0x4d4] sm:$0xf]
        %v2349 = vld [vmem:[%s1816 + $0x4d8] sm:$0xf]
        %v2350 = vld [vmem:[%s1816 + $0x4dc] sm:$0xf]
        %v2351 = vld [vmem:[%s1816 + $0x4e0] sm:$0xf]
        %v2352 = vld [vmem:[%s1816 + $0x4e4] sm:$0xf]
        %v2353 = vld [vmem:[%s1816 + $0x4e8] sm:$0xf]
        %v2354 = vld [vmem:[%s1816 + $0x4ec] sm:$0xf]
        %v2355 = vld [vmem:[%s1816 + $0x4f0] sm:$0xf]
        %v2356 = vld [vmem:[%s1816 + $0x4f4] sm:$0xf]
        %v2357 = vld [vmem:[%s1816 + $0x4f8] sm:$0xf]
        %v2358 = vld [vmem:[%s1816 + $0x4fc] sm:$0xf]
        %v2359 = vld [vmem:[%s1816 + $0x500] sm:$0xf]
        %v2360 = vld [vmem:[%s1816 + $0x504] sm:$0xf]
        %v2361 = vld [vmem:[%s1816 + $0x508] sm:$0xf]
        %v2362 = vld [vmem:[%s1816 + $0x50c] sm:$0xf]
        %v2363 = vld [vmem:[%s1816 + $0x510] sm:$0xf]
        %v2364 = vld [vmem:[%s1816 + $0x514] sm:$0xf]
        %v2365 = vld [vmem:[%s1816 + $0x518] sm:$0xf]
        %v2366 = vld [vmem:[%s1816 + $0x51c] sm:$0xf]
        %v2367 = vld [vmem:[%s1816 + $0x520] sm:$0xf]
        %v2368 = vld [vmem:[%s1816 + $0x524] sm:$0xf]
        %v2369 = vld [vmem:[%s1816 + $0x528] sm:$0xf]
        %v2370 = vld [vmem:[%s1816 + $0x52c] sm:$0xf]
        %v2371 = vld [vmem:[%s1816 + $0x530] sm:$0xf]
        %v2372 = vld [vmem:[%s1816 + $0x534] sm:$0xf]
        %v2373 = vld [vmem:[%s1816 + $0x538] sm:$0xf]
        %v2374 = vld [vmem:[%s1816 + $0x53c] sm:$0xf]
        %v2375 = vld [vmem:[%s1816 + $0x540] sm:$0xf]
        %v2376 = vld [vmem:[%s1816 + $0x544] sm:$0xf]
        %v2377 = vld [vmem:[%s1816 + $0x548] sm:$0xf]
        %v2378 = vld [vmem:[%s1816 + $0x54c] sm:$0xf]
        %v2379 = vld [vmem:[%s1816 + $0x550] sm:$0xf]
        %v2380 = vld [vmem:[%s1816 + $0x554] sm:$0xf]
        %v2381 = vld [vmem:[%s1816 + $0x558] sm:$0xf]
        %v2382 = vld [vmem:[%s1816 + $0x55c] sm:$0xf]
        %v2383 = vld [vmem:[%s1816 + $0x560] sm:$0xf]
        %v2384 = vld [vmem:[%s1816 + $0x564] sm:$0xf]
        %v2385 = vld [vmem:[%s1816 + $0x568] sm:$0xf]
        %v2386 = vld [vmem:[%s1816 + $0x56c] sm:$0xf]
        %v2387 = vld [vmem:[%s1816 + $0x570] sm:$0xf]
        %v2388 = vld [vmem:[%s1816 + $0x574] sm:$0xf]
        %v2389 = vld [vmem:[%s1816 + $0x578] sm:$0xf]
        %v2390 = vld [vmem:[%s1816 + $0x57c] sm:$0xf]
        %v2391 = vld [vmem:[%s1816 + $0x580] sm:$0xf]
        %v2392 = vld [vmem:[%s1816 + $0x584] sm:$0xf]
        %v2393 = vld [vmem:[%s1816 + $0x588] sm:$0xf]
        %v2394 = vld [vmem:[%s1816 + $0x58c] sm:$0xf]
        %v2395 = vld [vmem:[%s1816 + $0x590] sm:$0xf]
        %v2396 = vld [vmem:[%s1816 + $0x594] sm:$0xf]
        %v2397 = vld [vmem:[%s1816 + $0x598] sm:$0xf]
        %v2398 = vld [vmem:[%s1816 + $0x59c] sm:$0xf]
        %v2399 = vld [vmem:[%s1816 + $0x5a0] sm:$0xf]
        %v2400 = vld [vmem:[%s1816 + $0x5a4] sm:$0xf]
        %v2401 = vld [vmem:[%s1816 + $0x5a8] sm:$0xf]
        %v2402 = vld [vmem:[%s1816 + $0x5ac] sm:$0xf]
        %v2403 = vld [vmem:[%s1816 + $0x5b0] sm:$0xf]
        %v2404 = vld [vmem:[%s1816 + $0x5b4] sm:$0xf]
        %v2405 = vld [vmem:[%s1816 + $0x5b8] sm:$0xf]
        %v2406 = vld [vmem:[%s1816 + $0x5bc] sm:$0xf]
        %v2407 = vld [vmem:[%s1816 + $0x5c0] sm:$0xf]
        %v2408 = vld [vmem:[%s1816 + $0x5c4] sm:$0xf]
        %v2409 = vld [vmem:[%s1816 + $0x5c8] sm:$0xf]
        %v2410 = vld [vmem:[%s1816 + $0x5cc] sm:$0xf]
        %v2411 = vld [vmem:[%s1816 + $0x5d0] sm:$0xf]
        %v2412 = vld [vmem:[%s1816 + $0x5d4] sm:$0xf]
        %v2413 = vld [vmem:[%s1816 + $0x5d8] sm:$0xf]
        %v2414 = vld [vmem:[%s1816 + $0x5dc] sm:$0xf]
        %v2415 = vld [vmem:[%s1816 + $0x5e0] sm:$0xf]
        %v2416 = vld [vmem:[%s1816 + $0x5e4] sm:$0xf]
        %v2417 = vld [vmem:[%s1816 + $0x5e8] sm:$0xf]
        %v2418 = vld [vmem:[%s1816 + $0x5ec] sm:$0xf]
        %v2419 = vld [vmem:[%s1816 + $0x5f0] sm:$0xf]
        %v2420 = vld [vmem:[%s1816 + $0x5f4] sm:$0xf]
        %v2421 = vld [vmem:[%s1816 + $0x5f8] sm:$0xf]
        %v2422 = vld [vmem:[%s1816 + $0x5fc] sm:$0xf]
        %v2423 = vld [vmem:[%s1816 + $0x600] sm:$0xf]
        %v2424 = vld [vmem:[%s1816 + $0x604] sm:$0xf]
        %v2425 = vld [vmem:[%s1816 + $0x608] sm:$0xf]
        %v2426 = vld [vmem:[%s1816 + $0x60c] sm:$0xf]
        %v2427 = vld [vmem:[%s1816 + $0x610] sm:$0xf]
        %v2428 = vld [vmem:[%s1816 + $0x614] sm:$0xf]
        %v2429 = vld [vmem:[%s1816 + $0x618] sm:$0xf]
        %v2430 = vld [vmem:[%s1816 + $0x61c] sm:$0xf]
        %v2431 = vld [vmem:[%s1816 + $0x620] sm:$0xf]
        %v2432 = vld [vmem:[%s1816 + $0x624] sm:$0xf]
        %v2433 = vld [vmem:[%s1816 + $0x628] sm:$0xf]
        %v2434 = vld [vmem:[%s1816 + $0x62c] sm:$0xf]
        %v2435 = vld [vmem:[%s1816 + $0x630] sm:$0xf]
        %v2436 = vld [vmem:[%s1816 + $0x634] sm:$0xf]
        %v2437 = vld [vmem:[%s1816 + $0x638] sm:$0xf]
        %v2438 = vld [vmem:[%s1816 + $0x63c] sm:$0xf]
        %v2439 = vld [vmem:[%s1854] sm:$0x1]
        %v2441 = vlaneseq
        %v2442 = vshrl.u32 %v2441, 7
        %v2443 = vsub.s32 0, %v2442
        %v2444 = vrot.slane %v2439, %v2443
        %v2628 = vunpack.c.l.b16 %v1857
        %v2629 = vunpack.c.h.b16 %v1857
        %v2630 = vunpack.c.l.b16 %v1858
        %v2631 = vunpack.c.h.b16 %v1858
        %v2632 = vunpack.c.l.b16 %v1859
        %v2633 = vunpack.c.h.b16 %v1859
        %v2634 = vunpack.c.l.b16 %v1860
        %v2635 = vunpack.c.h.b16 %v1860
        %v2636 = vunpack.c.l.b16 %v1861
        %v2637 = vunpack.c.h.b16 %v1861
        %v2638 = vunpack.c.l.b16 %v1862
        %v2639 = vunpack.c.h.b16 %v1862
        %v2640 = vunpack.c.l.b16 %v1863
        %v2641 = vunpack.c.h.b16 %v1863
        %v2642 = vunpack.c.l.b16 %v1864
        %v2643 = vunpack.c.h.b16 %v1864
        %v2644 = vunpack.c.l.b16 %v1865
        %v2645 = vunpack.c.h.b16 %v1865
        %v2646 = vunpack.c.l.b16 %v1866
        %v2647 = vunpack.c.h.b16 %v1866
        %v2648 = vunpack.c.l.b16 %v1867
        %v2649 = vunpack.c.h.b16 %v1867
        %v2650 = vunpack.c.l.b16 %v1868
        %v2651 = vunpack.c.h.b16 %v1868
        %v2652 = vunpack.c.l.b16 %v1869
        %v2653 = vunpack.c.l.b16 %v1870
        %v2654 = vunpack.c.h.b16 %v1870
        %v2655 = vunpack.c.l.b16 %v1871
        %v2656 = vunpack.c.h.b16 %v1871
        %v2657 = vunpack.c.l.b16 %v1872
        %v2658 = vunpack.c.h.b16 %v1872
        %v2659 = vunpack.c.l.b16 %v1873
        %v2660 = vunpack.c.h.b16 %v1873
        %v2661 = vunpack.c.l.b16 %v1874
        %v2662 = vunpack.c.h.b16 %v1874
        %v2663 = vunpack.c.l.b16 %v1875
        %v2664 = vunpack.c.h.b16 %v1875
        %v2665 = vunpack.c.l.b16 %v1876
        %v2666 = vunpack.c.h.b16 %v1876
        %v2667 = vunpack.c.l.b16 %v1877
        %v2668 = vunpack.c.h.b16 %v1877
        %v2669 = vunpack.c.l.b16 %v1878
        %v2670 = vunpack.c.h.b16 %v1878
        %v2671 = vunpack.c.l.b16 %v1879
        %v2672 = vunpack.c.h.b16 %v1879
        %v2673 = vunpack.c.l.b16 %v1880
        %v2674 = vunpack.c.h.b16 %v1880
        %v2675 = vunpack.c.l.b16 %v1881
        %v2676 = vunpack.c.h.b16 %v1881
        %v2677 = vunpack.c.l.b16 %v1882
        %v2678 = vunpack.c.l.b16 %v1883
        %v2679 = vunpack.c.h.b16 %v1883
        %v2680 = vunpack.c.l.b16 %v1884
        %v2681 = vunpack.c.h.b16 %v1884
        %v2682 = vunpack.c.l.b16 %v1885
        %v2683 = vunpack.c.h.b16 %v1885
        %v2684 = vunpack.c.l.b16 %v1886
        %v2685 = vunpack.c.h.b16 %v1886
        %v2686 = vunpack.c.l.b16 %v1887
        %v2687 = vunpack.c.h.b16 %v1887
        %v2688 = vunpack.c.l.b16 %v1888
        %v2689 = vunpack.c.h.b16 %v1888
        %v2690 = vunpack.c.l.b16 %v1889
        %v2691 = vunpack.c.h.b16 %v1889
        %v2692 = vunpack.c.l.b16 %v1890
        %v2693 = vunpack.c.h.b16 %v1890
        %v2694 = vunpack.c.l.b16 %v1891
        %v2695 = vunpack.c.h.b16 %v1891
        %v2696 = vunpack.c.l.b16 %v1892
        %v2697 = vunpack.c.h.b16 %v1892
        %v2698 = vunpack.c.l.b16 %v1893
        %v2699 = vunpack.c.h.b16 %v1893
        %v2700 = vunpack.c.l.b16 %v1894
        %v2701 = vunpack.c.h.b16 %v1894
        %v2702 = vunpack.c.l.b16 %v1895
        %v2703 = vunpack.c.l.b16 %v1896
        %v2704 = vunpack.c.h.b16 %v1896
        %v2705 = vunpack.c.l.b16 %v1897
        %v2706 = vunpack.c.h.b16 %v1897
        %v2707 = vunpack.c.l.b16 %v1898
        %v2708 = vunpack.c.h.b16 %v1898
        %v2709 = vunpack.c.l.b16 %v1899
        %v2710 = vunpack.c.h.b16 %v1899
        %v2711 = vunpack.c.l.b16 %v1900
        %v2712 = vunpack.c.h.b16 %v1900
        %v2713 = vunpack.c.l.b16 %v1901
        %v2714 = vunpack.c.h.b16 %v1901
        %v2715 = vunpack.c.l.b16 %v1902
        %v2716 = vunpack.c.h.b16 %v1902
        %v2717 = vunpack.c.l.b16 %v1903
        %v2718 = vunpack.c.h.b16 %v1903
        %v2719 = vunpack.c.l.b16 %v1904
        %v2720 = vunpack.c.h.b16 %v1904
        %v2721 = vunpack.c.l.b16 %v1905
        %v2722 = vunpack.c.h.b16 %v1905
        %v2723 = vunpack.c.l.b16 %v1906
        %v2724 = vunpack.c.h.b16 %v1906
        %v2725 = vunpack.c.l.b16 %v1907
        %v2726 = vunpack.c.h.b16 %v1907
        %v2727 = vunpack.c.l.b16 %v1908
        %v2728 = vunpack.c.l.b16 %v1909
        %v2729 = vunpack.c.h.b16 %v1909
        %v2730 = vunpack.c.l.b16 %v1910
        %v2731 = vunpack.c.h.b16 %v1910
        %v2732 = vunpack.c.l.b16 %v1911
        %v2733 = vunpack.c.h.b16 %v1911
        %v2734 = vunpack.c.l.b16 %v1912
        %v2735 = vunpack.c.h.b16 %v1912
        %v2736 = vunpack.c.l.b16 %v1913
        %v2737 = vunpack.c.h.b16 %v1913
        %v2738 = vunpack.c.l.b16 %v1914
        %v2739 = vunpack.c.h.b16 %v1914
        %v2740 = vunpack.c.l.b16 %v1915
        %v2741 = vunpack.c.h.b16 %v1915
        %v2742 = vunpack.c.l.b16 %v1916
        %v2743 = vunpack.c.h.b16 %v1916
        %v2744 = vunpack.c.l.b16 %v1917
        %v2745 = vunpack.c.h.b16 %v1917
        %v2746 = vunpack.c.l.b16 %v1918
        %v2747 = vunpack.c.h.b16 %v1918
        %v2748 = vunpack.c.l.b16 %v1919
        %v2749 = vunpack.c.h.b16 %v1919
        %v2750 = vunpack.c.l.b16 %v1920
        %v2751 = vunpack.c.h.b16 %v1920
        %v2752 = vunpack.c.l.b16 %v1921
        %v2753 = vunpack.c.l.b16 %v1922
        %v2754 = vunpack.c.h.b16 %v1922
        %v2755 = vunpack.c.l.b16 %v1923
        %v2756 = vunpack.c.h.b16 %v1923
        %v2757 = vunpack.c.l.b16 %v1924
        %v2758 = vunpack.c.h.b16 %v1924
        %v2759 = vunpack.c.l.b16 %v1925
        %v2760 = vunpack.c.h.b16 %v1925
        %v2761 = vunpack.c.l.b16 %v1926
        %v2762 = vunpack.c.h.b16 %v1926
        %v2763 = vunpack.c.l.b16 %v1927
        %v2764 = vunpack.c.h.b16 %v1927
        %v2765 = vunpack.c.l.b16 %v1928
        %v2766 = vunpack.c.h.b16 %v1928
        %v2767 = vunpack.c.l.b16 %v1929
        %v2768 = vunpack.c.h.b16 %v1929
        %v2769 = vunpack.c.l.b16 %v1930
        %v2770 = vunpack.c.h.b16 %v1930
        %v2771 = vunpack.c.l.b16 %v1931
        %v2772 = vunpack.c.h.b16 %v1931
        %v2773 = vunpack.c.l.b16 %v1932
        %v2774 = vunpack.c.h.b16 %v1932
        %v2775 = vunpack.c.l.b16 %v1933
        %v2776 = vunpack.c.h.b16 %v1933
        %v2777 = vunpack.c.l.b16 %v1934
        %v2778 = vunpack.c.l.b16 %v1935
        %v2779 = vunpack.c.h.b16 %v1935
        %v2780 = vunpack.c.l.b16 %v1936
        %v2781 = vunpack.c.h.b16 %v1936
        %v2782 = vunpack.c.l.b16 %v1937
        %v2783 = vunpack.c.h.b16 %v1937
        %v2784 = vunpack.c.l.b16 %v1938
        %v2785 = vunpack.c.h.b16 %v1938
        %v2786 = vunpack.c.l.b16 %v1939
        %v2787 = vunpack.c.h.b16 %v1939
        %v2788 = vunpack.c.l.b16 %v1940
        %v2789 = vunpack.c.h.b16 %v1940
        %v2790 = vunpack.c.l.b16 %v1941
        %v2791 = vunpack.c.h.b16 %v1941
        %v2792 = vunpack.c.l.b16 %v1942
        %v2793 = vunpack.c.h.b16 %v1942
        %v2794 = vunpack.c.l.b16 %v1943
        %v2795 = vunpack.c.h.b16 %v1943
        %v2796 = vunpack.c.l.b16 %v1944
        %v2797 = vunpack.c.h.b16 %v1944
        %v2798 = vunpack.c.l.b16 %v1945
        %v2799 = vunpack.c.h.b16 %v1945
        %v2800 = vunpack.c.l.b16 %v1946
        %v2801 = vunpack.c.h.b16 %v1946
        %v2802 = vunpack.c.l.b16 %v1947
        %v2803 = vunpack.c.l.b16 %v1948
        %v2804 = vunpack.c.h.b16 %v1948
        %v2805 = vunpack.c.l.b16 %v1949
        %v2806 = vunpack.c.h.b16 %v1949
        %v2807 = vunpack.c.l.b16 %v1950
        %v2808 = vunpack.c.h.b16 %v1950
        %v2809 = vunpack.c.l.b16 %v1951
        %v2810 = vunpack.c.h.b16 %v1951
        %v2811 = vunpack.c.l.b16 %v1952
        %v2812 = vunpack.c.h.b16 %v1952
        %v2813 = vunpack.c.l.b16 %v1953
        %v2814 = vunpack.c.h.b16 %v1953
        %v2815 = vunpack.c.l.b16 %v1954
        %v2816 = vunpack.c.h.b16 %v1954
        %v2817 = vunpack.c.l.b16 %v1955
        %v2818 = vunpack.c.h.b16 %v1955
        %v2819 = vunpack.c.l.b16 %v1956
        %v2820 = vunpack.c.h.b16 %v1956
        %v2821 = vunpack.c.l.b16 %v1957
        %v2822 = vunpack.c.h.b16 %v1957
        %v2823 = vunpack.c.l.b16 %v1958
        %v2824 = vunpack.c.h.b16 %v1958
        %v2825 = vunpack.c.l.b16 %v1959
        %v2826 = vunpack.c.h.b16 %v1959
        %v2827 = vunpack.c.l.b16 %v1960
        %v2828 = vunpack.c.l.b16 %v1961
        %v2829 = vunpack.c.h.b16 %v1961
        %v2830 = vunpack.c.l.b16 %v1962
        %v2831 = vunpack.c.h.b16 %v1962
        %v2832 = vunpack.c.l.b16 %v1963
        %v2833 = vunpack.c.h.b16 %v1963
        %v2834 = vunpack.c.l.b16 %v1964
        %v2835 = vunpack.c.h.b16 %v1964
        %v2836 = vunpack.c.l.b16 %v1965
        %v2837 = vunpack.c.h.b16 %v1965
        %v2838 = vunpack.c.l.b16 %v1966
        %v2839 = vunpack.c.h.b16 %v1966
        %v2840 = vunpack.c.l.b16 %v1967
        %v2841 = vunpack.c.h.b16 %v1967
        %v2842 = vunpack.c.l.b16 %v1968
        %v2843 = vunpack.c.h.b16 %v1968
        %v2844 = vunpack.c.l.b16 %v1969
        %v2845 = vunpack.c.h.b16 %v1969
        %v2846 = vunpack.c.l.b16 %v1970
        %v2847 = vunpack.c.h.b16 %v1970
        %v2848 = vunpack.c.l.b16 %v1971
        %v2849 = vunpack.c.h.b16 %v1971
        %v2850 = vunpack.c.l.b16 %v1972
        %v2851 = vunpack.c.h.b16 %v1972
        %v2852 = vunpack.c.l.b16 %v1973
        %v2853 = vunpack.c.l.b16 %v1974
        %v2854 = vunpack.c.h.b16 %v1974
        %v2855 = vunpack.c.l.b16 %v1975
        %v2856 = vunpack.c.h.b16 %v1975
        %v2857 = vunpack.c.l.b16 %v1976
        %v2858 = vunpack.c.h.b16 %v1976
        %v2859 = vunpack.c.l.b16 %v1977
        %v2860 = vunpack.c.h.b16 %v1977
        %v2861 = vunpack.c.l.b16 %v1978
        %v2862 = vunpack.c.h.b16 %v1978
        %v2863 = vunpack.c.l.b16 %v1979
        %v2864 = vunpack.c.h.b16 %v1979
        %v2865 = vunpack.c.l.b16 %v1980
        %v2866 = vunpack.c.h.b16 %v1980
        %v2867 = vunpack.c.l.b16 %v1981
        %v2868 = vunpack.c.h.b16 %v1981
        %v2869 = vunpack.c.l.b16 %v1982
        %v2870 = vunpack.c.h.b16 %v1982
        %v2871 = vunpack.c.l.b16 %v1983
        %v2872 = vunpack.c.h.b16 %v1983
        %v2873 = vunpack.c.l.b16 %v1984
        %v2874 = vunpack.c.h.b16 %v1984
        %v2875 = vunpack.c.l.b16 %v1985
        %v2876 = vunpack.c.h.b16 %v1985
        %v2877 = vunpack.c.l.b16 %v1986
        %v2878 = vunpack.c.l.b16 %v1987
        %v2879 = vunpack.c.h.b16 %v1987
        %v2880 = vunpack.c.l.b16 %v1988
        %v2881 = vunpack.c.h.b16 %v1988
        %v2882 = vunpack.c.l.b16 %v1989
        %v2883 = vunpack.c.h.b16 %v1989
        %v2884 = vunpack.c.l.b16 %v1990
        %v2885 = vunpack.c.h.b16 %v1990
        %v2886 = vunpack.c.l.b16 %v1991
        %v2887 = vunpack.c.h.b16 %v1991
        %v2888 = vunpack.c.l.b16 %v1992
        %v2889 = vunpack.c.h.b16 %v1992
        %v2890 = vunpack.c.l.b16 %v1993
        %v2891 = vunpack.c.h.b16 %v1993
        %v2892 = vunpack.c.l.b16 %v1994
        %v2893 = vunpack.c.h.b16 %v1994
        %v2894 = vunpack.c.l.b16 %v1995
        %v2895 = vunpack.c.h.b16 %v1995
        %v2896 = vunpack.c.l.b16 %v1996
        %v2897 = vunpack.c.h.b16 %v1996
        %v2898 = vunpack.c.l.b16 %v1997
        %v2899 = vunpack.c.h.b16 %v1997
        %v2900 = vunpack.c.l.b16 %v1998
        %v2901 = vunpack.c.h.b16 %v1998
        %v2902 = vunpack.c.l.b16 %v1999
        %v2903 = vunpack.c.l.b16 %v2000
        %v2904 = vunpack.c.h.b16 %v2000
        %v2905 = vunpack.c.l.b16 %v2001
        %v2906 = vunpack.c.h.b16 %v2001
        %v2907 = vunpack.c.l.b16 %v2002
        %v2908 = vunpack.c.h.b16 %v2002
        %v2909 = vunpack.c.l.b16 %v2003
        %v2910 = vunpack.c.h.b16 %v2003
        %v2911 = vunpack.c.l.b16 %v2004
        %v2912 = vunpack.c.h.b16 %v2004
        %v2913 = vunpack.c.l.b16 %v2005
        %v2914 = vunpack.c.h.b16 %v2005
        %v2915 = vunpack.c.l.b16 %v2006
        %v2916 = vunpack.c.h.b16 %v2006
        %v2917 = vunpack.c.l.b16 %v2007
        %v2918 = vunpack.c.h.b16 %v2007
        %v2919 = vunpack.c.l.b16 %v2008
        %v2920 = vunpack.c.h.b16 %v2008
        %v2921 = vunpack.c.l.b16 %v2009
        %v2922 = vunpack.c.h.b16 %v2009
        %v2923 = vunpack.c.l.b16 %v2010
        %v2924 = vunpack.c.h.b16 %v2010
        %v2925 = vunpack.c.l.b16 %v2011
        %v2926 = vunpack.c.h.b16 %v2011
        %v2927 = vunpack.c.l.b16 %v2012
        %v2928 = vunpack.c.l.b16 %v2013
        %v2929 = vunpack.c.h.b16 %v2013
        %v2930 = vunpack.c.l.b16 %v2014
        %v2931 = vunpack.c.h.b16 %v2014
        %v2932 = vunpack.c.l.b16 %v2015
        %v2933 = vunpack.c.h.b16 %v2015
        %v2934 = vunpack.c.l.b16 %v2016
        %v2935 = vunpack.c.h.b16 %v2016
        %v2936 = vunpack.c.l.b16 %v2017
        %v2937 = vunpack.c.h.b16 %v2017
        %v2938 = vunpack.c.l.b16 %v2018
        %v2939 = vunpack.c.h.b16 %v2018
        %v2940 = vunpack.c.l.b16 %v2019
        %v2941 = vunpack.c.h.b16 %v2019
        %v2942 = vunpack.c.l.b16 %v2020
        %v2943 = vunpack.c.h.b16 %v2020
        %v2944 = vunpack.c.l.b16 %v2021
        %v2945 = vunpack.c.h.b16 %v2021
        %v2946 = vunpack.c.l.b16 %v2022
        %v2947 = vunpack.c.h.b16 %v2022
        %v2948 = vunpack.c.l.b16 %v2023
        %v2949 = vunpack.c.h.b16 %v2023
        %v2950 = vunpack.c.l.b16 %v2024
        %v2951 = vunpack.c.h.b16 %v2024
        %v2952 = vunpack.c.l.b16 %v2025
        %v2953 = vunpack.c.l.b16 %v2026
        %v2954 = vunpack.c.h.b16 %v2026
        %v2955 = vunpack.c.l.b16 %v2027
        %v2956 = vunpack.c.h.b16 %v2027
        %v2957 = vunpack.c.l.b16 %v2028
        %v2958 = vunpack.c.h.b16 %v2028
        %v2959 = vunpack.c.l.b16 %v2029
        %v2960 = vunpack.c.h.b16 %v2029
        %v2961 = vunpack.c.l.b16 %v2030
        %v2962 = vunpack.c.h.b16 %v2030
        %v2963 = vunpack.c.l.b16 %v2031
        %v2964 = vunpack.c.h.b16 %v2031
        %v2965 = vunpack.c.l.b16 %v2032
        %v2966 = vunpack.c.h.b16 %v2032
        %v2967 = vunpack.c.l.b16 %v2033
        %v2968 = vunpack.c.h.b16 %v2033
        %v2969 = vunpack.c.l.b16 %v2034
        %v2970 = vunpack.c.h.b16 %v2034
        %v2971 = vunpack.c.l.b16 %v2035
        %v2972 = vunpack.c.h.b16 %v2035
        %v2973 = vunpack.c.l.b16 %v2036
        %v2974 = vunpack.c.h.b16 %v2036
        %v2975 = vunpack.c.l.b16 %v2037
        %v2976 = vunpack.c.h.b16 %v2037
        %v2977 = vunpack.c.l.b16 %v2038
        %v2978 = vpack.c.b16 %v2653, %v2628
        %v2979 = vpack.c.b16 %v2654, %v2629
        %v2980 = vpack.c.b16 %v2655, %v2630
        %v2981 = vpack.c.b16 %v2656, %v2631
        %v2982 = vpack.c.b16 %v2657, %v2632
        %v2983 = vpack.c.b16 %v2658, %v2633
        %v2984 = vpack.c.b16 %v2659, %v2634
        %v2985 = vpack.c.b16 %v2660, %v2635
        %v2986 = vpack.c.b16 %v2661, %v2636
        %v2987 = vpack.c.b16 %v2662, %v2637
        %v2988 = vpack.c.b16 %v2663, %v2638
        %v2989 = vpack.c.b16 %v2664, %v2639
        %v2990 = vpack.c.b16 %v2665, %v2640
        %v2991 = vpack.c.b16 %v2666, %v2641
        %v2992 = vpack.c.b16 %v2667, %v2642
        %v2993 = vpack.c.b16 %v2668, %v2643
        %v2994 = vpack.c.b16 %v2669, %v2644
        %v2995 = vpack.c.b16 %v2670, %v2645
        %v2996 = vpack.c.b16 %v2671, %v2646
        %v2997 = vpack.c.b16 %v2672, %v2647
        %v2998 = vpack.c.b16 %v2673, %v2648
        %v2999 = vpack.c.b16 %v2674, %v2649
        %v3000 = vpack.c.b16 %v2675, %v2650
        %v3001 = vpack.c.b16 %v2676, %v2651
        %v3002 = vpack.c.b16 %v2677, %v2652
        %v3003 = vpack.c.b16 %v2703, %v2678
        %v3004 = vpack.c.b16 %v2704, %v2679
        %v3005 = vpack.c.b16 %v2705, %v2680
        %v3006 = vpack.c.b16 %v2706, %v2681
        %v3007 = vpack.c.b16 %v2707, %v2682
        %v3008 = vpack.c.b16 %v2708, %v2683
        %v3009 = vpack.c.b16 %v2709, %v2684
        %v3010 = vpack.c.b16 %v2710, %v2685
        %v3011 = vpack.c.b16 %v2711, %v2686
        %v3012 = vpack.c.b16 %v2712, %v2687
        %v3013 = vpack.c.b16 %v2713, %v2688
        %v3014 = vpack.c.b16 %v2714, %v2689
        %v3015 = vpack.c.b16 %v2715, %v2690
        %v3016 = vpack.c.b16 %v2716, %v2691
        %v3017 = vpack.c.b16 %v2717, %v2692
        %v3018 = vpack.c.b16 %v2718, %v2693
        %v3019 = vpack.c.b16 %v2719, %v2694
        %v3020 = vpack.c.b16 %v2720, %v2695
        %v3021 = vpack.c.b16 %v2721, %v2696
        %v3022 = vpack.c.b16 %v2722, %v2697
        %v3023 = vpack.c.b16 %v2723, %v2698
        %v3024 = vpack.c.b16 %v2724, %v2699
        %v3025 = vpack.c.b16 %v2725, %v2700
        %v3026 = vpack.c.b16 %v2726, %v2701
        %v3027 = vpack.c.b16 %v2727, %v2702
        %v3028 = vpack.c.b16 %v2753, %v2728
        %v3029 = vpack.c.b16 %v2754, %v2729
        %v3030 = vpack.c.b16 %v2755, %v2730
        %v3031 = vpack.c.b16 %v2756, %v2731
        %v3032 = vpack.c.b16 %v2757, %v2732
        %v3033 = vpack.c.b16 %v2758, %v2733
        %v3034 = vpack.c.b16 %v2759, %v2734
        %v3035 = vpack.c.b16 %v2760, %v2735
        %v3036 = vpack.c.b16 %v2761, %v2736
        %v3037 = vpack.c.b16 %v2762, %v2737
        %v3038 = vpack.c.b16 %v2763, %v2738
        %v3039 = vpack.c.b16 %v2764, %v2739
        %v3040 = vpack.c.b16 %v2765, %v2740
        %v3041 = vpack.c.b16 %v2766, %v2741
        %v3042 = vpack.c.b16 %v2767, %v2742
        %v3043 = vpack.c.b16 %v2768, %v2743
        %v3044 = vpack.c.b16 %v2769, %v2744
        %v3045 = vpack.c.b16 %v2770, %v2745
        %v3046 = vpack.c.b16 %v2771, %v2746
        %v3047 = vpack.c.b16 %v2772, %v2747
        %v3048 = vpack.c.b16 %v2773, %v2748
        %v3049 = vpack.c.b16 %v2774, %v2749
        %v3050 = vpack.c.b16 %v2775, %v2750
        %v3051 = vpack.c.b16 %v2776, %v2751
        %v3052 = vpack.c.b16 %v2777, %v2752
        %v3053 = vpack.c.b16 %v2803, %v2778
        %v3054 = vpack.c.b16 %v2804, %v2779
        %v3055 = vpack.c.b16 %v2805, %v2780
        %v3056 = vpack.c.b16 %v2806, %v2781
        %v3057 = vpack.c.b16 %v2807, %v2782
        %v3058 = vpack.c.b16 %v2808, %v2783
        %v3059 = vpack.c.b16 %v2809, %v2784
        %v3060 = vpack.c.b16 %v2810, %v2785
        %v3061 = vpack.c.b16 %v2811, %v2786
        %v3062 = vpack.c.b16 %v2812, %v2787
        %v3063 = vpack.c.b16 %v2813, %v2788
        %v3064 = vpack.c.b16 %v2814, %v2789
        %v3065 = vpack.c.b16 %v2815, %v2790
        %v3066 = vpack.c.b16 %v2816, %v2791
        %v3067 = vpack.c.b16 %v2817, %v2792
        %v3068 = vpack.c.b16 %v2818, %v2793
        %v3069 = vpack.c.b16 %v2819, %v2794
        %v3070 = vpack.c.b16 %v2820, %v2795
        %v3071 = vpack.c.b16 %v2821, %v2796
        %v3072 = vpack.c.b16 %v2822, %v2797
        %v3073 = vpack.c.b16 %v2823, %v2798
        %v3074 = vpack.c.b16 %v2824, %v2799
        %v3075 = vpack.c.b16 %v2825, %v2800
        %v3076 = vpack.c.b16 %v2826, %v2801
        %v3077 = vpack.c.b16 %v2827, %v2802
        %v3078 = vpack.c.b16 %v2853, %v2828
        %v3079 = vpack.c.b16 %v2854, %v2829
        %v3080 = vpack.c.b16 %v2855, %v2830
        %v3081 = vpack.c.b16 %v2856, %v2831
        %v3082 = vpack.c.b16 %v2857, %v2832
        %v3083 = vpack.c.b16 %v2858, %v2833
        %v3084 = vpack.c.b16 %v2859, %v2834
        %v3085 = vpack.c.b16 %v2860, %v2835
        %v3086 = vpack.c.b16 %v2861, %v2836
        %v3087 = vpack.c.b16 %v2862, %v2837
        %v3088 = vpack.c.b16 %v2863, %v2838
        %v3089 = vpack.c.b16 %v2864, %v2839
        %v3090 = vpack.c.b16 %v2865, %v2840
        %v3091 = vpack.c.b16 %v2866, %v2841
        %v3092 = vpack.c.b16 %v2867, %v2842
        %v3093 = vpack.c.b16 %v2868, %v2843
        %v3094 = vpack.c.b16 %v2869, %v2844
        %v3095 = vpack.c.b16 %v2870, %v2845
        %v3096 = vpack.c.b16 %v2871, %v2846
        %v3097 = vpack.c.b16 %v2872, %v2847
        %v3098 = vpack.c.b16 %v2873, %v2848
        %v3099 = vpack.c.b16 %v2874, %v2849
        %v3100 = vpack.c.b16 %v2875, %v2850
        %v3101 = vpack.c.b16 %v2876, %v2851
        %v3102 = vpack.c.b16 %v2877, %v2852
        %v3103 = vpack.c.b16 %v2903, %v2878
        %v3104 = vpack.c.b16 %v2904, %v2879
        %v3105 = vpack.c.b16 %v2905, %v2880
        %v3106 = vpack.c.b16 %v2906, %v2881
        %v3107 = vpack.c.b16 %v2907, %v2882
        %v3108 = vpack.c.b16 %v2908, %v2883
        %v3109 = vpack.c.b16 %v2909, %v2884
        %v3110 = vpack.c.b16 %v2910, %v2885
        %v3111 = vpack.c.b16 %v2911, %v2886
        %v3112 = vpack.c.b16 %v2912, %v2887
        %v3113 = vpack.c.b16 %v2913, %v2888
        %v3114 = vpack.c.b16 %v2914, %v2889
        %v3115 = vpack.c.b16 %v2915, %v2890
        %v3116 = vpack.c.b16 %v2916, %v2891
        %v3117 = vpack.c.b16 %v2917, %v2892
        %v3118 = vpack.c.b16 %v2918, %v2893
        %v3119 = vpack.c.b16 %v2919, %v2894
        %v3120 = vpack.c.b16 %v2920, %v2895
        %v3121 = vpack.c.b16 %v2921, %v2896
        %v3122 = vpack.c.b16 %v2922, %v2897
        %v3123 = vpack.c.b16 %v2923, %v2898
        %v3124 = vpack.c.b16 %v2924, %v2899
        %v3125 = vpack.c.b16 %v2925, %v2900
        %v3126 = vpack.c.b16 %v2926, %v2901
        %v3127 = vpack.c.b16 %v2927, %v2902
        %v3128 = vpack.c.b16 %v2953, %v2928
        %v3129 = vpack.c.b16 %v2954, %v2929
        %v3130 = vpack.c.b16 %v2955, %v2930
        %v3131 = vpack.c.b16 %v2956, %v2931
        %v3132 = vpack.c.b16 %v2957, %v2932
        %v3133 = vpack.c.b16 %v2958, %v2933
        %v3134 = vpack.c.b16 %v2959, %v2934
        %v3135 = vpack.c.b16 %v2960, %v2935
        %v3136 = vpack.c.b16 %v2961, %v2936
        %v3137 = vpack.c.b16 %v2962, %v2937
        %v3138 = vpack.c.b16 %v2963, %v2938
        %v3139 = vpack.c.b16 %v2964, %v2939
        %v3140 = vpack.c.b16 %v2965, %v2940
        %v3141 = vpack.c.b16 %v2966, %v2941
        %v3142 = vpack.c.b16 %v2967, %v2942
        %v3143 = vpack.c.b16 %v2968, %v2943
        %v3144 = vpack.c.b16 %v2969, %v2944
        %v3145 = vpack.c.b16 %v2970, %v2945
        %v3146 = vpack.c.b16 %v2971, %v2946
        %v3147 = vpack.c.b16 %v2972, %v2947
        %v3148 = vpack.c.b16 %v2973, %v2948
        %v3149 = vpack.c.b16 %v2974, %v2949
        %v3150 = vpack.c.b16 %v2975, %v2950
        %v3151 = vpack.c.b16 %v2976, %v2951
        %v3152 = vpack.c.b16 %v2977, %v2952
        %v3728 = vunpack.c.l.b16 %v2039
        %v3729 = vunpack.c.l.b16 %v2040
        %v3730 = vunpack.c.l.b16 %v2041
        %v3731 = vunpack.c.l.b16 %v2042
        %v3732 = vunpack.c.l.b16 %v2043
        %v3733 = vunpack.c.l.b16 %v2044
        %v3734 = vunpack.c.l.b16 %v2045
        %v3735 = vunpack.c.l.b16 %v2046
        %v3736 = vunpack.c.l.b16 %v2047
        %v3737 = vunpack.c.l.b16 %v2048
        %v3738 = vunpack.c.l.b16 %v2049
        %v3739 = vunpack.c.l.b16 %v2050
        %v3740 = vunpack.c.l.b16 %v2051
        %v3741 = vunpack.c.l.b16 %v2052
        %v3742 = vunpack.c.l.b16 %v2053
        %v3743 = vunpack.c.l.b16 %v2054
        %v3744 = vunpack.c.l.b16 %v2055
        %v3745 = vunpack.c.l.b16 %v2056
        %v3746 = vunpack.c.l.b16 %v2057
        %v3747 = vunpack.c.l.b16 %v2058
        %v3748 = vunpack.c.l.b16 %v2059
        %v3749 = vunpack.c.l.b16 %v2060
        %v3750 = vunpack.c.l.b16 %v2061
        %v3751 = vunpack.c.l.b16 %v2062
        %v3752 = vunpack.c.l.b16 %v2063
        %v3753 = vunpack.c.l.b16 %v2064
        %v3754 = vunpack.c.l.b16 %v2065
        %v3755 = vunpack.c.l.b16 %v2066
        %v3756 = vunpack.c.l.b16 %v2067
        %v3757 = vunpack.c.l.b16 %v2068
        %v3758 = vunpack.c.l.b16 %v2069
        %v3759 = vunpack.c.l.b16 %v2070
        %v3760 = vunpack.c.l.b16 %v2071
        %v3761 = vunpack.c.l.b16 %v2072
        %v3762 = vunpack.c.l.b16 %v2073
        %v3763 = vunpack.c.l.b16 %v2074
        %v3764 = vunpack.c.l.b16 %v2075
        %v3765 = vunpack.c.l.b16 %v2076
        %v3766 = vunpack.c.l.b16 %v2077
        %v3767 = vunpack.c.l.b16 %v2078
        %v3768 = vunpack.c.l.b16 %v2079
        %v3769 = vunpack.c.l.b16 %v2080
        %v3770 = vunpack.c.l.b16 %v2081
        %v3771 = vunpack.c.l.b16 %v2082
        %v3772 = vunpack.c.l.b16 %v2083
        %v3773 = vunpack.c.l.b16 %v2084
        %v3774 = vunpack.c.l.b16 %v2085
        %v3775 = vunpack.c.l.b16 %v2086
        %v3776 = vunpack.c.l.b16 %v2087
        %v3777 = vunpack.c.l.b16 %v2088
        %v3778 = vunpack.c.l.b16 %v2089
        %v3779 = vunpack.c.l.b16 %v2090
        %v3780 = vunpack.c.l.b16 %v2091
        %v3781 = vunpack.c.l.b16 %v2092
        %v3782 = vunpack.c.l.b16 %v2093
        %v3783 = vunpack.c.l.b16 %v2094
        %v3784 = vunpack.c.l.b16 %v2095
        %v3785 = vunpack.c.l.b16 %v2096
        %v3786 = vunpack.c.l.b16 %v2097
        %v3787 = vunpack.c.l.b16 %v2098
        %v3788 = vunpack.c.l.b16 %v2099
        %v3789 = vunpack.c.l.b16 %v2100
        %v3790 = vunpack.c.l.b16 %v2101
        %v3791 = vunpack.c.l.b16 %v2102
        %v3792 = vunpack.c.l.b16 %v2103
        %v3793 = vunpack.c.l.b16 %v2104
        %v3794 = vunpack.c.l.b16 %v2105
        %v3795 = vunpack.c.l.b16 %v2106
        %v3796 = vunpack.c.l.b16 %v2107
        %v3797 = vunpack.c.l.b16 %v2108
        %v3798 = vunpack.c.l.b16 %v2109
        %v3799 = vunpack.c.l.b16 %v2110
        %v3800 = vunpack.c.l.b16 %v2111
        %v3801 = vunpack.c.l.b16 %v2112
        %v3802 = vunpack.c.l.b16 %v2113
        %v3803 = vunpack.c.l.b16 %v2114
        %v3804 = vunpack.c.l.b16 %v2115
        %v3805 = vunpack.c.l.b16 %v2116
        %v3806 = vunpack.c.l.b16 %v2117
        %v3807 = vunpack.c.l.b16 %v2118
        %v3808 = vunpack.c.l.b16 %v2119
        %v3809 = vunpack.c.l.b16 %v2120
        %v3810 = vunpack.c.l.b16 %v2121
        %v3811 = vunpack.c.l.b16 %v2122
        %v3812 = vunpack.c.l.b16 %v2123
        %v3813 = vunpack.c.l.b16 %v2124
        %v3814 = vunpack.c.l.b16 %v2125
        %v3815 = vunpack.c.l.b16 %v2126
        %v3816 = vunpack.c.l.b16 %v2127
        %v3817 = vunpack.c.l.b16 %v2128
        %v3818 = vunpack.c.l.b16 %v2129
        %v3819 = vunpack.c.l.b16 %v2130
        %v3820 = vunpack.c.l.b16 %v2131
        %v3821 = vunpack.c.l.b16 %v2132
        %v3822 = vunpack.c.l.b16 %v2133
        %v3823 = vunpack.c.l.b16 %v2134
        %v3824 = vunpack.c.l.b16 %v2135
        %v3825 = vunpack.c.l.b16 %v2136
        %v3826 = vunpack.c.l.b16 %v2137
        %v3827 = vunpack.c.l.b16 %v2138
        %v3828 = vunpack.c.l.b16 %v2139
        %v3829 = vunpack.c.l.b16 %v2140
        %v3830 = vunpack.c.l.b16 %v2141
        %v3831 = vunpack.c.l.b16 %v2142
        %v3832 = vunpack.c.l.b16 %v2143
        %v3833 = vunpack.c.l.b16 %v2144
        %v3834 = vunpack.c.l.b16 %v2145
        %v3835 = vunpack.c.l.b16 %v2146
        %v3836 = vunpack.c.l.b16 %v2147
        %v3837 = vunpack.c.l.b16 %v2148
        %v3838 = vunpack.c.l.b16 %v2149
        %v3839 = vunpack.c.l.b16 %v2150
        %v3840 = vunpack.c.l.b16 %v2151
        %v3841 = vunpack.c.l.b16 %v2152
        %v3842 = vunpack.c.l.b16 %v2153
        %v3843 = vunpack.c.l.b16 %v2154
        %v3844 = vunpack.c.l.b16 %v2155
        %v3845 = vunpack.c.l.b16 %v2156
        %v3846 = vunpack.c.l.b16 %v2157
        %v3847 = vunpack.c.l.b16 %v2158
        %v3848 = vunpack.c.l.b16 %v2159
        %v3849 = vunpack.c.l.b16 %v2160
        %v3850 = vunpack.c.l.b16 %v2161
        %v3851 = vunpack.c.l.b16 %v2162
        %v3852 = vunpack.c.l.b16 %v2163
        %v3853 = vunpack.c.l.b16 %v2164
        %v3854 = vunpack.c.l.b16 %v2165
        %v3855 = vunpack.c.l.b16 %v2166
        %v3856 = vunpack.c.l.b16 %v2167
        %v3857 = vunpack.c.l.b16 %v2168
        %v3858 = vunpack.c.l.b16 %v2169
        %v3859 = vunpack.c.l.b16 %v2170
        %v3860 = vunpack.c.l.b16 %v2171
        %v3861 = vunpack.c.l.b16 %v2172
        %v3862 = vunpack.c.l.b16 %v2173
        %v3863 = vunpack.c.l.b16 %v2174
        %v3864 = vunpack.c.l.b16 %v2175
        %v3865 = vunpack.c.l.b16 %v2176
        %v3866 = vunpack.c.l.b16 %v2177
        %v3867 = vunpack.c.l.b16 %v2178
        %v3868 = vunpack.c.l.b16 %v2179
        %v3869 = vunpack.c.l.b16 %v2180
        %v3870 = vunpack.c.l.b16 %v2181
        %v3871 = vunpack.c.l.b16 %v2182
        %v3872 = vunpack.c.l.b16 %v2183
        %v3873 = vunpack.c.l.b16 %v2184
        %v3874 = vunpack.c.l.b16 %v2185
        %v3875 = vunpack.c.l.b16 %v2186
        %v3876 = vunpack.c.l.b16 %v2187
        %v3877 = vunpack.c.l.b16 %v2188
        %v3878 = vunpack.c.l.b16 %v2189
        %v3879 = vunpack.c.l.b16 %v2190
        %v3880 = vunpack.c.l.b16 %v2191
        %v3881 = vunpack.c.l.b16 %v2192
        %v3882 = vunpack.c.l.b16 %v2193
        %v3883 = vunpack.c.l.b16 %v2194
        %v3884 = vunpack.c.l.b16 %v2195
        %v3885 = vunpack.c.l.b16 %v2196
        %v3886 = vunpack.c.l.b16 %v2197
        %v3887 = vunpack.c.l.b16 %v2198
        %v3888 = vunpack.c.l.b16 %v2199
        %v3889 = vunpack.c.l.b16 %v2200
        %v3890 = vunpack.c.l.b16 %v2201
        %v3891 = vunpack.c.l.b16 %v2202
        %v3892 = vunpack.c.l.b16 %v2203
        %v3893 = vunpack.c.l.b16 %v2204
        %v3894 = vunpack.c.l.b16 %v2205
        %v3895 = vunpack.c.l.b16 %v2206
        %v3896 = vunpack.c.l.b16 %v2207
        %v3897 = vunpack.c.l.b16 %v2208
        %v3898 = vunpack.c.l.b16 %v2209
        %v3899 = vunpack.c.l.b16 %v2210
        %v3900 = vunpack.c.l.b16 %v2211
        %v3901 = vunpack.c.l.b16 %v2212
        %v3902 = vunpack.c.l.b16 %v2213
        %v3903 = vunpack.c.l.b16 %v2214
        %v3904 = vunpack.c.l.b16 %v2215
        %v3905 = vunpack.c.l.b16 %v2216
        %v3906 = vunpack.c.l.b16 %v2217
        %v3907 = vunpack.c.l.b16 %v2218
        %v3908 = vunpack.c.l.b16 %v2219
        %v3909 = vunpack.c.l.b16 %v2220
        %v3910 = vunpack.c.l.b16 %v2221
        %v3911 = vunpack.c.l.b16 %v2222
        %v3912 = vunpack.c.l.b16 %v2223
        %v3913 = vunpack.c.l.b16 %v2224
        %v3914 = vunpack.c.l.b16 %v2225
        %v3915 = vunpack.c.l.b16 %v2226
        %v3916 = vunpack.c.l.b16 %v2227
        %v3917 = vunpack.c.l.b16 %v2228
        %v3918 = vunpack.c.l.b16 %v2229
        %v3919 = vunpack.c.l.b16 %v2230
        %v3920 = vunpack.c.l.b16 %v2231
        %v3921 = vunpack.c.l.b16 %v2232
        %v3922 = vunpack.c.l.b16 %v2233
        %v3923 = vunpack.c.l.b16 %v2234
        %v3924 = vunpack.c.l.b16 %v2235
        %v3925 = vunpack.c.l.b16 %v2236
        %v3926 = vunpack.c.l.b16 %v2237
        %v3927 = vunpack.c.l.b16 %v2238
        %v3928 = vunpack.c.l.b16 %v2239
        %v3929 = vunpack.c.l.b16 %v2240
        %v3930 = vunpack.c.l.b16 %v2241
        %v3931 = vunpack.c.l.b16 %v2242
        %v3932 = vunpack.c.l.b16 %v2243
        %v3933 = vunpack.c.l.b16 %v2244
        %v3934 = vunpack.c.l.b16 %v2245
        %v3935 = vunpack.c.l.b16 %v2246
        %v3936 = vunpack.c.l.b16 %v2247
        %v3937 = vunpack.c.l.b16 %v2248
        %v3938 = vunpack.c.l.b16 %v2249
        %v3939 = vunpack.c.l.b16 %v2250
        %v3940 = vunpack.c.l.b16 %v2251
        %v3941 = vunpack.c.l.b16 %v2252
        %v3942 = vunpack.c.l.b16 %v2253
        %v3943 = vunpack.c.l.b16 %v2254
        %v3944 = vunpack.c.l.b16 %v2255
        %v3945 = vunpack.c.l.b16 %v2256
        %v3946 = vunpack.c.l.b16 %v2257
        %v3947 = vunpack.c.l.b16 %v2258
        %v3948 = vunpack.c.l.b16 %v2259
        %v3949 = vunpack.c.l.b16 %v2260
        %v3950 = vunpack.c.l.b16 %v2261
        %v3951 = vunpack.c.l.b16 %v2262
        %v3952 = vunpack.c.l.b16 %v2263
        %v3953 = vunpack.c.l.b16 %v2264
        %v3954 = vunpack.c.l.b16 %v2265
        %v3955 = vunpack.c.l.b16 %v2266
        %v3956 = vunpack.c.l.b16 %v2267
        %v3957 = vunpack.c.l.b16 %v2268
        %v3958 = vunpack.c.l.b16 %v2269
        %v3959 = vunpack.c.l.b16 %v2270
        %v3960 = vunpack.c.l.b16 %v2271
        %v3961 = vunpack.c.l.b16 %v2272
        %v3962 = vunpack.c.l.b16 %v2273
        %v3963 = vunpack.c.l.b16 %v2274
        %v3964 = vunpack.c.l.b16 %v2275
        %v3965 = vunpack.c.l.b16 %v2276
        %v3966 = vunpack.c.l.b16 %v2277
        %v3967 = vunpack.c.l.b16 %v2278
        %v3968 = vunpack.c.l.b16 %v2279
        %v3969 = vunpack.c.l.b16 %v2280
        %v3970 = vunpack.c.l.b16 %v2281
        %v3971 = vunpack.c.l.b16 %v2282
        %v3972 = vunpack.c.l.b16 %v2283
        %v3973 = vunpack.c.l.b16 %v2284
        %v3974 = vunpack.c.l.b16 %v2285
        %v3975 = vunpack.c.l.b16 %v2286
        %v3976 = vunpack.c.l.b16 %v2287
        %v3977 = vunpack.c.l.b16 %v2288
        %v3978 = vunpack.c.l.b16 %v2289
        %v3979 = vunpack.c.l.b16 %v2290
        %v3980 = vunpack.c.l.b16 %v2291
        %v3981 = vunpack.c.l.b16 %v2292
        %v3982 = vunpack.c.l.b16 %v2293
        %v3983 = vunpack.c.l.b16 %v2294
        %v3984 = vunpack.c.l.b16 %v2295
        %v3985 = vunpack.c.l.b16 %v2296
        %v3986 = vunpack.c.l.b16 %v2297
        %v3987 = vunpack.c.l.b16 %v2298
        %v3988 = vunpack.c.l.b16 %v2299
        %v3989 = vunpack.c.l.b16 %v2300
        %v3990 = vunpack.c.l.b16 %v2301
        %v3991 = vunpack.c.l.b16 %v2302
        %v3992 = vunpack.c.l.b16 %v2303
        %v3993 = vunpack.c.l.b16 %v2304
        %v3994 = vunpack.c.l.b16 %v2305
        %v3995 = vunpack.c.l.b16 %v2306
        %v3996 = vunpack.c.l.b16 %v2307
        %v3997 = vunpack.c.l.b16 %v2308
        %v3998 = vunpack.c.l.b16 %v2309
        %v3999 = vunpack.c.l.b16 %v2310
        %v4000 = vunpack.c.l.b16 %v2311
        %v4001 = vunpack.c.l.b16 %v2312
        %v4002 = vunpack.c.l.b16 %v2313
        %v4003 = vunpack.c.l.b16 %v2314
        %v4004 = vunpack.c.l.b16 %v2315
        %v4005 = vunpack.c.l.b16 %v2316
        %v4006 = vunpack.c.l.b16 %v2317
        %v4007 = vunpack.c.l.b16 %v2318
        %v4008 = vunpack.c.l.b16 %v2319
        %v4009 = vunpack.c.l.b16 %v2320
        %v4010 = vunpack.c.l.b16 %v2321
        %v4011 = vunpack.c.l.b16 %v2322
        %v4012 = vunpack.c.l.b16 %v2323
        %v4013 = vunpack.c.l.b16 %v2324
        %v4014 = vunpack.c.l.b16 %v2325
        %v4015 = vunpack.c.l.b16 %v2326
        %v4016 = vunpack.c.l.b16 %v2327
        %v4017 = vunpack.c.l.b16 %v2328
        %v4018 = vunpack.c.l.b16 %v2329
        %v4019 = vunpack.c.l.b16 %v2330
        %v4020 = vunpack.c.l.b16 %v2331
        %v4021 = vunpack.c.l.b16 %v2332
        %v4022 = vunpack.c.l.b16 %v2333
        %v4023 = vunpack.c.l.b16 %v2334
        %v4024 = vunpack.c.l.b16 %v2335
        %v4025 = vunpack.c.l.b16 %v2336
        %v4026 = vunpack.c.l.b16 %v2337
        %v4027 = vunpack.c.l.b16 %v2338
        %v4028 = vunpack.c.l.b16 %v2339
        %v4029 = vunpack.c.l.b16 %v2340
        %v4030 = vunpack.c.l.b16 %v2341
        %v4031 = vunpack.c.l.b16 %v2342
        %v4032 = vunpack.c.l.b16 %v2343
        %v4033 = vunpack.c.l.b16 %v2344
        %v4034 = vunpack.c.l.b16 %v2345
        %v4035 = vunpack.c.l.b16 %v2346
        %v4036 = vunpack.c.l.b16 %v2347
        %v4037 = vunpack.c.l.b16 %v2348
        %v4038 = vunpack.c.l.b16 %v2349
        %v4039 = vunpack.c.l.b16 %v2350
        %v4040 = vunpack.c.l.b16 %v2351
        %v4041 = vunpack.c.l.b16 %v2352
        %v4042 = vunpack.c.l.b16 %v2353
        %v4043 = vunpack.c.l.b16 %v2354
        %v4044 = vunpack.c.l.b16 %v2355
        %v4045 = vunpack.c.l.b16 %v2356
        %v4046 = vunpack.c.l.b16 %v2357
        %v4047 = vunpack.c.l.b16 %v2358
        %v4048 = vunpack.c.l.b16 %v2359
        %v4049 = vunpack.c.l.b16 %v2360
        %v4050 = vunpack.c.l.b16 %v2361
        %v4051 = vunpack.c.l.b16 %v2362
        %v4052 = vunpack.c.l.b16 %v2363
        %v4053 = vunpack.c.l.b16 %v2364
        %v4054 = vunpack.c.l.b16 %v2365
        %v4055 = vunpack.c.l.b16 %v2366
        %v4056 = vunpack.c.l.b16 %v2367
        %v4057 = vunpack.c.l.b16 %v2368
        %v4058 = vunpack.c.l.b16 %v2369
        %v4059 = vunpack.c.l.b16 %v2370
        %v4060 = vunpack.c.l.b16 %v2371
        %v4061 = vunpack.c.l.b16 %v2372
        %v4062 = vunpack.c.l.b16 %v2373
        %v4063 = vunpack.c.l.b16 %v2374
        %v4064 = vunpack.c.l.b16 %v2375
        %v4065 = vunpack.c.l.b16 %v2376
        %v4066 = vunpack.c.l.b16 %v2377
        %v4067 = vunpack.c.l.b16 %v2378
        %v4068 = vunpack.c.l.b16 %v2379
        %v4069 = vunpack.c.l.b16 %v2380
        %v4070 = vunpack.c.l.b16 %v2381
        %v4071 = vunpack.c.l.b16 %v2382
        %v4072 = vunpack.c.l.b16 %v2383
        %v4073 = vunpack.c.l.b16 %v2384
        %v4074 = vunpack.c.l.b16 %v2385
        %v4075 = vunpack.c.l.b16 %v2386
        %v4076 = vunpack.c.l.b16 %v2387
        %v4077 = vunpack.c.l.b16 %v2388
        %v4078 = vunpack.c.l.b16 %v2389
        %v4079 = vunpack.c.l.b16 %v2390
        %v4080 = vunpack.c.l.b16 %v2391
        %v4081 = vunpack.c.l.b16 %v2392
        %v4082 = vunpack.c.l.b16 %v2393
        %v4083 = vunpack.c.l.b16 %v2394
        %v4084 = vunpack.c.l.b16 %v2395
        %v4085 = vunpack.c.l.b16 %v2396
        %v4086 = vunpack.c.l.b16 %v2397
        %v4087 = vunpack.c.l.b16 %v2398
        %v4088 = vunpack.c.l.b16 %v2399
        %v4089 = vunpack.c.l.b16 %v2400
        %v4090 = vunpack.c.l.b16 %v2401
        %v4091 = vunpack.c.l.b16 %v2402
        %v4092 = vunpack.c.l.b16 %v2403
        %v4093 = vunpack.c.l.b16 %v2404
        %v4094 = vunpack.c.l.b16 %v2405
        %v4095 = vunpack.c.l.b16 %v2406
        %v4096 = vunpack.c.l.b16 %v2407
        %v4097 = vunpack.c.l.b16 %v2408
        %v4098 = vunpack.c.l.b16 %v2409
        %v4099 = vunpack.c.l.b16 %v2410
        %v4100 = vunpack.c.l.b16 %v2411
        %v4101 = vunpack.c.l.b16 %v2412
        %v4102 = vunpack.c.l.b16 %v2413
        %v4103 = vunpack.c.l.b16 %v2414
        %v4104 = vunpack.c.l.b16 %v2415
        %v4105 = vunpack.c.l.b16 %v2416
        %v4106 = vunpack.c.l.b16 %v2417
        %v4107 = vunpack.c.l.b16 %v2418
        %v4108 = vunpack.c.l.b16 %v2419
        %v4109 = vunpack.c.l.b16 %v2420
        %v4110 = vunpack.c.l.b16 %v2421
        %v4111 = vunpack.c.l.b16 %v2422
        %v4112 = vunpack.c.l.b16 %v2423
        %v4113 = vunpack.c.l.b16 %v2424
        %v4114 = vunpack.c.l.b16 %v2425
        %v4115 = vunpack.c.l.b16 %v2426
        %v4116 = vunpack.c.l.b16 %v2427
        %v4117 = vunpack.c.l.b16 %v2428
        %v4118 = vunpack.c.l.b16 %v2429
        %v4119 = vunpack.c.l.b16 %v2430
        %v4120 = vunpack.c.l.b16 %v2431
        %v4121 = vunpack.c.l.b16 %v2432
        %v4122 = vunpack.c.l.b16 %v2433
        %v4123 = vunpack.c.l.b16 %v2434
        %v4124 = vunpack.c.l.b16 %v2435
        %v4125 = vunpack.c.l.b16 %v2436
        %v4126 = vunpack.c.l.b16 %v2437
        %v4127 = vunpack.c.l.b16 %v2438
        %v4128 = vpack.c.b16 %v3729, %v3728
        %v4129 = vpack.c.b16 %v3731, %v3730
        %v4130 = vpack.c.b16 %v3733, %v3732
        %v4131 = vpack.c.b16 %v3735, %v3734
        %v4132 = vpack.c.b16 %v3737, %v3736
        %v4133 = vpack.c.b16 %v3739, %v3738
        %v4134 = vpack.c.b16 %v3741, %v3740
        %v4135 = vpack.c.b16 %v3743, %v3742
        %v4136 = vpack.c.b16 %v3745, %v3744
        %v4137 = vpack.c.b16 %v3747, %v3746
        %v4138 = vpack.c.b16 %v3749, %v3748
        %v4139 = vpack.c.b16 %v3751, %v3750
        %v4140 = vpack.c.b16 %v3753, %v3752
        %v4141 = vpack.c.b16 %v3755, %v3754
        %v4142 = vpack.c.b16 %v3757, %v3756
        %v4143 = vpack.c.b16 %v3759, %v3758
        %v4144 = vpack.c.b16 %v3761, %v3760
        %v4145 = vpack.c.b16 %v3763, %v3762
        %v4146 = vpack.c.b16 %v3765, %v3764
        %v4147 = vpack.c.b16 %v3767, %v3766
        %v4148 = vpack.c.b16 %v3769, %v3768
        %v4149 = vpack.c.b16 %v3771, %v3770
        %v4150 = vpack.c.b16 %v3773, %v3772
        %v4151 = vpack.c.b16 %v3775, %v3774
        %v4152 = vpack.c.b16 %v3777, %v3776
        %v4153 = vpack.c.b16 %v3779, %v3778
        %v4154 = vpack.c.b16 %v3781, %v3780
        %v4155 = vpack.c.b16 %v3783, %v3782
        %v4156 = vpack.c.b16 %v3785, %v3784
        %v4157 = vpack.c.b16 %v3787, %v3786
        %v4158 = vpack.c.b16 %v3789, %v3788
        %v4159 = vpack.c.b16 %v3791, %v3790
        %v4160 = vpack.c.b16 %v3793, %v3792
        %v4161 = vpack.c.b16 %v3795, %v3794
        %v4162 = vpack.c.b16 %v3797, %v3796
        %v4163 = vpack.c.b16 %v3799, %v3798
        %v4164 = vpack.c.b16 %v3801, %v3800
        %v4165 = vpack.c.b16 %v3803, %v3802
        %v4166 = vpack.c.b16 %v3805, %v3804
        %v4167 = vpack.c.b16 %v3807, %v3806
        %v4168 = vpack.c.b16 %v3809, %v3808
        %v4169 = vpack.c.b16 %v3811, %v3810
        %v4170 = vpack.c.b16 %v3813, %v3812
        %v4171 = vpack.c.b16 %v3815, %v3814
        %v4172 = vpack.c.b16 %v3817, %v3816
        %v4173 = vpack.c.b16 %v3819, %v3818
        %v4174 = vpack.c.b16 %v3821, %v3820
        %v4175 = vpack.c.b16 %v3823, %v3822
        %v4176 = vpack.c.b16 %v3825, %v3824
        %v4177 = vpack.c.b16 %v3827, %v3826
        %v4178 = vpack.c.b16 %v3829, %v3828
        %v4179 = vpack.c.b16 %v3831, %v3830
        %v4180 = vpack.c.b16 %v3833, %v3832
        %v4181 = vpack.c.b16 %v3835, %v3834
        %v4182 = vpack.c.b16 %v3837, %v3836
        %v4183 = vpack.c.b16 %v3839, %v3838
        %v4184 = vpack.c.b16 %v3841, %v3840
        %v4185 = vpack.c.b16 %v3843, %v3842
        %v4186 = vpack.c.b16 %v3845, %v3844
        %v4187 = vpack.c.b16 %v3847, %v3846
        %v4188 = vpack.c.b16 %v3849, %v3848
        %v4189 = vpack.c.b16 %v3851, %v3850
        %v4190 = vpack.c.b16 %v3853, %v3852
        %v4191 = vpack.c.b16 %v3855, %v3854
        %v4192 = vpack.c.b16 %v3857, %v3856
        %v4193 = vpack.c.b16 %v3859, %v3858
        %v4194 = vpack.c.b16 %v3861, %v3860
        %v4195 = vpack.c.b16 %v3863, %v3862
        %v4196 = vpack.c.b16 %v3865, %v3864
        %v4197 = vpack.c.b16 %v3867, %v3866
        %v4198 = vpack.c.b16 %v3869, %v3868
        %v4199 = vpack.c.b16 %v3871, %v3870
        %v4200 = vpack.c.b16 %v3873, %v3872
        %v4201 = vpack.c.b16 %v3875, %v3874
        %v4202 = vpack.c.b16 %v3877, %v3876
        %v4203 = vpack.c.b16 %v3879, %v3878
        %v4204 = vpack.c.b16 %v3881, %v3880
        %v4205 = vpack.c.b16 %v3883, %v3882
        %v4206 = vpack.c.b16 %v3885, %v3884
        %v4207 = vpack.c.b16 %v3887, %v3886
        %v4208 = vpack.c.b16 %v3889, %v3888
        %v4209 = vpack.c.b16 %v3891, %v3890
        %v4210 = vpack.c.b16 %v3893, %v3892
        %v4211 = vpack.c.b16 %v3895, %v3894
        %v4212 = vpack.c.b16 %v3897, %v3896
        %v4213 = vpack.c.b16 %v3899, %v3898
        %v4214 = vpack.c.b16 %v3901, %v3900
        %v4215 = vpack.c.b16 %v3903, %v3902
        %v4216 = vpack.c.b16 %v3905, %v3904
        %v4217 = vpack.c.b16 %v3907, %v3906
        %v4218 = vpack.c.b16 %v3909, %v3908
        %v4219 = vpack.c.b16 %v3911, %v3910
        %v4220 = vpack.c.b16 %v3913, %v3912
        %v4221 = vpack.c.b16 %v3915, %v3914
        %v4222 = vpack.c.b16 %v3917, %v3916
        %v4223 = vpack.c.b16 %v3919, %v3918
        %v4224 = vpack.c.b16 %v3921, %v3920
        %v4225 = vpack.c.b16 %v3923, %v3922
        %v4226 = vpack.c.b16 %v3925, %v3924
        %v4227 = vpack.c.b16 %v3927, %v3926
        %v4228 = vpack.c.b16 %v3929, %v3928
        %v4229 = vpack.c.b16 %v3931, %v3930
        %v4230 = vpack.c.b16 %v3933, %v3932
        %v4231 = vpack.c.b16 %v3935, %v3934
        %v4232 = vpack.c.b16 %v3937, %v3936
        %v4233 = vpack.c.b16 %v3939, %v3938
        %v4234 = vpack.c.b16 %v3941, %v3940
        %v4235 = vpack.c.b16 %v3943, %v3942
        %v4236 = vpack.c.b16 %v3945, %v3944
        %v4237 = vpack.c.b16 %v3947, %v3946
        %v4238 = vpack.c.b16 %v3949, %v3948
        %v4239 = vpack.c.b16 %v3951, %v3950
        %v4240 = vpack.c.b16 %v3953, %v3952
        %v4241 = vpack.c.b16 %v3955, %v3954
        %v4242 = vpack.c.b16 %v3957, %v3956
        %v4243 = vpack.c.b16 %v3959, %v3958
        %v4244 = vpack.c.b16 %v3961, %v3960
        %v4245 = vpack.c.b16 %v3963, %v3962
        %v4246 = vpack.c.b16 %v3965, %v3964
        %v4247 = vpack.c.b16 %v3967, %v3966
        %v4248 = vpack.c.b16 %v3969, %v3968
        %v4249 = vpack.c.b16 %v3971, %v3970
        %v4250 = vpack.c.b16 %v3973, %v3972
        %v4251 = vpack.c.b16 %v3975, %v3974
        %v4252 = vpack.c.b16 %v3977, %v3976
        %v4253 = vpack.c.b16 %v3979, %v3978
        %v4254 = vpack.c.b16 %v3981, %v3980
        %v4255 = vpack.c.b16 %v3983, %v3982
        %v4256 = vpack.c.b16 %v3985, %v3984
        %v4257 = vpack.c.b16 %v3987, %v3986
        %v4258 = vpack.c.b16 %v3989, %v3988
        %v4259 = vpack.c.b16 %v3991, %v3990
        %v4260 = vpack.c.b16 %v3993, %v3992
        %v4261 = vpack.c.b16 %v3995, %v3994
        %v4262 = vpack.c.b16 %v3997, %v3996
        %v4263 = vpack.c.b16 %v3999, %v3998
        %v4264 = vpack.c.b16 %v4001, %v4000
        %v4265 = vpack.c.b16 %v4003, %v4002
        %v4266 = vpack.c.b16 %v4005, %v4004
        %v4267 = vpack.c.b16 %v4007, %v4006
        %v4268 = vpack.c.b16 %v4009, %v4008
        %v4269 = vpack.c.b16 %v4011, %v4010
        %v4270 = vpack.c.b16 %v4013, %v4012
        %v4271 = vpack.c.b16 %v4015, %v4014
        %v4272 = vpack.c.b16 %v4017, %v4016
        %v4273 = vpack.c.b16 %v4019, %v4018
        %v4274 = vpack.c.b16 %v4021, %v4020
        %v4275 = vpack.c.b16 %v4023, %v4022
        %v4276 = vpack.c.b16 %v4025, %v4024
        %v4277 = vpack.c.b16 %v4027, %v4026
        %v4278 = vpack.c.b16 %v4029, %v4028
        %v4279 = vpack.c.b16 %v4031, %v4030
        %v4280 = vpack.c.b16 %v4033, %v4032
        %v4281 = vpack.c.b16 %v4035, %v4034
        %v4282 = vpack.c.b16 %v4037, %v4036
        %v4283 = vpack.c.b16 %v4039, %v4038
        %v4284 = vpack.c.b16 %v4041, %v4040
        %v4285 = vpack.c.b16 %v4043, %v4042
        %v4286 = vpack.c.b16 %v4045, %v4044
        %v4287 = vpack.c.b16 %v4047, %v4046
        %v4288 = vpack.c.b16 %v4049, %v4048
        %v4289 = vpack.c.b16 %v4051, %v4050
        %v4290 = vpack.c.b16 %v4053, %v4052
        %v4291 = vpack.c.b16 %v4055, %v4054
        %v4292 = vpack.c.b16 %v4057, %v4056
        %v4293 = vpack.c.b16 %v4059, %v4058
        %v4294 = vpack.c.b16 %v4061, %v4060
        %v4295 = vpack.c.b16 %v4063, %v4062
        %v4296 = vpack.c.b16 %v4065, %v4064
        %v4297 = vpack.c.b16 %v4067, %v4066
        %v4298 = vpack.c.b16 %v4069, %v4068
        %v4299 = vpack.c.b16 %v4071, %v4070
        %v4300 = vpack.c.b16 %v4073, %v4072
        %v4301 = vpack.c.b16 %v4075, %v4074
        %v4302 = vpack.c.b16 %v4077, %v4076
        %v4303 = vpack.c.b16 %v4079, %v4078
        %v4304 = vpack.c.b16 %v4081, %v4080
        %v4305 = vpack.c.b16 %v4083, %v4082
        %v4306 = vpack.c.b16 %v4085, %v4084
        %v4307 = vpack.c.b16 %v4087, %v4086
        %v4308 = vpack.c.b16 %v4089, %v4088
        %v4309 = vpack.c.b16 %v4091, %v4090
        %v4310 = vpack.c.b16 %v4093, %v4092
        %v4311 = vpack.c.b16 %v4095, %v4094
        %v4312 = vpack.c.b16 %v4097, %v4096
        %v4313 = vpack.c.b16 %v4099, %v4098
        %v4314 = vpack.c.b16 %v4101, %v4100
        %v4315 = vpack.c.b16 %v4103, %v4102
        %v4316 = vpack.c.b16 %v4105, %v4104
        %v4317 = vpack.c.b16 %v4107, %v4106
        %v4318 = vpack.c.b16 %v4109, %v4108
        %v4319 = vpack.c.b16 %v4111, %v4110
        %v4320 = vpack.c.b16 %v4113, %v4112
        %v4321 = vpack.c.b16 %v4115, %v4114
        %v4322 = vpack.c.b16 %v4117, %v4116
        %v4323 = vpack.c.b16 %v4119, %v4118
        %v4324 = vpack.c.b16 %v4121, %v4120
        %v4325 = vpack.c.b16 %v4123, %v4122
        %v4326 = vpack.c.b16 %v4125, %v4124
        %v4327 = vpack.c.b16 %v4127, %v4126
        %4528 = vmatprep.subr.bf16.mxu0 0
        %4529 = vmatpush1.bf16.msra.mxu0 %v4128
        %4530 = vmatprep.subr.bf16.mxu0 0
        %4531 = vmatpush1.bf16.msra.mxu0 %v4129
        %4532 = vmatprep.subr.bf16.mxu0 0
        %4533 = vmatpush1.bf16.msra.mxu0 %v4130
        %4534 = vmatprep.subr.bf16.mxu0 0
        %4535 = vmatpush1.bf16.msra.mxu0 %v4131
        %4536 = vmatprep.subr.bf16.mxu0 0
        %4537 = vmatpush1.bf16.msra.mxu0 %v4132
        %4538 = vmatprep.subr.bf16.mxu0 0
        %4539 = vmatpush1.bf16.msra.mxu0 %v4133
        %4540 = vmatprep.subr.bf16.mxu0 0
        %4541 = vmatpush1.bf16.msra.mxu0 %v4134
        %4542 = vmatprep.subr.bf16.mxu0 0
        %4543 = vmatpush1.bf16.msra.mxu0 %v4135
        %4544 = vmatprep.subr.bf16.mxu0 0
        %4545 = vmatpush1.bf16.msra.mxu0 %v4136
        %4546 = vmatprep.subr.bf16.mxu0 0
        %4547 = vmatpush1.bf16.msra.mxu0 %v4137
        %4548 = vmatprep.subr.bf16.mxu0 0
        %4549 = vmatpush1.bf16.msra.mxu0 %v4138
        %4550 = vmatprep.subr.bf16.mxu0 0
        %4551 = vmatpush1.bf16.msra.mxu0 %v4139
        %4552 = vmatprep.subr.bf16.mxu0 0
        %4553 = vmatpush1.bf16.msra.mxu0 %v4140
        %4554 = vmatprep.subr.bf16.mxu0 0
        %4555 = vmatpush1.bf16.msra.mxu0 %v4141
        %4556 = vmatprep.subr.bf16.mxu0 0
        %4557 = vmatpush1.bf16.msra.mxu0 %v4142
        %4558 = vmatprep.subr.bf16.mxu0 0
        %4559 = vmatpush1.bf16.msra.mxu0 %v4143
        %4560 = vmatprep.mubr.bf16.mxu0 %v2979
        %4561 = vmatmul.mubr.bf16.gmra.mrb[0].mxu0 %v2978
        %v4562 = vpop.f32.mrb[0].mxu0
        %v4563 = vadd.f32 %v2444, %v4562
        %v4564 = vpop.f32.mrb[0].mxu0
        %v4565 = vpop.f32.mrb[0].mxu0
        %v4566 = vadd.f32 %v2444, %v4565
        %v4567 = vpop.f32.mrb[0].mxu0
        %4568 = vmatprep.mubr.bf16.mxu0 %v3004
        %4569 = vmatmul.mubr.bf16.gmra.mrb[0].mxu0 %v3003
        %v4570 = vpop.f32.mrb[0].mxu0
        %v4571 = vadd.f32 %v2444, %v4570
        %v4572 = vpop.f32.mrb[0].mxu0
        %v4573 = vpop.f32.mrb[0].mxu0
        %v4574 = vadd.f32 %v2444, %v4573
        %v4575 = vpop.f32.mrb[0].mxu0
        %4576 = vmatprep.mubr.bf16.mxu0 %v3029
        %4577 = vmatmul.mubr.bf16.gmra.mrb[0].mxu0 %v3028
        %v4578 = vpop.f32.mrb[0].mxu0
        %v4579 = vadd.f32 %v2444, %v4578
        %v4580 = vpop.f32.mrb[0].mxu0
        %v4581 = vpop.f32.mrb[0].mxu0
        %v4582 = vadd.f32 %v2444, %v4581
        %v4583 = vpop.f32.mrb[0].mxu0
        %4584 = vmatprep.mubr.bf16.mxu0 %v3054
        %4585 = vmatmul.mubr.bf16.gmra.mrb[0].mxu0 %v3053
        %v4586 = vpop.f32.mrb[0].mxu0
        %v4587 = vadd.f32 %v2444, %v4586
        %v4588 = vpop.f32.mrb[0].mxu0
        %v4589 = vpop.f32.mrb[0].mxu0
        %v4590 = vadd.f32 %v2444, %v4589
        %v4591 = vpop.f32.mrb[0].mxu0
        %4592 = vmatprep.mubr.bf16.mxu0 %v3079
        %4593 = vmatmul.mubr.bf16.gmra.mrb[0].mxu0 %v3078
        %v4594 = vpop.f32.mrb[0].mxu0
        %v4595 = vadd.f32 %v2444, %v4594
        %v4596 = vpop.f32.mrb[0].mxu0
        %v4597 = vpop.f32.mrb[0].mxu0
        %v4598 = vadd.f32 %v2444, %v4597
        %v4599 = vpop.f32.mrb[0].mxu0
        %4600 = vmatprep.mubr.bf16.mxu0 %v3104
        %4601 = vmatmul.mubr.bf16.gmra.mrb[0].mxu0 %v3103
        %v4602 = vpop.f32.mrb[0].mxu0
        %v4603 = vadd.f32 %v2444, %v4602
        %v4604 = vpop.f32.mrb[0].mxu0
        %v4605 = vpop.f32.mrb[0].mxu0
        %v4606 = vadd.f32 %v2444, %v4605
        %v4607 = vpop.f32.mrb[0].mxu0
        %4608 = vmatprep.mubr.bf16.mxu0 %v3129
        %4609 = vmatmul.mubr.bf16.gmra.mrb[0].mxu0 %v3128
        %v4610 = vpop.f32.mrb[0].mxu0
        %v4611 = vadd.f32 %v2444, %v4610
        %v4612 = vpop.f32.mrb[0].mxu0
        %v4613 = vpop.f32.mrb[0].mxu0
        %v4614 = vadd.f32 %v2444, %v4613
        %v4615 = vpop.f32.mrb[0].mxu0
        %4616 = vdwg.mxu0
        %4617 = vmatprep.subr.bf16.mxu0 0
        %4618 = vmatpush1.bf16.msra.mxu0 %v4144
        %4619 = vmatprep.subr.bf16.mxu0 0
        %4620 = vmatpush1.bf16.msra.mxu0 %v4145
        %4621 = vmatprep.subr.bf16.mxu0 0
        %4622 = vmatpush1.bf16.msra.mxu0 %v4146
        %4623 = vmatprep.subr.bf16.mxu0 0
        %4624 = vmatpush1.bf16.msra.mxu0 %v4147
        %4625 = vmatprep.subr.bf16.mxu0 0
        %4626 = vmatpush1.bf16.msra.mxu0 %v4148
        %4627 = vmatprep.subr.bf16.mxu0 0
        %4628 = vmatpush1.bf16.msra.mxu0 %v4149
        %4629 = vmatprep.subr.bf16.mxu0 0
        %4630 = vmatpush1.bf16.msra.mxu0 %v4150
        %4631 = vmatprep.subr.bf16.mxu0 0
        %4632 = vmatpush1.bf16.msra.mxu0 %v4151
        %4633 = vmatprep.subr.bf16.mxu0 0
        %4634 = vmatpush1.bf16.msra.mxu0 %v4152
        %4635 = vmatprep.subr.bf16.mxu0 0
        %4636 = vmatpush1.bf16.msra.mxu0 %v4153
        %4637 = vmatprep.subr.bf16.mxu0 0
        %4638 = vmatpush1.bf16.msra.mxu0 %v4154
        %4639 = vmatprep.subr.bf16.mxu0 0
        %4640 = vmatpush1.bf16.msra.mxu0 %v4155
        %4641 = vmatprep.subr.bf16.mxu0 0
        %4642 = vmatpush1.bf16.msra.mxu0 %v4156
        %4643 = vmatprep.subr.bf16.mxu0 0
        %4644 = vmatpush1.bf16.msra.mxu0 %v4157
        %4645 = vmatprep.subr.bf16.mxu0 0
        %4646 = vmatpush1.bf16.msra.mxu0 %v4158
        %4647 = vmatprep.subr.bf16.mxu0 0
        %4648 = vmatpush1.bf16.msra.mxu0 %v4159
        %4649 = vmatprep.mubr.bf16.mxu0 %v2981
        %4650 = vmatmul.mubr.bf16.gmra.mrb[0].mxu0 %v2980
        %v4651 = vpop.f32.mrb[0].mxu0
        %v4652 = vadd.f32 %v4563, %v4651
        %v4653 = vpop.f32.mrb[0].mxu0
        %v4654 = vpop.f32.mrb[0].mxu0
        %v4655 = vadd.f32 %v4566, %v4654
        %v4656 = vpop.f32.mrb[0].mxu0
        %4657 = vmatprep.mubr.bf16.mxu0 %v3006
        %4658 = vmatmul.mubr.bf16.gmra.mrb[0].mxu0 %v3005
        %v4659 = vpop.f32.mrb[0].mxu0
        %v4660 = vadd.f32 %v4571, %v4659
        %v4661 = vpop.f32.mrb[0].mxu0
        %v4662 = vpop.f32.mrb[0].mxu0
        %v4663 = vadd.f32 %v4574, %v4662
        %v4664 = vpop.f32.mrb[0].mxu0
        %4665 = vmatprep.mubr.bf16.mxu0 %v3031
        %4666 = vmatmul.mubr.bf16.gmra.mrb[0].mxu0 %v3030
        %v4667 = vpop.f32.mrb[0].mxu0
        %v4668 = vadd.f32 %v4579, %v4667
        %v4669 = vpop.f32.mrb[0].mxu0
        %v4670 = vpop.f32.mrb[0].mxu0
        %v4671 = vadd.f32 %v4582, %v4670
        %v4672 = vpop.f32.mrb[0].mxu0
        %4673 = vmatprep.mubr.bf16.mxu0 %v3056
        %4674 = vmatmul.mubr.bf16.gmra.mrb[0].mxu0 %v3055
        %v4675 = vpop.f32.mrb[0].mxu0
        %v4676 = vadd.f32 %v4587, %v4675
        %v4677 = vpop.f32.mrb[0].mxu0
        %v4678 = vpop.f32.mrb[0].mxu0
        %v4679 = vadd.f32 %v4590, %v4678
        %v4680 = vpop.f32.mrb[0].mxu0
        %4681 = vmatprep.mubr.bf16.mxu0 %v3081
        %4682 = vmatmul.mubr.bf16.gmra.mrb[0].mxu0 %v3080
        %v4683 = vpop.f32.mrb[0].mxu0
        %v4684 = vadd.f32 %v4595, %v4683
        %v4685 = vpop.f32.mrb[0].mxu0
        %v4686 = vpop.f32.mrb[0].mxu0
        %v4687 = vadd.f32 %v4598, %v4686
        %v4688 = vpop.f32.mrb[0].mxu0
        %4689 = vmatprep.mubr.bf16.mxu0 %v3106
        %4690 = vmatmul.mubr.bf16.gmra.mrb[0].mxu0 %v3105
        %v4691 = vpop.f32.mrb[0].mxu0
        %v4692 = vadd.f32 %v4603, %v4691
        %v4693 = vpop.f32.mrb[0].mxu0
        %v4694 = vpop.f32.mrb[0].mxu0
        %v4695 = vadd.f32 %v4606, %v4694
        %v4696 = vpop.f32.mrb[0].mxu0
        %4697 = vmatprep.mubr.bf16.mxu0 %v3131
        %4698 = vmatmul.mubr.bf16.gmra.mrb[0].mxu0 %v3130
        %v4699 = vpop.f32.mrb[0].mxu0
        %v4700 = vadd.f32 %v4611, %v4699
        %v4701 = vpop.f32.mrb[0].mxu0
        %v4702 = vpop.f32.mrb[0].mxu0
        %v4703 = vadd.f32 %v4614, %v4702
        %v4704 = vpop.f32.mrb[0].mxu0
        %4705 = vdwg.mxu0
        %4706 = vmatprep.subr.bf16.mxu0 0
        %4707 = vmatpush1.bf16.msra.mxu0 %v4160
        %4708 = vmatprep.subr.bf16.mxu0 0
        %4709 = vmatpush1.bf16.msra.mxu0 %v4161
        %4710 = vmatprep.subr.bf16.mxu0 0
        %4711 = vmatpush1.bf16.msra.mxu0 %v4162
        %4712 = vmatprep.subr.bf16.mxu0 0
        %4713 = vmatpush1.bf16.msra.mxu0 %v4163
        %4714 = vmatprep.subr.bf16.mxu0 0
        %4715 = vmatpush1.bf16.msra.mxu0 %v4164
        %4716 = vmatprep.subr.bf16.mxu0 0
        %4717 = vmatpush1.bf16.msra.mxu0 %v4165
        %4718 = vmatprep.subr.bf16.mxu0 0
        %4719 = vmatpush1.bf16.msra.mxu0 %v4166
        %4720 = vmatprep.subr.bf16.mxu0 0
        %4721 = vmatpush1.bf16.msra.mxu0 %v4167
        %4722 = vmatprep.subr.bf16.mxu0 0
        %4723 = vmatpush1.bf16.msra.mxu0 %v4168
        %4724 = vmatprep.subr.bf16.mxu0 0
        %4725 = vmatpush1.bf16.msra.mxu0 %v4169
        %4726 = vmatprep.subr.bf16.mxu0 0
        %4727 = vmatpush1.bf16.msra.mxu0 %v4170
        %4728 = vmatprep.subr.bf16.mxu0 0
        %4729 = vmatpush1.bf16.msra.mxu0 %v4171
        %4730 = vmatprep.subr.bf16.mxu0 0
        %4731 = vmatpush1.bf16.msra.mxu0 %v4172
        %4732 = vmatprep.subr.bf16.mxu0 0
        %4733 = vmatpush1.bf16.msra.mxu0 %v4173
        %4734 = vmatprep.subr.bf16.mxu0 0
        %4735 = vmatpush1.bf16.msra.mxu0 %v4174
        %4736 = vmatprep.subr.bf16.mxu0 0
        %4737 = vmatpush1.bf16.msra.mxu0 %v4175
        %4738 = vmatprep.mubr.bf16.mxu0 %v2983
        %4739 = vmatmul.mubr.bf16.gmra.mrb[0].mxu0 %v2982
        %v4740 = vpop.f32.mrb[0].mxu0
        %v4741 = vadd.f32 %v4652, %v4740
        %v4742 = vpop.f32.mrb[0].mxu0
        %v4743 = vpop.f32.mrb[0].mxu0
        %v4744 = vadd.f32 %v4655, %v4743
        %v4745 = vpop.f32.mrb[0].mxu0
        %4746 = vmatprep.mubr.bf16.mxu0 %v3008
        %4747 = vmatmul.mubr.bf16.gmra.mrb[0].mxu0 %v3007
        %v4748 = vpop.f32.mrb[0].mxu0
        %v4749 = vadd.f32 %v4660, %v4748
        %v4750 = vpop.f32.mrb[0].mxu0
        %v4751 = vpop.f32.mrb[0].mxu0
        %v4752 = vadd.f32 %v4663, %v4751
        %v4753 = vpop.f32.mrb[0].mxu0
        %4754 = vmatprep.mubr.bf16.mxu0 %v3033
        %4755 = vmatmul.mubr.bf16.gmra.mrb[0].mxu0 %v3032
        %v4756 = vpop.f32.mrb[0].mxu0
        %v4757 = vadd.f32 %v4668, %v4756
        %v4758 = vpop.f32.mrb[0].mxu0
        %v4759 = vpop.f32.mrb[0].mxu0
        %v4760 = vadd.f32 %v4671, %v4759
        %v4761 = vpop.f32.mrb[0].mxu0
        %4762 = vmatprep.mubr.bf16.mxu0 %v3058
        %4763 = vmatmul.mubr.bf16.gmra.mrb[0].mxu0 %v3057
        %v4764 = vpop.f32.mrb[0].mxu0
        %v4765 = vadd.f32 %v4676, %v4764
        %v4766 = vpop.f32.mrb[0].mxu0
        %v4767 = vpop.f32.mrb[0].mxu0
        %v4768 = vadd.f32 %v4679, %v4767
        %v4769 = vpop.f32.mrb[0].mxu0
        %4770 = vmatprep.mubr.bf16.mxu0 %v3083
        %4771 = vmatmul.mubr.bf16.gmra.mrb[0].mxu0 %v3082
        %v4772 = vpop.f32.mrb[0].mxu0
        %v4773 = vadd.f32 %v4684, %v4772
        %v4774 = vpop.f32.mrb[0].mxu0
        %v4775 = vpop.f32.mrb[0].mxu0
        %v4776 = vadd.f32 %v4687, %v4775
        %v4777 = vpop.f32.mrb[0].mxu0
        %4778 = vmatprep.mubr.bf16.mxu0 %v3108
        %4779 = vmatmul.mubr.bf16.gmra.mrb[0].mxu0 %v3107
        %v4780 = vpop.f32.mrb[0].mxu0
        %v4781 = vadd.f32 %v4692, %v4780
        %v4782 = vpop.f32.mrb[0].mxu0
        %v4783 = vpop.f32.mrb[0].mxu0
        %v4784 = vadd.f32 %v4695, %v4783
        %v4785 = vpop.f32.mrb[0].mxu0
        %4786 = vmatprep.mubr.bf16.mxu0 %v3133
        %4787 = vmatmul.mubr.bf16.gmra.mrb[0].mxu0 %v3132
        %v4788 = vpop.f32.mrb[0].mxu0
        %v4789 = vadd.f32 %v4700, %v4788
        %v4790 = vpop.f32.mrb[0].mxu0
        %v4791 = vpop.f32.mrb[0].mxu0
        %v4792 = vadd.f32 %v4703, %v4791
        %v4793 = vpop.f32.mrb[0].mxu0
        %4794 = vdwg.mxu0
        %4795 = vmatprep.subr.bf16.mxu0 0
        %4796 = vmatpush1.bf16.msra.mxu0 %v4176
        %4797 = vmatprep.subr.bf16.mxu0 0
        %4798 = vmatpush1.bf16.msra.mxu0 %v4177
        %4799 = vmatprep.subr.bf16.mxu0 0
        %4800 = vmatpush1.bf16.msra.mxu0 %v4178
        %4801 = vmatprep.subr.bf16.mxu0 0
        %4802 = vmatpush1.bf16.msra.mxu0 %v4179
        %4803 = vmatprep.subr.bf16.mxu0 0
        %4804 = vmatpush1.bf16.msra.mxu0 %v4180
        %4805 = vmatprep.subr.bf16.mxu0 0
        %4806 = vmatpush1.bf16.msra.mxu0 %v4181
        %4807 = vmatprep.subr.bf16.mxu0 0
        %4808 = vmatpush1.bf16.msra.mxu0 %v4182
        %4809 = vmatprep.subr.bf16.mxu0 0
        %4810 = vmatpush1.bf16.msra.mxu0 %v4183
        %4811 = vmatprep.subr.bf16.mxu0 0
        %4812 = vmatpush1.bf16.msra.mxu0 %v4184
        %4813 = vmatprep.subr.bf16.mxu0 0
        %4814 = vmatpush1.bf16.msra.mxu0 %v4185
        %4815 = vmatprep.subr.bf16.mxu0 0
        %4816 = vmatpush1.bf16.msra.mxu0 %v4186
        %4817 = vmatprep.subr.bf16.mxu0 0
        %4818 = vmatpush1.bf16.msra.mxu0 %v4187
        %4819 = vmatprep.subr.bf16.mxu0 0
        %4820 = vmatpush1.bf16.msra.mxu0 %v4188
        %4821 = vmatprep.subr.bf16.mxu0 0
        %4822 = vmatpush1.bf16.msra.mxu0 %v4189
        %4823 = vmatprep.subr.bf16.mxu0 0
        %4824 = vmatpush1.bf16.msra.mxu0 %v4190
        %4825 = vmatprep.subr.bf16.mxu0 0
        %4826 = vmatpush1.bf16.msra.mxu0 %v4191
        %4827 = vmatprep.mubr.bf16.mxu0 %v2985
        %4828 = vmatmul.mubr.bf16.gmra.mrb[0].mxu0 %v2984
        %v4829 = vpop.f32.mrb[0].mxu0
        %v4830 = vadd.f32 %v4741, %v4829
        %v4831 = vpop.f32.mrb[0].mxu0
        %v4832 = vpop.f32.mrb[0].mxu0
        %v4833 = vadd.f32 %v4744, %v4832
        %v4834 = vpop.f32.mrb[0].mxu0
        %4835 = vmatprep.mubr.bf16.mxu0 %v3010
        %4836 = vmatmul.mubr.bf16.gmra.mrb[0].mxu0 %v3009
        %v4837 = vpop.f32.mrb[0].mxu0
        %v4838 = vadd.f32 %v4749, %v4837
        %v4839 = vpop.f32.mrb[0].mxu0
        %v4840 = vpop.f32.mrb[0].mxu0
        %v4841 = vadd.f32 %v4752, %v4840
        %v4842 = vpop.f32.mrb[0].mxu0
        %4843 = vmatprep.mubr.bf16.mxu0 %v3035
        %4844 = vmatmul.mubr.bf16.gmra.mrb[0].mxu0 %v3034
        %v4845 = vpop.f32.mrb[0].mxu0
        %v4846 = vadd.f32 %v4757, %v4845
        %v4847 = vpop.f32.mrb[0].mxu0
        %v4848 = vpop.f32.mrb[0].mxu0
        %v4849 = vadd.f32 %v4760, %v4848
        %v4850 = vpop.f32.mrb[0].mxu0
        %4851 = vmatprep.mubr.bf16.mxu0 %v3060
        %4852 = vmatmul.mubr.bf16.gmra.mrb[0].mxu0 %v3059
        %v4853 = vpop.f32.mrb[0].mxu0
        %v4854 = vadd.f32 %v4765, %v4853
        %v4855 = vpop.f32.mrb[0].mxu0
        %v4856 = vpop.f32.mrb[0].mxu0
        %v4857 = vadd.f32 %v4768, %v4856
        %v4858 = vpop.f32.mrb[0].mxu0
        %4859 = vmatprep.mubr.bf16.mxu0 %v3085
        %4860 = vmatmul.mubr.bf16.gmra.mrb[0].mxu0 %v3084
        %v4861 = vpop.f32.mrb[0].mxu0
        %v4862 = vadd.f32 %v4773, %v4861
        %v4863 = vpop.f32.mrb[0].mxu0
        %v4864 = vpop.f32.mrb[0].mxu0
        %v4865 = vadd.f32 %v4776, %v4864
        %v4866 = vpop.f32.mrb[0].mxu0
        %4867 = vmatprep.mubr.bf16.mxu0 %v3110
        %4868 = vmatmul.mubr.bf16.gmra.mrb[0].mxu0 %v3109
        %v4869 = vpop.f32.mrb[0].mxu0
        %v4870 = vadd.f32 %v4781, %v4869
        %v4871 = vpop.f32.mrb[0].mxu0
        %v4872 = vpop.f32.mrb[0].mxu0
        %v4873 = vadd.f32 %v4784, %v4872
        %v4874 = vpop.f32.mrb[0].mxu0
        %4875 = vmatprep.mubr.bf16.mxu0 %v3135
        %4876 = vmatmul.mubr.bf16.gmra.mrb[0].mxu0 %v3134
        %v4877 = vpop.f32.mrb[0].mxu0
        %v4878 = vadd.f32 %v4789, %v4877
        %v4879 = vpop.f32.mrb[0].mxu0
        %v4880 = vpop.f32.mrb[0].mxu0
        %v4881 = vadd.f32 %v4792, %v4880
        %v4882 = vpop.f32.mrb[0].mxu0
        %4883 = vdwg.mxu0
        %4884 = vmatprep.subr.bf16.mxu0 0
        %4885 = vmatpush1.bf16.msra.mxu0 %v4192
        %4886 = vmatprep.subr.bf16.mxu0 0
        %4887 = vmatpush1.bf16.msra.mxu0 %v4193
        %4888 = vmatprep.subr.bf16.mxu0 0
        %4889 = vmatpush1.bf16.msra.mxu0 %v4194
        %4890 = vmatprep.subr.bf16.mxu0 0
        %4891 = vmatpush1.bf16.msra.mxu0 %v4195
        %4892 = vmatprep.subr.bf16.mxu0 0
        %4893 = vmatpush1.bf16.msra.mxu0 %v4196
        %4894 = vmatprep.subr.bf16.mxu0 0
        %4895 = vmatpush1.bf16.msra.mxu0 %v4197
        %4896 = vmatprep.subr.bf16.mxu0 0
        %4897 = vmatpush1.bf16.msra.mxu0 %v4198
        %4898 = vmatprep.subr.bf16.mxu0 0
        %4899 = vmatpush1.bf16.msra.mxu0 %v4199
        %4900 = vmatprep.subr.bf16.mxu0 0
        %4901 = vmatpush1.bf16.msra.mxu0 %v4200
        %4902 = vmatprep.subr.bf16.mxu0 0
        %4903 = vmatpush1.bf16.msra.mxu0 %v4201
        %4904 = vmatprep.subr.bf16.mxu0 0
        %4905 = vmatpush1.bf16.msra.mxu0 %v4202
        %4906 = vmatprep.subr.bf16.mxu0 0
        %4907 = vmatpush1.bf16.msra.mxu0 %v4203
        %4908 = vmatprep.subr.bf16.mxu0 0
        %4909 = vmatpush1.bf16.msra.mxu0 %v4204
        %4910 = vmatprep.subr.bf16.mxu0 0
        %4911 = vmatpush1.bf16.msra.mxu0 %v4205
        %4912 = vmatprep.subr.bf16.mxu0 0
        %4913 = vmatpush1.bf16.msra.mxu0 %v4206
        %4914 = vmatprep.subr.bf16.mxu0 0
        %4915 = vmatpush1.bf16.msra.mxu0 %v4207
        %4916 = vmatprep.mubr.bf16.mxu0 %v2987
        %4917 = vmatmul.mubr.bf16.gmra.mrb[0].mxu0 %v2986
        %v4918 = vpop.f32.mrb[0].mxu0
        %v4919 = vadd.f32 %v4830, %v4918
        %v4920 = vpop.f32.mrb[0].mxu0
        %v4921 = vpop.f32.mrb[0].mxu0
        %v4922 = vadd.f32 %v4833, %v4921
        %v4923 = vpop.f32.mrb[0].mxu0
        %4924 = vmatprep.mubr.bf16.mxu0 %v3012
        %4925 = vmatmul.mubr.bf16.gmra.mrb[0].mxu0 %v3011
        %v4926 = vpop.f32.mrb[0].mxu0
        %v4927 = vadd.f32 %v4838, %v4926
        %v4928 = vpop.f32.mrb[0].mxu0
        %v4929 = vpop.f32.mrb[0].mxu0
        %v4930 = vadd.f32 %v4841, %v4929
        %v4931 = vpop.f32.mrb[0].mxu0
        %4932 = vmatprep.mubr.bf16.mxu0 %v3037
        %4933 = vmatmul.mubr.bf16.gmra.mrb[0].mxu0 %v3036
        %v4934 = vpop.f32.mrb[0].mxu0
        %v4935 = vadd.f32 %v4846, %v4934
        %v4936 = vpop.f32.mrb[0].mxu0
        %v4937 = vpop.f32.mrb[0].mxu0
        %v4938 = vadd.f32 %v4849, %v4937
        %v4939 = vpop.f32.mrb[0].mxu0
        %4940 = vmatprep.mubr.bf16.mxu0 %v3062
        %4941 = vmatmul.mubr.bf16.gmra.mrb[0].mxu0 %v3061
        %v4942 = vpop.f32.mrb[0].mxu0
        %v4943 = vadd.f32 %v4854, %v4942
        %v4944 = vpop.f32.mrb[0].mxu0
        %v4945 = vpop.f32.mrb[0].mxu0
        %v4946 = vadd.f32 %v4857, %v4945
        %v4947 = vpop.f32.mrb[0].mxu0
        %4948 = vmatprep.mubr.bf16.mxu0 %v3087
        %4949 = vmatmul.mubr.bf16.gmra.mrb[0].mxu0 %v3086
        %v4950 = vpop.f32.mrb[0].mxu0
        %v4951 = vadd.f32 %v4862, %v4950
        %v4952 = vpop.f32.mrb[0].mxu0
        %v4953 = vpop.f32.mrb[0].mxu0
        %v4954 = vadd.f32 %v4865, %v4953
        %v4955 = vpop.f32.mrb[0].mxu0
        %4956 = vmatprep.mubr.bf16.mxu0 %v3112
        %4957 = vmatmul.mubr.bf16.gmra.mrb[0].mxu0 %v3111
        %v4958 = vpop.f32.mrb[0].mxu0
        %v4959 = vadd.f32 %v4870, %v4958
        %v4960 = vpop.f32.mrb[0].mxu0
        %v4961 = vpop.f32.mrb[0].mxu0
        %v4962 = vadd.f32 %v4873, %v4961
        %v4963 = vpop.f32.mrb[0].mxu0
        %4964 = vmatprep.mubr.bf16.mxu0 %v3137
        %4965 = vmatmul.mubr.bf16.gmra.mrb[0].mxu0 %v3136
        %v4966 = vpop.f32.mrb[0].mxu0
        %v4967 = vadd.f32 %v4878, %v4966
        %v4968 = vpop.f32.mrb[0].mxu0
        %v4969 = vpop.f32.mrb[0].mxu0
        %v4970 = vadd.f32 %v4881, %v4969
        %v4971 = vpop.f32.mrb[0].mxu0
        %4972 = vdwg.mxu0
        %4973 = vmatprep.subr.bf16.mxu0 0
        %4974 = vmatpush1.bf16.msra.mxu0 %v4208
        %4975 = vmatprep.subr.bf16.mxu0 0
        %4976 = vmatpush1.bf16.msra.mxu0 %v4209
        %4977 = vmatprep.subr.bf16.mxu0 0
        %4978 = vmatpush1.bf16.msra.mxu0 %v4210
        %4979 = vmatprep.subr.bf16.mxu0 0
        %4980 = vmatpush1.bf16.msra.mxu0 %v4211
        %4981 = vmatprep.subr.bf16.mxu0 0
        %4982 = vmatpush1.bf16.msra.mxu0 %v4212
        %4983 = vmatprep.subr.bf16.mxu0 0
        %4984 = vmatpush1.bf16.msra.mxu0 %v4213
        %4985 = vmatprep.subr.bf16.mxu0 0
        %4986 = vmatpush1.bf16.msra.mxu0 %v4214
        %4987 = vmatprep.subr.bf16.mxu0 0
        %4988 = vmatpush1.bf16.msra.mxu0 %v4215
        %4989 = vmatprep.subr.bf16.mxu0 0
        %4990 = vmatpush1.bf16.msra.mxu0 %v4216
        %4991 = vmatprep.subr.bf16.mxu0 0
        %4992 = vmatpush1.bf16.msra.mxu0 %v4217
        %4993 = vmatprep.subr.bf16.mxu0 0
        %4994 = vmatpush1.bf16.msra.mxu0 %v4218
        %4995 = vmatprep.subr.bf16.mxu0 0
        %4996 = vmatpush1.bf16.msra.mxu0 %v4219
        %4997 = vmatprep.subr.bf16.mxu0 0
        %4998 = vmatpush1.bf16.msra.mxu0 %v4220
        %4999 = vmatprep.subr.bf16.mxu0 0
        %5000 = vmatpush1.bf16.msra.mxu0 %v4221
        %5001 = vmatprep.subr.bf16.mxu0 0
        %5002 = vmatpush1.bf16.msra.mxu0 %v4222
        %5003 = vmatprep.subr.bf16.mxu0 0
        %5004 = vmatpush1.bf16.msra.mxu0 %v4223
        %5005 = vmatprep.mubr.bf16.mxu0 %v2989
        %5006 = vmatmul.mubr.bf16.gmra.mrb[0].mxu0 %v2988
        %v5007 = vpop.f32.mrb[0].mxu0
        %v5008 = vadd.f32 %v4919, %v5007
        %v5009 = vpop.f32.mrb[0].mxu0
        %v5010 = vpop.f32.mrb[0].mxu0
        %v5011 = vadd.f32 %v4922, %v5010
        %v5012 = vpop.f32.mrb[0].mxu0
        %5013 = vmatprep.mubr.bf16.mxu0 %v3014
        %5014 = vmatmul.mubr.bf16.gmra.mrb[0].mxu0 %v3013
        %v5015 = vpop.f32.mrb[0].mxu0
        %v5016 = vadd.f32 %v4927, %v5015
        %v5017 = vpop.f32.mrb[0].mxu0
        %v5018 = vpop.f32.mrb[0].mxu0
        %v5019 = vadd.f32 %v4930, %v5018
        %v5020 = vpop.f32.mrb[0].mxu0
        %5021 = vmatprep.mubr.bf16.mxu0 %v3039
        %5022 = vmatmul.mubr.bf16.gmra.mrb[0].mxu0 %v3038
        %v5023 = vpop.f32.mrb[0].mxu0
        %v5024 = vadd.f32 %v4935, %v5023
        %v5025 = vpop.f32.mrb[0].mxu0
        %v5026 = vpop.f32.mrb[0].mxu0
        %v5027 = vadd.f32 %v4938, %v5026
        %v5028 = vpop.f32.mrb[0].mxu0
        %5029 = vmatprep.mubr.bf16.mxu0 %v3064
        %5030 = vmatmul.mubr.bf16.gmra.mrb[0].mxu0 %v3063
        %v5031 = vpop.f32.mrb[0].mxu0
        %v5032 = vadd.f32 %v4943, %v5031
        %v5033 = vpop.f32.mrb[0].mxu0
        %v5034 = vpop.f32.mrb[0].mxu0
        %v5035 = vadd.f32 %v4946, %v5034
        %v5036 = vpop.f32.mrb[0].mxu0
        %5037 = vmatprep.mubr.bf16.mxu0 %v3089
        %5038 = vmatmul.mubr.bf16.gmra.mrb[0].mxu0 %v3088
        %v5039 = vpop.f32.mrb[0].mxu0
        %v5040 = vadd.f32 %v4951, %v5039
        %v5041 = vpop.f32.mrb[0].mxu0
        %v5042 = vpop.f32.mrb[0].mxu0
        %v5043 = vadd.f32 %v4954, %v5042
        %v5044 = vpop.f32.mrb[0].mxu0
        %5045 = vmatprep.mubr.bf16.mxu0 %v3114
        %5046 = vmatmul.mubr.bf16.gmra.mrb[0].mxu0 %v3113
        %v5047 = vpop.f32.mrb[0].mxu0
        %v5048 = vadd.f32 %v4959, %v5047
        %v5049 = vpop.f32.mrb[0].mxu0
        %v5050 = vpop.f32.mrb[0].mxu0
        %v5051 = vadd.f32 %v4962, %v5050
        %v5052 = vpop.f32.mrb[0].mxu0
        %5053 = vmatprep.mubr.bf16.mxu0 %v3139
        %5054 = vmatmul.mubr.bf16.gmra.mrb[0].mxu0 %v3138
        %v5055 = vpop.f32.mrb[0].mxu0
        %v5056 = vadd.f32 %v4967, %v5055
        %v5057 = vpop.f32.mrb[0].mxu0
        %v5058 = vpop.f32.mrb[0].mxu0
        %v5059 = vadd.f32 %v4970, %v5058
        %v5060 = vpop.f32.mrb[0].mxu0
        %5061 = vdwg.mxu0
        %5062 = vmatprep.subr.bf16.mxu0 0
        %5063 = vmatpush1.bf16.msra.mxu0 %v4224
        %5064 = vmatprep.subr.bf16.mxu0 0
        %5065 = vmatpush1.bf16.msra.mxu0 %v4225
        %5066 = vmatprep.subr.bf16.mxu0 0
        %5067 = vmatpush1.bf16.msra.mxu0 %v4226
        %5068 = vmatprep.subr.bf16.mxu0 0
        %5069 = vmatpush1.bf16.msra.mxu0 %v4227
        %5070 = vmatprep.subr.bf16.mxu0 0
        %5071 = vmatpush1.bf16.msra.mxu0 %v4228
        %5072 = vmatprep.subr.bf16.mxu0 0
        %5073 = vmatpush1.bf16.msra.mxu0 %v4229
        %5074 = vmatprep.subr.bf16.mxu0 0
        %5075 = vmatpush1.bf16.msra.mxu0 %v4230
        %5076 = vmatprep.subr.bf16.mxu0 0
        %5077 = vmatpush1.bf16.msra.mxu0 %v4231
        %5078 = vmatprep.subr.bf16.mxu0 0
        %5079 = vmatpush1.bf16.msra.mxu0 %v4232
        %5080 = vmatprep.subr.bf16.mxu0 0
        %5081 = vmatpush1.bf16.msra.mxu0 %v4233
        %5082 = vmatprep.subr.bf16.mxu0 0
        %5083 = vmatpush1.bf16.msra.mxu0 %v4234
        %5084 = vmatprep.subr.bf16.mxu0 0
        %5085 = vmatpush1.bf16.msra.mxu0 %v4235
        %5086 = vmatprep.subr.bf16.mxu0 0
        %5087 = vmatpush1.bf16.msra.mxu0 %v4236
        %5088 = vmatprep.subr.bf16.mxu0 0
        %5089 = vmatpush1.bf16.msra.mxu0 %v4237
        %5090 = vmatprep.subr.bf16.mxu0 0
        %5091 = vmatpush1.bf16.msra.mxu0 %v4238
        %5092 = vmatprep.subr.bf16.mxu0 0
        %5093 = vmatpush1.bf16.msra.mxu0 %v4239
        %5094 = vmatprep.mubr.bf16.mxu0 %v2991
        %5095 = vmatmul.mubr.bf16.gmra.mrb[0].mxu0 %v2990
        %v5096 = vpop.f32.mrb[0].mxu0
        %v5097 = vadd.f32 %v5008, %v5096
        %v5098 = vpop.f32.mrb[0].mxu0
        %v5099 = vpop.f32.mrb[0].mxu0
        %v5100 = vadd.f32 %v5011, %v5099
        %v5101 = vpop.f32.mrb[0].mxu0
        %5102 = vmatprep.mubr.bf16.mxu0 %v3016
        %5103 = vmatmul.mubr.bf16.gmra.mrb[0].mxu0 %v3015
        %v5104 = vpop.f32.mrb[0].mxu0
        %v5105 = vadd.f32 %v5016, %v5104
        %v5106 = vpop.f32.mrb[0].mxu0
        %v5107 = vpop.f32.mrb[0].mxu0
        %v5108 = vadd.f32 %v5019, %v5107
        %v5109 = vpop.f32.mrb[0].mxu0
        %5110 = vmatprep.mubr.bf16.mxu0 %v3041
        %5111 = vmatmul.mubr.bf16.gmra.mrb[0].mxu0 %v3040
        %v5112 = vpop.f32.mrb[0].mxu0
        %v5113 = vadd.f32 %v5024, %v5112
        %v5114 = vpop.f32.mrb[0].mxu0
        %v5115 = vpop.f32.mrb[0].mxu0
        %v5116 = vadd.f32 %v5027, %v5115
        %v5117 = vpop.f32.mrb[0].mxu0
        %5118 = vmatprep.mubr.bf16.mxu0 %v3066
        %5119 = vmatmul.mubr.bf16.gmra.mrb[0].mxu0 %v3065
        %v5120 = vpop.f32.mrb[0].mxu0
        %v5121 = vadd.f32 %v5032, %v5120
        %v5122 = vpop.f32.mrb[0].mxu0
        %v5123 = vpop.f32.mrb[0].mxu0
        %v5124 = vadd.f32 %v5035, %v5123
        %v5125 = vpop.f32.mrb[0].mxu0
        %5126 = vmatprep.mubr.bf16.mxu0 %v3091
        %5127 = vmatmul.mubr.bf16.gmra.mrb[0].mxu0 %v3090
        %v5128 = vpop.f32.mrb[0].mxu0
        %v5129 = vadd.f32 %v5040, %v5128
        %v5130 = vpop.f32.mrb[0].mxu0
        %v5131 = vpop.f32.mrb[0].mxu0
        %v5132 = vadd.f32 %v5043, %v5131
        %v5133 = vpop.f32.mrb[0].mxu0
        %5134 = vmatprep.mubr.bf16.mxu0 %v3116
        %5135 = vmatmul.mubr.bf16.gmra.mrb[0].mxu0 %v3115
        %v5136 = vpop.f32.mrb[0].mxu0
        %v5137 = vadd.f32 %v5048, %v5136
        %v5138 = vpop.f32.mrb[0].mxu0
        %v5139 = vpop.f32.mrb[0].mxu0
        %v5140 = vadd.f32 %v5051, %v5139
        %v5141 = vpop.f32.mrb[0].mxu0
        %5142 = vmatprep.mubr.bf16.mxu0 %v3141
        %5143 = vmatmul.mubr.bf16.gmra.mrb[0].mxu0 %v3140
        %v5144 = vpop.f32.mrb[0].mxu0
        %v5145 = vadd.f32 %v5056, %v5144
        %v5146 = vpop.f32.mrb[0].mxu0
        %v5147 = vpop.f32.mrb[0].mxu0
        %v5148 = vadd.f32 %v5059, %v5147
        %v5149 = vpop.f32.mrb[0].mxu0
        %5150 = vdwg.mxu0
        %5151 = vmatprep.subr.bf16.mxu0 0
        %5152 = vmatpush1.bf16.msra.mxu0 %v4240
        %5153 = vmatprep.subr.bf16.mxu0 0
        %5154 = vmatpush1.bf16.msra.mxu0 %v4241
        %5155 = vmatprep.subr.bf16.mxu0 0
        %5156 = vmatpush1.bf16.msra.mxu0 %v4242
        %5157 = vmatprep.subr.bf16.mxu0 0
        %5158 = vmatpush1.bf16.msra.mxu0 %v4243
        %5159 = vmatprep.subr.bf16.mxu0 0
        %5160 = vmatpush1.bf16.msra.mxu0 %v4244
        %5161 = vmatprep.subr.bf16.mxu0 0
        %5162 = vmatpush1.bf16.msra.mxu0 %v4245
        %5163 = vmatprep.subr.bf16.mxu0 0
        %5164 = vmatpush1.bf16.msra.mxu0 %v4246
        %5165 = vmatprep.subr.bf16.mxu0 0
        %5166 = vmatpush1.bf16.msra.mxu0 %v4247
        %5167 = vmatprep.subr.bf16.mxu0 0
        %5168 = vmatpush1.bf16.msra.mxu0 %v4248
        %5169 = vmatprep.subr.bf16.mxu0 0
        %5170 = vmatpush1.bf16.msra.mxu0 %v4249
        %5171 = vmatprep.subr.bf16.mxu0 0
        %5172 = vmatpush1.bf16.msra.mxu0 %v4250
        %5173 = vmatprep.subr.bf16.mxu0 0
        %5174 = vmatpush1.bf16.msra.mxu0 %v4251
        %5175 = vmatprep.subr.bf16.mxu0 0
        %5176 = vmatpush1.bf16.msra.mxu0 %v4252
        %5177 = vmatprep.subr.bf16.mxu0 0
        %5178 = vmatpush1.bf16.msra.mxu0 %v4253
        %5179 = vmatprep.subr.bf16.mxu0 0
        %5180 = vmatpush1.bf16.msra.mxu0 %v4254
        %5181 = vmatprep.subr.bf16.mxu0 0
        %5182 = vmatpush1.bf16.msra.mxu0 %v4255
        %5183 = vmatprep.mubr.bf16.mxu0 %v2993
        %5184 = vmatmul.mubr.bf16.gmra.mrb[0].mxu0 %v2992
        %v5185 = vpop.f32.mrb[0].mxu0
        %v5186 = vadd.f32 %v5097, %v5185
        %v5187 = vpop.f32.mrb[0].mxu0
        %v5188 = vpop.f32.mrb[0].mxu0
        %v5189 = vadd.f32 %v5100, %v5188
        %v5190 = vpop.f32.mrb[0].mxu0
        %5191 = vmatprep.mubr.bf16.mxu0 %v3018
        %5192 = vmatmul.mubr.bf16.gmra.mrb[0].mxu0 %v3017
        %v5193 = vpop.f32.mrb[0].mxu0
        %v5194 = vadd.f32 %v5105, %v5193
        %v5195 = vpop.f32.mrb[0].mxu0
        %v5196 = vpop.f32.mrb[0].mxu0
        %v5197 = vadd.f32 %v5108, %v5196
        %v5198 = vpop.f32.mrb[0].mxu0
        %5199 = vmatprep.mubr.bf16.mxu0 %v3043
        %5200 = vmatmul.mubr.bf16.gmra.mrb[0].mxu0 %v3042
        %v5201 = vpop.f32.mrb[0].mxu0
        %v5202 = vadd.f32 %v5113, %v5201
        %v5203 = vpop.f32.mrb[0].mxu0
        %v5204 = vpop.f32.mrb[0].mxu0
        %v5205 = vadd.f32 %v5116, %v5204
        %v5206 = vpop.f32.mrb[0].mxu0
        %5207 = vmatprep.mubr.bf16.mxu0 %v3068
        %5208 = vmatmul.mubr.bf16.gmra.mrb[0].mxu0 %v3067
        %v5209 = vpop.f32.mrb[0].mxu0
        %v5210 = vadd.f32 %v5121, %v5209
        %v5211 = vpop.f32.mrb[0].mxu0
        %v5212 = vpop.f32.mrb[0].mxu0
        %v5213 = vadd.f32 %v5124, %v5212
        %v5214 = vpop.f32.mrb[0].mxu0
        %5215 = vmatprep.mubr.bf16.mxu0 %v3093
        %5216 = vmatmul.mubr.bf16.gmra.mrb[0].mxu0 %v3092
        %v5217 = vpop.f32.mrb[0].mxu0
        %v5218 = vadd.f32 %v5129, %v5217
        %v5219 = vpop.f32.mrb[0].mxu0
        %v5220 = vpop.f32.mrb[0].mxu0
        %v5221 = vadd.f32 %v5132, %v5220
        %v5222 = vpop.f32.mrb[0].mxu0
        %5223 = vmatprep.mubr.bf16.mxu0 %v3118
        %5224 = vmatmul.mubr.bf16.gmra.mrb[0].mxu0 %v3117
        %v5225 = vpop.f32.mrb[0].mxu0
        %v5226 = vadd.f32 %v5137, %v5225
        %v5227 = vpop.f32.mrb[0].mxu0
        %v5228 = vpop.f32.mrb[0].mxu0
        %v5229 = vadd.f32 %v5140, %v5228
        %v5230 = vpop.f32.mrb[0].mxu0
        %5231 = vmatprep.mubr.bf16.mxu0 %v3143
        %5232 = vmatmul.mubr.bf16.gmra.mrb[0].mxu0 %v3142
        %v5233 = vpop.f32.mrb[0].mxu0
        %v5234 = vadd.f32 %v5145, %v5233
        %v5235 = vpop.f32.mrb[0].mxu0
        %v5236 = vpop.f32.mrb[0].mxu0
        %v5237 = vadd.f32 %v5148, %v5236
        %v5238 = vpop.f32.mrb[0].mxu0
        %5239 = vdwg.mxu0
        %5240 = vmatprep.subr.bf16.mxu0 0
        %5241 = vmatpush1.bf16.msra.mxu0 %v4256
        %5242 = vmatprep.subr.bf16.mxu0 0
        %5243 = vmatpush1.bf16.msra.mxu0 %v4257
        %5244 = vmatprep.subr.bf16.mxu0 0
        %5245 = vmatpush1.bf16.msra.mxu0 %v4258
        %5246 = vmatprep.subr.bf16.mxu0 0
        %5247 = vmatpush1.bf16.msra.mxu0 %v4259
        %5248 = vmatprep.subr.bf16.mxu0 0
        %5249 = vmatpush1.bf16.msra.mxu0 %v4260
        %5250 = vmatprep.subr.bf16.mxu0 0
        %5251 = vmatpush1.bf16.msra.mxu0 %v4261
        %5252 = vmatprep.subr.bf16.mxu0 0
        %5253 = vmatpush1.bf16.msra.mxu0 %v4262
        %5254 = vmatprep.subr.bf16.mxu0 0
        %5255 = vmatpush1.bf16.msra.mxu0 %v4263
        %5256 = vmatprep.subr.bf16.mxu0 0
        %5257 = vmatpush1.bf16.msra.mxu0 %v4264
        %5258 = vmatprep.subr.bf16.mxu0 0
        %5259 = vmatpush1.bf16.msra.mxu0 %v4265
        %5260 = vmatprep.subr.bf16.mxu0 0
        %5261 = vmatpush1.bf16.msra.mxu0 %v4266
        %5262 = vmatprep.subr.bf16.mxu0 0
        %5263 = vmatpush1.bf16.msra.mxu0 %v4267
        %5264 = vmatprep.subr.bf16.mxu0 0
        %5265 = vmatpush1.bf16.msra.mxu0 %v4268
        %5266 = vmatprep.subr.bf16.mxu0 0
        %5267 = vmatpush1.bf16.msra.mxu0 %v4269
        %5268 = vmatprep.subr.bf16.mxu0 0
        %5269 = vmatpush1.bf16.msra.mxu0 %v4270
        %5270 = vmatprep.subr.bf16.mxu0 0
        %5271 = vmatpush1.bf16.msra.mxu0 %v4271
        %5272 = vmatprep.mubr.bf16.mxu0 %v2995
        %5273 = vmatmul.mubr.bf16.gmra.mrb[0].mxu0 %v2994
        %v5274 = vpop.f32.mrb[0].mxu0
        %v5275 = vadd.f32 %v5186, %v5274
        %v5276 = vpop.f32.mrb[0].mxu0
        %v5277 = vpop.f32.mrb[0].mxu0
        %v5278 = vadd.f32 %v5189, %v5277
        %v5279 = vpop.f32.mrb[0].mxu0
        %5280 = vmatprep.mubr.bf16.mxu0 %v3020
        %5281 = vmatmul.mubr.bf16.gmra.mrb[0].mxu0 %v3019
        %v5282 = vpop.f32.mrb[0].mxu0
        %v5283 = vadd.f32 %v5194, %v5282
        %v5284 = vpop.f32.mrb[0].mxu0
        %v5285 = vpop.f32.mrb[0].mxu0
        %v5286 = vadd.f32 %v5197, %v5285
        %v5287 = vpop.f32.mrb[0].mxu0
        %5288 = vmatprep.mubr.bf16.mxu0 %v3045
        %5289 = vmatmul.mubr.bf16.gmra.mrb[0].mxu0 %v3044
        %v5290 = vpop.f32.mrb[0].mxu0
        %v5291 = vadd.f32 %v5202, %v5290
        %v5292 = vpop.f32.mrb[0].mxu0
        %v5293 = vpop.f32.mrb[0].mxu0
        %v5294 = vadd.f32 %v5205, %v5293
        %v5295 = vpop.f32.mrb[0].mxu0
        %5296 = vmatprep.mubr.bf16.mxu0 %v3070
        %5297 = vmatmul.mubr.bf16.gmra.mrb[0].mxu0 %v3069
        %v5298 = vpop.f32.mrb[0].mxu0
        %v5299 = vadd.f32 %v5210, %v5298
        %v5300 = vpop.f32.mrb[0].mxu0
        %v5301 = vpop.f32.mrb[0].mxu0
        %v5302 = vadd.f32 %v5213, %v5301
        %v5303 = vpop.f32.mrb[0].mxu0
        %5304 = vmatprep.mubr.bf16.mxu0 %v3095
        %5305 = vmatmul.mubr.bf16.gmra.mrb[0].mxu0 %v3094
        %v5306 = vpop.f32.mrb[0].mxu0
        %v5307 = vadd.f32 %v5218, %v5306
        %v5308 = vpop.f32.mrb[0].mxu0
        %v5309 = vpop.f32.mrb[0].mxu0
        %v5310 = vadd.f32 %v5221, %v5309
        %v5311 = vpop.f32.mrb[0].mxu0
        %5312 = vmatprep.mubr.bf16.mxu0 %v3120
        %5313 = vmatmul.mubr.bf16.gmra.mrb[0].mxu0 %v3119
        %v5314 = vpop.f32.mrb[0].mxu0
        %v5315 = vadd.f32 %v5226, %v5314
        %v5316 = vpop.f32.mrb[0].mxu0
        %v5317 = vpop.f32.mrb[0].mxu0
        %v5318 = vadd.f32 %v5229, %v5317
        %v5319 = vpop.f32.mrb[0].mxu0
        %5320 = vmatprep.mubr.bf16.mxu0 %v3145
        %5321 = vmatmul.mubr.bf16.gmra.mrb[0].mxu0 %v3144
        %v5322 = vpop.f32.mrb[0].mxu0
        %v5323 = vadd.f32 %v5234, %v5322
        %v5324 = vpop.f32.mrb[0].mxu0
        %v5325 = vpop.f32.mrb[0].mxu0
        %v5326 = vadd.f32 %v5237, %v5325
        %v5327 = vpop.f32.mrb[0].mxu0
        %5328 = vdwg.mxu0
        %5329 = vmatprep.subr.bf16.mxu0 0
        %5330 = vmatpush1.bf16.msra.mxu0 %v4272
        %5331 = vmatprep.subr.bf16.mxu0 0
        %5332 = vmatpush1.bf16.msra.mxu0 %v4273
        %5333 = vmatprep.subr.bf16.mxu0 0
        %5334 = vmatpush1.bf16.msra.mxu0 %v4274
        %5335 = vmatprep.subr.bf16.mxu0 0
        %5336 = vmatpush1.bf16.msra.mxu0 %v4275
        %5337 = vmatprep.subr.bf16.mxu0 0
        %5338 = vmatpush1.bf16.msra.mxu0 %v4276
        %5339 = vmatprep.subr.bf16.mxu0 0
        %5340 = vmatpush1.bf16.msra.mxu0 %v4277
        %5341 = vmatprep.subr.bf16.mxu0 0
        %5342 = vmatpush1.bf16.msra.mxu0 %v4278
        %5343 = vmatprep.subr.bf16.mxu0 0
        %5344 = vmatpush1.bf16.msra.mxu0 %v4279
        %5345 = vmatprep.subr.bf16.mxu0 0
        %5346 = vmatpush1.bf16.msra.mxu0 %v4280
        %5347 = vmatprep.subr.bf16.mxu0 0
        %5348 = vmatpush1.bf16.msra.mxu0 %v4281
        %5349 = vmatprep.subr.bf16.mxu0 0
        %5350 = vmatpush1.bf16.msra.mxu0 %v4282
        %5351 = vmatprep.subr.bf16.mxu0 0
        %5352 = vmatpush1.bf16.msra.mxu0 %v4283
        %5353 = vmatprep.subr.bf16.mxu0 0
        %5354 = vmatpush1.bf16.msra.mxu0 %v4284
        %5355 = vmatprep.subr.bf16.mxu0 0
        %5356 = vmatpush1.bf16.msra.mxu0 %v4285
        %5357 = vmatprep.subr.bf16.mxu0 0
        %5358 = vmatpush1.bf16.msra.mxu0 %v4286
        %5359 = vmatprep.subr.bf16.mxu0 0
        %5360 = vmatpush1.bf16.msra.mxu0 %v4287
        %5361 = vmatprep.mubr.bf16.mxu0 %v2997
        %5362 = vmatmul.mubr.bf16.gmra.mrb[0].mxu0 %v2996
        %v5363 = vpop.f32.mrb[0].mxu0
        %v5364 = vadd.f32 %v5275, %v5363
        %v5365 = vpop.f32.mrb[0].mxu0
        %v5366 = vpop.f32.mrb[0].mxu0
        %v5367 = vadd.f32 %v5278, %v5366
        %v5368 = vpop.f32.mrb[0].mxu0
        %5369 = vmatprep.mubr.bf16.mxu0 %v3022
        %5370 = vmatmul.mubr.bf16.gmra.mrb[0].mxu0 %v3021
        %v5371 = vpop.f32.mrb[0].mxu0
        %v5372 = vadd.f32 %v5283, %v5371
        %v5373 = vpop.f32.mrb[0].mxu0
        %v5374 = vpop.f32.mrb[0].mxu0
        %v5375 = vadd.f32 %v5286, %v5374
        %v5376 = vpop.f32.mrb[0].mxu0
        %5377 = vmatprep.mubr.bf16.mxu0 %v3047
        %5378 = vmatmul.mubr.bf16.gmra.mrb[0].mxu0 %v3046
        %v5379 = vpop.f32.mrb[0].mxu0
        %v5380 = vadd.f32 %v5291, %v5379
        %v5381 = vpop.f32.mrb[0].mxu0
        %v5382 = vpop.f32.mrb[0].mxu0
        %v5383 = vadd.f32 %v5294, %v5382
        %v5384 = vpop.f32.mrb[0].mxu0
        %5385 = vmatprep.mubr.bf16.mxu0 %v3072
        %5386 = vmatmul.mubr.bf16.gmra.mrb[0].mxu0 %v3071
        %v5387 = vpop.f32.mrb[0].mxu0
        %v5388 = vadd.f32 %v5299, %v5387
        %v5389 = vpop.f32.mrb[0].mxu0
        %v5390 = vpop.f32.mrb[0].mxu0
        %v5391 = vadd.f32 %v5302, %v5390
        %v5392 = vpop.f32.mrb[0].mxu0
        %5393 = vmatprep.mubr.bf16.mxu0 %v3097
        %5394 = vmatmul.mubr.bf16.gmra.mrb[0].mxu0 %v3096
        %v5395 = vpop.f32.mrb[0].mxu0
        %v5396 = vadd.f32 %v5307, %v5395
        %v5397 = vpop.f32.mrb[0].mxu0
        %v5398 = vpop.f32.mrb[0].mxu0
        %v5399 = vadd.f32 %v5310, %v5398
        %v5400 = vpop.f32.mrb[0].mxu0
        %5401 = vmatprep.mubr.bf16.mxu0 %v3122
        %5402 = vmatmul.mubr.bf16.gmra.mrb[0].mxu0 %v3121
        %v5403 = vpop.f32.mrb[0].mxu0
        %v5404 = vadd.f32 %v5315, %v5403
        %v5405 = vpop.f32.mrb[0].mxu0
        %v5406 = vpop.f32.mrb[0].mxu0
        %v5407 = vadd.f32 %v5318, %v5406
        %v5408 = vpop.f32.mrb[0].mxu0
        %5409 = vmatprep.mubr.bf16.mxu0 %v3147
        %5410 = vmatmul.mubr.bf16.gmra.mrb[0].mxu0 %v3146
        %v5411 = vpop.f32.mrb[0].mxu0
        %v5412 = vadd.f32 %v5323, %v5411
        %v5413 = vpop.f32.mrb[0].mxu0
        %v5414 = vpop.f32.mrb[0].mxu0
        %v5415 = vadd.f32 %v5326, %v5414
        %v5416 = vpop.f32.mrb[0].mxu0
        %5417 = vdwg.mxu0
        %5418 = vmatprep.subr.bf16.mxu0 0
        %5419 = vmatpush1.bf16.msra.mxu0 %v4288
        %5420 = vmatprep.subr.bf16.mxu0 0
        %5421 = vmatpush1.bf16.msra.mxu0 %v4289
        %5422 = vmatprep.subr.bf16.mxu0 0
        %5423 = vmatpush1.bf16.msra.mxu0 %v4290
        %5424 = vmatprep.subr.bf16.mxu0 0
        %5425 = vmatpush1.bf16.msra.mxu0 %v4291
        %5426 = vmatprep.subr.bf16.mxu0 0
        %5427 = vmatpush1.bf16.msra.mxu0 %v4292
        %5428 = vmatprep.subr.bf16.mxu0 0
        %5429 = vmatpush1.bf16.msra.mxu0 %v4293
        %5430 = vmatprep.subr.bf16.mxu0 0
        %5431 = vmatpush1.bf16.msra.mxu0 %v4294
        %5432 = vmatprep.subr.bf16.mxu0 0
        %5433 = vmatpush1.bf16.msra.mxu0 %v4295
        %5434 = vmatprep.subr.bf16.mxu0 0
        %5435 = vmatpush1.bf16.msra.mxu0 %v4296
        %5436 = vmatprep.subr.bf16.mxu0 0
        %5437 = vmatpush1.bf16.msra.mxu0 %v4297
        %5438 = vmatprep.subr.bf16.mxu0 0
        %5439 = vmatpush1.bf16.msra.mxu0 %v4298
        %5440 = vmatprep.subr.bf16.mxu0 0
        %5441 = vmatpush1.bf16.msra.mxu0 %v4299
        %5442 = vmatprep.subr.bf16.mxu0 0
        %5443 = vmatpush1.bf16.msra.mxu0 %v4300
        %5444 = vmatprep.subr.bf16.mxu0 0
        %5445 = vmatpush1.bf16.msra.mxu0 %v4301
        %5446 = vmatprep.subr.bf16.mxu0 0
        %5447 = vmatpush1.bf16.msra.mxu0 %v4302
        %5448 = vmatprep.subr.bf16.mxu0 0
        %5449 = vmatpush1.bf16.msra.mxu0 %v4303
        %5450 = vmatprep.mubr.bf16.mxu0 %v2999
        %5451 = vmatmul.mubr.bf16.gmra.mrb[0].mxu0 %v2998
        %v5452 = vpop.f32.mrb[0].mxu0
        %v5453 = vadd.f32 %v5364, %v5452
        %v5454 = vpop.f32.mrb[0].mxu0
        %v5455 = vpop.f32.mrb[0].mxu0
        %v5456 = vadd.f32 %v5367, %v5455
        %v5457 = vpop.f32.mrb[0].mxu0
        %5458 = vmatprep.mubr.bf16.mxu0 %v3024
        %5459 = vmatmul.mubr.bf16.gmra.mrb[0].mxu0 %v3023
        %v5460 = vpop.f32.mrb[0].mxu0
        %v5461 = vadd.f32 %v5372, %v5460
        %v5462 = vpop.f32.mrb[0].mxu0
        %v5463 = vpop.f32.mrb[0].mxu0
        %v5464 = vadd.f32 %v5375, %v5463
        %v5465 = vpop.f32.mrb[0].mxu0
        %5466 = vmatprep.mubr.bf16.mxu0 %v3049
        %5467 = vmatmul.mubr.bf16.gmra.mrb[0].mxu0 %v3048
        %v5468 = vpop.f32.mrb[0].mxu0
        %v5469 = vadd.f32 %v5380, %v5468
        %v5470 = vpop.f32.mrb[0].mxu0
        %v5471 = vpop.f32.mrb[0].mxu0
        %v5472 = vadd.f32 %v5383, %v5471
        %v5473 = vpop.f32.mrb[0].mxu0
        %5474 = vmatprep.mubr.bf16.mxu0 %v3074
        %5475 = vmatmul.mubr.bf16.gmra.mrb[0].mxu0 %v3073
        %v5476 = vpop.f32.mrb[0].mxu0
        %v5477 = vadd.f32 %v5388, %v5476
        %v5478 = vpop.f32.mrb[0].mxu0
        %v5479 = vpop.f32.mrb[0].mxu0
        %v5480 = vadd.f32 %v5391, %v5479
        %v5481 = vpop.f32.mrb[0].mxu0
        %5482 = vmatprep.mubr.bf16.mxu0 %v3099
        %5483 = vmatmul.mubr.bf16.gmra.mrb[0].mxu0 %v3098
        %v5484 = vpop.f32.mrb[0].mxu0
        %v5485 = vadd.f32 %v5396, %v5484
        %v5486 = vpop.f32.mrb[0].mxu0
        %v5487 = vpop.f32.mrb[0].mxu0
        %v5488 = vadd.f32 %v5399, %v5487
        %v5489 = vpop.f32.mrb[0].mxu0
        %5490 = vmatprep.mubr.bf16.mxu0 %v3124
        %5491 = vmatmul.mubr.bf16.gmra.mrb[0].mxu0 %v3123
        %v5492 = vpop.f32.mrb[0].mxu0
        %v5493 = vadd.f32 %v5404, %v5492
        %v5494 = vpop.f32.mrb[0].mxu0
        %v5495 = vpop.f32.mrb[0].mxu0
        %v5496 = vadd.f32 %v5407, %v5495
        %v5497 = vpop.f32.mrb[0].mxu0
        %5498 = vmatprep.mubr.bf16.mxu0 %v3149
        %5499 = vmatmul.mubr.bf16.gmra.mrb[0].mxu0 %v3148
        %v5500 = vpop.f32.mrb[0].mxu0
        %v5501 = vadd.f32 %v5412, %v5500
        %v5502 = vpop.f32.mrb[0].mxu0
        %v5503 = vpop.f32.mrb[0].mxu0
        %v5504 = vadd.f32 %v5415, %v5503
        %v5505 = vpop.f32.mrb[0].mxu0
        %5506 = vdwg.mxu0
        %5507 = vmatprep.subr.bf16.mxu0 0
        %5508 = vmatpush1.bf16.msra.mxu0 %v4304
        %5509 = vmatprep.subr.bf16.mxu0 0
        %5510 = vmatpush1.bf16.msra.mxu0 %v4305
        %5511 = vmatprep.subr.bf16.mxu0 0
        %5512 = vmatpush1.bf16.msra.mxu0 %v4306
        %5513 = vmatprep.subr.bf16.mxu0 0
        %5514 = vmatpush1.bf16.msra.mxu0 %v4307
        %5515 = vmatprep.subr.bf16.mxu0 0
        %5516 = vmatpush1.bf16.msra.mxu0 %v4308
        %5517 = vmatprep.subr.bf16.mxu0 0
        %5518 = vmatpush1.bf16.msra.mxu0 %v4309
        %5519 = vmatprep.subr.bf16.mxu0 0
        %5520 = vmatpush1.bf16.msra.mxu0 %v4310
        %5521 = vmatprep.subr.bf16.mxu0 0
        %5522 = vmatpush1.bf16.msra.mxu0 %v4311
        %5523 = vmatprep.subr.bf16.mxu0 0
        %5524 = vmatpush1.bf16.msra.mxu0 %v4312
        %5525 = vmatprep.subr.bf16.mxu0 0
        %5526 = vmatpush1.bf16.msra.mxu0 %v4313
        %5527 = vmatprep.subr.bf16.mxu0 0
        %5528 = vmatpush1.bf16.msra.mxu0 %v4314
        %5529 = vmatprep.subr.bf16.mxu0 0
        %5530 = vmatpush1.bf16.msra.mxu0 %v4315
        %5531 = vmatprep.subr.bf16.mxu0 0
        %5532 = vmatpush1.bf16.msra.mxu0 %v4316
        %5533 = vmatprep.subr.bf16.mxu0 0
        %5534 = vmatpush1.bf16.msra.mxu0 %v4317
        %5535 = vmatprep.subr.bf16.mxu0 0
        %5536 = vmatpush1.bf16.msra.mxu0 %v4318
        %5537 = vmatprep.subr.bf16.mxu0 0
        %5538 = vmatpush1.bf16.msra.mxu0 %v4319
        %5539 = vmatprep.mubr.bf16.mxu0 %v3001
        %5540 = vmatmul.mubr.bf16.gmra.mrb[0].mxu0 %v3000
        %v5541 = vpop.f32.mrb[0].mxu0
        %v5542 = vadd.f32 %v5453, %v5541
        %v5543 = vpop.f32.mrb[0].mxu0
        %v5544 = vpop.f32.mrb[0].mxu0
        %v5545 = vadd.f32 %v5456, %v5544
        %v5546 = vpop.f32.mrb[0].mxu0
        %5547 = vmatprep.mubr.bf16.mxu0 %v3026
        %5548 = vmatmul.mubr.bf16.gmra.mrb[0].mxu0 %v3025
        %v5549 = vpop.f32.mrb[0].mxu0
        %v5550 = vadd.f32 %v5461, %v5549
        %v5551 = vpop.f32.mrb[0].mxu0
        %v5552 = vpop.f32.mrb[0].mxu0
        %v5553 = vadd.f32 %v5464, %v5552
        %v5554 = vpop.f32.mrb[0].mxu0
        %5555 = vmatprep.mubr.bf16.mxu0 %v3051
        %5556 = vmatmul.mubr.bf16.gmra.mrb[0].mxu0 %v3050
        %v5557 = vpop.f32.mrb[0].mxu0
        %v5558 = vadd.f32 %v5469, %v5557
        %v5559 = vpop.f32.mrb[0].mxu0
        %v5560 = vpop.f32.mrb[0].mxu0
        %v5561 = vadd.f32 %v5472, %v5560
        %v5562 = vpop.f32.mrb[0].mxu0
        %5563 = vmatprep.mubr.bf16.mxu0 %v3076
        %5564 = vmatmul.mubr.bf16.gmra.mrb[0].mxu0 %v3075
        %v5565 = vpop.f32.mrb[0].mxu0
        %v5566 = vadd.f32 %v5477, %v5565
        %v5567 = vpop.f32.mrb[0].mxu0
        %v5568 = vpop.f32.mrb[0].mxu0
        %v5569 = vadd.f32 %v5480, %v5568
        %v5570 = vpop.f32.mrb[0].mxu0
        %5571 = vmatprep.mubr.bf16.mxu0 %v3101
        %5572 = vmatmul.mubr.bf16.gmra.mrb[0].mxu0 %v3100
        %v5573 = vpop.f32.mrb[0].mxu0
        %v5574 = vadd.f32 %v5485, %v5573
        %v5575 = vpop.f32.mrb[0].mxu0
        %v5576 = vpop.f32.mrb[0].mxu0
        %v5577 = vadd.f32 %v5488, %v5576
        %v5578 = vpop.f32.mrb[0].mxu0
        %5579 = vmatprep.mubr.bf16.mxu0 %v3126
        %5580 = vmatmul.mubr.bf16.gmra.mrb[0].mxu0 %v3125
        %v5581 = vpop.f32.mrb[0].mxu0
        %v5582 = vadd.f32 %v5493, %v5581
        %v5583 = vpop.f32.mrb[0].mxu0
        %v5584 = vpop.f32.mrb[0].mxu0
        %v5585 = vadd.f32 %v5496, %v5584
        %v5586 = vpop.f32.mrb[0].mxu0
        %5587 = vmatprep.mubr.bf16.mxu0 %v3151
        %5588 = vmatmul.mubr.bf16.gmra.mrb[0].mxu0 %v3150
        %v5589 = vpop.f32.mrb[0].mxu0
        %v5590 = vadd.f32 %v5501, %v5589
        %v5591 = vpop.f32.mrb[0].mxu0
        %v5592 = vpop.f32.mrb[0].mxu0
        %v5593 = vadd.f32 %v5504, %v5592
        %v5594 = vpop.f32.mrb[0].mxu0
        %5595 = vdwg.mxu0
        %5596 = vmatprep.subr.bf16.mxu0 0
        %5597 = vmatpush1.bf16.msra.mxu0 %v4320
        %5598 = vmatprep.subr.bf16.mxu0 0
        %5599 = vmatpush1.bf16.msra.mxu0 %v4321
        %5600 = vmatprep.subr.bf16.mxu0 0
        %5601 = vmatpush1.bf16.msra.mxu0 %v4322
        %5602 = vmatprep.subr.bf16.mxu0 0
        %5603 = vmatpush1.bf16.msra.mxu0 %v4323
        %5604 = vmatprep.subr.bf16.mxu0 0
        %5605 = vmatpush1.bf16.msra.mxu0 %v4324
        %5606 = vmatprep.subr.bf16.mxu0 0
        %5607 = vmatpush1.bf16.msra.mxu0 %v4325
        %5608 = vmatprep.subr.bf16.mxu0 0
        %5609 = vmatpush1.bf16.msra.mxu0 %v4326
        %5610 = vmatprep.subr.bf16.mxu0 0
        %5611 = vmatpush1.bf16.msra.mxu0 %v4327
        %5612 = vmatprep.subr.bf16.mxu0 0
        %5613 = vmatpush1.bf16.msra.mxu0 0
        %5614 = vmatprep.subr.bf16.mxu0 0
        %5615 = vmatpush1.bf16.msra.mxu0 0
        %5616 = vmatprep.subr.bf16.mxu0 0
        %5617 = vmatpush1.bf16.msra.mxu0 0
        %5618 = vmatprep.subr.bf16.mxu0 0
        %5619 = vmatpush1.bf16.msra.mxu0 0
        %5620 = vmatprep.subr.bf16.mxu0 0
        %5621 = vmatpush1.bf16.msra.mxu0 0
        %5622 = vmatprep.subr.bf16.mxu0 0
        %5623 = vmatpush1.bf16.msra.mxu0 0
        %5624 = vmatprep.subr.bf16.mxu0 0
        %5625 = vmatpush1.bf16.msra.mxu0 0
        %5626 = vmatprep.subr.bf16.mxu0 0
        %5627 = vmatpush1.bf16.msra.mxu0 0
        %5628 = vmatprep.mubr.bf16.mxu0 0
        %5629 = vmatmul.mubr.bf16.gmra.mrb[0].mxu0 %v3002
        %v5630 = vpop.f32.mrb[0].mxu0
        %v5631 = vadd.f32 %v5542, %v5630
        %v5632 = vpop.f32.mrb[0].mxu0
        %v5633 = vpop.f32.mrb[0].mxu0
        %v5634 = vadd.f32 %v5545, %v5633
        %v5635 = vpop.f32.mrb[0].mxu0
        %5636 = vmatprep.mubr.bf16.mxu0 0
        %5637 = vmatmul.mubr.bf16.gmra.mrb[0].mxu0 %v3027
        %v5638 = vpop.f32.mrb[0].mxu0
        %v5639 = vadd.f32 %v5550, %v5638
        %v5640 = vpop.f32.mrb[0].mxu0
        %v5641 = vpop.f32.mrb[0].mxu0
        %v5642 = vadd.f32 %v5553, %v5641
        %v5643 = vpop.f32.mrb[0].mxu0
        %5644 = vmatprep.mubr.bf16.mxu0 0
        %5645 = vmatmul.mubr.bf16.gmra.mrb[0].mxu0 %v3052
        %v5646 = vpop.f32.mrb[0].mxu0
        %v5647 = vadd.f32 %v5558, %v5646
        %v5648 = vpop.f32.mrb[0].mxu0
        %v5649 = vpop.f32.mrb[0].mxu0
        %v5650 = vadd.f32 %v5561, %v5649
        %v5651 = vpop.f32.mrb[0].mxu0
        %5652 = vmatprep.mubr.bf16.mxu0 0
        %5653 = vmatmul.mubr.bf16.gmra.mrb[0].mxu0 %v3077
        %v5654 = vpop.f32.mrb[0].mxu0
        %v5655 = vadd.f32 %v5566, %v5654
        %v5656 = vpop.f32.mrb[0].mxu0
        %v5657 = vpop.f32.mrb[0].mxu0
        %v5658 = vadd.f32 %v5569, %v5657
        %v5659 = vpop.f32.mrb[0].mxu0
        %5660 = vmatprep.mubr.bf16.mxu0 0
        %5661 = vmatmul.mubr.bf16.gmra.mrb[0].mxu0 %v3102
        %v5662 = vpop.f32.mrb[0].mxu0
        %v5663 = vadd.f32 %v5574, %v5662
        %v5664 = vpop.f32.mrb[0].mxu0
        %v5665 = vpop.f32.mrb[0].mxu0
        %v5666 = vadd.f32 %v5577, %v5665
        %v5667 = vpop.f32.mrb[0].mxu0
        %5668 = vmatprep.mubr.bf16.mxu0 0
        %5669 = vmatmul.mubr.bf16.gmra.mrb[0].mxu0 %v3127
        %v5670 = vpop.f32.mrb[0].mxu0
        %v5671 = vadd.f32 %v5582, %v5670
        %v5672 = vpop.f32.mrb[0].mxu0
        %v5673 = vpop.f32.mrb[0].mxu0
        %v5674 = vadd.f32 %v5585, %v5673
        %v5675 = vpop.f32.mrb[0].mxu0
        %5676 = vmatprep.mubr.bf16.mxu0 0
        %5677 = vmatmul.mubr.bf16.gmra.mrb[0].mxu0 %v3152
        %v5678 = vpop.f32.mrb[0].mxu0
        %v5679 = vadd.f32 %v5590, %v5678
        %v5680 = vpop.f32.mrb[0].mxu0
        %v5681 = vpop.f32.mrb[0].mxu0
        %v5682 = vadd.f32 %v5593, %v5681
        %v5683 = vpop.f32.mrb[0].mxu0
        %5684 = vdwg.mxu0
        %v5685 = vmax.f32 %v5631, 0.0
        %v5686 = vmax.f32 %v5634, 0.0
        %v5687 = vmax.f32 %v5639, 0.0
        %v5688 = vmax.f32 %v5642, 0.0
        %v5689 = vmax.f32 %v5647, 0.0
        %v5690 = vmax.f32 %v5650, 0.0
        %v5691 = vmax.f32 %v5655, 0.0
        %v5692 = vmax.f32 %v5658, 0.0
        %v5693 = vmax.f32 %v5663, 0.0
        %v5694 = vmax.f32 %v5666, 0.0
        %v5695 = vmax.f32 %v5671, 0.0
        %v5696 = vmax.f32 %v5674, 0.0
        %v5697 = vmax.f32 %v5679, 0.0
        %v5698 = vmax.f32 %v5682, 0.0
        %v5699 = vpack.c.bf16 %v5686, %v5685
        %v5700 = vpack.c.bf16 %v5688, %v5687
        %v5701 = vpack.c.bf16 %v5690, %v5689
        %v5702 = vpack.c.bf16 %v5692, %v5691
        %v5703 = vpack.c.bf16 %v5694, %v5693
        %v5704 = vpack.c.bf16 %v5696, %v5695
        %v5705 = vpack.c.bf16 %v5698, %v5697
        %v5713 = vunpack.c.l.b16 %v5699
        %v5714 = vunpack.c.h.b16 %v5699
        %v5715 = vunpack.c.l.b16 %v5700
        %v5716 = vunpack.c.h.b16 %v5700
        %v5717 = vunpack.c.l.b16 %v5701
        %v5718 = vunpack.c.h.b16 %v5701
        %v5719 = vunpack.c.l.b16 %v5702
        %v5720 = vunpack.c.h.b16 %v5702
        %v5721 = vunpack.c.l.b16 %v5703
        %v5722 = vunpack.c.h.b16 %v5703
        %v5723 = vunpack.c.l.b16 %v5704
        %v5724 = vunpack.c.h.b16 %v5704
        %v5725 = vunpack.c.l.b16 %v5705
        %v5726 = vunpack.c.h.b16 %v5705
        %v5727 = vpack.c.b16 %v5713, %v5713
        %v5728 = vpack.c.b16 %v5714, %v5714
        %v5729 = vpack.c.b16 %v5715, %v5715
        %v5730 = vpack.c.b16 %v5716, %v5716
        %v5731 = vpack.c.b16 %v5717, %v5717
        %v5732 = vpack.c.b16 %v5718, %v5718
        %v5733 = vpack.c.b16 %v5719, %v5719
        %v5734 = vpack.c.b16 %v5720, %v5720
        %v5735 = vpack.c.b16 %v5721, %v5721
        %v5736 = vpack.c.b16 %v5722, %v5722
        %v5737 = vpack.c.b16 %v5723, %v5723
        %v5738 = vpack.c.b16 %v5724, %v5724
        %v5739 = vpack.c.b16 %v5725, %v5725
        %v5740 = vpack.c.b16 %v5726, %v5726
        %5755 = vst [vmem:[%s1844] sm:$0xf] %v5727
        %5756 = vst [vmem:[%s1844 + $0x4] sm:$0xf] %v5728
        %5757 = vst [vmem:[%s1844 + $0x8] sm:$0xf] %v5729
        %5758 = vst [vmem:[%s1844 + $0xc] sm:$0xf] %v5730
        %5759 = vst [vmem:[%s1844 + $0x10] sm:$0xf] %v5731
        %5760 = vst [vmem:[%s1844 + $0x14] sm:$0xf] %v5732
        %5761 = vst [vmem:[%s1844 + $0x18] sm:$0xf] %v5733
        %5762 = vst [vmem:[%s1844 + $0x1c] sm:$0xf] %v5734
        %5763 = vst [vmem:[%s1844 + $0x20] sm:$0xf] %v5735
        %5764 = vst [vmem:[%s1844 + $0x24] sm:$0xf] %v5736
        %5765 = vst [vmem:[%s1844 + $0x28] sm:$0xf] %v5737
        %5766 = vst [vmem:[%s1844 + $0x2c] sm:$0xf] %v5738
        %5767 = vst [vmem:[%s1844 + $0x30] sm:$0xf] %v5739
        %5768 = vst [vmem:[%s1844 + $0x34] sm:$0xf] %v5740
        %s5769 = sand.u32 %s114, 1
        %s5770 = sand.u32 %s114, 1
        %s5771 = smul.addr %s5770, 56
        %s5772 = scalar_lea.vmem [#allocation3], %s5771
        // Predicated region
        $region74: #{headnet_forward.3} parent=68 // pred_check
          %p5773 = pneg %p124
        $region75: #{headnet_forward.3} parent=68 // pred_check_branch
          %5775 = sbr.rel (%p5773) target = $region77
        $region76: #{headnet_forward.3} parent=68 // pred_region
          %s5776 = smul.u32 14, %s18
          %s5777 = smul.addr %s5776, 2
          %s5778 = sadd.s32 %s19, %s5777
          %s5779 = smul.addr %s5778, 4
          %s5780 = scalar_lea.vmem %s3, %s5779
          // Predicated region
          $region78: #{headnet_forward.3} parent=76 // pred_check
            _
          $region79: #{headnet_forward.3} parent=76 // pred_check_branch
            %5782 = sbr.rel (0) target = $region81
          $region80: #{headnet_forward.3} parent=76 // pred_region
            // Predicated region
            $region82: #{headnet_forward.3} parent=80 // pred_check
              _
            $region83: #{headnet_forward.3} parent=80 // pred_check_branch
              %5784 = sbr.rel target = $region85
            $region84: #{headnet_forward.3} parent=80 // pred_region
              // Predicated region
              $region97: #{headnet_forward.3} parent=84 // pred_check
                _
              $region98: #{headnet_forward.3} parent=84 // pred_check_branch
                %5825 = sbr.rel (0) target = $region100
              $region99: #{headnet_forward.3} parent=84 // pred_region
                loop: start=0, step=1, limit=1
                $region101: #{headnet_forward.3} parent=99 // loop_pre_header
                  _
                $region102: #{headnet_forward.3} parent=99 // loop_header
                  %s5827 = sphi 0, %s5831
                  %p5828 = scmp.ge.s32.totalorder %s5827, 1
                  %s5832 = sphi %s5772, %s5772
                  %s5833 = sphi %s5780, %s5780
                $region103: #{headnet_forward.3} parent=99 // loop_header_branch
                  %5830 = sbr.rel (%p5828) target = $region107
                $region104: #{headnet_forward.3} parent=99 // loop_body
                  _
                $region105: #{headnet_forward.3} parent=99 // loop_footer
                  %s5831 = sadd.s32 1, %s5827
                $region106: #{headnet_forward.3} parent=99 // loop_footer_branch
                  %5826 = sbr.rel target = $region102
                $region107: #{headnet_forward.3} parent=99 // loop_exit
                  _
                loop: start=0, step=1, limit=1
                $region108: #{headnet_forward.3} parent=99 // loop_pre_header
                  _
                $region109: #{headnet_forward.3} parent=99 // loop_header
                  %s5836 = sphi 0, %s5840
                  %p5837 = scmp.ge.s32.totalorder %s5836, 1
                  %s5841 = sphi %s5772, %s5772
                  %s5842 = sphi %s5780, %s5780
                $region110: #{headnet_forward.3} parent=99 // loop_header_branch
                  %5839 = sbr.rel (%p5837) target = $region114
                $region111: #{headnet_forward.3} parent=99 // loop_body
                  %v5843 = vld [vmem:[%s5841] sm:$0xf]
                  %5844 = vst [vmem:[%s5842] sm:$0xf] %v5843
                  %v5845 = vld [vmem:[%s5841 + $0x4] sm:$0xf]
                  %5846 = vst [vmem:[%s5842 + $0x8] sm:$0xf] %v5845
                  %v5847 = vld [vmem:[%s5841 + $0x8] sm:$0xf]
                  %5848 = vst [vmem:[%s5842 + $0x10] sm:$0xf] %v5847
                  %v5849 = vld [vmem:[%s5841 + $0xc] sm:$0xf]
                  %5850 = vst [vmem:[%s5842 + $0x18] sm:$0xf] %v5849
                  %v5851 = vld [vmem:[%s5841 + $0x10] sm:$0xf]
                  %5852 = vst [vmem:[%s5842 + $0x20] sm:$0xf] %v5851
                  %v5853 = vld [vmem:[%s5841 + $0x14] sm:$0xf]
                  %5854 = vst [vmem:[%s5842 + $0x28] sm:$0xf] %v5853
                  %v5855 = vld [vmem:[%s5841 + $0x18] sm:$0xf]
                  %5856 = vst [vmem:[%s5842 + $0x30] sm:$0xf] %v5855
                  %v5857 = vld [vmem:[%s5841 + $0x1c] sm:$0xf]
                  %5858 = vst [vmem:[%s5842 + $0x38] sm:$0xf] %v5857
                  %v5859 = vld [vmem:[%s5841 + $0x20] sm:$0xf]
                  %5860 = vst [vmem:[%s5842 + $0x40] sm:$0xf] %v5859
                  %v5861 = vld [vmem:[%s5841 + $0x24] sm:$0xf]
                  %5862 = vst [vmem:[%s5842 + $0x48] sm:$0xf] %v5861
                  %v5863 = vld [vmem:[%s5841 + $0x28] sm:$0xf]
                  %5864 = vst [vmem:[%s5842 + $0x50] sm:$0xf] %v5863
                  %v5865 = vld [vmem:[%s5841 + $0x2c] sm:$0xf]
                  %5866 = vst [vmem:[%s5842 + $0x58] sm:$0xf] %v5865
                  %v5867 = vld [vmem:[%s5841 + $0x30] sm:$0xf]
                  %5868 = vst [vmem:[%s5842 + $0x60] sm:$0xf] %v5867
                  %v5869 = vld [vmem:[%s5841 + $0x34] sm:$0xf]
                  %5870 = vst [vmem:[%s5842 + $0x68] sm:$0xf] %v5869
                $region112: #{headnet_forward.3} parent=99 // loop_footer
                  %s5840 = sadd.s32 1, %s5836
                $region113: #{headnet_forward.3} parent=99 // loop_footer_branch
                  %5835 = sbr.rel target = $region109
                $region114: #{headnet_forward.3} parent=99 // loop_exit
                  _
              $region100: #{headnet_forward.3} parent=84 // pred_fallthru
                _
            $region85: #{headnet_forward.3} parent=80 // pred_fallthru
              _
            // Predicated region
            $region86: #{headnet_forward.3} parent=80 // pred_check
              _
            $region87: #{headnet_forward.3} parent=80 // pred_check_branch
              %5786 = sbr.rel (0) target = $region89
            $region88: #{headnet_forward.3} parent=80 // pred_region
              loop: start=0, step=1, limit=1
              $region90: #{headnet_forward.3} parent=88 // loop_pre_header
                _
              $region91: #{headnet_forward.3} parent=88 // loop_header
                %s5789 = sphi 0, %s5793
                %p5790 = scmp.ge.s32.totalorder %s5789, 1
                %s5794 = sphi %s5772, %s5772
                %s5795 = sphi %s5780, %s5780
              $region92: #{headnet_forward.3} parent=88 // loop_header_branch
                %5792 = sbr.rel (%p5790) target = $region96
              $region93: #{headnet_forward.3} parent=88 // loop_body
                %v5796 = vld [vmem:[%s5794] sm:$0xf]
                %5797 = vst [vmem:[%s5795] sm:$0xf] %v5796
                %v5798 = vld [vmem:[%s5794 + $0x4] sm:$0xf]
                %5799 = vst [vmem:[%s5795 + $0x8] sm:$0xf] %v5798
                %v5800 = vld [vmem:[%s5794 + $0x8] sm:$0xf]
                %5801 = vst [vmem:[%s5795 + $0x10] sm:$0xf] %v5800
                %v5802 = vld [vmem:[%s5794 + $0xc] sm:$0xf]
                %5803 = vst [vmem:[%s5795 + $0x18] sm:$0xf] %v5802
                %v5804 = vld [vmem:[%s5794 + $0x10] sm:$0xf]
                %5805 = vst [vmem:[%s5795 + $0x20] sm:$0xf] %v5804
                %v5806 = vld [vmem:[%s5794 + $0x14] sm:$0xf]
                %5807 = vst [vmem:[%s5795 + $0x28] sm:$0xf] %v5806
                %v5808 = vld [vmem:[%s5794 + $0x18] sm:$0xf]
                %5809 = vst [vmem:[%s5795 + $0x30] sm:$0xf] %v5808
                %v5810 = vld [vmem:[%s5794 + $0x1c] sm:$0xf]
                %5811 = vst [vmem:[%s5795 + $0x38] sm:$0xf] %v5810
                %v5812 = vld [vmem:[%s5794 + $0x20] sm:$0xf]
                %5813 = vst [vmem:[%s5795 + $0x40] sm:$0xf] %v5812
                %v5814 = vld [vmem:[%s5794 + $0x24] sm:$0xf]
                %5815 = vst [vmem:[%s5795 + $0x48] sm:$0xf] %v5814
                %v5816 = vld [vmem:[%s5794 + $0x28] sm:$0xf]
                %5817 = vst [vmem:[%s5795 + $0x50] sm:$0xf] %v5816
                %v5818 = vld [vmem:[%s5794 + $0x2c] sm:$0xf]
                %5819 = vst [vmem:[%s5795 + $0x58] sm:$0xf] %v5818
                %v5820 = vld [vmem:[%s5794 + $0x30] sm:$0xf]
                %5821 = vst [vmem:[%s5795 + $0x60] sm:$0xf] %v5820
                %v5822 = vld [vmem:[%s5794 + $0x34] sm:$0xf]
                %5823 = vst [vmem:[%s5795 + $0x68] sm:$0xf] %v5822
              $region94: #{headnet_forward.3} parent=88 // loop_footer
                %s5793 = sadd.s32 1, %s5789
              $region95: #{headnet_forward.3} parent=88 // loop_footer_branch
                %5788 = sbr.rel target = $region91
              $region96: #{headnet_forward.3} parent=88 // loop_exit
                _
            $region89: #{headnet_forward.3} parent=80 // pred_fallthru
              _
          $region81: #{headnet_forward.3} parent=76 // pred_fallthru
            _
          %5871 = vnop
        $region77: #{headnet_forward.3} parent=68 // pred_fallthru
          _
      $region69: #{headnet_forward.3} parent=5 // pred_fallthru
        _
      %p5872 = scmp.le.s32.totalorder 2, %s9
      // Predicated region
      $region115: #{headnet_forward.3} parent=5 // pred_check
        %p5873 = pneg %p5872
      $region116: #{headnet_forward.3} parent=5 // pred_check_branch
        %5875 = sbr.rel (%p5873) target = $region118
      $region117: #{headnet_forward.3} parent=5 // pred_region
        %s5876 = ssub.s32 %s9, 2
        // Predicated region
        $region119: #{headnet_forward.3} parent=117 // pred_check
          %p5877 = pneg %p130
        $region120: #{headnet_forward.3} parent=117 // pred_check_branch
          %5879 = sbr.rel (%p5877) target = $region122
        $region121: #{headnet_forward.3} parent=117 // pred_region
          %s5880 = sand.u32 %s115, 1
          %s5881 = sand.u32 %s115, 1
          %s5882 = smul.addr %s5881, 56
          %s5883 = scalar_lea.vmem [#allocation3], %s5882
        $region122: #{headnet_forward.3} parent=117 // pred_fallthru
          _
      $region118: #{headnet_forward.3} parent=5 // pred_fallthru
        _
    $region6: #{headnet_forward.3} parent=1 // loop_footer
      %s13 = sadd.s32 1, %s9
    $region7: #{headnet_forward.3} parent=1 // loop_footer_branch
      %8 = sbr.rel target = $region3
    $region8: #{headnet_forward.3} parent=1 // loop_exit
      _

</llo_original>
